<compile_context>
chip_gen: v5e
topology: v5e:2x2
jax: 0.10.0
libtpu: 0.0.40
codegen_flags: <defaults>
</compile_context>

<pallas_src>
import functools

import jax
import jax.numpy as jnp
from jax.experimental import pallas as pl
from jax.experimental.pallas import tpu as pltpu

GN_EPS = 1e-5
# TODO(synk): StdConvPt's exact eps / unbiased-variance convention is unverified
# in the reference; using biased variance with eps=1e-5 (matches flax octo).
WS_EPS = 1e-5
GN_GROUPS = 32
VMEM_LIMIT = 32 * 1024 * 1024


# ------------------------------ kernel helpers ------------------------------

def _gn_apply(y, g, b, ocg, ogc, *, eps, group_size):
    """GroupNorm on y: (P, C) f32 using precomputed one-hot group matrices."""
    rows = y.shape[0]
    denom = float(rows * group_size)
    sum_g = jnp.dot(jnp.sum(y, axis=0, keepdims=True), ocg,
                    preferred_element_type=jnp.float32)                  # (1, G)
    mean_c = jnp.dot(sum_g, ogc, preferred_element_type=jnp.float32) / denom
    d = y - mean_c
    var_g = jnp.dot(jnp.sum(d * d, axis=0, keepdims=True), ocg,
                    preferred_element_type=jnp.float32) / denom          # (1, G)
    inv_c = jnp.dot(jax.lax.rsqrt(var_g + eps), ogc,
                    preferred_element_type=jnp.float32)                  # (1, C)
    return d * inv_c * g + b


# ------------------------------ Pallas kernels ------------------------------

def _conv1x1_gn_kernel(x_ref, w_ref, g_ref, b_ref, ocg_ref, ogc_ref, o_ref,
                       *, eps, relu, group_size):
    # 1x1 StdConv (pre-standardized weights) + GroupNorm (+ReLU), one image.
    y = jnp.dot(x_ref[0].astype(jnp.bfloat16), w_ref[...],
                preferred_element_type=jnp.float32)                      # (P, Cout)
    out = _gn_apply(y, g_ref[...], b_ref[...], ocg_ref[...], ogc_ref[...],
                    eps=eps, group_size=group_size)
    if relu:
        out = jnp.maximum(out, 0.0)
    o_ref[0] = out.astype(o_ref.dtype)


def _conv1x1_gn_res_kernel(x_ref, w_ref, g_ref, b_ref, ocg_ref, ogc_ref, r_ref,
                           o_ref, *, eps, relu, group_size):
    # 1x1 StdConv + GroupNorm + residual add (+ReLU): relu(residual + gn(conv(x)))
    y = jnp.dot(x_ref[0].astype(jnp.bfloat16), w_ref[...],
                preferred_element_type=jnp.float32)
    out = _gn_apply(y, g_ref[...], b_ref[...], ocg_ref[...], ogc_ref[...],
                    eps=eps, group_size=group_size)
    out = out + r_ref[0].astype(jnp.float32)
    if relu:
        out = jnp.maximum(out, 0.0)
    o_ref[0] = out.astype(o_ref.dtype)


def _conv3x3_gn_kernel(xp_ref, w_ref, g_ref, b_ref, ocg_ref, ogc_ref, o_ref,
                       *, eps, relu, group_size, stride, out_h, out_w,
                       plane_rows):
    # 3x3 StdConv (stride s, pad 1) folded in-kernel: 9 taps, each a static
    # window slice of the padded parity-plane map, accumulated in f32 -> GN(+ReLU).
    s = stride
    OH, OW = out_h, out_w
    cin = w_ref.shape[1]
    acc = None
    for dh in range(3):
        for dw in range(3):
            plane = (dh % s) * s + (dw % s)
            row0 = plane * plane_rows + dh // s
            col0 = dw // s
            xt = xp_ref[0, pl.ds(row0, OH), pl.ds(col0, OW), :]          # (OH, OW, Cin)
            xt = xt.reshape(OH * OW, cin).astype(jnp.bfloat16)
            t = jnp.dot(xt, w_ref[dh * 3 + dw],
                        preferred_element_type=jnp.float32)
            acc = t if acc is None else acc + t
    out = _gn_apply(acc, g_ref[...], b_ref[...], ocg_ref[...], ogc_ref[...],
                    eps=eps, group_size=group_size)
    if relu:
        out = jnp.maximum(out, 0.0)
    o_ref[0] = out.astype(o_ref.dtype)


# ------------------------------ Pallas wrappers -----------------------------

def conv1x1_gn(x_npc, cp, *, relu, residual=None, out_dtype=jnp.bfloat16):
    """Fused 1x1 StdConv + GroupNorm (+residual) (+ReLU).  x_npc: (N, P, Cin)."""
    N, P, Cin = x_npc.shape
    Cout = cp["w"].shape[-1]
    G = GN_GROUPS
    in_specs = [
        pl.BlockSpec((1, P, Cin), lambda n: (n, 0, 0)),
        pl.BlockSpec((Cin, Cout), lambda n: (0, 0)),
        pl.BlockSpec((1, Cout), lambda n: (0, 0)),
        pl.BlockSpec((1, Cout), lambda n: (0, 0)),
        pl.BlockSpec((Cout, G), lambda n: (0, 0)),
        pl.BlockSpec((G, Cout), lambda n: (0, 0)),
    ]
    args = [x_npc, cp["w"], cp["gamma"], cp["beta"], cp["ocg"], cp["ogc"]]
    if residual is None:
        kern = functools.partial(_conv1x1_gn_kernel, eps=GN_EPS, relu=relu,
                                 group_size=Cout // G)
    else:
        in_specs.append(pl.BlockSpec((1, P, Cout), lambda n: (n, 0, 0)))
        args.append(residual)
        kern = functools.partial(_conv1x1_gn_res_kernel, eps=GN_EPS, relu=relu,
                                 group_size=Cout // G)
    return pl.pallas_call(
        kern,
        out_shape=jax.ShapeDtypeStruct((N, P, Cout), out_dtype),
        grid=(N,),
        in_specs=in_specs,
        out_specs=pl.BlockSpec((1, P, Cout), lambda n: (n, 0, 0)),
        compiler_params=pltpu.CompilerParams(
            dimension_semantics=("parallel",),
            vmem_limit_bytes=VMEM_LIMIT),
    )(*args)


def conv3x3_gn(x_nhwc, cp, *, stride, relu, out_dtype=jnp.bfloat16):
    """Fused 3x3 StdConv (stride s, pad 1) + GroupNorm (+ReLU). x_nhwc: (N,H,W,C)."""
    N, H, W, Cin = x_nhwc.shape
    s = stride
    Hp, Wp = H + 2, W + 2
    OH = (Hp - 3) // s + 1
    OW = (Wp - 3) // s + 1
    Hq = -(-Hp // s)
    Wq = -(-Wp // s)
    # Zero-pad (conv padding=1 plus alignment so every parity plane has the same
    # shape), then split into s*s parity planes so every tap becomes a
    # unit-stride window:  plane[(dh%s)*s+dw%s][oh+dh//s, ow+dw//s, :]
    #                      == xpad[s*oh+dh, s*ow+dw, :]
    # Total bytes == input bytes: no im2col blow-up, just a cheap reshuffle.
    xpad = jnp.pad(x_nhwc.astype(jnp.float32),
                   ((0, 0), (1, 1 + s * Hq - Hp), (1, 1 + s * Wq - Wp), (0, 0)))
    planes = jnp.concatenate(
        [xpad[:, a::s, b::s, :] for a in range(s) for b in range(s)],
        axis=1)                                             # (N, s*s*Hq, Wq, Cin)
    Cout = cp["w"].shape[-1]
    G = GN_GROUPS
    kern = functools.partial(_conv3x3_gn_kernel, eps=GN_EPS, relu=relu,
                             group_size=Cout // G, stride=s,
                             out_h=OH, out_w=OW, plane_rows=Hq)
    return pl.pallas_call(
        kern,
        out_shape=jax.ShapeDtypeStruct((N, OH * OW, Cout), out_dtype),
        grid=(N,),
        in_specs=[
            pl.BlockSpec((1, s * s * Hq, Wq, Cin), lambda n: (n, 0, 0, 0)),
            pl.BlockSpec((9, Cin, Cout), lambda n: (0, 0, 0)),
            pl.BlockSpec((1, Cout), lambda n: (0, 0)),
            pl.BlockSpec((1, Cout), lambda n: (0, 0)),
            pl.BlockSpec((Cout, G), lambda n: (0, 0)),
            pl.BlockSpec((G, Cout), lambda n: (0, 0)),
        ],
        out_specs=pl.BlockSpec((1, OH * OW, Cout), lambda n: (n, 0, 0)),
        compiler_params=pltpu.CompilerParams(
            dimension_semantics=("parallel",),
            vmem_limit_bytes=VMEM_LIMIT),
    )(planes, cp["w"], cp["gamma"], cp["beta"], cp["ocg"], cp["ogc"])


# ---------------------------- model building blocks -------------------------

def residual_unit_forward(x_nhwc, pb):
    """Bottleneck ResidualUnit: relu(residual + gn3(conv3(relu(gn2(conv2(relu(gn1(conv1(x)))))))))."""
    N, H, W, Cin = x_nhwc.shape
    s = pb["stride"]
    OH = (H - 1) // s + 1
    OW = (W - 1) // s + 1
    F4 = pb["c3"]["w"].shape[-1]
    Fm = pb["c1"]["w"].shape[-1]
    # Residual branch (identity or fused proj-conv + GroupNorm, no ReLU).
    if "proj" in pb:
        xs = x_nhwc[:, ::s, ::s, :]
        residual = conv1x1_gn(xs.reshape(N, OH * OW, Cin), pb["proj"], relu=False)
    else:
        residual = x_nhwc.reshape(N, H * W, Cin)
    # Main branch (each call is one fused Pallas kernel).
    y = conv1x1_gn(x_nhwc.reshape(N, H * W, Cin), pb["c1"], relu=True,
                   out_dtype=jnp.float32)                  # feeds the 3x3 conv
    y = conv3x3_gn(y.reshape(N, H, W, Fm), pb["c2"], stride=s, relu=True)
    y = conv1x1_gn(y, pb["c3"], relu=True, residual=residual)
    return y.reshape(N, OH, OW, F4)


def resnet_stage_forward(x_nchw, prep_blocks):
    # NCHW -> NHWC (channels on the 128-wide lane dim); bf16 activations
    # between kernels, f32 math inside the kernels.
    x = jnp.transpose(x_nchw, (0, 2, 3, 1)).astype(jnp.bfloat16)
    for pb in prep_blocks:
        x = residual_unit_forward(x, pb)
    return jnp.transpose(x.astype(jnp.float32), (0, 3, 1, 2))   # back to NCHW


# ---------------------- one-time constant preprocessing ----------------------

def _standardize_weight(w, eps=WS_EPS):
    # Per-output-channel weight standardization (StdConvPt), biased variance.
    m = jnp.mean(w, axis=(1, 2, 3), keepdims=True)
    d = w - m
    v = jnp.mean(d * d, axis=(1, 2, 3), keepdims=True)
    return d * jax.lax.rsqrt(v + eps)


def _group_onehots(c, g=GN_GROUPS):
    cg = c // g
    grp = jnp.arange(c) // cg
    ocg = (grp[:, None] == jnp.arange(g)[None, :]).astype(jnp.float32)   # (C, G)
    return ocg, jnp.transpose(ocg)                                        # (G, C)


def _prep_conv(w, gn):
    cout, cin, kh, kw = w.shape
    ws = _standardize_weight(w)
    if kh == 1 and kw == 1:
        wmat = jnp.transpose(ws[:, :, 0, 0]).astype(jnp.bfloat16)         # (Cin, Cout)
    else:
        wmat = jnp.transpose(ws, (2, 3, 1, 0)).reshape(
            kh * kw, cin, cout).astype(jnp.bfloat16)                      # (9, Cin, Cout)
    ocg, ogc = _group_onehots(cout)
    return {"w": wmat,
            "gamma": gn["gamma"].reshape(1, cout).astype(jnp.float32),
            "beta": gn["beta"].reshape(1, cout).astype(jnp.float32),
            "ocg": ocg, "ogc": ogc}


def prepare_stage(raw_blocks):
    # Hoisted out of the forward pass (params are constant): weight
    # standardization, MXU-friendly bf16 weight layout, GN one-hot matrices.
    prep = []
    for bp in raw_blocks:
        pb = {"stride": bp["strides"][0],
              "c1": _prep_conv(bp["conv1"], bp["gn1"]),
              "c2": _prep_conv(bp["conv2"], bp["gn2"]),
              "c3": _prep_conv(bp["conv3"], bp["gn3"])}
        if "proj_conv" in bp:
            pb["proj"] = _prep_conv(bp["proj_conv"], bp["proj_gn"])
        prep.append(pb)
    return prep


# ------------------------------ parameter init ------------------------------

def _init_conv(key, cout, cin, k):
    scale = 1.0 / float(cin * k * k) ** 0.5
    return scale * jax.random.normal(key, (cout, cin, k, k), jnp.float32)


def _init_gn(key, c):
    k1, k2 = jax.random.split(key)
    return {"gamma": 1.0 + 0.1 * jax.random.normal(k1, (c,), jnp.float32),
            "beta": 0.1 * jax.random.normal(k2, (c,), jnp.float32)}


def build_resnet_stage_params(key, in_features, nout, block_size, first_stride):
    blocks = []
    keys = iter(jax.random.split(key, 8 * block_size + 4))
    for i in range(block_size):
        cin = in_features if i == 0 else nout * 4
        strides = first_stride if i == 0 else (1, 1)
        bp = {
            "strides": strides,
            "conv1": _init_conv(next(keys), nout, cin, 1),
            "gn1": _init_gn(next(keys), nout),
            "conv2": _init_conv(next(keys), nout, nout, 3),
            "gn2": _init_gn(next(keys), nout),
            "conv3": _init_conv(next(keys), nout * 4, nout, 1),
            "gn3": _init_gn(next(keys), nout * 4),
        }
        if cin != nout * 4 or strides != (1, 1):
            bp["proj_conv"] = _init_conv(next(keys), nout * 4, cin, 1)
            bp["proj_gn"] = _init_gn(next(keys), nout * 4)
        blocks.append(bp)
    return blocks


# --------------------------- pure-JAX reference ------------------------------

def _ref_stdconv(x_nhwc, w_oihw, *, stride, padding):
    ws = _standardize_weight(w_oihw)
    w_hwio = jnp.transpose(ws, (2, 3, 1, 0))
    return jax.lax.conv_general_dilated(
        x_nhwc, w_hwio, window_strides=(stride, stride),
        padding=((padding, padding), (padding, padding)),
        dimension_numbers=("NHWC", "HWIO", "NHWC"))


def _ref_groupnorm(x_nhwc, gn, *, groups=GN_GROUPS, eps=GN_EPS):
    N, H, W, C = x_nhwc.shape
    xg = x_nhwc.reshape(N, H, W, groups, C // groups)
    m = jnp.mean(xg, axis=(1, 2, 4), keepdims=True)
    v = jnp.mean((xg - m) ** 2, axis=(1, 2, 4), keepdims=True)
    xn = ((xg - m) * jax.lax.rsqrt(v + eps)).reshape(N, H, W, C)
    return xn * gn["gamma"].reshape(1, 1, 1, C) + gn["beta"].reshape(1, 1, 1, C)


def reference_stage_forward(x_nchw, raw_blocks):
    x = jnp.transpose(x_nchw, (0, 2, 3, 1))
    for bp in raw_blocks:
        s = bp["strides"][0]
        if "proj_conv" in bp:
            r = _ref_groupnorm(
                _ref_stdconv(x, bp["proj_conv"], stride=s, padding=0),
                bp["proj_gn"])
        else:
            r = x
        y = jax.nn.relu(_ref_groupnorm(
            _ref_stdconv(x, bp["conv1"], stride=1, padding=0), bp["gn1"]))
        y = jax.nn.relu(_ref_groupnorm(
            _ref_stdconv(y, bp["conv2"], stride=s, padding=1), bp["gn2"]))
        y = _ref_groupnorm(
            _ref_stdconv(y, bp["conv3"], stride=1, padding=0), bp["gn3"])
        x = jax.nn.relu(r + y)
    return jnp.transpose(x, (0, 3, 1, 2))


# ---------------------------------- main -------------------------------------

if __name__ == "__main__":
    key = jax.random.PRNGKey(0)
    kp, kx = jax.random.split(key)
    # ResNetStage(in_features=64, nout=64, block_size=2, first_stride=(2, 2)):
    # block 0 has a strided projection shortcut, block 1 is identity-residual.
    in_features, nout, block_size, first_stride = 64, 64, 2, (2, 2)
    raw = build_resnet_stage_params(kp, in_features, nout, block_size, first_stride)
    prep = prepare_stage(raw)
    x = jax.random.normal(kx, (2, in_features, 16, 16), jnp.float32)

    fwd = jax.jit(lambda o: resnet_stage_forward(o, prep))
    out = jax.block_until_ready(fwd(x))
    assert out.shape == (2, nout * 4, 8, 8), out.shape

    # Loose-tolerance correctness check vs an f32 XLA reference (kernel uses
    # bf16 activations / MXU operands with f32 accumulation).
    ref = jax.block_until_ready(jax.jit(lambda o: reference_stage_forward(o, raw))(x))
    err = float(jnp.max(jnp.abs(out - ref)))
    scale = float(jnp.max(jnp.abs(ref)))
    assert err <= 0.05 * scale + 0.1, ("mismatch vs reference", err, scale)

    print("KERNEL_OK")
</pallas_src>

<mosaic_0001>
module attributes {stable_mosaic.version = 11 : i64} {
  func.func @_conv1x1_gn_kernel(%arg0: i32, %arg1: memref<1x256x64xbf16, #tpu.memory_space<vmem>>, %arg2: memref<64x64xbf16, #tpu.memory_space<vmem>>, %arg3: memref<1x64xf32, #tpu.memory_space<vmem>>, %arg4: memref<1x64xf32, #tpu.memory_space<vmem>>, %arg5: memref<64x32xf32, #tpu.memory_space<vmem>>, %arg6: memref<32x64xf32, #tpu.memory_space<vmem>>, %arg7: memref<1x256x64xf32, #tpu.memory_space<vmem>>) attributes {dimension_semantics = [#tpu.dimension_semantics<parallel>], iteration_bounds = array<i64: 2>, scalar_prefetch = 0 : i64, scratch_operands = 0 : i64, tpu.core_type = #tpu.core_type<tc>, window_params = [{transform_indices = @transform_0, window_bounds = array<i64: 1, 256, 64>}, {pipeline_mode = #tpu.pipeline_mode<synchronous>, transform_indices = @transform_1, window_bounds = array<i64: 64, 64>}, {pipeline_mode = #tpu.pipeline_mode<synchronous>, transform_indices = @transform_2, window_bounds = array<i64: 1, 64>}, {pipeline_mode = #tpu.pipeline_mode<synchronous>, transform_indices = @transform_3, window_bounds = array<i64: 1, 64>}, {pipeline_mode = #tpu.pipeline_mode<synchronous>, transform_indices = @transform_4, window_bounds = array<i64: 64, 32>}, {pipeline_mode = #tpu.pipeline_mode<synchronous>, transform_indices = @transform_5, window_bounds = array<i64: 32, 64>}, {transform_indices = @transform_6, window_bounds = array<i64: 1, 256, 64>}]} {
    %c0 = arith.constant 0 : index
    %c0_0 = arith.constant 0 : index
    %c0_1 = arith.constant 0 : index
    %0 = vector.load %arg1[%c0, %c0_0, %c0_1] : memref<1x256x64xbf16, #tpu.memory_space<vmem>>, vector<1x256x64xbf16>
    %1 = vector.shape_cast %0 : vector<1x256x64xbf16> to vector<256x64xbf16>
    %c0_2 = arith.constant 0 : index
    %c0_3 = arith.constant 0 : index
    %2 = vector.load %arg2[%c0_2, %c0_3] : memref<64x64xbf16, #tpu.memory_space<vmem>>, vector<64x64xbf16>
    %cst = arith.constant dense<0.000000e+00> : vector<256x64xf32>
    %3 = tpu.matmul %1, %2, %cst {dimension_numbers = #tpu.dot_dimension_numbers<[1], [0], [0], [1], [0, 0, 1, 1], [], []>} : vector<256x64xbf16>, vector<64x64xbf16>, vector<256x64xf32> -> vector<256x64xf32>
    %c0_4 = arith.constant 0 : index
    %c0_5 = arith.constant 0 : index
    %4 = vector.load %arg3[%c0_4, %c0_5] : memref<1x64xf32, #tpu.memory_space<vmem>>, vector<1x64xf32>
    %c0_6 = arith.constant 0 : index
    %c0_7 = arith.constant 0 : index
    %5 = vector.load %arg4[%c0_6, %c0_7] : memref<1x64xf32, #tpu.memory_space<vmem>>, vector<1x64xf32>
    %c0_8 = arith.constant 0 : index
    %c0_9 = arith.constant 0 : index
    %6 = vector.load %arg5[%c0_8, %c0_9] : memref<64x32xf32, #tpu.memory_space<vmem>>, vector<64x32xf32>
    %c0_10 = arith.constant 0 : index
    %c0_11 = arith.constant 0 : index
    %7 = vector.load %arg6[%c0_10, %c0_11] : memref<32x64xf32, #tpu.memory_space<vmem>>, vector<32x64xf32>
    %cst_12 = arith.constant dense<0.000000e+00> : vector<64xf32>
    %8 = vector.multi_reduction <add>, %3, %cst_12 [0] : vector<256x64xf32> to vector<64xf32>
    %9 = vector.shape_cast %8 : vector<64xf32> to vector<1x64xf32>
    %cst_13 = arith.constant dense<0.000000e+00> : vector<1x32xf32>
    %10 = tpu.matmul %9, %6, %cst_13 {dimension_numbers = #tpu.dot_dimension_numbers<[1], [0], [0], [1], [0, 0, 1, 1], [], []>} : vector<1x64xf32>, vector<64x32xf32>, vector<1x32xf32> -> vector<1x32xf32>
    %cst_14 = arith.constant dense<0.000000e+00> : vector<1x64xf32>
    %11 = tpu.matmul %10, %7, %cst_14 {dimension_numbers = #tpu.dot_dimension_numbers<[1], [0], [0], [1], [0, 0, 1, 1], [], []>} : vector<1x32xf32>, vector<32x64xf32>, vector<1x64xf32> -> vector<1x64xf32>
    %cst_15 = arith.constant 5.120000e+02 : f32
    %12 = vector.broadcast %cst_15 : f32 to vector<1x64xf32>
    %13 = arith.divf %11, %12 : vector<1x64xf32>
    %14 = vector.broadcast %13 : vector<1x64xf32> to vector<256x64xf32>
    %15 = arith.subf %3, %14 : vector<256x64xf32>
    %16 = arith.mulf %15, %15 : vector<256x64xf32>
    %cst_16 = arith.constant dense<0.000000e+00> : vector<64xf32>
    %17 = vector.multi_reduction <add>, %16, %cst_16 [0] : vector<256x64xf32> to vector<64xf32>
    %18 = vector.shape_cast %17 : vector<64xf32> to vector<1x64xf32>
    %cst_17 = arith.constant dense<0.000000e+00> : vector<1x32xf32>
    %19 = tpu.matmul %18, %6, %cst_17 {dimension_numbers = #tpu.dot_dimension_numbers<[1], [0], [0], [1], [0, 0, 1, 1], [], []>} : vector<1x64xf32>, vector<64x32xf32>, vector<1x32xf32> -> vector<1x32xf32>
    %cst_18 = arith.constant 5.120000e+02 : f32
    %20 = vector.broadcast %cst_18 : f32 to vector<1x32xf32>
    %21 = arith.divf %19, %20 : vector<1x32xf32>
    %cst_19 = arith.constant 9.99999974E-6 : f32
    %22 = vector.broadcast %cst_19 : f32 to vector<1x32xf32>
    %23 = arith.addf %21, %22 : vector<1x32xf32>
    %24 = math.rsqrt %23 : vector<1x32xf32>
    %cst_20 = arith.constant dense<0.000000e+00> : vector<1x64xf32>
    %25 = tpu.matmul %24, %7, %cst_20 {dimension_numbers = #tpu.dot_dimension_numbers<[1], [0], [0], [1], [0, 0, 1, 1], [], []>} : vector<1x32xf32>, vector<32x64xf32>, vector<1x64xf32> -> vector<1x64xf32>
    %26 = vector.broadcast %25 : vector<1x64xf32> to vector<256x64xf32>
    %27 = arith.mulf %15, %26 : vector<256x64xf32>
    %28 = vector.broadcast %4 : vector<1x64xf32> to vector<256x64xf32>
    %29 = arith.mulf %27, %28 : vector<256x64xf32>
    %30 = vector.broadcast %5 : vector<1x64xf32> to vector<256x64xf32>
    %31 = arith.addf %29, %30 : vector<256x64xf32>
    %cst_21 = arith.constant 0.000000e+00 : f32
    %32 = vector.broadcast %cst_21 : f32 to vector<256x64xf32>
    %33 = arith.maximumf %31, %32 : vector<256x64xf32>
    %c0_22 = arith.constant 0 : index
    %c0_23 = arith.constant 0 : index
    %c0_24 = arith.constant 0 : index
    %34 = vector.load %arg7[%c0_22, %c0_23, %c0_24] : memref<1x256x64xf32, #tpu.memory_space<vmem>>, vector<1x256x64xf32>
    %35 = vector.shape_cast %34 : vector<1x256x64xf32> to vector<256x64xf32>
    %36 = vector.shape_cast %33 : vector<256x64xf32> to vector<1x256x64xf32>
    tpu.vector_store %arg7[%c0_22, %c0_23, %c0_24], %36 {strides = array<i32>} : memref<1x256x64xf32, #tpu.memory_space<vmem>>, vector<1x256x64xf32>,
    return
  }
  func.func @transform_0(%arg0: i32) -> (i32, i32, i32) {
    %c0_i32 = arith.constant 0 : i32
    %c0_i32_0 = arith.constant 0 : i32
    %c0_i32_1 = arith.constant 0 : i32
    return %arg0, %c0_i32, %c0_i32_0 : i32, i32, i32
  }
  func.func @transform_1(%arg0: i32) -> (i32, i32) {
    %c0_i32 = arith.constant 0 : i32
    %c0_i32_0 = arith.constant 0 : i32
    %c0_i32_1 = arith.constant 0 : i32
    return %c0_i32, %c0_i32_0 : i32, i32
  }
  func.func @transform_2(%arg0: i32) -> (i32, i32) {
    %c0_i32 = arith.constant 0 : i32
    %c0_i32_0 = arith.constant 0 : i32
    %c0_i32_1 = arith.constant 0 : i32
    return %c0_i32, %c0_i32_0 : i32, i32
  }
  func.func @transform_3(%arg0: i32) -> (i32, i32) {
    %c0_i32 = arith.constant 0 : i32
    %c0_i32_0 = arith.constant 0 : i32
    %c0_i32_1 = arith.constant 0 : i32
    return %c0_i32, %c0_i32_0 : i32, i32
  }
  func.func @transform_4(%arg0: i32) -> (i32, i32) {
    %c0_i32 = arith.constant 0 : i32
    %c0_i32_0 = arith.constant 0 : i32
    %c0_i32_1 = arith.constant 0 : i32
    return %c0_i32, %c0_i32_0 : i32, i32
  }
  func.func @transform_5(%arg0: i32) -> (i32, i32) {
    %c0_i32 = arith.constant 0 : i32
    %c0_i32_0 = arith.constant 0 : i32
    %c0_i32_1 = arith.constant 0 : i32
    return %c0_i32, %c0_i32_0 : i32, i32
  }
  func.func @transform_6(%arg0: i32) -> (i32, i32, i32) {
    %c0_i32 = arith.constant 0 : i32
    %c0_i32_0 = arith.constant 0 : i32
    %c0_i32_1 = arith.constant 0 : i32
    return %arg0, %c0_i32, %c0_i32_0 : i32, i32, i32
  }
}

module attributes {stable_mosaic.version = 11 : i64} {
  func.func @_conv1x1_gn_kernel(%arg0: i32, %arg1: memref<1x64x64xbf16, #tpu.memory_space<vmem>>, %arg2: memref<64x256xbf16, #tpu.memory_space<vmem>>, %arg3: memref<1x256xf32, #tpu.memory_space<vmem>>, %arg4: memref<1x256xf32, #tpu.memory_space<vmem>>, %arg5: memref<256x32xf32, #tpu.memory_space<vmem>>, %arg6: memref<32x256xf32, #tpu.memory_space<vmem>>, %arg7: memref<1x64x256xbf16, #tpu.memory_space<vmem>>) attributes {dimension_semantics = [#tpu.dimension_semantics<parallel>], iteration_bounds = array<i64: 2>, scalar_prefetch = 0 : i64, scratch_operands = 0 : i64, tpu.core_type = #tpu.core_type<tc>, window_params = [{transform_indices = @transform_0, window_bounds = array<i64: 1, 64, 64>}, {pipeline_mode = #tpu.pipeline_mode<synchronous>, transform_indices = @transform_1, window_bounds = array<i64: 64, 256>}, {pipeline_mode = #tpu.pipeline_mode<synchronous>, transform_indices = @transform_2, window_bounds = array<i64: 1, 256>}, {pipeline_mode = #tpu.pipeline_mode<synchronous>, transform_indices = @transform_3, window_bounds = array<i64: 1, 256>}, {pipeline_mode = #tpu.pipeline_mode<synchronous>, transform_indices = @transform_4, window_bounds = array<i64: 256, 32>}, {pipeline_mode = #tpu.pipeline_mode<synchronous>, transform_indices = @transform_5, window_bounds = array<i64: 32, 256>}, {transform_indices = @transform_6, window_bounds = array<i64: 1, 64, 256>}]} {
    %c0 = arith.constant 0 : index
    %c0_0 = arith.constant 0 : index
    %c0_1 = arith.constant 0 : index
    %0 = vector.load %arg1[%c0, %c0_0, %c0_1] : memref<1x64x64xbf16, #tpu.memory_space<vmem>>, vector<1x64x64xbf16>
    %1 = vector.shape_cast %0 : vector<1x64x64xbf16> to vector<64x64xbf16>
    %c0_2 = arith.constant 0 : index
    %c0_3 = arith.constant 0 : index
    %2 = vector.load %arg2[%c0_2, %c0_3] : memref<64x256xbf16, #tpu.memory_space<vmem>>, vector<64x256xbf16>
    %cst = arith.constant dense<0.000000e+00> : vector<64x256xf32>
    %3 = tpu.matmul %1, %2, %cst {dimension_numbers = #tpu.dot_dimension_numbers<[1], [0], [0], [1], [0, 0, 1, 1], [], []>} : vector<64x64xbf16>, vector<64x256xbf16>, vector<64x256xf32> -> vector<64x256xf32>
    %c0_4 = arith.constant 0 : index
    %c0_5 = arith.constant 0 : index
    %4 = vector.load %arg3[%c0_4, %c0_5] : memref<1x256xf32, #tpu.memory_space<vmem>>, vector<1x256xf32>
    %c0_6 = arith.constant 0 : index
    %c0_7 = arith.constant 0 : index
    %5 = vector.load %arg4[%c0_6, %c0_7] : memref<1x256xf32, #tpu.memory_space<vmem>>, vector<1x256xf32>
    %c0_8 = arith.constant 0 : index
    %c0_9 = arith.constant 0 : index
    %6 = vector.load %arg5[%c0_8, %c0_9] : memref<256x32xf32, #tpu.memory_space<vmem>>, vector<256x32xf32>
    %c0_10 = arith.constant 0 : index
    %c0_11 = arith.constant 0 : index
    %7 = vector.load %arg6[%c0_10, %c0_11] : memref<32x256xf32, #tpu.memory_space<vmem>>, vector<32x256xf32>
    %cst_12 = arith.constant dense<0.000000e+00> : vector<256xf32>
    %8 = vector.multi_reduction <add>, %3, %cst_12 [0] : vector<64x256xf32> to vector<256xf32>
    %9 = vector.shape_cast %8 : vector<256xf32> to vector<1x256xf32>
    %cst_13 = arith.constant dense<0.000000e+00> : vector<1x32xf32>
    %10 = tpu.matmul %9, %6, %cst_13 {dimension_numbers = #tpu.dot_dimension_numbers<[1], [0], [0], [1], [0, 0, 1, 1], [], []>} : vector<1x256xf32>, vector<256x32xf32>, vector<1x32xf32> -> vector<1x32xf32>
    %cst_14 = arith.constant dense<0.000000e+00> : vector<1x256xf32>
    %11 = tpu.matmul %10, %7, %cst_14 {dimension_numbers = #tpu.dot_dimension_numbers<[1], [0], [0], [1], [0, 0, 1, 1], [], []>} : vector<1x32xf32>, vector<32x256xf32>, vector<1x256xf32> -> vector<1x256xf32>
    %cst_15 = arith.constant 5.120000e+02 : f32
    %12 = vector.broadcast %cst_15 : f32 to vector<1x256xf32>
    %13 = arith.divf %11, %12 : vector<1x256xf32>
    %14 = vector.broadcast %13 : vector<1x256xf32> to vector<64x256xf32>
    %15 = arith.subf %3, %14 : vector<64x256xf32>
    %16 = arith.mulf %15, %15 : vector<64x256xf32>
    %cst_16 = arith.constant dense<0.000000e+00> : vector<256xf32>
    %17 = vector.multi_reduction <add>, %16, %cst_16 [0] : vector<64x256xf32> to vector<256xf32>
    %18 = vector.shape_cast %17 : vector<256xf32> to vector<1x256xf32>
    %cst_17 = arith.constant dense<0.000000e+00> : vector<1x32xf32>
    %19 = tpu.matmul %18, %6, %cst_17 {dimension_numbers = #tpu.dot_dimension_numbers<[1], [0], [0], [1], [0, 0, 1, 1], [], []>} : vector<1x256xf32>, vector<256x32xf32>, vector<1x32xf32> -> vector<1x32xf32>
    %cst_18 = arith.constant 5.120000e+02 : f32
    %20 = vector.broadcast %cst_18 : f32 to vector<1x32xf32>
    %21 = arith.divf %19, %20 : vector<1x32xf32>
    %cst_19 = arith.constant 9.99999974E-6 : f32
    %22 = vector.broadcast %cst_19 : f32 to vector<1x32xf32>
    %23 = arith.addf %21, %22 : vector<1x32xf32>
    %24 = math.rsqrt %23 : vector<1x32xf32>
    %cst_20 = arith.constant dense<0.000000e+00> : vector<1x256xf32>
    %25 = tpu.matmul %24, %7, %cst_20 {dimension_numbers = #tpu.dot_dimension_numbers<[1], [0], [0], [1], [0, 0, 1, 1], [], []>} : vector<1x32xf32>, vector<32x256xf32>, vector<1x256xf32> -> vector<1x256xf32>
    %26 = vector.broadcast %25 : vector<1x256xf32> to vector<64x256xf32>
    %27 = arith.mulf %15, %26 : vector<64x256xf32>
    %28 = vector.broadcast %4 : vector<1x256xf32> to vector<64x256xf32>
    %29 = arith.mulf %27, %28 : vector<64x256xf32>
    %30 = vector.broadcast %5 : vector<1x256xf32> to vector<64x256xf32>
    %31 = arith.addf %29, %30 : vector<64x256xf32>
    %32 = arith.truncf %31 : vector<64x256xf32> to vector<64x256xbf16>
    %c0_21 = arith.constant 0 : index
    %c0_22 = arith.constant 0 : index
    %c0_23 = arith.constant 0 : index
    %33 = vector.load %arg7[%c0_21, %c0_22, %c0_23] : memref<1x64x256xbf16, #tpu.memory_space<vmem>>, vector<1x64x256xbf16>
    %34 = vector.shape_cast %33 : vector<1x64x256xbf16> to vector<64x256xbf16>
    %35 = vector.shape_cast %32 : vector<64x256xbf16> to vector<1x64x256xbf16>
    tpu.vector_store %arg7[%c0_21, %c0_22, %c0_23], %35 {strides = array<i32>} : memref<1x64x256xbf16, #tpu.memory_space<vmem>>, vector<1x64x256xbf16>,
    return
  }
  func.func @transform_0(%arg0: i32) -> (i32, i32, i32) {
    %c0_i32 = arith.constant 0 : i32
    %c0_i32_0 = arith.constant 0 : i32
    %c0_i32_1 = arith.constant 0 : i32
    return %arg0, %c0_i32, %c0_i32_0 : i32, i32, i32
  }
  func.func @transform_1(%arg0: i32) -> (i32, i32) {
    %c0_i32 = arith.constant 0 : i32
    %c0_i32_0 = arith.constant 0 : i32
    %c0_i32_1 = arith.constant 0 : i32
    return %c0_i32, %c0_i32_0 : i32, i32
  }
  func.func @transform_2(%arg0: i32) -> (i32, i32) {
    %c0_i32 = arith.constant 0 : i32
    %c0_i32_0 = arith.constant 0 : i32
    %c0_i32_1 = arith.constant 0 : i32
    return %c0_i32, %c0_i32_0 : i32, i32
  }
  func.func @transform_3(%arg0: i32) -> (i32, i32) {
    %c0_i32 = arith.constant 0 : i32
    %c0_i32_0 = arith.constant 0 : i32
    %c0_i32_1 = arith.constant 0 : i32
    return %c0_i32, %c0_i32_0 : i32, i32
  }
  func.func @transform_4(%arg0: i32) -> (i32, i32) {
    %c0_i32 = arith.constant 0 : i32
    %c0_i32_0 = arith.constant 0 : i32
    %c0_i32_1 = arith.constant 0 : i32
    return %c0_i32, %c0_i32_0 : i32, i32
  }
  func.func @transform_5(%arg0: i32) -> (i32, i32) {
    %c0_i32 = arith.constant 0 : i32
    %c0_i32_0 = arith.constant 0 : i32
    %c0_i32_1 = arith.constant 0 : i32
    return %c0_i32, %c0_i32_0 : i32, i32
  }
  func.func @transform_6(%arg0: i32) -> (i32, i32, i32) {
    %c0_i32 = arith.constant 0 : i32
    %c0_i32_0 = arith.constant 0 : i32
    %c0_i32_1 = arith.constant 0 : i32
    return %arg0, %c0_i32, %c0_i32_0 : i32, i32, i32
  }
}

module attributes {stable_mosaic.version = 11 : i64} {
  func.func @_conv3x3_gn_kernel(%arg0: i32, %arg1: memref<1x36x9x64xf32, #tpu.memory_space<vmem>>, %arg2: memref<9x64x64xbf16, #tpu.memory_space<vmem>>, %arg3: memref<1x64xf32, #tpu.memory_space<vmem>>, %arg4: memref<1x64xf32, #tpu.memory_space<vmem>>, %arg5: memref<64x32xf32, #tpu.memory_space<vmem>>, %arg6: memref<32x64xf32, #tpu.memory_space<vmem>>, %arg7: memref<1x64x64xbf16, #tpu.memory_space<vmem>>) attributes {dimension_semantics = [#tpu.dimension_semantics<parallel>], iteration_bounds = array<i64: 2>, scalar_prefetch = 0 : i64, scratch_operands = 0 : i64, tpu.core_type = #tpu.core_type<tc>, window_params = [{transform_indices = @transform_0, window_bounds = array<i64: 1, 36, 9, 64>}, {pipeline_mode = #tpu.pipeline_mode<synchronous>, transform_indices = @transform_1, window_bounds = array<i64: 9, 64, 64>}, {pipeline_mode = #tpu.pipeline_mode<synchronous>, transform_indices = @transform_2, window_bounds = array<i64: 1, 64>}, {pipeline_mode = #tpu.pipeline_mode<synchronous>, transform_indices = @transform_3, window_bounds = array<i64: 1, 64>}, {pipeline_mode = #tpu.pipeline_mode<synchronous>, transform_indices = @transform_4, window_bounds = array<i64: 64, 32>}, {pipeline_mode = #tpu.pipeline_mode<synchronous>, transform_indices = @transform_5, window_bounds = array<i64: 32, 64>}, {transform_indices = @transform_6, window_bounds = array<i64: 1, 64, 64>}]} {
    %c0 = arith.constant 0 : index
    %c0_0 = arith.constant 0 : index
    %c0_1 = arith.constant 0 : index
    %c0_2 = arith.constant 0 : index
    %0 = vector.load %arg1[%c0, %c0_0, %c0_1, %c0_2] : memref<1x36x9x64xf32, #tpu.memory_space<vmem>>, vector<1x8x8x64xf32>
    %1 = vector.shape_cast %0 : vector<1x8x8x64xf32> to vector<8x8x64xf32>
    %2 = vector.shape_cast %1 : vector<8x8x64xf32> to vector<64x64xf32>
    %3 = arith.truncf %2 : vector<64x64xf32> to vector<64x64xbf16>
    %c0_3 = arith.constant 0 : index
    %c0_4 = arith.constant 0 : index
    %c0_5 = arith.constant 0 : index
    %4 = vector.load %arg2[%c0_3, %c0_4, %c0_5] : memref<9x64x64xbf16, #tpu.memory_space<vmem>>, vector<1x64x64xbf16>
    %5 = vector.shape_cast %4 : vector<1x64x64xbf16> to vector<64x64xbf16>
    %cst = arith.constant dense<0.000000e+00> : vector<64x64xf32>
    %6 = tpu.matmul %3, %5, %cst {dimension_numbers = #tpu.dot_dimension_numbers<[1], [0], [0], [1], [0, 0, 1, 1], [], []>} : vector<64x64xbf16>, vector<64x64xbf16>, vector<64x64xf32> -> vector<64x64xf32>
    %c0_6 = arith.constant 0 : index
    %c9 = arith.constant 9 : index
    %c0_7 = arith.constant 0 : index
    %c0_8 = arith.constant 0 : index
    %7 = vector.load %arg1[%c0_6, %c9, %c0_7, %c0_8] : memref<1x36x9x64xf32, #tpu.memory_space<vmem>>, vector<1x8x8x64xf32>
    %8 = vector.shape_cast %7 : vector<1x8x8x64xf32> to vector<8x8x64xf32>
    %9 = vector.shape_cast %8 : vector<8x8x64xf32> to vector<64x64xf32>
    %10 = arith.truncf %9 : vector<64x64xf32> to vector<64x64xbf16>
    %c1 = arith.constant 1 : index
    %c0_9 = arith.constant 0 : index
    %c0_10 = arith.constant 0 : index
    %11 = vector.load %arg2[%c1, %c0_9, %c0_10] : memref<9x64x64xbf16, #tpu.memory_space<vmem>>, vector<1x64x64xbf16>
    %12 = vector.shape_cast %11 : vector<1x64x64xbf16> to vector<64x64xbf16>
    %cst_11 = arith.constant dense<0.000000e+00> : vector<64x64xf32>
    %13 = tpu.matmul %10, %12, %cst_11 {dimension_numbers = #tpu.dot_dimension_numbers<[1], [0], [0], [1], [0, 0, 1, 1], [], []>} : vector<64x64xbf16>, vector<64x64xbf16>, vector<64x64xf32> -> vector<64x64xf32>
    %14 = arith.addf %6, %13 : vector<64x64xf32>
    %c0_12 = arith.constant 0 : index
    %c0_13 = arith.constant 0 : index
    %c1_14 = arith.constant 1 : index
    %c0_15 = arith.constant 0 : index
    %15 = vector.load %arg1[%c0_12, %c0_13, %c1_14, %c0_15] : memref<1x36x9x64xf32, #tpu.memory_space<vmem>>, vector<1x8x8x64xf32>
    %16 = vector.shape_cast %15 : vector<1x8x8x64xf32> to vector<8x8x64xf32>
    %17 = vector.shape_cast %16 : vector<8x8x64xf32> to vector<64x64xf32>
    %18 = arith.truncf %17 : vector<64x64xf32> to vector<64x64xbf16>
    %c2 = arith.constant 2 : index
    %c0_16 = arith.constant 0 : index
    %c0_17 = arith.constant 0 : index
    %19 = vector.load %arg2[%c2, %c0_16, %c0_17] : memref<9x64x64xbf16, #tpu.memory_space<vmem>>, vector<1x64x64xbf16>
    %20 = vector.shape_cast %19 : vector<1x64x64xbf16> to vector<64x64xbf16>
    %cst_18 = arith.constant dense<0.000000e+00> : vector<64x64xf32>
    %21 = tpu.matmul %18, %20, %cst_18 {dimension_numbers = #tpu.dot_dimension_numbers<[1], [0], [0], [1], [0, 0, 1, 1], [], []>} : vector<64x64xbf16>, vector<64x64xbf16>, vector<64x64xf32> -> vector<64x64xf32>
    %22 = arith.addf %14, %21 : vector<64x64xf32>
    %c0_19 = arith.constant 0 : index
    %c18 = arith.constant 18 : index
    %c0_20 = arith.constant 0 : index
    %c0_21 = arith.constant 0 : index
    %23 = vector.load %arg1[%c0_19, %c18, %c0_20, %c0_21] : memref<1x36x9x64xf32, #tpu.memory_space<vmem>>, vector<1x8x8x64xf32>
    %24 = vector.shape_cast %23 : vector<1x8x8x64xf32> to vector<8x8x64xf32>
    %25 = vector.shape_cast %24 : vector<8x8x64xf32> to vector<64x64xf32>
    %26 = arith.truncf %25 : vector<64x64xf32> to vector<64x64xbf16>
    %c3 = arith.constant 3 : index
    %c0_22 = arith.constant 0 : index
    %c0_23 = arith.constant 0 : index
    %27 = vector.load %arg2[%c3, %c0_22, %c0_23] : memref<9x64x64xbf16, #tpu.memory_space<vmem>>, vector<1x64x64xbf16>
    %28 = vector.shape_cast %27 : vector<1x64x64xbf16> to vector<64x64xbf16>
    %cst_24 = arith.constant dense<0.000000e+00> : vector<64x64xf32>
    %29 = tpu.matmul %26, %28, %cst_24 {dimension_numbers = #tpu.dot_dimension_numbers<[1], [0], [0], [1], [0, 0, 1, 1], [], []>} : vector<64x64xbf16>, vector<64x64xbf16>, vector<64x64xf32> -> vector<64x64xf32>
    %30 = arith.addf %22, %29 : vector<64x64xf32>
    %c0_25 = arith.constant 0 : index
    %c27 = arith.constant 27 : index
    %c0_26 = arith.constant 0 : index
    %c0_27 = arith.constant 0 : index
    %31 = vector.load %arg1[%c0_25, %c27, %c0_26, %c0_27] : memref<1x36x9x64xf32, #tpu.memory_space<vmem>>, vector<1x8x8x64xf32>
    %32 = vector.shape_cast %31 : vector<1x8x8x64xf32> to vector<8x8x64xf32>
    %33 = vector.shape_cast %32 : vector<8x8x64xf32> to vector<64x64xf32>
    %34 = arith.truncf %33 : vector<64x64xf32> to vector<64x64xbf16>
    %c4 = arith.constant 4 : index
    %c0_28 = arith.constant 0 : index
    %c0_29 = arith.constant 0 : index
    %35 = vector.load %arg2[%c4, %c0_28, %c0_29] : memref<9x64x64xbf16, #tpu.memory_space<vmem>>, vector<1x64x64xbf16>
    %36 = vector.shape_cast %35 : vector<1x64x64xbf16> to vector<64x64xbf16>
    %cst_30 = arith.constant dense<0.000000e+00> : vector<64x64xf32>
    %37 = tpu.matmul %34, %36, %cst_30 {dimension_numbers = #tpu.dot_dimension_numbers<[1], [0], [0], [1], [0, 0, 1, 1], [], []>} : vector<64x64xbf16>, vector<64x64xbf16>, vector<64x64xf32> -> vector<64x64xf32>
    %38 = arith.addf %30, %37 : vector<64x64xf32>
    %c0_31 = arith.constant 0 : index
    %c18_32 = arith.constant 18 : index
    %c1_33 = arith.constant 1 : index
    %c0_34 = arith.constant 0 : index
    %39 = vector.load %arg1[%c0_31, %c18_32, %c1_33, %c0_34] : memref<1x36x9x64xf32, #tpu.memory_space<vmem>>, vector<1x8x8x64xf32>
    %40 = vector.shape_cast %39 : vector<1x8x8x64xf32> to vector<8x8x64xf32>
    %41 = vector.shape_cast %40 : vector<8x8x64xf32> to vector<64x64xf32>
    %42 = arith.truncf %41 : vector<64x64xf32> to vector<64x64xbf16>
    %c5 = arith.constant 5 : index
    %c0_35 = arith.constant 0 : index
    %c0_36 = arith.constant 0 : index
    %43 = vector.load %arg2[%c5, %c0_35, %c0_36] : memref<9x64x64xbf16, #tpu.memory_space<vmem>>, vector<1x64x64xbf16>
    %44 = vector.shape_cast %43 : vector<1x64x64xbf16> to vector<64x64xbf16>
    %cst_37 = arith.constant dense<0.000000e+00> : vector<64x64xf32>
    %45 = tpu.matmul %42, %44, %cst_37 {dimension_numbers = #tpu.dot_dimension_numbers<[1], [0], [0], [1], [0, 0, 1, 1], [], []>} : vector<64x64xbf16>, vector<64x64xbf16>, vector<64x64xf32> -> vector<64x64xf32>
    %46 = arith.addf %38, %45 : vector<64x64xf32>
    %c0_38 = arith.constant 0 : index
    %c1_39 = arith.constant 1 : index
    %c0_40 = arith.constant 0 : index
    %c0_41 = arith.constant 0 : index
    %47 = vector.load %arg1[%c0_38, %c1_39, %c0_40, %c0_41] : memref<1x36x9x64xf32, #tpu.memory_space<vmem>>, vector<1x8x8x64xf32>
    %48 = vector.shape_cast %47 : vector<1x8x8x64xf32> to vector<8x8x64xf32>
    %49 = vector.shape_cast %48 : vector<8x8x64xf32> to vector<64x64xf32>
    %50 = arith.truncf %49 : vector<64x64xf32> to vector<64x64xbf16>
    %c6 = arith.constant 6 : index
    %c0_42 = arith.constant 0 : index
    %c0_43 = arith.constant 0 : index
    %51 = vector.load %arg2[%c6, %c0_42, %c0_43] : memref<9x64x64xbf16, #tpu.memory_space<vmem>>, vector<1x64x64xbf16>
    %52 = vector.shape_cast %51 : vector<1x64x64xbf16> to vector<64x64xbf16>
    %cst_44 = arith.constant dense<0.000000e+00> : vector<64x64xf32>
    %53 = tpu.matmul %50, %52, %cst_44 {dimension_numbers = #tpu.dot_dimension_numbers<[1], [0], [0], [1], [0, 0, 1, 1], [], []>} : vector<64x64xbf16>, vector<64x64xbf16>, vector<64x64xf32> -> vector<64x64xf32>
    %54 = arith.addf %46, %53 : vector<64x64xf32>
    %c0_45 = arith.constant 0 : index
    %c10 = arith.constant 10 : index
    %c0_46 = arith.constant 0 : index
    %c0_47 = arith.constant 0 : index
    %55 = vector.load %arg1[%c0_45, %c10, %c0_46, %c0_47] : memref<1x36x9x64xf32, #tpu.memory_space<vmem>>, vector<1x8x8x64xf32>
    %56 = vector.shape_cast %55 : vector<1x8x8x64xf32> to vector<8x8x64xf32>
    %57 = vector.shape_cast %56 : vector<8x8x64xf32> to vector<64x64xf32>
    %58 = arith.truncf %57 : vector<64x64xf32> to vector<64x64xbf16>
    %c7 = arith.constant 7 : index
    %c0_48 = arith.constant 0 : index
    %c0_49 = arith.constant 0 : index
    %59 = vector.load %arg2[%c7, %c0_48, %c0_49] : memref<9x64x64xbf16, #tpu.memory_space<vmem>>, vector<1x64x64xbf16>
    %60 = vector.shape_cast %59 : vector<1x64x64xbf16> to vector<64x64xbf16>
    %cst_50 = arith.constant dense<0.000000e+00> : vector<64x64xf32>
    %61 = tpu.matmul %58, %60, %cst_50 {dimension_numbers = #tpu.dot_dimension_numbers<[1], [0], [0], [1], [0, 0, 1, 1], [], []>} : vector<64x64xbf16>, vector<64x64xbf16>, vector<64x64xf32> -> vector<64x64xf32>
    %62 = arith.addf %54, %61 : vector<64x64xf32>
    %c0_51 = arith.constant 0 : index
    %c1_52 = arith.constant 1 : index
    %c1_53 = arith.constant 1 : index
    %c0_54 = arith.constant 0 : index
    %63 = vector.load %arg1[%c0_51, %c1_52, %c1_53, %c0_54] : memref<1x36x9x64xf32, #tpu.memory_space<vmem>>, vector<1x8x8x64xf32>
    %64 = vector.shape_cast %63 : vector<1x8x8x64xf32> to vector<8x8x64xf32>
    %65 = vector.shape_cast %64 : vector<8x8x64xf32> to vector<64x64xf32>
    %66 = arith.truncf %65 : vector<64x64xf32> to vector<64x64xbf16>
    %c8 = arith.constant 8 : index
    %c0_55 = arith.constant 0 : index
    %c0_56 = arith.constant 0 : index
    %67 = vector.load %arg2[%c8, %c0_55, %c0_56] : memref<9x64x64xbf16, #tpu.memory_space<vmem>>, vector<1x64x64xbf16>
    %68 = vector.shape_cast %67 : vector<1x64x64xbf16> to vector<64x64xbf16>
    %cst_57 = arith.constant dense<0.000000e+00> : vector<64x64xf32>
    %69 = tpu.matmul %66, %68, %cst_57 {dimension_numbers = #tpu.dot_dimension_numbers<[1], [0], [0], [1], [0, 0, 1, 1], [], []>} : vector<64x64xbf16>, vector<64x64xbf16>, vector<64x64xf32> -> vector<64x64xf32>
    %70 = arith.addf %62, %69 : vector<64x64xf32>
    %c0_58 = arith.constant 0 : index
    %c0_59 = arith.constant 0 : index
    %71 = vector.load %arg3[%c0_58, %c0_59] : memref<1x64xf32, #tpu.memory_space<vmem>>, vector<1x64xf32>
    %c0_60 = arith.constant 0 : index
    %c0_61 = arith.constant 0 : index
    %72 = vector.load %arg4[%c0_60, %c0_61] : memref<1x64xf32, #tpu.memory_space<vmem>>, vector<1x64xf32>
    %c0_62 = arith.constant 0 : index
    %c0_63 = arith.constant 0 : index
    %73 = vector.load %arg5[%c0_62, %c0_63] : memref<64x32xf32, #tpu.memory_space<vmem>>, vector<64x32xf32>
    %c0_64 = arith.constant 0 : index
    %c0_65 = arith.constant 0 : index
    %74 = vector.load %arg6[%c0_64, %c0_65] : memref<32x64xf32, #tpu.memory_space<vmem>>, vector<32x64xf32>
    %cst_66 = arith.constant dense<0.000000e+00> : vector<64xf32>
    %75 = vector.multi_reduction <add>, %70, %cst_66 [0] : vector<64x64xf32> to vector<64xf32>
    %76 = vector.shape_cast %75 : vector<64xf32> to vector<1x64xf32>
    %cst_67 = arith.constant dense<0.000000e+00> : vector<1x32xf32>
    %77 = tpu.matmul %76, %73, %cst_67 {dimension_numbers = #tpu.dot_dimension_numbers<[1], [0], [0], [1], [0, 0, 1, 1], [], []>} : vector<1x64xf32>, vector<64x32xf32>, vector<1x32xf32> -> vector<1x32xf32>
    %cst_68 = arith.constant dense<0.000000e+00> : vector<1x64xf32>
    %78 = tpu.matmul %77, %74, %cst_68 {dimension_numbers = #tpu.dot_dimension_numbers<[1], [0], [0], [1], [0, 0, 1, 1], [], []>} : vector<1x32xf32>, vector<32x64xf32>, vector<1x64xf32> -> vector<1x64xf32>
    %cst_69 = arith.constant 1.280000e+02 : f32
    %79 = vector.broadcast %cst_69 : f32 to vector<1x64xf32>
    %80 = arith.divf %78, %79 : vector<1x64xf32>
    %81 = vector.broadcast %80 : vector<1x64xf32> to vector<64x64xf32>
    %82 = arith.subf %70, %81 : vector<64x64xf32>
    %83 = arith.mulf %82, %82 : vector<64x64xf32>
    %cst_70 = arith.constant dense<0.000000e+00> : vector<64xf32>
    %84 = vector.multi_reduction <add>, %83, %cst_70 [0] : vector<64x64xf32> to vector<64xf32>
    %85 = vector.shape_cast %84 : vector<64xf32> to vector<1x64xf32>
    %cst_71 = arith.constant dense<0.000000e+00> : vector<1x32xf32>
    %86 = tpu.matmul %85, %73, %cst_71 {dimension_numbers = #tpu.dot_dimension_numbers<[1], [0], [0], [1], [0, 0, 1, 1], [], []>} : vector<1x64xf32>, vector<64x32xf32>, vector<1x32xf32> -> vector<1x32xf32>
    %cst_72 = arith.constant 1.280000e+02 : f32
    %87 = vector.broadcast %cst_72 : f32 to vector<1x32xf32>
    %88 = arith.divf %86, %87 : vector<1x32xf32>
    %cst_73 = arith.constant 9.99999974E-6 : f32
    %89 = vector.broadcast %cst_73 : f32 to vector<1x32xf32>
    %90 = arith.addf %88, %89 : vector<1x32xf32>
    %91 = math.rsqrt %90 : vector<1x32xf32>
    %cst_74 = arith.constant dense<0.000000e+00> : vector<1x64xf32>
    %92 = tpu.matmul %91, %74, %cst_74 {dimension_numbers = #tpu.dot_dimension_numbers<[1], [0], [0], [1], [0, 0, 1, 1], [], []>} : vector<1x32xf32>, vector<32x64xf32>, vector<1x64xf32> -> vector<1x64xf32>
    %93 = vector.broadcast %92 : vector<1x64xf32> to vector<64x64xf32>
    %94 = arith.mulf %82, %93 : vector<64x64xf32>
    %95 = vector.broadcast %71 : vector<1x64xf32> to vector<64x64xf32>
    %96 = arith.mulf %94, %95 : vector<64x64xf32>
    %97 = vector.broadcast %72 : vector<1x64xf32> to vector<64x64xf32>
    %98 = arith.addf %96, %97 : vector<64x64xf32>
    %cst_75 = arith.constant 0.000000e+00 : f32
    %99 = vector.broadcast %cst_75 : f32 to vector<64x64xf32>
    %100 = arith.maximumf %98, %99 : vector<64x64xf32>
    %101 = arith.truncf %100 : vector<64x64xf32> to vector<64x64xbf16>
    %c0_76 = arith.constant 0 : index
    %c0_77 = arith.constant 0 : index
    %c0_78 = arith.constant 0 : index
    %102 = vector.load %arg7[%c0_76, %c0_77, %c0_78] : memref<1x64x64xbf16, #tpu.memory_space<vmem>>, vector<1x64x64xbf16>
    %103 = vector.shape_cast %102 : vector<1x64x64xbf16> to vector<64x64xbf16>
    %104 = vector.shape_cast %101 : vector<64x64xbf16> to vector<1x64x64xbf16>
    tpu.vector_store %arg7[%c0_76, %c0_77, %c0_78], %104 {strides = array<i32>} : memref<1x64x64xbf16, #tpu.memory_space<vmem>>, vector<1x64x64xbf16>,
    return
  }
  func.func @transform_0(%arg0: i32) -> (i32, i32, i32, i32) {
    %c0_i32 = arith.constant 0 : i32
    %c0_i32_0 = arith.constant 0 : i32
    %c0_i32_1 = arith.constant 0 : i32
    %c0_i32_2 = arith.constant 0 : i32
    return %arg0, %c0_i32, %c0_i32_0, %c0_i32_1 : i32, i32, i32, i32
  }
  func.func @transform_1(%arg0: i32) -> (i32, i32, i32) {
    %c0_i32 = arith.constant 0 : i32
    %c0_i32_0 = arith.constant 0 : i32
    %c0_i32_1 = arith.constant 0 : i32
    %c0_i32_2 = arith.constant 0 : i32
    return %c0_i32, %c0_i32_0, %c0_i32_1 : i32, i32, i32
  }
  func.func @transform_2(%arg0: i32) -> (i32, i32) {
    %c0_i32 = arith.constant 0 : i32
    %c0_i32_0 = arith.constant 0 : i32
    %c0_i32_1 = arith.constant 0 : i32
    return %c0_i32, %c0_i32_0 : i32, i32
  }
  func.func @transform_3(%arg0: i32) -> (i32, i32) {
    %c0_i32 = arith.constant 0 : i32
    %c0_i32_0 = arith.constant 0 : i32
    %c0_i32_1 = arith.constant 0 : i32
    return %c0_i32, %c0_i32_0 : i32, i32
  }
  func.func @transform_4(%arg0: i32) -> (i32, i32) {
    %c0_i32 = arith.constant 0 : i32
    %c0_i32_0 = arith.constant 0 : i32
    %c0_i32_1 = arith.constant 0 : i32
    return %c0_i32, %c0_i32_0 : i32, i32
  }
  func.func @transform_5(%arg0: i32) -> (i32, i32) {
    %c0_i32 = arith.constant 0 : i32
    %c0_i32_0 = arith.constant 0 : i32
    %c0_i32_1 = arith.constant 0 : i32
    return %c0_i32, %c0_i32_0 : i32, i32
  }
  func.func @transform_6(%arg0: i32) -> (i32, i32, i32) {
    %c0_i32 = arith.constant 0 : i32
    %c0_i32_0 = arith.constant 0 : i32
    %c0_i32_1 = arith.constant 0 : i32
    return %arg0, %c0_i32, %c0_i32_0 : i32, i32, i32
  }
}

module attributes {stable_mosaic.version = 11 : i64} {
  func.func @_conv1x1_gn_res_kernel(%arg0: i32, %arg1: memref<1x64x64xbf16, #tpu.memory_space<vmem>>, %arg2: memref<64x256xbf16, #tpu.memory_space<vmem>>, %arg3: memref<1x256xf32, #tpu.memory_space<vmem>>, %arg4: memref<1x256xf32, #tpu.memory_space<vmem>>, %arg5: memref<256x32xf32, #tpu.memory_space<vmem>>, %arg6: memref<32x256xf32, #tpu.memory_space<vmem>>, %arg7: memref<1x64x256xbf16, #tpu.memory_space<vmem>>, %arg8: memref<1x64x256xbf16, #tpu.memory_space<vmem>>) attributes {dimension_semantics = [#tpu.dimension_semantics<parallel>], iteration_bounds = array<i64: 2>, scalar_prefetch = 0 : i64, scratch_operands = 0 : i64, tpu.core_type = #tpu.core_type<tc>, window_params = [{transform_indices = @transform_0, window_bounds = array<i64: 1, 64, 64>}, {pipeline_mode = #tpu.pipeline_mode<synchronous>, transform_indices = @transform_1, window_bounds = array<i64: 64, 256>}, {pipeline_mode = #tpu.pipeline_mode<synchronous>, transform_indices = @transform_2, window_bounds = array<i64: 1, 256>}, {pipeline_mode = #tpu.pipeline_mode<synchronous>, transform_indices = @transform_3, window_bounds = array<i64: 1, 256>}, {pipeline_mode = #tpu.pipeline_mode<synchronous>, transform_indices = @transform_4, window_bounds = array<i64: 256, 32>}, {pipeline_mode = #tpu.pipeline_mode<synchronous>, transform_indices = @transform_5, window_bounds = array<i64: 32, 256>}, {transform_indices = @transform_6, window_bounds = array<i64: 1, 64, 256>}, {transform_indices = @transform_7, window_bounds = array<i64: 1, 64, 256>}]} {
    %c0 = arith.constant 0 : index
    %c0_0 = arith.constant 0 : index
    %c0_1 = arith.constant 0 : index
    %0 = vector.load %arg1[%c0, %c0_0, %c0_1] : memref<1x64x64xbf16, #tpu.memory_space<vmem>>, vector<1x64x64xbf16>
    %1 = vector.shape_cast %0 : vector<1x64x64xbf16> to vector<64x64xbf16>
    %c0_2 = arith.constant 0 : index
    %c0_3 = arith.constant 0 : index
    %2 = vector.load %arg2[%c0_2, %c0_3] : memref<64x256xbf16, #tpu.memory_space<vmem>>, vector<64x256xbf16>
    %cst = arith.constant dense<0.000000e+00> : vector<64x256xf32>
    %3 = tpu.matmul %1, %2, %cst {dimension_numbers = #tpu.dot_dimension_numbers<[1], [0], [0], [1], [0, 0, 1, 1], [], []>} : vector<64x64xbf16>, vector<64x256xbf16>, vector<64x256xf32> -> vector<64x256xf32>
    %c0_4 = arith.constant 0 : index
    %c0_5 = arith.constant 0 : index
    %4 = vector.load %arg3[%c0_4, %c0_5] : memref<1x256xf32, #tpu.memory_space<vmem>>, vector<1x256xf32>
    %c0_6 = arith.constant 0 : index
    %c0_7 = arith.constant 0 : index
    %5 = vector.load %arg4[%c0_6, %c0_7] : memref<1x256xf32, #tpu.memory_space<vmem>>, vector<1x256xf32>
    %c0_8 = arith.constant 0 : index
    %c0_9 = arith.constant 0 : index
    %6 = vector.load %arg5[%c0_8, %c0_9] : memref<256x32xf32, #tpu.memory_space<vmem>>, vector<256x32xf32>
    %c0_10 = arith.constant 0 : index
    %c0_11 = arith.constant 0 : index
    %7 = vector.load %arg6[%c0_10, %c0_11] : memref<32x256xf32, #tpu.memory_space<vmem>>, vector<32x256xf32>
    %cst_12 = arith.constant dense<0.000000e+00> : vector<256xf32>
    %8 = vector.multi_reduction <add>, %3, %cst_12 [0] : vector<64x256xf32> to vector<256xf32>
    %9 = vector.shape_cast %8 : vector<256xf32> to vector<1x256xf32>
    %cst_13 = arith.constant dense<0.000000e+00> : vector<1x32xf32>
    %10 = tpu.matmul %9, %6, %cst_13 {dimension_numbers = #tpu.dot_dimension_numbers<[1], [0], [0], [1], [0, 0, 1, 1], [], []>} : vector<1x256xf32>, vector<256x32xf32>, vector<1x32xf32> -> vector<1x32xf32>
    %cst_14 = arith.constant dense<0.000000e+00> : vector<1x256xf32>
    %11 = tpu.matmul %10, %7, %cst_14 {dimension_numbers = #tpu.dot_dimension_numbers<[1], [0], [0], [1], [0, 0, 1, 1], [], []>} : vector<1x32xf32>, vector<32x256xf32>, vector<1x256xf32> -> vector<1x256xf32>
    %cst_15 = arith.constant 5.120000e+02 : f32
    %12 = vector.broadcast %cst_15 : f32 to vector<1x256xf32>
    %13 = arith.divf %11, %12 : vector<1x256xf32>
    %14 = vector.broadcast %13 : vector<1x256xf32> to vector<64x256xf32>
    %15 = arith.subf %3, %14 : vector<64x256xf32>
    %16 = arith.mulf %15, %15 : vector<64x256xf32>
    %cst_16 = arith.constant dense<0.000000e+00> : vector<256xf32>
    %17 = vector.multi_reduction <add>, %16, %cst_16 [0] : vector<64x256xf32> to vector<256xf32>
    %18 = vector.shape_cast %17 : vector<256xf32> to vector<1x256xf32>
    %cst_17 = arith.constant dense<0.000000e+00> : vector<1x32xf32>
    %19 = tpu.matmul %18, %6, %cst_17 {dimension_numbers = #tpu.dot_dimension_numbers<[1], [0], [0], [1], [0, 0, 1, 1], [], []>} : vector<1x256xf32>, vector<256x32xf32>, vector<1x32xf32> -> vector<1x32xf32>
    %cst_18 = arith.constant 5.120000e+02 : f32
    %20 = vector.broadcast %cst_18 : f32 to vector<1x32xf32>
    %21 = arith.divf %19, %20 : vector<1x32xf32>
    %cst_19 = arith.constant 9.99999974E-6 : f32
    %22 = vector.broadcast %cst_19 : f32 to vector<1x32xf32>
    %23 = arith.addf %21, %22 : vector<1x32xf32>
    %24 = math.rsqrt %23 : vector<1x32xf32>
    %cst_20 = arith.constant dense<0.000000e+00> : vector<1x256xf32>
    %25 = tpu.matmul %24, %7, %cst_20 {dimension_numbers = #tpu.dot_dimension_numbers<[1], [0], [0], [1], [0, 0, 1, 1], [], []>} : vector<1x32xf32>, vector<32x256xf32>, vector<1x256xf32> -> vector<1x256xf32>
    %26 = vector.broadcast %25 : vector<1x256xf32> to vector<64x256xf32>
    %27 = arith.mulf %15, %26 : vector<64x256xf32>
    %28 = vector.broadcast %4 : vector<1x256xf32> to vector<64x256xf32>
    %29 = arith.mulf %27, %28 : vector<64x256xf32>
    %30 = vector.broadcast %5 : vector<1x256xf32> to vector<64x256xf32>
    %31 = arith.addf %29, %30 : vector<64x256xf32>
    %c0_21 = arith.constant 0 : index
    %c0_22 = arith.constant 0 : index
    %c0_23 = arith.constant 0 : index
    %32 = vector.load %arg7[%c0_21, %c0_22, %c0_23] : memref<1x64x256xbf16, #tpu.memory_space<vmem>>, vector<1x64x256xbf16>
    %33 = vector.shape_cast %32 : vector<1x64x256xbf16> to vector<64x256xbf16>
    %34 = arith.extf %33 : vector<64x256xbf16> to vector<64x256xf32>
    %35 = arith.addf %31, %34 : vector<64x256xf32>
    %cst_24 = arith.constant 0.000000e+00 : f32
    %36 = vector.broadcast %cst_24 : f32 to vector<64x256xf32>
    %37 = arith.maximumf %35, %36 : vector<64x256xf32>
    %38 = arith.truncf %37 : vector<64x256xf32> to vector<64x256xbf16>
    %c0_25 = arith.constant 0 : index
    %c0_26 = arith.constant 0 : index
    %c0_27 = arith.constant 0 : index
    %39 = vector.load %arg8[%c0_25, %c0_26, %c0_27] : memref<1x64x256xbf16, #tpu.memory_space<vmem>>, vector<1x64x256xbf16>
    %40 = vector.shape_cast %39 : vector<1x64x256xbf16> to vector<64x256xbf16>
    %41 = vector.shape_cast %38 : vector<64x256xbf16> to vector<1x64x256xbf16>
    tpu.vector_store %arg8[%c0_25, %c0_26, %c0_27], %41 {strides = array<i32>} : memref<1x64x256xbf16, #tpu.memory_space<vmem>>, vector<1x64x256xbf16>,
    return
  }
  func.func @transform_0(%arg0: i32) -> (i32, i32, i32) {
    %c0_i32 = arith.constant 0 : i32
    %c0_i32_0 = arith.constant 0 : i32
    %c0_i32_1 = arith.constant 0 : i32
    return %arg0, %c0_i32, %c0_i32_0 : i32, i32, i32
  }
  func.func @transform_1(%arg0: i32) -> (i32, i32) {
    %c0_i32 = arith.constant 0 : i32
    %c0_i32_0 = arith.constant 0 : i32
    %c0_i32_1 = arith.constant 0 : i32
    return %c0_i32, %c0_i32_0 : i32, i32
  }
  func.func @transform_2(%arg0: i32) -> (i32, i32) {
    %c0_i32 = arith.constant 0 : i32
    %c0_i32_0 = arith.constant 0 : i32
    %c0_i32_1 = arith.constant 0 : i32
    return %c0_i32, %c0_i32_0 : i32, i32
  }
  func.func @transform_3(%arg0: i32) -> (i32, i32) {
    %c0_i32 = arith.constant 0 : i32
    %c0_i32_0 = arith.constant 0 : i32
    %c0_i32_1 = arith.constant 0 : i32
    return %c0_i32, %c0_i32_0 : i32, i32
  }
  func.func @transform_4(%arg0: i32) -> (i32, i32) {
    %c0_i32 = arith.constant 0 : i32
    %c0_i32_0 = arith.constant 0 : i32
    %c0_i32_1 = arith.constant 0 : i32
    return %c0_i32, %c0_i32_0 : i32, i32
  }
  func.func @transform_5(%arg0: i32) -> (i32, i32) {
    %c0_i32 = arith.constant 0 : i32
    %c0_i32_0 = arith.constant 0 : i32
    %c0_i32_1 = arith.constant 0 : i32
    return %c0_i32, %c0_i32_0 : i32, i32
  }
  func.func @transform_6(%arg0: i32) -> (i32, i32, i32) {
    %c0_i32 = arith.constant 0 : i32
    %c0_i32_0 = arith.constant 0 : i32
    %c0_i32_1 = arith.constant 0 : i32
    return %arg0, %c0_i32, %c0_i32_0 : i32, i32, i32
  }
  func.func @transform_7(%arg0: i32) -> (i32, i32, i32) {
    %c0_i32 = arith.constant 0 : i32
    %c0_i32_0 = arith.constant 0 : i32
    %c0_i32_1 = arith.constant 0 : i32
    return %arg0, %c0_i32, %c0_i32_0 : i32, i32, i32
  }
}

module attributes {stable_mosaic.version = 11 : i64} {
  func.func @_conv3x3_gn_kernel(%arg0: i32, %arg1: memref<1x10x10x64xf32, #tpu.memory_space<vmem>>, %arg2: memref<9x64x64xbf16, #tpu.memory_space<vmem>>, %arg3: memref<1x64xf32, #tpu.memory_space<vmem>>, %arg4: memref<1x64xf32, #tpu.memory_space<vmem>>, %arg5: memref<64x32xf32, #tpu.memory_space<vmem>>, %arg6: memref<32x64xf32, #tpu.memory_space<vmem>>, %arg7: memref<1x64x64xbf16, #tpu.memory_space<vmem>>) attributes {dimension_semantics = [#tpu.dimension_semantics<parallel>], iteration_bounds = array<i64: 2>, scalar_prefetch = 0 : i64, scratch_operands = 0 : i64, tpu.core_type = #tpu.core_type<tc>, window_params = [{transform_indices = @transform_0, window_bounds = array<i64: 1, 10, 10, 64>}, {pipeline_mode = #tpu.pipeline_mode<synchronous>, transform_indices = @transform_1, window_bounds = array<i64: 9, 64, 64>}, {pipeline_mode = #tpu.pipeline_mode<synchronous>, transform_indices = @transform_2, window_bounds = array<i64: 1, 64>}, {pipeline_mode = #tpu.pipeline_mode<synchronous>, transform_indices = @transform_3, window_bounds = array<i64: 1, 64>}, {pipeline_mode = #tpu.pipeline_mode<synchronous>, transform_indices = @transform_4, window_bounds = array<i64: 64, 32>}, {pipeline_mode = #tpu.pipeline_mode<synchronous>, transform_indices = @transform_5, window_bounds = array<i64: 32, 64>}, {transform_indices = @transform_6, window_bounds = array<i64: 1, 64, 64>}]} {
    %c0 = arith.constant 0 : index
    %c0_0 = arith.constant 0 : index
    %c0_1 = arith.constant 0 : index
    %c0_2 = arith.constant 0 : index
    %0 = vector.load %arg1[%c0, %c0_0, %c0_1, %c0_2] : memref<1x10x10x64xf32, #tpu.memory_space<vmem>>, vector<1x8x8x64xf32>
    %1 = vector.shape_cast %0 : vector<1x8x8x64xf32> to vector<8x8x64xf32>
    %2 = vector.shape_cast %1 : vector<8x8x64xf32> to vector<64x64xf32>
    %3 = arith.truncf %2 : vector<64x64xf32> to vector<64x64xbf16>
    %c0_3 = arith.constant 0 : index
    %c0_4 = arith.constant 0 : index
    %c0_5 = arith.constant 0 : index
    %4 = vector.load %arg2[%c0_3, %c0_4, %c0_5] : memref<9x64x64xbf16, #tpu.memory_space<vmem>>, vector<1x64x64xbf16>
    %5 = vector.shape_cast %4 : vector<1x64x64xbf16> to vector<64x64xbf16>
    %cst = arith.constant dense<0.000000e+00> : vector<64x64xf32>
    %6 = tpu.matmul %3, %5, %cst {dimension_numbers = #tpu.dot_dimension_numbers<[1], [0], [0], [1], [0, 0, 1, 1], [], []>} : vector<64x64xbf16>, vector<64x64xbf16>, vector<64x64xf32> -> vector<64x64xf32>
    %c0_6 = arith.constant 0 : index
    %c0_7 = arith.constant 0 : index
    %c1 = arith.constant 1 : index
    %c0_8 = arith.constant 0 : index
    %7 = vector.load %arg1[%c0_6, %c0_7, %c1, %c0_8] : memref<1x10x10x64xf32, #tpu.memory_space<vmem>>, vector<1x8x8x64xf32>
    %8 = vector.shape_cast %7 : vector<1x8x8x64xf32> to vector<8x8x64xf32>
    %9 = vector.shape_cast %8 : vector<8x8x64xf32> to vector<64x64xf32>
    %10 = arith.truncf %9 : vector<64x64xf32> to vector<64x64xbf16>
    %c1_9 = arith.constant 1 : index
    %c0_10 = arith.constant 0 : index
    %c0_11 = arith.constant 0 : index
    %11 = vector.load %arg2[%c1_9, %c0_10, %c0_11] : memref<9x64x64xbf16, #tpu.memory_space<vmem>>, vector<1x64x64xbf16>
    %12 = vector.shape_cast %11 : vector<1x64x64xbf16> to vector<64x64xbf16>
    %cst_12 = arith.constant dense<0.000000e+00> : vector<64x64xf32>
    %13 = tpu.matmul %10, %12, %cst_12 {dimension_numbers = #tpu.dot_dimension_numbers<[1], [0], [0], [1], [0, 0, 1, 1], [], []>} : vector<64x64xbf16>, vector<64x64xbf16>, vector<64x64xf32> -> vector<64x64xf32>
    %14 = arith.addf %6, %13 : vector<64x64xf32>
    %c0_13 = arith.constant 0 : index
    %c0_14 = arith.constant 0 : index
    %c2 = arith.constant 2 : index
    %c0_15 = arith.constant 0 : index
    %15 = vector.load %arg1[%c0_13, %c0_14, %c2, %c0_15] : memref<1x10x10x64xf32, #tpu.memory_space<vmem>>, vector<1x8x8x64xf32>
    %16 = vector.shape_cast %15 : vector<1x8x8x64xf32> to vector<8x8x64xf32>
    %17 = vector.shape_cast %16 : vector<8x8x64xf32> to vector<64x64xf32>
    %18 = arith.truncf %17 : vector<64x64xf32> to vector<64x64xbf16>
    %c2_16 = arith.constant 2 : index
    %c0_17 = arith.constant 0 : index
    %c0_18 = arith.constant 0 : index
    %19 = vector.load %arg2[%c2_16, %c0_17, %c0_18] : memref<9x64x64xbf16, #tpu.memory_space<vmem>>, vector<1x64x64xbf16>
    %20 = vector.shape_cast %19 : vector<1x64x64xbf16> to vector<64x64xbf16>
    %cst_19 = arith.constant dense<0.000000e+00> : vector<64x64xf32>
    %21 = tpu.matmul %18, %20, %cst_19 {dimension_numbers = #tpu.dot_dimension_numbers<[1], [0], [0], [1], [0, 0, 1, 1], [], []>} : vector<64x64xbf16>, vector<64x64xbf16>, vector<64x64xf32> -> vector<64x64xf32>
    %22 = arith.addf %14, %21 : vector<64x64xf32>
    %c0_20 = arith.constant 0 : index
    %c1_21 = arith.constant 1 : index
    %c0_22 = arith.constant 0 : index
    %c0_23 = arith.constant 0 : index
    %23 = vector.load %arg1[%c0_20, %c1_21, %c0_22, %c0_23] : memref<1x10x10x64xf32, #tpu.memory_space<vmem>>, vector<1x8x8x64xf32>
    %24 = vector.shape_cast %23 : vector<1x8x8x64xf32> to vector<8x8x64xf32>
    %25 = vector.shape_cast %24 : vector<8x8x64xf32> to vector<64x64xf32>
    %26 = arith.truncf %25 : vector<64x64xf32> to vector<64x64xbf16>
    %c3 = arith.constant 3 : index
    %c0_24 = arith.constant 0 : index
    %c0_25 = arith.constant 0 : index
    %27 = vector.load %arg2[%c3, %c0_24, %c0_25] : memref<9x64x64xbf16, #tpu.memory_space<vmem>>, vector<1x64x64xbf16>
    %28 = vector.shape_cast %27 : vector<1x64x64xbf16> to vector<64x64xbf16>
    %cst_26 = arith.constant dense<0.000000e+00> : vector<64x64xf32>
    %29 = tpu.matmul %26, %28, %cst_26 {dimension_numbers = #tpu.dot_dimension_numbers<[1], [0], [0], [1], [0, 0, 1, 1], [], []>} : vector<64x64xbf16>, vector<64x64xbf16>, vector<64x64xf32> -> vector<64x64xf32>
    %30 = arith.addf %22, %29 : vector<64x64xf32>
    %c0_27 = arith.constant 0 : index
    %c1_28 = arith.constant 1 : index
    %c1_29 = arith.constant 1 : index
    %c0_30 = arith.constant 0 : index
    %31 = vector.load %arg1[%c0_27, %c1_28, %c1_29, %c0_30] : memref<1x10x10x64xf32, #tpu.memory_space<vmem>>, vector<1x8x8x64xf32>
    %32 = vector.shape_cast %31 : vector<1x8x8x64xf32> to vector<8x8x64xf32>
    %33 = vector.shape_cast %32 : vector<8x8x64xf32> to vector<64x64xf32>
    %34 = arith.truncf %33 : vector<64x64xf32> to vector<64x64xbf16>
    %c4 = arith.constant 4 : index
    %c0_31 = arith.constant 0 : index
    %c0_32 = arith.constant 0 : index
    %35 = vector.load %arg2[%c4, %c0_31, %c0_32] : memref<9x64x64xbf16, #tpu.memory_space<vmem>>, vector<1x64x64xbf16>
    %36 = vector.shape_cast %35 : vector<1x64x64xbf16> to vector<64x64xbf16>
    %cst_33 = arith.constant dense<0.000000e+00> : vector<64x64xf32>
    %37 = tpu.matmul %34, %36, %cst_33 {dimension_numbers = #tpu.dot_dimension_numbers<[1], [0], [0], [1], [0, 0, 1, 1], [], []>} : vector<64x64xbf16>, vector<64x64xbf16>, vector<64x64xf32> -> vector<64x64xf32>
    %38 = arith.addf %30, %37 : vector<64x64xf32>
    %c0_34 = arith.constant 0 : index
    %c1_35 = arith.constant 1 : index
    %c2_36 = arith.constant 2 : index
    %c0_37 = arith.constant 0 : index
    %39 = vector.load %arg1[%c0_34, %c1_35, %c2_36, %c0_37] : memref<1x10x10x64xf32, #tpu.memory_space<vmem>>, vector<1x8x8x64xf32>
    %40 = vector.shape_cast %39 : vector<1x8x8x64xf32> to vector<8x8x64xf32>
    %41 = vector.shape_cast %40 : vector<8x8x64xf32> to vector<64x64xf32>
    %42 = arith.truncf %41 : vector<64x64xf32> to vector<64x64xbf16>
    %c5 = arith.constant 5 : index
    %c0_38 = arith.constant 0 : index
    %c0_39 = arith.constant 0 : index
    %43 = vector.load %arg2[%c5, %c0_38, %c0_39] : memref<9x64x64xbf16, #tpu.memory_space<vmem>>, vector<1x64x64xbf16>
    %44 = vector.shape_cast %43 : vector<1x64x64xbf16> to vector<64x64xbf16>
    %cst_40 = arith.constant dense<0.000000e+00> : vector<64x64xf32>
    %45 = tpu.matmul %42, %44, %cst_40 {dimension_numbers = #tpu.dot_dimension_numbers<[1], [0], [0], [1], [0, 0, 1, 1], [], []>} : vector<64x64xbf16>, vector<64x64xbf16>, vector<64x64xf32> -> vector<64x64xf32>
    %46 = arith.addf %38, %45 : vector<64x64xf32>
    %c0_41 = arith.constant 0 : index
    %c2_42 = arith.constant 2 : index
    %c0_43 = arith.constant 0 : index
    %c0_44 = arith.constant 0 : index
    %47 = vector.load %arg1[%c0_41, %c2_42, %c0_43, %c0_44] : memref<1x10x10x64xf32, #tpu.memory_space<vmem>>, vector<1x8x8x64xf32>
    %48 = vector.shape_cast %47 : vector<1x8x8x64xf32> to vector<8x8x64xf32>
    %49 = vector.shape_cast %48 : vector<8x8x64xf32> to vector<64x64xf32>
    %50 = arith.truncf %49 : vector<64x64xf32> to vector<64x64xbf16>
    %c6 = arith.constant 6 : index
    %c0_45 = arith.constant 0 : index
    %c0_46 = arith.constant 0 : index
    %51 = vector.load %arg2[%c6, %c0_45, %c0_46] : memref<9x64x64xbf16, #tpu.memory_space<vmem>>, vector<1x64x64xbf16>
    %52 = vector.shape_cast %51 : vector<1x64x64xbf16> to vector<64x64xbf16>
    %cst_47 = arith.constant dense<0.000000e+00> : vector<64x64xf32>
    %53 = tpu.matmul %50, %52, %cst_47 {dimension_numbers = #tpu.dot_dimension_numbers<[1], [0], [0], [1], [0, 0, 1, 1], [], []>} : vector<64x64xbf16>, vector<64x64xbf16>, vector<64x64xf32> -> vector<64x64xf32>
    %54 = arith.addf %46, %53 : vector<64x64xf32>
    %c0_48 = arith.constant 0 : index
    %c2_49 = arith.constant 2 : index
    %c1_50 = arith.constant 1 : index
    %c0_51 = arith.constant 0 : index
    %55 = vector.load %arg1[%c0_48, %c2_49, %c1_50, %c0_51] : memref<1x10x10x64xf32, #tpu.memory_space<vmem>>, vector<1x8x8x64xf32>
    %56 = vector.shape_cast %55 : vector<1x8x8x64xf32> to vector<8x8x64xf32>
    %57 = vector.shape_cast %56 : vector<8x8x64xf32> to vector<64x64xf32>
    %58 = arith.truncf %57 : vector<64x64xf32> to vector<64x64xbf16>
    %c7 = arith.constant 7 : index
    %c0_52 = arith.constant 0 : index
    %c0_53 = arith.constant 0 : index
    %59 = vector.load %arg2[%c7, %c0_52, %c0_53] : memref<9x64x64xbf16, #tpu.memory_space<vmem>>, vector<1x64x64xbf16>
    %60 = vector.shape_cast %59 : vector<1x64x64xbf16> to vector<64x64xbf16>
    %cst_54 = arith.constant dense<0.000000e+00> : vector<64x64xf32>
    %61 = tpu.matmul %58, %60, %cst_54 {dimension_numbers = #tpu.dot_dimension_numbers<[1], [0], [0], [1], [0, 0, 1, 1], [], []>} : vector<64x64xbf16>, vector<64x64xbf16>, vector<64x64xf32> -> vector<64x64xf32>
    %62 = arith.addf %54, %61 : vector<64x64xf32>
    %c0_55 = arith.constant 0 : index
    %c2_56 = arith.constant 2 : index
    %c2_57 = arith.constant 2 : index
    %c0_58 = arith.constant 0 : index
    %63 = vector.load %arg1[%c0_55, %c2_56, %c2_57, %c0_58] : memref<1x10x10x64xf32, #tpu.memory_space<vmem>>, vector<1x8x8x64xf32>
    %64 = vector.shape_cast %63 : vector<1x8x8x64xf32> to vector<8x8x64xf32>
    %65 = vector.shape_cast %64 : vector<8x8x64xf32> to vector<64x64xf32>
    %66 = arith.truncf %65 : vector<64x64xf32> to vector<64x64xbf16>
    %c8 = arith.constant 8 : index
    %c0_59 = arith.constant 0 : index
    %c0_60 = arith.constant 0 : index
    %67 = vector.load %arg2[%c8, %c0_59, %c0_60] : memref<9x64x64xbf16, #tpu.memory_space<vmem>>, vector<1x64x64xbf16>
    %68 = vector.shape_cast %67 : vector<1x64x64xbf16> to vector<64x64xbf16>
    %cst_61 = arith.constant dense<0.000000e+00> : vector<64x64xf32>
    %69 = tpu.matmul %66, %68, %cst_61 {dimension_numbers = #tpu.dot_dimension_numbers<[1], [0], [0], [1], [0, 0, 1, 1], [], []>} : vector<64x64xbf16>, vector<64x64xbf16>, vector<64x64xf32> -> vector<64x64xf32>
    %70 = arith.addf %62, %69 : vector<64x64xf32>
    %c0_62 = arith.constant 0 : index
    %c0_63 = arith.constant 0 : index
    %71 = vector.load %arg3[%c0_62, %c0_63] : memref<1x64xf32, #tpu.memory_space<vmem>>, vector<1x64xf32>
    %c0_64 = arith.constant 0 : index
    %c0_65 = arith.constant 0 : index
    %72 = vector.load %arg4[%c0_64, %c0_65] : memref<1x64xf32, #tpu.memory_space<vmem>>, vector<1x64xf32>
    %c0_66 = arith.constant 0 : index
    %c0_67 = arith.constant 0 : index
    %73 = vector.load %arg5[%c0_66, %c0_67] : memref<64x32xf32, #tpu.memory_space<vmem>>, vector<64x32xf32>
    %c0_68 = arith.constant 0 : index
    %c0_69 = arith.constant 0 : index
    %74 = vector.load %arg6[%c0_68, %c0_69] : memref<32x64xf32, #tpu.memory_space<vmem>>, vector<32x64xf32>
    %cst_70 = arith.constant dense<0.000000e+00> : vector<64xf32>
    %75 = vector.multi_reduction <add>, %70, %cst_70 [0] : vector<64x64xf32> to vector<64xf32>
    %76 = vector.shape_cast %75 : vector<64xf32> to vector<1x64xf32>
    %cst_71 = arith.constant dense<0.000000e+00> : vector<1x32xf32>
    %77 = tpu.matmul %76, %73, %cst_71 {dimension_numbers = #tpu.dot_dimension_numbers<[1], [0], [0], [1], [0, 0, 1, 1], [], []>} : vector<1x64xf32>, vector<64x32xf32>, vector<1x32xf32> -> vector<1x32xf32>
    %cst_72 = arith.constant dense<0.000000e+00> : vector<1x64xf32>
    %78 = tpu.matmul %77, %74, %cst_72 {dimension_numbers = #tpu.dot_dimension_numbers<[1], [0], [0], [1], [0, 0, 1, 1], [], []>} : vector<1x32xf32>, vector<32x64xf32>, vector<1x64xf32> -> vector<1x64xf32>
    %cst_73 = arith.constant 1.280000e+02 : f32
    %79 = vector.broadcast %cst_73 : f32 to vector<1x64xf32>
    %80 = arith.divf %78, %79 : vector<1x64xf32>
    %81 = vector.broadcast %80 : vector<1x64xf32> to vector<64x64xf32>
    %82 = arith.subf %70, %81 : vector<64x64xf32>
    %83 = arith.mulf %82, %82 : vector<64x64xf32>
    %cst_74 = arith.constant dense<0.000000e+00> : vector<64xf32>
    %84 = vector.multi_reduction <add>, %83, %cst_74 [0] : vector<64x64xf32> to vector<64xf32>
    %85 = vector.shape_cast %84 : vector<64xf32> to vector<1x64xf32>
    %cst_75 = arith.constant dense<0.000000e+00> : vector<1x32xf32>
    %86 = tpu.matmul %85, %73, %cst_75 {dimension_numbers = #tpu.dot_dimension_numbers<[1], [0], [0], [1], [0, 0, 1, 1], [], []>} : vector<1x64xf32>, vector<64x32xf32>, vector<1x32xf32> -> vector<1x32xf32>
    %cst_76 = arith.constant 1.280000e+02 : f32
    %87 = vector.broadcast %cst_76 : f32 to vector<1x32xf32>
    %88 = arith.divf %86, %87 : vector<1x32xf32>
    %cst_77 = arith.constant 9.99999974E-6 : f32
    %89 = vector.broadcast %cst_77 : f32 to vector<1x32xf32>
    %90 = arith.addf %88, %89 : vector<1x32xf32>
    %91 = math.rsqrt %90 : vector<1x32xf32>
    %cst_78 = arith.constant dense<0.000000e+00> : vector<1x64xf32>
    %92 = tpu.matmul %91, %74, %cst_78 {dimension_numbers = #tpu.dot_dimension_numbers<[1], [0], [0], [1], [0, 0, 1, 1], [], []>} : vector<1x32xf32>, vector<32x64xf32>, vector<1x64xf32> -> vector<1x64xf32>
    %93 = vector.broadcast %92 : vector<1x64xf32> to vector<64x64xf32>
    %94 = arith.mulf %82, %93 : vector<64x64xf32>
    %95 = vector.broadcast %71 : vector<1x64xf32> to vector<64x64xf32>
    %96 = arith.mulf %94, %95 : vector<64x64xf32>
    %97 = vector.broadcast %72 : vector<1x64xf32> to vector<64x64xf32>
    %98 = arith.addf %96, %97 : vector<64x64xf32>
    %cst_79 = arith.constant 0.000000e+00 : f32
    %99 = vector.broadcast %cst_79 : f32 to vector<64x64xf32>
    %100 = arith.maximumf %98, %99 : vector<64x64xf32>
    %101 = arith.truncf %100 : vector<64x64xf32> to vector<64x64xbf16>
    %c0_80 = arith.constant 0 : index
    %c0_81 = arith.constant 0 : index
    %c0_82 = arith.constant 0 : index
    %102 = vector.load %arg7[%c0_80, %c0_81, %c0_82] : memref<1x64x64xbf16, #tpu.memory_space<vmem>>, vector<1x64x64xbf16>
    %103 = vector.shape_cast %102 : vector<1x64x64xbf16> to vector<64x64xbf16>
    %104 = vector.shape_cast %101 : vector<64x64xbf16> to vector<1x64x64xbf16>
    tpu.vector_store %arg7[%c0_80, %c0_81, %c0_82], %104 {strides = array<i32>} : memref<1x64x64xbf16, #tpu.memory_space<vmem>>, vector<1x64x64xbf16>,
    return
  }
  func.func @transform_0(%arg0: i32) -> (i32, i32, i32, i32) {
    %c0_i32 = arith.constant 0 : i32
    %c0_i32_0 = arith.constant 0 : i32
    %c0_i32_1 = arith.constant 0 : i32
    %c0_i32_2 = arith.constant 0 : i32
    return %arg0, %c0_i32, %c0_i32_0, %c0_i32_1 : i32, i32, i32, i32
  }
  func.func @transform_1(%arg0: i32) -> (i32, i32, i32) {
    %c0_i32 = arith.constant 0 : i32
    %c0_i32_0 = arith.constant 0 : i32
    %c0_i32_1 = arith.constant 0 : i32
    %c0_i32_2 = arith.constant 0 : i32
    return %c0_i32, %c0_i32_0, %c0_i32_1 : i32, i32, i32
  }
  func.func @transform_2(%arg0: i32) -> (i32, i32) {
    %c0_i32 = arith.constant 0 : i32
    %c0_i32_0 = arith.constant 0 : i32
    %c0_i32_1 = arith.constant 0 : i32
    return %c0_i32, %c0_i32_0 : i32, i32
  }
  func.func @transform_3(%arg0: i32) -> (i32, i32) {
    %c0_i32 = arith.constant 0 : i32
    %c0_i32_0 = arith.constant 0 : i32
    %c0_i32_1 = arith.constant 0 : i32
    return %c0_i32, %c0_i32_0 : i32, i32
  }
  func.func @transform_4(%arg0: i32) -> (i32, i32) {
    %c0_i32 = arith.constant 0 : i32
    %c0_i32_0 = arith.constant 0 : i32
    %c0_i32_1 = arith.constant 0 : i32
    return %c0_i32, %c0_i32_0 : i32, i32
  }
  func.func @transform_5(%arg0: i32) -> (i32, i32) {
    %c0_i32 = arith.constant 0 : i32
    %c0_i32_0 = arith.constant 0 : i32
    %c0_i32_1 = arith.constant 0 : i32
    return %c0_i32, %c0_i32_0 : i32, i32
  }
  func.func @transform_6(%arg0: i32) -> (i32, i32, i32) {
    %c0_i32 = arith.constant 0 : i32
    %c0_i32_0 = arith.constant 0 : i32
    %c0_i32_1 = arith.constant 0 : i32
    return %arg0, %c0_i32, %c0_i32_0 : i32, i32, i32
  }
}

module attributes {stable_mosaic.version = 11 : i64} {
  func.func @_conv1x1_gn_kernel(%arg0: i32, %arg1: memref<1x64x256xbf16, #tpu.memory_space<vmem>>, %arg2: memref<256x64xbf16, #tpu.memory_space<vmem>>, %arg3: memref<1x64xf32, #tpu.memory_space<vmem>>, %arg4: memref<1x64xf32, #tpu.memory_space<vmem>>, %arg5: memref<64x32xf32, #tpu.memory_space<vmem>>, %arg6: memref<32x64xf32, #tpu.memory_space<vmem>>, %arg7: memref<1x64x64xf32, #tpu.memory_space<vmem>>) attributes {dimension_semantics = [#tpu.dimension_semantics<parallel>], iteration_bounds = array<i64: 2>, scalar_prefetch = 0 : i64, scratch_operands = 0 : i64, tpu.core_type = #tpu.core_type<tc>, window_params = [{transform_indices = @transform_0, window_bounds = array<i64: 1, 64, 256>}, {pipeline_mode = #tpu.pipeline_mode<synchronous>, transform_indices = @transform_1, window_bounds = array<i64: 256, 64>}, {pipeline_mode = #tpu.pipeline_mode<synchronous>, transform_indices = @transform_2, window_bounds = array<i64: 1, 64>}, {pipeline_mode = #tpu.pipeline_mode<synchronous>, transform_indices = @transform_3, window_bounds = array<i64: 1, 64>}, {pipeline_mode = #tpu.pipeline_mode<synchronous>, transform_indices = @transform_4, window_bounds = array<i64: 64, 32>}, {pipeline_mode = #tpu.pipeline_mode<synchronous>, transform_indices = @transform_5, window_bounds = array<i64: 32, 64>}, {transform_indices = @transform_6, window_bounds = array<i64: 1, 64, 64>}]} {
    %c0 = arith.constant 0 : index
    %c0_0 = arith.constant 0 : index
    %c0_1 = arith.constant 0 : index
    %0 = vector.load %arg1[%c0, %c0_0, %c0_1] : memref<1x64x256xbf16, #tpu.memory_space<vmem>>, vector<1x64x256xbf16>
    %1 = vector.shape_cast %0 : vector<1x64x256xbf16> to vector<64x256xbf16>
    %c0_2 = arith.constant 0 : index
    %c0_3 = arith.constant 0 : index
    %2 = vector.load %arg2[%c0_2, %c0_3] : memref<256x64xbf16, #tpu.memory_space<vmem>>, vector<256x64xbf16>
    %cst = arith.constant dense<0.000000e+00> : vector<64x64xf32>
    %3 = tpu.matmul %1, %2, %cst {dimension_numbers = #tpu.dot_dimension_numbers<[1], [0], [0], [1], [0, 0, 1, 1], [], []>} : vector<64x256xbf16>, vector<256x64xbf16>, vector<64x64xf32> -> vector<64x64xf32>
    %c0_4 = arith.constant 0 : index
    %c0_5 = arith.constant 0 : index
    %4 = vector.load %arg3[%c0_4, %c0_5] : memref<1x64xf32, #tpu.memory_space<vmem>>, vector<1x64xf32>
    %c0_6 = arith.constant 0 : index
    %c0_7 = arith.constant 0 : index
    %5 = vector.load %arg4[%c0_6, %c0_7] : memref<1x64xf32, #tpu.memory_space<vmem>>, vector<1x64xf32>
    %c0_8 = arith.constant 0 : index
    %c0_9 = arith.constant 0 : index
    %6 = vector.load %arg5[%c0_8, %c0_9] : memref<64x32xf32, #tpu.memory_space<vmem>>, vector<64x32xf32>
    %c0_10 = arith.constant 0 : index
    %c0_11 = arith.constant 0 : index
    %7 = vector.load %arg6[%c0_10, %c0_11] : memref<32x64xf32, #tpu.memory_space<vmem>>, vector<32x64xf32>
    %cst_12 = arith.constant dense<0.000000e+00> : vector<64xf32>
    %8 = vector.multi_reduction <add>, %3, %cst_12 [0] : vector<64x64xf32> to vector<64xf32>
    %9 = vector.shape_cast %8 : vector<64xf32> to vector<1x64xf32>
    %cst_13 = arith.constant dense<0.000000e+00> : vector<1x32xf32>
    %10 = tpu.matmul %9, %6, %cst_13 {dimension_numbers = #tpu.dot_dimension_numbers<[1], [0], [0], [1], [0, 0, 1, 1], [], []>} : vector<1x64xf32>, vector<64x32xf32>, vector<1x32xf32> -> vector<1x32xf32>
    %cst_14 = arith.constant dense<0.000000e+00> : vector<1x64xf32>
    %11 = tpu.matmul %10, %7, %cst_14 {dimension_numbers = #tpu.dot_dimension_numbers<[1], [0], [0], [1], [0, 0, 1, 1], [], []>} : vector<1x32xf32>, vector<32x64xf32>, vector<1x64xf32> -> vector<1x64xf32>
    %cst_15 = arith.constant 1.280000e+02 : f32
    %12 = vector.broadcast %cst_15 : f32 to vector<1x64xf32>
    %13 = arith.divf %11, %12 : vector<1x64xf32>
    %14 = vector.broadcast %13 : vector<1x64xf32> to vector<64x64xf32>
    %15 = arith.subf %3, %14 : vector<64x64xf32>
    %16 = arith.mulf %15, %15 : vector<64x64xf32>
    %cst_16 = arith.constant dense<0.000000e+00> : vector<64xf32>
    %17 = vector.multi_reduction <add>, %16, %cst_16 [0] : vector<64x64xf32> to vector<64xf32>
    %18 = vector.shape_cast %17 : vector<64xf32> to vector<1x64xf32>
    %cst_17 = arith.constant dense<0.000000e+00> : vector<1x32xf32>
    %19 = tpu.matmul %18, %6, %cst_17 {dimension_numbers = #tpu.dot_dimension_numbers<[1], [0], [0], [1], [0, 0, 1, 1], [], []>} : vector<1x64xf32>, vector<64x32xf32>, vector<1x32xf32> -> vector<1x32xf32>
    %cst_18 = arith.constant 1.280000e+02 : f32
    %20 = vector.broadcast %cst_18 : f32 to vector<1x32xf32>
    %21 = arith.divf %19, %20 : vector<1x32xf32>
    %cst_19 = arith.constant 9.99999974E-6 : f32
    %22 = vector.broadcast %cst_19 : f32 to vector<1x32xf32>
    %23 = arith.addf %21, %22 : vector<1x32xf32>
    %24 = math.rsqrt %23 : vector<1x32xf32>
    %cst_20 = arith.constant dense<0.000000e+00> : vector<1x64xf32>
    %25 = tpu.matmul %24, %7, %cst_20 {dimension_numbers = #tpu.dot_dimension_numbers<[1], [0], [0], [1], [0, 0, 1, 1], [], []>} : vector<1x32xf32>, vector<32x64xf32>, vector<1x64xf32> -> vector<1x64xf32>
    %26 = vector.broadcast %25 : vector<1x64xf32> to vector<64x64xf32>
    %27 = arith.mulf %15, %26 : vector<64x64xf32>
    %28 = vector.broadcast %4 : vector<1x64xf32> to vector<64x64xf32>
    %29 = arith.mulf %27, %28 : vector<64x64xf32>
    %30 = vector.broadcast %5 : vector<1x64xf32> to vector<64x64xf32>
    %31 = arith.addf %29, %30 : vector<64x64xf32>
    %cst_21 = arith.constant 0.000000e+00 : f32
    %32 = vector.broadcast %cst_21 : f32 to vector<64x64xf32>
    %33 = arith.maximumf %31, %32 : vector<64x64xf32>
    %c0_22 = arith.constant 0 : index
    %c0_23 = arith.constant 0 : index
    %c0_24 = arith.constant 0 : index
    %34 = vector.load %arg7[%c0_22, %c0_23, %c0_24] : memref<1x64x64xf32, #tpu.memory_space<vmem>>, vector<1x64x64xf32>
    %35 = vector.shape_cast %34 : vector<1x64x64xf32> to vector<64x64xf32>
    %36 = vector.shape_cast %33 : vector<64x64xf32> to vector<1x64x64xf32>
    tpu.vector_store %arg7[%c0_22, %c0_23, %c0_24], %36 {strides = array<i32>} : memref<1x64x64xf32, #tpu.memory_space<vmem>>, vector<1x64x64xf32>,
    return
  }
  func.func @transform_0(%arg0: i32) -> (i32, i32, i32) {
    %c0_i32 = arith.constant 0 : i32
    %c0_i32_0 = arith.constant 0 : i32
    %c0_i32_1 = arith.constant 0 : i32
    return %arg0, %c0_i32, %c0_i32_0 : i32, i32, i32
  }
  func.func @transform_1(%arg0: i32) -> (i32, i32) {
    %c0_i32 = arith.constant 0 : i32
    %c0_i32_0 = arith.constant 0 : i32
    %c0_i32_1 = arith.constant 0 : i32
    return %c0_i32, %c0_i32_0 : i32, i32
  }
  func.func @transform_2(%arg0: i32) -> (i32, i32) {
    %c0_i32 = arith.constant 0 : i32
    %c0_i32_0 = arith.constant 0 : i32
    %c0_i32_1 = arith.constant 0 : i32
    return %c0_i32, %c0_i32_0 : i32, i32
  }
  func.func @transform_3(%arg0: i32) -> (i32, i32) {
    %c0_i32 = arith.constant 0 : i32
    %c0_i32_0 = arith.constant 0 : i32
    %c0_i32_1 = arith.constant 0 : i32
    return %c0_i32, %c0_i32_0 : i32, i32
  }
  func.func @transform_4(%arg0: i32) -> (i32, i32) {
    %c0_i32 = arith.constant 0 : i32
    %c0_i32_0 = arith.constant 0 : i32
    %c0_i32_1 = arith.constant 0 : i32
    return %c0_i32, %c0_i32_0 : i32, i32
  }
  func.func @transform_5(%arg0: i32) -> (i32, i32) {
    %c0_i32 = arith.constant 0 : i32
    %c0_i32_0 = arith.constant 0 : i32
    %c0_i32_1 = arith.constant 0 : i32
    return %c0_i32, %c0_i32_0 : i32, i32
  }
  func.func @transform_6(%arg0: i32) -> (i32, i32, i32) {
    %c0_i32 = arith.constant 0 : i32
    %c0_i32_0 = arith.constant 0 : i32
    %c0_i32_1 = arith.constant 0 : i32
    return %arg0, %c0_i32, %c0_i32_0 : i32, i32, i32
  }
}

</mosaic_0001>

<llo_original>
// kernel: _lambda_.7
$region0: #{_lambda_.7}
  #allocation0 [shape = 'u32[]', space=smem, size = 0x4, offset = 0x4, fixed_abs, tag = 'smem constant byte address 0x4 - core index']
  #allocation1 [shape = 'u32[72,128]{1,0:T(1,128)}', space=vmem, size = 0x9000, scoped, tag = 'internal scratch']
  %s0 = inlined_call_operand.vmem [shape: bf16[2,64,64], index: 0, kind: input, shape index: {}]
  %s1 = inlined_call_operand.vmem [shape: bf16[64,256], index: 1, kind: input, shape index: {}]
  %s2 = inlined_call_operand.vmem [shape: f32[1,256], index: 2, kind: input, shape index: {}]
  %s3 = inlined_call_operand.vmem [shape: f32[1,256], index: 3, kind: input, shape index: {}]
  %s4 = inlined_call_operand.vmem [shape: f32[256,32], index: 4, kind: input, shape index: {}]
  %s5 = inlined_call_operand.vmem [shape: f32[32,256], index: 5, kind: input, shape index: {}]
  %s6 = inlined_call_operand.vmem [shape: bf16[2,64,256], index: 6, kind: output, shape index: {}]
  %s7 = sld [smem:[#allocation0]]
  $region57: #{_lambda_.7} parent=0
    _
  %s9 = ssub.s32 1, %s7
  %s10 = scalar_select 0, %s9, %s7
  loop: start=0, step=1, limit=4
  $region2: #{_lambda_.7} parent=0 // loop_pre_header
    _
  $region3: #{_lambda_.7} parent=0 // loop_header
    %s12 = sphi 0, %s16
    %p13 = scmp.ge.s32.totalorder %s12, 4
    %s22 = sphi 0, %s24
    %s25 = sphi 0, %s22
    %s26 = sphi 0, %s25
    %s42 = sphi 0, %s26
    %s46 = sphi 0, %s46
    %s48 = sphi 0, %s46
    %s49 = sphi 0, %s48
    %s63 = sphi 0, %s49
    %s67 = sphi 0, %s67
    %s69 = sphi 0, %s67
    %s70 = sphi 0, %s69
    %s84 = sphi 0, %s70
    %s88 = sphi 0, %s88
    %s90 = sphi 0, %s88
    %s91 = sphi 0, %s90
    %s105 = sphi 0, %s91
    %s109 = sphi 0, %s109
    %s111 = sphi 0, %s109
    %s112 = sphi 0, %s111
    %s126 = sphi 0, %s112
    %s130 = sphi 0, %s130
    %s132 = sphi 0, %s130
    %s133 = sphi 0, %s132
    %s147 = sphi 0, %s133
    %s153 = sphi 0, %s155
    %s156 = sphi 0, %s153
    %s157 = sphi 0, %s156
    %s173 = sphi 0, %s157
  $region4: #{_lambda_.7} parent=0 // loop_header_branch
    %15 = sbr.rel (%p13) target = $region8
  $region5: #{_lambda_.7} parent=0 // loop_body
    %s17 = ssub.s32 %s12, 1
    %s18 = ssub.s32 %s12, 2
    %s19 = sadd.s32 %s12, 1
    %s20 = ssub.s32 %s12, %s19
    %p21 = scmp.eq.s32.totalorder %s20, 0
    %s23 = sadd.s32 %s22, 1
    %s24 = scalar_select %p21, %s22, %s23
    %p27 = pneg %p21
    %p28 = scmp.eq.s32.totalorder %s12, 1
    %p29 = por %p27, %p28
    %p30 = scmp.ne.s32.totalorder %s22, %s25
    %p31 = scmp.eq.s32.totalorder %s12, 0
    %p32 = por %p30, %p31
    %p33 = scmp.ne.s32.totalorder %s22, %s25
    %p34 = scmp.eq.s32.totalorder %s17, 1
    %p35 = por %p33, %p34
    %p36 = scmp.ne.s32.totalorder %s25, %s26
    %p37 = scmp.eq.s32.totalorder %s17, 0
    %p38 = por %p36, %p37
    %p39 = scmp.ne.s32.totalorder %s25, %s26
    %p40 = scmp.eq.s32.totalorder %s18, 1
    %p41 = por %p39, %p40
    %p43 = scmp.ne.s32.totalorder %s26, %s42
    %p44 = scmp.eq.s32.totalorder %s18, 0
    %p45 = por %p43, %p44
    %s47 = sadd.s32 %s46, 1
    %p50 = scmp.eq.s32.totalorder %s12, 1
    %p51 = scmp.ne.s32.totalorder %s46, %s48
    %p52 = scmp.eq.s32.totalorder %s12, 0
    %p53 = por %p51, %p52
    %p54 = scmp.ne.s32.totalorder %s46, %s48
    %p55 = scmp.eq.s32.totalorder %s17, 1
    %p56 = por %p54, %p55
    %p57 = scmp.ne.s32.totalorder %s48, %s49
    %p58 = scmp.eq.s32.totalorder %s17, 0
    %p59 = por %p57, %p58
    %p60 = scmp.ne.s32.totalorder %s48, %s49
    %p61 = scmp.eq.s32.totalorder %s18, 1
    %p62 = por %p60, %p61
    %p64 = scmp.ne.s32.totalorder %s49, %s63
    %p65 = scmp.eq.s32.totalorder %s18, 0
    %p66 = por %p64, %p65
    %s68 = sadd.s32 %s67, 1
    %p71 = scmp.eq.s32.totalorder %s12, 1
    %p72 = scmp.ne.s32.totalorder %s67, %s69
    %p73 = scmp.eq.s32.totalorder %s12, 0
    %p74 = por %p72, %p73
    %p75 = scmp.ne.s32.totalorder %s67, %s69
    %p76 = scmp.eq.s32.totalorder %s17, 1
    %p77 = por %p75, %p76
    %p78 = scmp.ne.s32.totalorder %s69, %s70
    %p79 = scmp.eq.s32.totalorder %s17, 0
    %p80 = por %p78, %p79
    %p81 = scmp.ne.s32.totalorder %s69, %s70
    %p82 = scmp.eq.s32.totalorder %s18, 1
    %p83 = por %p81, %p82
    %p85 = scmp.ne.s32.totalorder %s70, %s84
    %p86 = scmp.eq.s32.totalorder %s18, 0
    %p87 = por %p85, %p86
    %s89 = sadd.s32 %s88, 1
    %p92 = scmp.eq.s32.totalorder %s12, 1
    %p93 = scmp.ne.s32.totalorder %s88, %s90
    %p94 = scmp.eq.s32.totalorder %s12, 0
    %p95 = por %p93, %p94
    %p96 = scmp.ne.s32.totalorder %s88, %s90
    %p97 = scmp.eq.s32.totalorder %s17, 1
    %p98 = por %p96, %p97
    %p99 = scmp.ne.s32.totalorder %s90, %s91
    %p100 = scmp.eq.s32.totalorder %s17, 0
    %p101 = por %p99, %p100
    %p102 = scmp.ne.s32.totalorder %s90, %s91
    %p103 = scmp.eq.s32.totalorder %s18, 1
    %p104 = por %p102, %p103
    %p106 = scmp.ne.s32.totalorder %s91, %s105
    %p107 = scmp.eq.s32.totalorder %s18, 0
    %p108 = por %p106, %p107
    %s110 = sadd.s32 %s109, 1
    %p113 = scmp.eq.s32.totalorder %s12, 1
    %p114 = scmp.ne.s32.totalorder %s109, %s111
    %p115 = scmp.eq.s32.totalorder %s12, 0
    %p116 = por %p114, %p115
    %p117 = scmp.ne.s32.totalorder %s109, %s111
    %p118 = scmp.eq.s32.totalorder %s17, 1
    %p119 = por %p117, %p118
    %p120 = scmp.ne.s32.totalorder %s111, %s112
    %p121 = scmp.eq.s32.totalorder %s17, 0
    %p122 = por %p120, %p121
    %p123 = scmp.ne.s32.totalorder %s111, %s112
    %p124 = scmp.eq.s32.totalorder %s18, 1
    %p125 = por %p123, %p124
    %p127 = scmp.ne.s32.totalorder %s112, %s126
    %p128 = scmp.eq.s32.totalorder %s18, 0
    %p129 = por %p127, %p128
    %s131 = sadd.s32 %s130, 1
    %p134 = scmp.eq.s32.totalorder %s12, 1
    %p135 = scmp.ne.s32.totalorder %s130, %s132
    %p136 = scmp.eq.s32.totalorder %s12, 0
    %p137 = por %p135, %p136
    %p138 = scmp.ne.s32.totalorder %s130, %s132
    %p139 = scmp.eq.s32.totalorder %s17, 1
    %p140 = por %p138, %p139
    %p141 = scmp.ne.s32.totalorder %s132, %s133
    %p142 = scmp.eq.s32.totalorder %s17, 0
    %p143 = por %p141, %p142
    %p144 = scmp.ne.s32.totalorder %s132, %s133
    %p145 = scmp.eq.s32.totalorder %s18, 1
    %p146 = por %p144, %p145
    %p148 = scmp.ne.s32.totalorder %s133, %s147
    %p149 = scmp.eq.s32.totalorder %s18, 0
    %p150 = por %p148, %p149
    %s151 = ssub.s32 %s12, %s19
    %p152 = scmp.eq.s32.totalorder %s151, 0
    %s154 = sadd.s32 %s153, 1
    %s155 = scalar_select %p152, %s153, %s154
    %p158 = pneg %p152
    %p159 = scmp.eq.s32.totalorder %s12, 1
    %p160 = por %p158, %p159
    %p161 = scmp.ne.s32.totalorder %s153, %s156
    %p162 = scmp.eq.s32.totalorder %s12, 0
    %p163 = por %p161, %p162
    %p164 = scmp.ne.s32.totalorder %s153, %s156
    %p165 = scmp.eq.s32.totalorder %s17, 1
    %p166 = por %p164, %p165
    %p167 = scmp.ne.s32.totalorder %s156, %s157
    %p168 = scmp.eq.s32.totalorder %s17, 0
    %p169 = por %p167, %p168
    %p170 = scmp.ne.s32.totalorder %s156, %s157
    %p171 = scmp.eq.s32.totalorder %s18, 1
    %p172 = por %p170, %p171
    %p174 = scmp.ne.s32.totalorder %s157, %s173
    %p175 = scmp.eq.s32.totalorder %s18, 0
    %p176 = por %p174, %p175
    %p177 = scmp.le.s32.totalorder 1, %s12
    %p178 = scmp.lt.s32.totalorder %s12, 3
    %p179 = pnand %p177, %p178
    %p180 = pneg %p179
    // Predicated region
    $region9: #{_lambda_.7} parent=5 // pred_check
      _
    $region10: #{_lambda_.7} parent=5 // pred_check_branch
      %182 = sbr.rel (%p179) target = $region12
    $region11: #{_lambda_.7} parent=5 // pred_region
      %s183 = ssub.s32 %s12, 1
      // Predicated region
      $region13: #{_lambda_.7} parent=11 // pred_check
        %p184 = pneg %p59
      $region14: #{_lambda_.7} parent=11 // pred_check_branch
        %186 = sbr.rel (%p184) target = $region16
      $region15: #{_lambda_.7} parent=11 // pred_region
        _
      $region16: #{_lambda_.7} parent=11 // pred_fallthru
        _
      // Predicated region
      $region17: #{_lambda_.7} parent=11 // pred_check
        %p187 = pneg %p80
      $region18: #{_lambda_.7} parent=11 // pred_check_branch
        %189 = sbr.rel (%p187) target = $region20
      $region19: #{_lambda_.7} parent=11 // pred_region
        _
      $region20: #{_lambda_.7} parent=11 // pred_fallthru
        _
      // Predicated region
      $region21: #{_lambda_.7} parent=11 // pred_check
        %p190 = pneg %p101
      $region22: #{_lambda_.7} parent=11 // pred_check_branch
        %192 = sbr.rel (%p190) target = $region24
      $region23: #{_lambda_.7} parent=11 // pred_region
        _
      $region24: #{_lambda_.7} parent=11 // pred_fallthru
        _
      // Predicated region
      $region25: #{_lambda_.7} parent=11 // pred_check
        %p193 = pneg %p122
      $region26: #{_lambda_.7} parent=11 // pred_check_branch
        %195 = sbr.rel (%p193) target = $region28
      $region27: #{_lambda_.7} parent=11 // pred_region
        _
      $region28: #{_lambda_.7} parent=11 // pred_fallthru
        _
      // Predicated region
      $region29: #{_lambda_.7} parent=11 // pred_check
        %p196 = pneg %p143
      $region30: #{_lambda_.7} parent=11 // pred_check_branch
        %198 = sbr.rel (%p196) target = $region32
      $region31: #{_lambda_.7} parent=11 // pred_region
        _
      $region32: #{_lambda_.7} parent=11 // pred_fallthru
        _
    $region12: #{_lambda_.7} parent=5 // pred_fallthru
      _
    %p199 = scmp.lt.s32.totalorder %s12, 2
    // Predicated region
    $region33: #{_lambda_.7} parent=5 // pred_check
      %p200 = pneg %p199
    $region34: #{_lambda_.7} parent=5 // pred_check_branch
      %202 = sbr.rel (%p200) target = $region36
    $region35: #{_lambda_.7} parent=5 // pred_region
      // Predicated region
      $region37: #{_lambda_.7} parent=35 // pred_check
        %p203 = pneg %p32
      $region38: #{_lambda_.7} parent=35 // pred_check_branch
        %205 = sbr.rel (%p203) target = $region40
      $region39: #{_lambda_.7} parent=35 // pred_region
        %p206 = scmp.lt.s32.totalorder %s12, 1
        %s207 = scalar_select %p206, %s12, 1
        %s208 = smul.addr %s207, 8
        %s209 = smul.addr %s208, 4
        %s210 = scalar_lea.vmem %s0, %s209
      $region40: #{_lambda_.7} parent=35 // pred_fallthru
        _
    $region36: #{_lambda_.7} parent=5 // pred_fallthru
      _
    %p211 = scmp.le.s32.totalorder 1, %s12
    %p212 = scmp.lt.s32.totalorder %s12, 3
    %p213 = pnand %p211, %p212
    %p214 = pneg %p213
    // Predicated region
    $region41: #{_lambda_.7} parent=5 // pred_check
      _
    $region42: #{_lambda_.7} parent=5 // pred_check_branch
      %216 = sbr.rel (%p213) target = $region44
    $region43: #{_lambda_.7} parent=5 // pred_region
      %s217 = ssub.s32 %s12, 1
      %p218 = scmp.lt.s32.totalorder %s17, 1
      %s219 = scalar_select %p218, %s17, 1
      %s220 = smul.addr %s219, 8
      %s221 = smul.addr %s220, 4
      %s222 = scalar_lea.vmem %s0, %s221
      %p223 = pneg %p38
      %p224 = pneg %p35
      %p225 = pneg %p59
      %p226 = pneg %p56
      %p227 = pneg %p80
      %p228 = pneg %p77
      %p229 = pneg %p101
      %p230 = pneg %p98
      %p231 = pneg %p122
      %p232 = pneg %p119
      %p233 = pneg %p143
      %p234 = pneg %p140
      %p235 = pneg %p169
      %p236 = pneg %p166
      %p237 = scmp.lt.s32.totalorder %s17, 1
      %s238 = scalar_select %p237, %s17, 1
      %s239 = smul.addr %s238, 16
      %s240 = smul.addr %s239, 4
      %s241 = scalar_lea.vmem %s6, %s240
      %p242 = scmp.lt.s32.totalorder %s17, 1
      %s243 = scalar_select %p242, %s17, 1
      %s244 = smul.addr %s243, 8
      %s245 = smul.addr %s244, 4
      %s246 = scalar_lea.vmem %s0, %s245
      %p247 = scmp.lt.s32.totalorder %s17, 1
      %s248 = scalar_select %p247, %s17, 1
      %s249 = smul.addr %s248, 16
      %s250 = smul.addr %s249, 4
      %s251 = scalar_lea.vmem %s6, %s250
      %v253 = vld [vmem:[%s246] sm:$0xf]
      %v254 = vld [vmem:[%s246 + $0x4] sm:$0xf]
      %v255 = vld [vmem:[%s246 + $0x8] sm:$0xf]
      %v256 = vld [vmem:[%s246 + $0xc] sm:$0xf]
      %v257 = vld [vmem:[%s246 + $0x10] sm:$0xf]
      %v258 = vld [vmem:[%s246 + $0x14] sm:$0xf]
      %v259 = vld [vmem:[%s246 + $0x18] sm:$0xf]
      %v260 = vld [vmem:[%s246 + $0x1c] sm:$0xf]
      %v261 = vld [vmem:[%s1] sm:$0xff]
      %v262 = vld [vmem:[%s1 + $0x8] sm:$0xff]
      %v263 = vld [vmem:[%s1 + $0x10] sm:$0xff]
      %v264 = vld [vmem:[%s1 + $0x18] sm:$0xff]
      %v265 = vld [vmem:[%s1 + $0x20] sm:$0xff]
      %v266 = vld [vmem:[%s1 + $0x28] sm:$0xff]
      %v267 = vld [vmem:[%s1 + $0x30] sm:$0xff]
      %v268 = vld [vmem:[%s1 + $0x38] sm:$0xff]
      %v277 = vunpack.c.l.b16 %v253
      %v278 = vunpack.c.l.b16 %v254
      %v279 = vunpack.c.l.b16 %v255
      %v280 = vunpack.c.l.b16 %v256
      %v281 = vunpack.c.l.b16 %v257
      %v282 = vunpack.c.l.b16 %v258
      %v283 = vunpack.c.l.b16 %v259
      %v284 = vunpack.c.l.b16 %v260
      %v285 = vpack.c.b16 %v278, %v277
      %v286 = vpack.c.b16 %v280, %v279
      %v287 = vpack.c.b16 %v282, %v281
      %v288 = vpack.c.b16 %v284, %v283
      %v297 = vunpack.c.l.b16 %v261
      %v298 = vunpack.c.h.b16 %v261
      %v299 = vunpack.c.l.b16 %v262
      %v300 = vunpack.c.h.b16 %v262
      %v301 = vunpack.c.l.b16 %v263
      %v302 = vunpack.c.h.b16 %v263
      %v303 = vunpack.c.l.b16 %v264
      %v304 = vunpack.c.h.b16 %v264
      %v305 = vunpack.c.l.b16 %v265
      %v306 = vunpack.c.h.b16 %v265
      %v307 = vunpack.c.l.b16 %v266
      %v308 = vunpack.c.h.b16 %v266
      %v309 = vunpack.c.l.b16 %v267
      %v310 = vunpack.c.h.b16 %v267
      %v311 = vunpack.c.l.b16 %v268
      %v312 = vunpack.c.h.b16 %v268
      %v313 = vpack.c.b16 %v299, %v297
      %v314 = vpack.c.b16 %v300, %v298
      %v315 = vpack.c.b16 %v303, %v301
      %v316 = vpack.c.b16 %v304, %v302
      %v317 = vpack.c.b16 %v307, %v305
      %v318 = vpack.c.b16 %v308, %v306
      %v319 = vpack.c.b16 %v311, %v309
      %v320 = vpack.c.b16 %v312, %v310
      %vm329 = vcmask 523264
      %v331 = vsel %vm329, %v285, 0
      %v334 = vsel %vm329, %v286, 0
      %v337 = vsel %vm329, %v287, 0
      %v340 = vsel %vm329, %v288, 0
      %342 = vmatpush.bf16.msra.mxu0 0
      %343 = vmatpush.bf16.msra.mxu0 0
      %344 = vmatpush.bf16.msra.mxu0 0
      %345 = vmatpush.bf16.msra.mxu0 0
      %346 = vmatpush.bf16.msra.mxu0 %v319
      %347 = vmatpush.bf16.msra.mxu0 %v317
      %348 = vmatpush.bf16.msra.mxu0 %v315
      %349 = vmatpush.bf16.msra.mxu0 %v313
      %350 = vmatmul.bf16.gmra.mxu0 %v331
      %v351 = vpop.f32.mrf.mxu0
      %v352 = vadd.f32 0.0, %v351
      %v353 = vpop.f32.mrf.mxu0
      %v354 = vadd.f32 0.0, %v353
      %355 = vmatmul.bf16.gmra.mxu0 %v334
      %v356 = vpop.f32.mrf.mxu0
      %v357 = vadd.f32 0.0, %v356
      %v358 = vpop.f32.mrf.mxu0
      %v359 = vadd.f32 0.0, %v358
      %360 = vmatmul.bf16.gmra.mxu0 %v337
      %v361 = vpop.f32.mrf.mxu0
      %v362 = vadd.f32 0.0, %v361
      %v363 = vpop.f32.mrf.mxu0
      %v364 = vadd.f32 0.0, %v363
      %365 = vmatmul.bf16.gmra.mxu0 %v340
      %v366 = vpop.f32.mrf.mxu0
      %v367 = vadd.f32 0.0, %v366
      %v368 = vpop.f32.mrf.mxu0
      %v369 = vadd.f32 0.0, %v368
      %370 = vdwg.mxu0
      %371 = vmatpush.bf16.msra.mxu0 0
      %372 = vmatpush.bf16.msra.mxu0 0
      %373 = vmatpush.bf16.msra.mxu0 0
      %374 = vmatpush.bf16.msra.mxu0 0
      %375 = vmatpush.bf16.msra.mxu0 %v320
      %376 = vmatpush.bf16.msra.mxu0 %v318
      %377 = vmatpush.bf16.msra.mxu0 %v316
      %378 = vmatpush.bf16.msra.mxu0 %v314
      %379 = vmatmul.bf16.gmra.mxu0 %v331
      %v380 = vpop.f32.mrf.mxu0
      %v381 = vadd.f32 0.0, %v380
      %v382 = vpop.f32.mrf.mxu0
      %v383 = vadd.f32 0.0, %v382
      %384 = vmatmul.bf16.gmra.mxu0 %v334
      %v385 = vpop.f32.mrf.mxu0
      %v386 = vadd.f32 0.0, %v385
      %v387 = vpop.f32.mrf.mxu0
      %v388 = vadd.f32 0.0, %v387
      %389 = vmatmul.bf16.gmra.mxu0 %v337
      %v390 = vpop.f32.mrf.mxu0
      %v391 = vadd.f32 0.0, %v390
      %v392 = vpop.f32.mrf.mxu0
      %v393 = vadd.f32 0.0, %v392
      %394 = vmatmul.bf16.gmra.mxu0 %v340
      %v395 = vpop.f32.mrf.mxu0
      %v396 = vadd.f32 0.0, %v395
      %v397 = vpop.f32.mrf.mxu0
      %v398 = vadd.f32 0.0, %v397
      %399 = vdwg.mxu0
      %v400 = vld [vmem:[%s2] sm:$0x3]
      %v401 = vld [vmem:[%s3] sm:$0x3]
      %v402 = vld [vmem:[%s4] sm:$0xff]
      %v403 = vld [vmem:[%s4 + $0x8] sm:$0xff]
      %v404 = vld [vmem:[%s4 + $0x10] sm:$0xff]
      %v405 = vld [vmem:[%s4 + $0x18] sm:$0xff]
      %v406 = vld [vmem:[%s4 + $0x20] sm:$0xff]
      %v407 = vld [vmem:[%s4 + $0x28] sm:$0xff]
      %v408 = vld [vmem:[%s4 + $0x30] sm:$0xff]
      %v409 = vld [vmem:[%s4 + $0x38] sm:$0xff]
      %v410 = vld [vmem:[%s4 + $0x40] sm:$0xff]
      %v411 = vld [vmem:[%s4 + $0x48] sm:$0xff]
      %v412 = vld [vmem:[%s4 + $0x50] sm:$0xff]
      %v413 = vld [vmem:[%s4 + $0x58] sm:$0xff]
      %v414 = vld [vmem:[%s4 + $0x60] sm:$0xff]
      %v415 = vld [vmem:[%s4 + $0x68] sm:$0xff]
      %v416 = vld [vmem:[%s4 + $0x70] sm:$0xff]
      %v417 = vld [vmem:[%s4 + $0x78] sm:$0xff]
      %v418 = vld [vmem:[%s4 + $0x80] sm:$0xff]
      %v419 = vld [vmem:[%s4 + $0x88] sm:$0xff]
      %v420 = vld [vmem:[%s4 + $0x90] sm:$0xff]
      %v421 = vld [vmem:[%s4 + $0x98] sm:$0xff]
      %v422 = vld [vmem:[%s4 + $0xa0] sm:$0xff]
      %v423 = vld [vmem:[%s4 + $0xa8] sm:$0xff]
      %v424 = vld [vmem:[%s4 + $0xb0] sm:$0xff]
      %v425 = vld [vmem:[%s4 + $0xb8] sm:$0xff]
      %v426 = vld [vmem:[%s4 + $0xc0] sm:$0xff]
      %v427 = vld [vmem:[%s4 + $0xc8] sm:$0xff]
      %v428 = vld [vmem:[%s4 + $0xd0] sm:$0xff]
      %v429 = vld [vmem:[%s4 + $0xd8] sm:$0xff]
      %v430 = vld [vmem:[%s4 + $0xe0] sm:$0xff]
      %v431 = vld [vmem:[%s4 + $0xe8] sm:$0xff]
      %v432 = vld [vmem:[%s4 + $0xf0] sm:$0xff]
      %v433 = vld [vmem:[%s4 + $0xf8] sm:$0xff]
      %v434 = vld [vmem:[%s5] sm:$0xff]
      %v435 = vld [vmem:[%s5 + $0x8] sm:$0xff]
      %v436 = vld [vmem:[%s5 + $0x10] sm:$0xff]
      %v437 = vld [vmem:[%s5 + $0x18] sm:$0xff]
      %v438 = vld [vmem:[%s5 + $0x20] sm:$0xff]
      %v439 = vld [vmem:[%s5 + $0x28] sm:$0xff]
      %v440 = vld [vmem:[%s5 + $0x30] sm:$0xff]
      %v441 = vld [vmem:[%s5 + $0x38] sm:$0xff]
      %v442 = vadd.f32 %v352, %v354
      %v443 = vadd.f32 %v442, %v357
      %v444 = vadd.f32 %v443, %v359
      %v445 = vadd.f32 %v444, %v362
      %v446 = vadd.f32 %v445, %v364
      %v447 = vadd.f32 %v446, %v367
      %v448 = vadd.f32 %v447, %v369
      %v449 = vrot.slane %v448, 4
      %v450 = vadd.f32 %v448, %v449
      %v451 = vrot.slane %v450, 2
      %v452 = vadd.f32 %v450, %v451
      %v453 = vrot.slane %v452, 1
      %v454 = vadd.f32 %v452, %v453
      %v455 = vadd.f32 %v381, %v383
      %v456 = vadd.f32 %v455, %v386
      %v457 = vadd.f32 %v456, %v388
      %v458 = vadd.f32 %v457, %v391
      %v459 = vadd.f32 %v458, %v393
      %v460 = vadd.f32 %v459, %v396
      %v461 = vadd.f32 %v460, %v398
      %v462 = vrot.slane %v461, 4
      %v463 = vadd.f32 %v461, %v462
      %v464 = vrot.slane %v463, 2
      %v465 = vadd.f32 %v463, %v464
      %v466 = vrot.slane %v465, 1
      %v467 = vadd.f32 %v465, %v466
      %468 = vmatpush.msra.mxu0 %v417
      %469 = vmatpush.msra.mxu0 %v416
      %470 = vmatpush.msra.mxu0 %v415
      %471 = vmatpush.msra.mxu0 %v414
      %472 = vmatpush.msra.mxu0 %v413
      %473 = vmatpush.msra.mxu0 %v412
      %474 = vmatpush.msra.mxu0 %v411
      %475 = vmatpush.msra.mxu0 %v410
      %476 = vmatpush.msra.mxu0 %v409
      %477 = vmatpush.msra.mxu0 %v408
      %478 = vmatpush.msra.mxu0 %v407
      %479 = vmatpush.msra.mxu0 %v406
      %480 = vmatpush.msra.mxu0 %v405
      %481 = vmatpush.msra.mxu0 %v404
      %482 = vmatpush.msra.mxu0 %v403
      %483 = vmatpush.msra.mxu0 %v402
      %484 = vmatmul.f32.gmra.mxu0 %v454
      %v485 = vpop.f32.mrf.mxu0
      %v486 = vadd.f32 0.0, %v485
      %487 = vdwg.mxu0
      %488 = vmatpush.msra.mxu0 %v433
      %489 = vmatpush.msra.mxu0 %v432
      %490 = vmatpush.msra.mxu0 %v431
      %491 = vmatpush.msra.mxu0 %v430
      %492 = vmatpush.msra.mxu0 %v429
      %493 = vmatpush.msra.mxu0 %v428
      %494 = vmatpush.msra.mxu0 %v427
      %495 = vmatpush.msra.mxu0 %v426
      %496 = vmatpush.msra.mxu0 %v425
      %497 = vmatpush.msra.mxu0 %v424
      %498 = vmatpush.msra.mxu0 %v423
      %499 = vmatpush.msra.mxu0 %v422
      %500 = vmatpush.msra.mxu0 %v421
      %501 = vmatpush.msra.mxu0 %v420
      %502 = vmatpush.msra.mxu0 %v419
      %503 = vmatpush.msra.mxu0 %v418
      %504 = vmatmul.f32.gmra.mxu0 %v467
      %v505 = vpop.f32.mrf.mxu0
      %v506 = vadd.f32 %v486, %v505
      %507 = vdwg.mxu0
      %vm508 = vcmask 261120
      %v510 = vsel %vm508, %v506, 0
      %512 = vmatpush.msra.mxu0 0.0
      %513 = vmatpush.msra.mxu0 0.0
      %514 = vmatpush.msra.mxu0 0.0
      %515 = vmatpush.msra.mxu0 0.0
      %516 = vmatpush.msra.mxu0 0.0
      %517 = vmatpush.msra.mxu0 0.0
      %518 = vmatpush.msra.mxu0 0.0
      %519 = vmatpush.msra.mxu0 0.0
      %520 = vmatpush.msra.mxu0 0.0
      %521 = vmatpush.msra.mxu0 0.0
      %522 = vmatpush.msra.mxu0 0.0
      %523 = vmatpush.msra.mxu0 0.0
      %524 = vmatpush.msra.mxu0 %v440
      %525 = vmatpush.msra.mxu0 %v438
      %526 = vmatpush.msra.mxu0 %v436
      %527 = vmatpush.msra.mxu0 %v434
      %528 = vmatmul.f32.gmra.mxu0 %v510
      %v529 = vpop.f32.mrf.mxu0
      %v530 = vadd.f32 0.0, %v529
      %531 = vdwg.mxu0
      %532 = vmatpush.msra.mxu0 0.0
      %533 = vmatpush.msra.mxu0 0.0
      %534 = vmatpush.msra.mxu0 0.0
      %535 = vmatpush.msra.mxu0 0.0
      %536 = vmatpush.msra.mxu0 0.0
      %537 = vmatpush.msra.mxu0 0.0
      %538 = vmatpush.msra.mxu0 0.0
      %539 = vmatpush.msra.mxu0 0.0
      %540 = vmatpush.msra.mxu0 0.0
      %541 = vmatpush.msra.mxu0 0.0
      %542 = vmatpush.msra.mxu0 0.0
      %543 = vmatpush.msra.mxu0 0.0
      %544 = vmatpush.msra.mxu0 %v441
      %545 = vmatpush.msra.mxu0 %v439
      %546 = vmatpush.msra.mxu0 %v437
      %547 = vmatpush.msra.mxu0 %v435
      %548 = vmatmul.f32.gmra.mxu0 %v510
      %v549 = vpop.f32.mrf.mxu0
      %v550 = vadd.f32 0.0, %v549
      %551 = vdwg.mxu0
      %v552 = vrcp.pop 512.0
      %v553 = vmul.f32 512.0, %v552
      %v554 = vsub.f32 1.0, %v553
      %v555 = vmul.f32 %v552, %v554
      %v556 = vadd.f32 %v552, %v555
      %vm557 = vweird.f32 %v552
      %v558 = vsel %vm557, %v552, %v556
      %v559 = vmul.f32 %v530, %v558
      %v560 = vmul.f32 %v550, %v558
      %v561 = vperm.slane %v559, 0
      %v562 = vperm.slane %v560, 0
      %v563 = vsub.f32 %v352, %v561
      %v564 = vsub.f32 %v381, %v562
      %v565 = vsub.f32 %v354, %v561
      %v566 = vsub.f32 %v383, %v562
      %v567 = vsub.f32 %v357, %v561
      %v568 = vsub.f32 %v386, %v562
      %v569 = vsub.f32 %v359, %v561
      %v570 = vsub.f32 %v388, %v562
      %v571 = vsub.f32 %v362, %v561
      %v572 = vsub.f32 %v391, %v562
      %v573 = vsub.f32 %v364, %v561
      %v574 = vsub.f32 %v393, %v562
      %v575 = vsub.f32 %v367, %v561
      %v576 = vsub.f32 %v396, %v562
      %v577 = vsub.f32 %v369, %v561
      %v578 = vsub.f32 %v398, %v562
      %v579 = vmul.f32 %v563, %v563
      %v580 = vmul.f32 %v564, %v564
      %v581 = vmul.f32 %v565, %v565
      %v582 = vmul.f32 %v566, %v566
      %v583 = vmul.f32 %v567, %v567
      %v584 = vmul.f32 %v568, %v568
      %v585 = vmul.f32 %v569, %v569
      %v586 = vmul.f32 %v570, %v570
      %v587 = vmul.f32 %v571, %v571
      %v588 = vmul.f32 %v572, %v572
      %v589 = vmul.f32 %v573, %v573
      %v590 = vmul.f32 %v574, %v574
      %v591 = vmul.f32 %v575, %v575
      %v592 = vmul.f32 %v576, %v576
      %v593 = vmul.f32 %v577, %v577
      %v594 = vmul.f32 %v578, %v578
      %v595 = vadd.f32 %v579, %v581
      %v596 = vadd.f32 %v595, %v583
      %v597 = vadd.f32 %v596, %v585
      %v598 = vadd.f32 %v597, %v587
      %v599 = vadd.f32 %v598, %v589
      %v600 = vadd.f32 %v599, %v591
      %v601 = vadd.f32 %v600, %v593
      %v602 = vrot.slane %v601, 4
      %v603 = vadd.f32 %v601, %v602
      %v604 = vrot.slane %v603, 2
      %v605 = vadd.f32 %v603, %v604
      %v606 = vrot.slane %v605, 1
      %v607 = vadd.f32 %v605, %v606
      %v608 = vadd.f32 %v580, %v582
      %v609 = vadd.f32 %v608, %v584
      %v610 = vadd.f32 %v609, %v586
      %v611 = vadd.f32 %v610, %v588
      %v612 = vadd.f32 %v611, %v590
      %v613 = vadd.f32 %v612, %v592
      %v614 = vadd.f32 %v613, %v594
      %v615 = vrot.slane %v614, 4
      %v616 = vadd.f32 %v614, %v615
      %v617 = vrot.slane %v616, 2
      %v618 = vadd.f32 %v616, %v617
      %v619 = vrot.slane %v618, 1
      %v620 = vadd.f32 %v618, %v619
      %621 = vmatpush.msra.mxu0 %v417
      %622 = vmatpush.msra.mxu0 %v416
      %623 = vmatpush.msra.mxu0 %v415
      %624 = vmatpush.msra.mxu0 %v414
      %625 = vmatpush.msra.mxu0 %v413
      %626 = vmatpush.msra.mxu0 %v412
      %627 = vmatpush.msra.mxu0 %v411
      %628 = vmatpush.msra.mxu0 %v410
      %629 = vmatpush.msra.mxu0 %v409
      %630 = vmatpush.msra.mxu0 %v408
      %631 = vmatpush.msra.mxu0 %v407
      %632 = vmatpush.msra.mxu0 %v406
      %633 = vmatpush.msra.mxu0 %v405
      %634 = vmatpush.msra.mxu0 %v404
      %635 = vmatpush.msra.mxu0 %v403
      %636 = vmatpush.msra.mxu0 %v402
      %637 = vmatmul.f32.gmra.mxu0 %v607
      %v638 = vpop.f32.mrf.mxu0
      %v639 = vadd.f32 0.0, %v638
      %640 = vdwg.mxu0
      %641 = vmatpush.msra.mxu0 %v433
      %642 = vmatpush.msra.mxu0 %v432
      %643 = vmatpush.msra.mxu0 %v431
      %644 = vmatpush.msra.mxu0 %v430
      %645 = vmatpush.msra.mxu0 %v429
      %646 = vmatpush.msra.mxu0 %v428
      %647 = vmatpush.msra.mxu0 %v427
      %648 = vmatpush.msra.mxu0 %v426
      %649 = vmatpush.msra.mxu0 %v425
      %650 = vmatpush.msra.mxu0 %v424
      %651 = vmatpush.msra.mxu0 %v423
      %652 = vmatpush.msra.mxu0 %v422
      %653 = vmatpush.msra.mxu0 %v421
      %654 = vmatpush.msra.mxu0 %v420
      %655 = vmatpush.msra.mxu0 %v419
      %656 = vmatpush.msra.mxu0 %v418
      %657 = vmatmul.f32.gmra.mxu0 %v620
      %v658 = vpop.f32.mrf.mxu0
      %v659 = vadd.f32 %v639, %v658
      %660 = vdwg.mxu0
      %v661 = vmul.f32 %v659, %v558
      %v662 = vadd.f32 %v661, 1e-05
      %v663 = vrsqrt.pop %v662
      %v664 = vmul.f32 %v663, %v662
      %v665 = vmul.f32 %v664, %v663
      %v666 = vmul.f32 0.5, %v665
      %v667 = vsub.f32 1.5, %v666
      %v668 = vmul.f32 %v663, %v667
      %vm669 = vweird.f32 %v662
      %vm670 = vweird.f32 %v663
      %vm671 = vmor %vm669, %vm670
      %v672 = vsel %vm671, %v663, %v668
      %v674 = vsel %vm508, %v672, 0
      %676 = vmatpush.msra.mxu0 0.0
      %677 = vmatpush.msra.mxu0 0.0
      %678 = vmatpush.msra.mxu0 0.0
      %679 = vmatpush.msra.mxu0 0.0
      %680 = vmatpush.msra.mxu0 0.0
      %681 = vmatpush.msra.mxu0 0.0
      %682 = vmatpush.msra.mxu0 0.0
      %683 = vmatpush.msra.mxu0 0.0
      %684 = vmatpush.msra.mxu0 0.0
      %685 = vmatpush.msra.mxu0 0.0
      %686 = vmatpush.msra.mxu0 0.0
      %687 = vmatpush.msra.mxu0 0.0
      %688 = vmatpush.msra.mxu0 %v440
      %689 = vmatpush.msra.mxu0 %v438
      %690 = vmatpush.msra.mxu0 %v436
      %691 = vmatpush.msra.mxu0 %v434
      %692 = vmatmul.f32.gmra.mxu0 %v674
      %v693 = vpop.f32.mrf.mxu0
      %v694 = vadd.f32 0.0, %v693
      %695 = vdwg.mxu0
      %696 = vmatpush.msra.mxu0 0.0
      %697 = vmatpush.msra.mxu0 0.0
      %698 = vmatpush.msra.mxu0 0.0
      %699 = vmatpush.msra.mxu0 0.0
      %700 = vmatpush.msra.mxu0 0.0
      %701 = vmatpush.msra.mxu0 0.0
      %702 = vmatpush.msra.mxu0 0.0
      %703 = vmatpush.msra.mxu0 0.0
      %704 = vmatpush.msra.mxu0 0.0
      %705 = vmatpush.msra.mxu0 0.0
      %706 = vmatpush.msra.mxu0 0.0
      %707 = vmatpush.msra.mxu0 0.0
      %708 = vmatpush.msra.mxu0 %v441
      %709 = vmatpush.msra.mxu0 %v439
      %710 = vmatpush.msra.mxu0 %v437
      %711 = vmatpush.msra.mxu0 %v435
      %712 = vmatmul.f32.gmra.mxu0 %v674
      %v713 = vpop.f32.mrf.mxu0
      %v714 = vadd.f32 0.0, %v713
      %715 = vdwg.mxu0
      %v716 = vperm.slane %v694, 0
      %v717 = vperm.slane %v714, 0
      %v718 = vmul.f32 %v563, %v716
      %v719 = vmul.f32 %v564, %v717
      %v720 = vmul.f32 %v565, %v716
      %v721 = vmul.f32 %v566, %v717
      %v722 = vmul.f32 %v567, %v716
      %v723 = vmul.f32 %v568, %v717
      %v724 = vmul.f32 %v569, %v716
      %v725 = vmul.f32 %v570, %v717
      %v726 = vmul.f32 %v571, %v716
      %v727 = vmul.f32 %v572, %v717
      %v728 = vmul.f32 %v573, %v716
      %v729 = vmul.f32 %v574, %v717
      %v730 = vmul.f32 %v575, %v716
      %v731 = vmul.f32 %v576, %v717
      %v732 = vmul.f32 %v577, %v716
      %v733 = vmul.f32 %v578, %v717
      %v735 = vperm.slane %v400, 0
      %v736 = vperm.slane %v400, 1
      %v739 = vmul.f32 %v718, %v735
      %v740 = vmul.f32 %v719, %v736
      %v741 = vmul.f32 %v720, %v735
      %v742 = vmul.f32 %v721, %v736
      %v743 = vmul.f32 %v722, %v735
      %v744 = vmul.f32 %v723, %v736
      %v745 = vmul.f32 %v724, %v735
      %v746 = vmul.f32 %v725, %v736
      %v747 = vmul.f32 %v726, %v735
      %v748 = vmul.f32 %v727, %v736
      %v749 = vmul.f32 %v728, %v735
      %v750 = vmul.f32 %v729, %v736
      %v751 = vmul.f32 %v730, %v735
      %v752 = vmul.f32 %v731, %v736
      %v753 = vmul.f32 %v732, %v735
      %v754 = vmul.f32 %v733, %v736
      %v756 = vperm.slane %v401, 0
      %v757 = vperm.slane %v401, 1
      %v760 = vadd.f32 %v739, %v756
      %v761 = vadd.f32 %v740, %v757
      %v762 = vadd.f32 %v741, %v756
      %v763 = vadd.f32 %v742, %v757
      %v764 = vadd.f32 %v743, %v756
      %v765 = vadd.f32 %v744, %v757
      %v766 = vadd.f32 %v745, %v756
      %v767 = vadd.f32 %v746, %v757
      %v768 = vadd.f32 %v747, %v756
      %v769 = vadd.f32 %v748, %v757
      %v770 = vadd.f32 %v749, %v756
      %v771 = vadd.f32 %v750, %v757
      %v772 = vadd.f32 %v751, %v756
      %v773 = vadd.f32 %v752, %v757
      %v774 = vadd.f32 %v753, %v756
      %v775 = vadd.f32 %v754, %v757
      %v776 = vpack.c.bf16 %v761, %v760
      %v777 = vpack.c.bf16 %v763, %v762
      %v778 = vpack.c.bf16 %v765, %v764
      %v779 = vpack.c.bf16 %v767, %v766
      %v780 = vpack.c.bf16 %v769, %v768
      %v781 = vpack.c.bf16 %v771, %v770
      %v782 = vpack.c.bf16 %v773, %v772
      %v783 = vpack.c.bf16 %v775, %v774
      %784 = vst [vmem:[%s251] sm:$0xff] %v776
      %785 = vst [vmem:[%s251 + $0x8] sm:$0xff] %v777
      %786 = vst [vmem:[%s251 + $0x10] sm:$0xff] %v778
      %787 = vst [vmem:[%s251 + $0x18] sm:$0xff] %v779
      %788 = vst [vmem:[%s251 + $0x20] sm:$0xff] %v780
      %789 = vst [vmem:[%s251 + $0x28] sm:$0xff] %v781
      %790 = vst [vmem:[%s251 + $0x30] sm:$0xff] %v782
      %791 = vst [vmem:[%s251 + $0x38] sm:$0xff] %v783
      %p792 = scmp.lt.s32.totalorder %s17, 1
      %s793 = scalar_select %p792, %s17, 1
      %s794 = smul.addr %s793, 16
      %s795 = smul.addr %s794, 4
      %s796 = scalar_lea.vmem %s6, %s795
      // Predicated region
      $region45: #{_lambda_.7} parent=43 // pred_check
        %p797 = pneg %p166
      $region46: #{_lambda_.7} parent=43 // pred_check_branch
        %799 = sbr.rel (%p797) target = $region48
      $region47: #{_lambda_.7} parent=43 // pred_region
        _
      $region48: #{_lambda_.7} parent=43 // pred_fallthru
        _
    $region44: #{_lambda_.7} parent=5 // pred_fallthru
      _
    %p800 = scmp.le.s32.totalorder 2, %s12
    // Predicated region
    $region49: #{_lambda_.7} parent=5 // pred_check
      %p801 = pneg %p800
    $region50: #{_lambda_.7} parent=5 // pred_check_branch
      %803 = sbr.rel (%p801) target = $region52
    $region51: #{_lambda_.7} parent=5 // pred_region
      %s804 = ssub.s32 %s12, 2
      // Predicated region
      $region53: #{_lambda_.7} parent=51 // pred_check
        %p805 = pneg %p172
      $region54: #{_lambda_.7} parent=51 // pred_check_branch
        %807 = sbr.rel (%p805) target = $region56
      $region55: #{_lambda_.7} parent=51 // pred_region
        %p808 = scmp.lt.s32.totalorder %s18, 1
        %s809 = scalar_select %p808, %s18, 1
        %s810 = smul.addr %s809, 16
        %s811 = smul.addr %s810, 4
        %s812 = scalar_lea.vmem %s6, %s811
      $region56: #{_lambda_.7} parent=51 // pred_fallthru
        _
    $region52: #{_lambda_.7} parent=5 // pred_fallthru
      _
  $region6: #{_lambda_.7} parent=0 // loop_footer
    %s16 = sadd.s32 1, %s12
  $region7: #{_lambda_.7} parent=0 // loop_footer_branch
    %11 = sbr.rel target = $region3
  $region8: #{_lambda_.7} parent=0 // loop_exit
    _

// kernel: _lambda_.8
$region0: #{_lambda_.8}
  #allocation0 [shape = 'u32[]', space=smem, size = 0x4, offset = 0x4, fixed_abs, tag = 'smem constant byte address 0x4 - core index']
  #allocation1 [shape = 'u32[72,128]{1,0:T(1,128)}', space=vmem, size = 0x9000, scoped, tag = 'internal scratch']
  %s0 = inlined_call_operand.vmem [shape: bf16[2,256,64], index: 0, kind: input, shape index: {}]
  %s1 = inlined_call_operand.vmem [shape: bf16[64,64], index: 1, kind: input, shape index: {}]
  %s2 = inlined_call_operand.vmem [shape: f32[1,64], index: 2, kind: input, shape index: {}]
  %s3 = inlined_call_operand.vmem [shape: f32[1,64], index: 3, kind: input, shape index: {}]
  %s4 = inlined_call_operand.vmem [shape: f32[64,32], index: 4, kind: input, shape index: {}]
  %s5 = inlined_call_operand.vmem [shape: f32[32,64], index: 5, kind: input, shape index: {}]
  %s6 = inlined_call_operand.vmem [shape: f32[2,256,64], index: 6, kind: output, shape index: {}]
  %s7 = sld [smem:[#allocation0]]
  $region57: #{_lambda_.8} parent=0
    _
  %s9 = ssub.s32 1, %s7
  %s10 = scalar_select 0, %s9, %s7
  loop: start=0, step=1, limit=4
  $region2: #{_lambda_.8} parent=0 // loop_pre_header
    _
  $region3: #{_lambda_.8} parent=0 // loop_header
    %s12 = sphi 0, %s16
    %p13 = scmp.ge.s32.totalorder %s12, 4
    %s22 = sphi 0, %s24
    %s25 = sphi 0, %s22
    %s26 = sphi 0, %s25
    %s42 = sphi 0, %s26
    %s46 = sphi 0, %s46
    %s48 = sphi 0, %s46
    %s49 = sphi 0, %s48
    %s63 = sphi 0, %s49
    %s67 = sphi 0, %s67
    %s69 = sphi 0, %s67
    %s70 = sphi 0, %s69
    %s84 = sphi 0, %s70
    %s88 = sphi 0, %s88
    %s90 = sphi 0, %s88
    %s91 = sphi 0, %s90
    %s105 = sphi 0, %s91
    %s109 = sphi 0, %s109
    %s111 = sphi 0, %s109
    %s112 = sphi 0, %s111
    %s126 = sphi 0, %s112
    %s130 = sphi 0, %s130
    %s132 = sphi 0, %s130
    %s133 = sphi 0, %s132
    %s147 = sphi 0, %s133
    %s153 = sphi 0, %s155
    %s156 = sphi 0, %s153
    %s157 = sphi 0, %s156
    %s173 = sphi 0, %s157
  $region4: #{_lambda_.8} parent=0 // loop_header_branch
    %15 = sbr.rel (%p13) target = $region8
  $region5: #{_lambda_.8} parent=0 // loop_body
    %s17 = ssub.s32 %s12, 1
    %s18 = ssub.s32 %s12, 2
    %s19 = sadd.s32 %s12, 1
    %s20 = ssub.s32 %s12, %s19
    %p21 = scmp.eq.s32.totalorder %s20, 0
    %s23 = sadd.s32 %s22, 1
    %s24 = scalar_select %p21, %s22, %s23
    %p27 = pneg %p21
    %p28 = scmp.eq.s32.totalorder %s12, 1
    %p29 = por %p27, %p28
    %p30 = scmp.ne.s32.totalorder %s22, %s25
    %p31 = scmp.eq.s32.totalorder %s12, 0
    %p32 = por %p30, %p31
    %p33 = scmp.ne.s32.totalorder %s22, %s25
    %p34 = scmp.eq.s32.totalorder %s17, 1
    %p35 = por %p33, %p34
    %p36 = scmp.ne.s32.totalorder %s25, %s26
    %p37 = scmp.eq.s32.totalorder %s17, 0
    %p38 = por %p36, %p37
    %p39 = scmp.ne.s32.totalorder %s25, %s26
    %p40 = scmp.eq.s32.totalorder %s18, 1
    %p41 = por %p39, %p40
    %p43 = scmp.ne.s32.totalorder %s26, %s42
    %p44 = scmp.eq.s32.totalorder %s18, 0
    %p45 = por %p43, %p44
    %s47 = sadd.s32 %s46, 1
    %p50 = scmp.eq.s32.totalorder %s12, 1
    %p51 = scmp.ne.s32.totalorder %s46, %s48
    %p52 = scmp.eq.s32.totalorder %s12, 0
    %p53 = por %p51, %p52
    %p54 = scmp.ne.s32.totalorder %s46, %s48
    %p55 = scmp.eq.s32.totalorder %s17, 1
    %p56 = por %p54, %p55
    %p57 = scmp.ne.s32.totalorder %s48, %s49
    %p58 = scmp.eq.s32.totalorder %s17, 0
    %p59 = por %p57, %p58
    %p60 = scmp.ne.s32.totalorder %s48, %s49
    %p61 = scmp.eq.s32.totalorder %s18, 1
    %p62 = por %p60, %p61
    %p64 = scmp.ne.s32.totalorder %s49, %s63
    %p65 = scmp.eq.s32.totalorder %s18, 0
    %p66 = por %p64, %p65
    %s68 = sadd.s32 %s67, 1
    %p71 = scmp.eq.s32.totalorder %s12, 1
    %p72 = scmp.ne.s32.totalorder %s67, %s69
    %p73 = scmp.eq.s32.totalorder %s12, 0
    %p74 = por %p72, %p73
    %p75 = scmp.ne.s32.totalorder %s67, %s69
    %p76 = scmp.eq.s32.totalorder %s17, 1
    %p77 = por %p75, %p76
    %p78 = scmp.ne.s32.totalorder %s69, %s70
    %p79 = scmp.eq.s32.totalorder %s17, 0
    %p80 = por %p78, %p79
    %p81 = scmp.ne.s32.totalorder %s69, %s70
    %p82 = scmp.eq.s32.totalorder %s18, 1
    %p83 = por %p81, %p82
    %p85 = scmp.ne.s32.totalorder %s70, %s84
    %p86 = scmp.eq.s32.totalorder %s18, 0
    %p87 = por %p85, %p86
    %s89 = sadd.s32 %s88, 1
    %p92 = scmp.eq.s32.totalorder %s12, 1
    %p93 = scmp.ne.s32.totalorder %s88, %s90
    %p94 = scmp.eq.s32.totalorder %s12, 0
    %p95 = por %p93, %p94
    %p96 = scmp.ne.s32.totalorder %s88, %s90
    %p97 = scmp.eq.s32.totalorder %s17, 1
    %p98 = por %p96, %p97
    %p99 = scmp.ne.s32.totalorder %s90, %s91
    %p100 = scmp.eq.s32.totalorder %s17, 0
    %p101 = por %p99, %p100
    %p102 = scmp.ne.s32.totalorder %s90, %s91
    %p103 = scmp.eq.s32.totalorder %s18, 1
    %p104 = por %p102, %p103
    %p106 = scmp.ne.s32.totalorder %s91, %s105
    %p107 = scmp.eq.s32.totalorder %s18, 0
    %p108 = por %p106, %p107
    %s110 = sadd.s32 %s109, 1
    %p113 = scmp.eq.s32.totalorder %s12, 1
    %p114 = scmp.ne.s32.totalorder %s109, %s111
    %p115 = scmp.eq.s32.totalorder %s12, 0
    %p116 = por %p114, %p115
    %p117 = scmp.ne.s32.totalorder %s109, %s111
    %p118 = scmp.eq.s32.totalorder %s17, 1
    %p119 = por %p117, %p118
    %p120 = scmp.ne.s32.totalorder %s111, %s112
    %p121 = scmp.eq.s32.totalorder %s17, 0
    %p122 = por %p120, %p121
    %p123 = scmp.ne.s32.totalorder %s111, %s112
    %p124 = scmp.eq.s32.totalorder %s18, 1
    %p125 = por %p123, %p124
    %p127 = scmp.ne.s32.totalorder %s112, %s126
    %p128 = scmp.eq.s32.totalorder %s18, 0
    %p129 = por %p127, %p128
    %s131 = sadd.s32 %s130, 1
    %p134 = scmp.eq.s32.totalorder %s12, 1
    %p135 = scmp.ne.s32.totalorder %s130, %s132
    %p136 = scmp.eq.s32.totalorder %s12, 0
    %p137 = por %p135, %p136
    %p138 = scmp.ne.s32.totalorder %s130, %s132
    %p139 = scmp.eq.s32.totalorder %s17, 1
    %p140 = por %p138, %p139
    %p141 = scmp.ne.s32.totalorder %s132, %s133
    %p142 = scmp.eq.s32.totalorder %s17, 0
    %p143 = por %p141, %p142
    %p144 = scmp.ne.s32.totalorder %s132, %s133
    %p145 = scmp.eq.s32.totalorder %s18, 1
    %p146 = por %p144, %p145
    %p148 = scmp.ne.s32.totalorder %s133, %s147
    %p149 = scmp.eq.s32.totalorder %s18, 0
    %p150 = por %p148, %p149
    %s151 = ssub.s32 %s12, %s19
    %p152 = scmp.eq.s32.totalorder %s151, 0
    %s154 = sadd.s32 %s153, 1
    %s155 = scalar_select %p152, %s153, %s154
    %p158 = pneg %p152
    %p159 = scmp.eq.s32.totalorder %s12, 1
    %p160 = por %p158, %p159
    %p161 = scmp.ne.s32.totalorder %s153, %s156
    %p162 = scmp.eq.s32.totalorder %s12, 0
    %p163 = por %p161, %p162
    %p164 = scmp.ne.s32.totalorder %s153, %s156
    %p165 = scmp.eq.s32.totalorder %s17, 1
    %p166 = por %p164, %p165
    %p167 = scmp.ne.s32.totalorder %s156, %s157
    %p168 = scmp.eq.s32.totalorder %s17, 0
    %p169 = por %p167, %p168
    %p170 = scmp.ne.s32.totalorder %s156, %s157
    %p171 = scmp.eq.s32.totalorder %s18, 1
    %p172 = por %p170, %p171
    %p174 = scmp.ne.s32.totalorder %s157, %s173
    %p175 = scmp.eq.s32.totalorder %s18, 0
    %p176 = por %p174, %p175
    %p177 = scmp.le.s32.totalorder 1, %s12
    %p178 = scmp.lt.s32.totalorder %s12, 3
    %p179 = pnand %p177, %p178
    %p180 = pneg %p179
    // Predicated region
    $region9: #{_lambda_.8} parent=5 // pred_check
      _
    $region10: #{_lambda_.8} parent=5 // pred_check_branch
      %182 = sbr.rel (%p179) target = $region12
    $region11: #{_lambda_.8} parent=5 // pred_region
      %s183 = ssub.s32 %s12, 1
      // Predicated region
      $region13: #{_lambda_.8} parent=11 // pred_check
        %p184 = pneg %p59
      $region14: #{_lambda_.8} parent=11 // pred_check_branch
        %186 = sbr.rel (%p184) target = $region16
      $region15: #{_lambda_.8} parent=11 // pred_region
        _
      $region16: #{_lambda_.8} parent=11 // pred_fallthru
        _
      // Predicated region
      $region17: #{_lambda_.8} parent=11 // pred_check
        %p187 = pneg %p80
      $region18: #{_lambda_.8} parent=11 // pred_check_branch
        %189 = sbr.rel (%p187) target = $region20
      $region19: #{_lambda_.8} parent=11 // pred_region
        _
      $region20: #{_lambda_.8} parent=11 // pred_fallthru
        _
      // Predicated region
      $region21: #{_lambda_.8} parent=11 // pred_check
        %p190 = pneg %p101
      $region22: #{_lambda_.8} parent=11 // pred_check_branch
        %192 = sbr.rel (%p190) target = $region24
      $region23: #{_lambda_.8} parent=11 // pred_region
        _
      $region24: #{_lambda_.8} parent=11 // pred_fallthru
        _
      // Predicated region
      $region25: #{_lambda_.8} parent=11 // pred_check
        %p193 = pneg %p122
      $region26: #{_lambda_.8} parent=11 // pred_check_branch
        %195 = sbr.rel (%p193) target = $region28
      $region27: #{_lambda_.8} parent=11 // pred_region
        _
      $region28: #{_lambda_.8} parent=11 // pred_fallthru
        _
      // Predicated region
      $region29: #{_lambda_.8} parent=11 // pred_check
        %p196 = pneg %p143
      $region30: #{_lambda_.8} parent=11 // pred_check_branch
        %198 = sbr.rel (%p196) target = $region32
      $region31: #{_lambda_.8} parent=11 // pred_region
        _
      $region32: #{_lambda_.8} parent=11 // pred_fallthru
        _
    $region12: #{_lambda_.8} parent=5 // pred_fallthru
      _
    %p199 = scmp.lt.s32.totalorder %s12, 2
    // Predicated region
    $region33: #{_lambda_.8} parent=5 // pred_check
      %p200 = pneg %p199
    $region34: #{_lambda_.8} parent=5 // pred_check_branch
      %202 = sbr.rel (%p200) target = $region36
    $region35: #{_lambda_.8} parent=5 // pred_region
      // Predicated region
      $region37: #{_lambda_.8} parent=35 // pred_check
        %p203 = pneg %p32
      $region38: #{_lambda_.8} parent=35 // pred_check_branch
        %205 = sbr.rel (%p203) target = $region40
      $region39: #{_lambda_.8} parent=35 // pred_region
        %p206 = scmp.lt.s32.totalorder %s12, 1
        %s207 = scalar_select %p206, %s12, 1
        %s208 = smul.addr %s207, 32
        %s209 = smul.addr %s208, 4
        %s210 = scalar_lea.vmem %s0, %s209
      $region40: #{_lambda_.8} parent=35 // pred_fallthru
        _
    $region36: #{_lambda_.8} parent=5 // pred_fallthru
      _
    %p211 = scmp.le.s32.totalorder 1, %s12
    %p212 = scmp.lt.s32.totalorder %s12, 3
    %p213 = pnand %p211, %p212
    %p214 = pneg %p213
    // Predicated region
    $region41: #{_lambda_.8} parent=5 // pred_check
      _
    $region42: #{_lambda_.8} parent=5 // pred_check_branch
      %216 = sbr.rel (%p213) target = $region44
    $region43: #{_lambda_.8} parent=5 // pred_region
      %s217 = ssub.s32 %s12, 1
      %p218 = scmp.lt.s32.totalorder %s17, 1
      %s219 = scalar_select %p218, %s17, 1
      %s220 = smul.addr %s219, 32
      %s221 = smul.addr %s220, 4
      %s222 = scalar_lea.vmem %s0, %s221
      %p223 = pneg %p38
      %p224 = pneg %p35
      %p225 = pneg %p59
      %p226 = pneg %p56
      %p227 = pneg %p80
      %p228 = pneg %p77
      %p229 = pneg %p101
      %p230 = pneg %p98
      %p231 = pneg %p122
      %p232 = pneg %p119
      %p233 = pneg %p143
      %p234 = pneg %p140
      %p235 = pneg %p169
      %p236 = pneg %p166
      %p237 = scmp.lt.s32.totalorder %s17, 1
      %s238 = scalar_select %p237, %s17, 1
      %s239 = smul.addr %s238, 32
      %s240 = smul.addr %s239, 8
      %s241 = scalar_lea.vmem %s6, %s240
      %p242 = scmp.lt.s32.totalorder %s17, 1
      %s243 = scalar_select %p242, %s17, 1
      %s244 = smul.addr %s243, 32
      %s245 = smul.addr %s244, 4
      %s246 = scalar_lea.vmem %s0, %s245
      %p247 = scmp.lt.s32.totalorder %s17, 1
      %s248 = scalar_select %p247, %s17, 1
      %s249 = smul.addr %s248, 32
      %s250 = smul.addr %s249, 8
      %s251 = scalar_lea.vmem %s6, %s250
      %v253 = vld [vmem:[%s246] sm:$0xf]
      %v254 = vld [vmem:[%s246 + $0x4] sm:$0xf]
      %v255 = vld [vmem:[%s246 + $0x8] sm:$0xf]
      %v256 = vld [vmem:[%s246 + $0xc] sm:$0xf]
      %v257 = vld [vmem:[%s246 + $0x10] sm:$0xf]
      %v258 = vld [vmem:[%s246 + $0x14] sm:$0xf]
      %v259 = vld [vmem:[%s246 + $0x18] sm:$0xf]
      %v260 = vld [vmem:[%s246 + $0x1c] sm:$0xf]
      %v261 = vld [vmem:[%s246 + $0x20] sm:$0xf]
      %v262 = vld [vmem:[%s246 + $0x24] sm:$0xf]
      %v263 = vld [vmem:[%s246 + $0x28] sm:$0xf]
      %v264 = vld [vmem:[%s246 + $0x2c] sm:$0xf]
      %v265 = vld [vmem:[%s246 + $0x30] sm:$0xf]
      %v266 = vld [vmem:[%s246 + $0x34] sm:$0xf]
      %v267 = vld [vmem:[%s246 + $0x38] sm:$0xf]
      %v268 = vld [vmem:[%s246 + $0x3c] sm:$0xf]
      %v269 = vld [vmem:[%s246 + $0x40] sm:$0xf]
      %v270 = vld [vmem:[%s246 + $0x44] sm:$0xf]
      %v271 = vld [vmem:[%s246 + $0x48] sm:$0xf]
      %v272 = vld [vmem:[%s246 + $0x4c] sm:$0xf]
      %v273 = vld [vmem:[%s246 + $0x50] sm:$0xf]
      %v274 = vld [vmem:[%s246 + $0x54] sm:$0xf]
      %v275 = vld [vmem:[%s246 + $0x58] sm:$0xf]
      %v276 = vld [vmem:[%s246 + $0x5c] sm:$0xf]
      %v277 = vld [vmem:[%s246 + $0x60] sm:$0xf]
      %v278 = vld [vmem:[%s246 + $0x64] sm:$0xf]
      %v279 = vld [vmem:[%s246 + $0x68] sm:$0xf]
      %v280 = vld [vmem:[%s246 + $0x6c] sm:$0xf]
      %v281 = vld [vmem:[%s246 + $0x70] sm:$0xf]
      %v282 = vld [vmem:[%s246 + $0x74] sm:$0xf]
      %v283 = vld [vmem:[%s246 + $0x78] sm:$0xf]
      %v284 = vld [vmem:[%s246 + $0x7c] sm:$0xf]
      %v285 = vld [vmem:[%s1] sm:$0xf]
      %v286 = vld [vmem:[%s1 + $0x4] sm:$0xf]
      %v287 = vld [vmem:[%s1 + $0x8] sm:$0xf]
      %v288 = vld [vmem:[%s1 + $0xc] sm:$0xf]
      %v289 = vld [vmem:[%s1 + $0x10] sm:$0xf]
      %v290 = vld [vmem:[%s1 + $0x14] sm:$0xf]
      %v291 = vld [vmem:[%s1 + $0x18] sm:$0xf]
      %v292 = vld [vmem:[%s1 + $0x1c] sm:$0xf]
      %v325 = vunpack.c.l.b16 %v253
      %v326 = vunpack.c.l.b16 %v254
      %v327 = vunpack.c.l.b16 %v255
      %v328 = vunpack.c.l.b16 %v256
      %v329 = vunpack.c.l.b16 %v257
      %v330 = vunpack.c.l.b16 %v258
      %v331 = vunpack.c.l.b16 %v259
      %v332 = vunpack.c.l.b16 %v260
      %v333 = vunpack.c.l.b16 %v261
      %v334 = vunpack.c.l.b16 %v262
      %v335 = vunpack.c.l.b16 %v263
      %v336 = vunpack.c.l.b16 %v264
      %v337 = vunpack.c.l.b16 %v265
      %v338 = vunpack.c.l.b16 %v266
      %v339 = vunpack.c.l.b16 %v267
      %v340 = vunpack.c.l.b16 %v268
      %v341 = vunpack.c.l.b16 %v269
      %v342 = vunpack.c.l.b16 %v270
      %v343 = vunpack.c.l.b16 %v271
      %v344 = vunpack.c.l.b16 %v272
      %v345 = vunpack.c.l.b16 %v273
      %v346 = vunpack.c.l.b16 %v274
      %v347 = vunpack.c.l.b16 %v275
      %v348 = vunpack.c.l.b16 %v276
      %v349 = vunpack.c.l.b16 %v277
      %v350 = vunpack.c.l.b16 %v278
      %v351 = vunpack.c.l.b16 %v279
      %v352 = vunpack.c.l.b16 %v280
      %v353 = vunpack.c.l.b16 %v281
      %v354 = vunpack.c.l.b16 %v282
      %v355 = vunpack.c.l.b16 %v283
      %v356 = vunpack.c.l.b16 %v284
      %v357 = vpack.c.b16 %v326, %v325
      %v358 = vpack.c.b16 %v328, %v327
      %v359 = vpack.c.b16 %v330, %v329
      %v360 = vpack.c.b16 %v332, %v331
      %v361 = vpack.c.b16 %v334, %v333
      %v362 = vpack.c.b16 %v336, %v335
      %v363 = vpack.c.b16 %v338, %v337
      %v364 = vpack.c.b16 %v340, %v339
      %v365 = vpack.c.b16 %v342, %v341
      %v366 = vpack.c.b16 %v344, %v343
      %v367 = vpack.c.b16 %v346, %v345
      %v368 = vpack.c.b16 %v348, %v347
      %v369 = vpack.c.b16 %v350, %v349
      %v370 = vpack.c.b16 %v352, %v351
      %v371 = vpack.c.b16 %v354, %v353
      %v372 = vpack.c.b16 %v356, %v355
      %v381 = vunpack.c.l.b16 %v285
      %v382 = vunpack.c.l.b16 %v286
      %v383 = vunpack.c.l.b16 %v287
      %v384 = vunpack.c.l.b16 %v288
      %v385 = vunpack.c.l.b16 %v289
      %v386 = vunpack.c.l.b16 %v290
      %v387 = vunpack.c.l.b16 %v291
      %v388 = vunpack.c.l.b16 %v292
      %v389 = vpack.c.b16 %v382, %v381
      %v390 = vpack.c.b16 %v384, %v383
      %v391 = vpack.c.b16 %v386, %v385
      %v392 = vpack.c.b16 %v388, %v387
      %vm397 = vcmask 523264
      %v399 = vsel %vm397, %v357, 0
      %v402 = vsel %vm397, %v358, 0
      %v405 = vsel %vm397, %v359, 0
      %v408 = vsel %vm397, %v360, 0
      %v411 = vsel %vm397, %v361, 0
      %v414 = vsel %vm397, %v362, 0
      %v417 = vsel %vm397, %v363, 0
      %v420 = vsel %vm397, %v364, 0
      %v423 = vsel %vm397, %v365, 0
      %v426 = vsel %vm397, %v366, 0
      %v429 = vsel %vm397, %v367, 0
      %v432 = vsel %vm397, %v368, 0
      %v435 = vsel %vm397, %v369, 0
      %v438 = vsel %vm397, %v370, 0
      %v441 = vsel %vm397, %v371, 0
      %v444 = vsel %vm397, %v372, 0
      %446 = vmatpush.bf16.msra.mxu0 0
      %447 = vmatpush.bf16.msra.mxu0 0
      %448 = vmatpush.bf16.msra.mxu0 0
      %449 = vmatpush.bf16.msra.mxu0 0
      %450 = vmatpush.bf16.msra.mxu0 %v392
      %451 = vmatpush.bf16.msra.mxu0 %v391
      %452 = vmatpush.bf16.msra.mxu0 %v390
      %453 = vmatpush.bf16.msra.mxu0 %v389
      %454 = vmatmul.bf16.gmra.mxu0 %v399
      %v455 = vpop.f32.mrf.mxu0
      %v456 = vadd.f32 0.0, %v455
      %v457 = vpop.f32.mrf.mxu0
      %v458 = vadd.f32 0.0, %v457
      %459 = vmatmul.bf16.gmra.mxu0 %v402
      %v460 = vpop.f32.mrf.mxu0
      %v461 = vadd.f32 0.0, %v460
      %v462 = vpop.f32.mrf.mxu0
      %v463 = vadd.f32 0.0, %v462
      %464 = vmatmul.bf16.gmra.mxu0 %v405
      %v465 = vpop.f32.mrf.mxu0
      %v466 = vadd.f32 0.0, %v465
      %v467 = vpop.f32.mrf.mxu0
      %v468 = vadd.f32 0.0, %v467
      %469 = vmatmul.bf16.gmra.mxu0 %v408
      %v470 = vpop.f32.mrf.mxu0
      %v471 = vadd.f32 0.0, %v470
      %v472 = vpop.f32.mrf.mxu0
      %v473 = vadd.f32 0.0, %v472
      %474 = vmatmul.bf16.gmra.mxu0 %v411
      %v475 = vpop.f32.mrf.mxu0
      %v476 = vadd.f32 0.0, %v475
      %v477 = vpop.f32.mrf.mxu0
      %v478 = vadd.f32 0.0, %v477
      %479 = vmatmul.bf16.gmra.mxu0 %v414
      %v480 = vpop.f32.mrf.mxu0
      %v481 = vadd.f32 0.0, %v480
      %v482 = vpop.f32.mrf.mxu0
      %v483 = vadd.f32 0.0, %v482
      %484 = vmatmul.bf16.gmra.mxu0 %v417
      %v485 = vpop.f32.mrf.mxu0
      %v486 = vadd.f32 0.0, %v485
      %v487 = vpop.f32.mrf.mxu0
      %v488 = vadd.f32 0.0, %v487
      %489 = vmatmul.bf16.gmra.mxu0 %v420
      %v490 = vpop.f32.mrf.mxu0
      %v491 = vadd.f32 0.0, %v490
      %v492 = vpop.f32.mrf.mxu0
      %v493 = vadd.f32 0.0, %v492
      %494 = vmatmul.bf16.gmra.mxu0 %v423
      %v495 = vpop.f32.mrf.mxu0
      %v496 = vadd.f32 0.0, %v495
      %v497 = vpop.f32.mrf.mxu0
      %v498 = vadd.f32 0.0, %v497
      %499 = vmatmul.bf16.gmra.mxu0 %v426
      %v500 = vpop.f32.mrf.mxu0
      %v501 = vadd.f32 0.0, %v500
      %v502 = vpop.f32.mrf.mxu0
      %v503 = vadd.f32 0.0, %v502
      %504 = vmatmul.bf16.gmra.mxu0 %v429
      %v505 = vpop.f32.mrf.mxu0
      %v506 = vadd.f32 0.0, %v505
      %v507 = vpop.f32.mrf.mxu0
      %v508 = vadd.f32 0.0, %v507
      %509 = vmatmul.bf16.gmra.mxu0 %v432
      %v510 = vpop.f32.mrf.mxu0
      %v511 = vadd.f32 0.0, %v510
      %v512 = vpop.f32.mrf.mxu0
      %v513 = vadd.f32 0.0, %v512
      %514 = vmatmul.bf16.gmra.mxu0 %v435
      %v515 = vpop.f32.mrf.mxu0
      %v516 = vadd.f32 0.0, %v515
      %v517 = vpop.f32.mrf.mxu0
      %v518 = vadd.f32 0.0, %v517
      %519 = vmatmul.bf16.gmra.mxu0 %v438
      %v520 = vpop.f32.mrf.mxu0
      %v521 = vadd.f32 0.0, %v520
      %v522 = vpop.f32.mrf.mxu0
      %v523 = vadd.f32 0.0, %v522
      %524 = vmatmul.bf16.gmra.mxu0 %v441
      %v525 = vpop.f32.mrf.mxu0
      %v526 = vadd.f32 0.0, %v525
      %v527 = vpop.f32.mrf.mxu0
      %v528 = vadd.f32 0.0, %v527
      %529 = vmatmul.bf16.gmra.mxu0 %v444
      %v530 = vpop.f32.mrf.mxu0
      %v531 = vadd.f32 0.0, %v530
      %v532 = vpop.f32.mrf.mxu0
      %v533 = vadd.f32 0.0, %v532
      %534 = vdwg.mxu0
      %v535 = vld [vmem:[%s2] sm:$0x1]
      %v536 = vld [vmem:[%s3] sm:$0x1]
      %v537 = vld [vmem:[%s4] sm:$0xff]
      %v538 = vld [vmem:[%s4 + $0x8] sm:$0xff]
      %v539 = vld [vmem:[%s4 + $0x10] sm:$0xff]
      %v540 = vld [vmem:[%s4 + $0x18] sm:$0xff]
      %v541 = vld [vmem:[%s4 + $0x20] sm:$0xff]
      %v542 = vld [vmem:[%s4 + $0x28] sm:$0xff]
      %v543 = vld [vmem:[%s4 + $0x30] sm:$0xff]
      %v544 = vld [vmem:[%s4 + $0x38] sm:$0xff]
      %v545 = vld [vmem:[%s5] sm:$0xff]
      %v546 = vld [vmem:[%s5 + $0x8] sm:$0xff]
      %v547 = vld [vmem:[%s5 + $0x10] sm:$0xff]
      %v548 = vld [vmem:[%s5 + $0x18] sm:$0xff]
      %v549 = vsel %vm397, %v456, 0.0
      %v550 = vsel %vm397, %v458, 0.0
      %v551 = vadd.f32 %v549, %v550
      %v552 = vsel %vm397, %v461, 0.0
      %v553 = vadd.f32 %v551, %v552
      %v554 = vsel %vm397, %v463, 0.0
      %v555 = vadd.f32 %v553, %v554
      %v556 = vsel %vm397, %v466, 0.0
      %v557 = vadd.f32 %v555, %v556
      %v558 = vsel %vm397, %v468, 0.0
      %v559 = vadd.f32 %v557, %v558
      %v560 = vsel %vm397, %v471, 0.0
      %v561 = vadd.f32 %v559, %v560
      %v562 = vsel %vm397, %v473, 0.0
      %v563 = vadd.f32 %v561, %v562
      %v564 = vsel %vm397, %v476, 0.0
      %v565 = vadd.f32 %v563, %v564
      %v566 = vsel %vm397, %v478, 0.0
      %v567 = vadd.f32 %v565, %v566
      %v568 = vsel %vm397, %v481, 0.0
      %v569 = vadd.f32 %v567, %v568
      %v570 = vsel %vm397, %v483, 0.0
      %v571 = vadd.f32 %v569, %v570
      %v572 = vsel %vm397, %v486, 0.0
      %v573 = vadd.f32 %v571, %v572
      %v574 = vsel %vm397, %v488, 0.0
      %v575 = vadd.f32 %v573, %v574
      %v576 = vsel %vm397, %v491, 0.0
      %v577 = vadd.f32 %v575, %v576
      %v578 = vsel %vm397, %v493, 0.0
      %v579 = vadd.f32 %v577, %v578
      %v580 = vsel %vm397, %v496, 0.0
      %v581 = vadd.f32 %v579, %v580
      %v582 = vsel %vm397, %v498, 0.0
      %v583 = vadd.f32 %v581, %v582
      %v584 = vsel %vm397, %v501, 0.0
      %v585 = vadd.f32 %v583, %v584
      %v586 = vsel %vm397, %v503, 0.0
      %v587 = vadd.f32 %v585, %v586
      %v588 = vsel %vm397, %v506, 0.0
      %v589 = vadd.f32 %v587, %v588
      %v590 = vsel %vm397, %v508, 0.0
      %v591 = vadd.f32 %v589, %v590
      %v592 = vsel %vm397, %v511, 0.0
      %v593 = vadd.f32 %v591, %v592
      %v594 = vsel %vm397, %v513, 0.0
      %v595 = vadd.f32 %v593, %v594
      %v596 = vsel %vm397, %v516, 0.0
      %v597 = vadd.f32 %v595, %v596
      %v598 = vsel %vm397, %v518, 0.0
      %v599 = vadd.f32 %v597, %v598
      %v600 = vsel %vm397, %v521, 0.0
      %v601 = vadd.f32 %v599, %v600
      %v602 = vsel %vm397, %v523, 0.0
      %v603 = vadd.f32 %v601, %v602
      %v604 = vsel %vm397, %v526, 0.0
      %v605 = vadd.f32 %v603, %v604
      %v606 = vsel %vm397, %v528, 0.0
      %v607 = vadd.f32 %v605, %v606
      %v608 = vsel %vm397, %v531, 0.0
      %v609 = vadd.f32 %v607, %v608
      %v610 = vsel %vm397, %v533, 0.0
      %v611 = vadd.f32 %v609, %v610
      %v612 = vrot.slane %v611, 4
      %v613 = vadd.f32 %v611, %v612
      %v614 = vrot.slane %v613, 2
      %v615 = vadd.f32 %v613, %v614
      %v616 = vrot.slane %v615, 1
      %v617 = vadd.f32 %v615, %v616
      %v619 = vsel %vm397, %v617, 0
      %621 = vmatpush.msra.mxu0 0.0
      %622 = vmatpush.msra.mxu0 0.0
      %623 = vmatpush.msra.mxu0 0.0
      %624 = vmatpush.msra.mxu0 0.0
      %625 = vmatpush.msra.mxu0 0.0
      %626 = vmatpush.msra.mxu0 0.0
      %627 = vmatpush.msra.mxu0 0.0
      %628 = vmatpush.msra.mxu0 0.0
      %629 = vmatpush.msra.mxu0 %v544
      %630 = vmatpush.msra.mxu0 %v543
      %631 = vmatpush.msra.mxu0 %v542
      %632 = vmatpush.msra.mxu0 %v541
      %633 = vmatpush.msra.mxu0 %v540
      %634 = vmatpush.msra.mxu0 %v539
      %635 = vmatpush.msra.mxu0 %v538
      %636 = vmatpush.msra.mxu0 %v537
      %637 = vmatmul.f32.gmra.mxu0 %v619
      %v638 = vpop.f32.mrf.mxu0
      %v639 = vadd.f32 0.0, %v638
      %640 = vdwg.mxu0
      %vm641 = vcmask 261120
      %v643 = vsel %vm641, %v639, 0
      %645 = vmatpush.msra.mxu0 0.0
      %646 = vmatpush.msra.mxu0 0.0
      %647 = vmatpush.msra.mxu0 0.0
      %648 = vmatpush.msra.mxu0 0.0
      %649 = vmatpush.msra.mxu0 0.0
      %650 = vmatpush.msra.mxu0 0.0
      %651 = vmatpush.msra.mxu0 0.0
      %652 = vmatpush.msra.mxu0 0.0
      %653 = vmatpush.msra.mxu0 0.0
      %654 = vmatpush.msra.mxu0 0.0
      %655 = vmatpush.msra.mxu0 0.0
      %656 = vmatpush.msra.mxu0 0.0
      %657 = vmatpush.msra.mxu0 %v548
      %658 = vmatpush.msra.mxu0 %v547
      %659 = vmatpush.msra.mxu0 %v546
      %660 = vmatpush.msra.mxu0 %v545
      %661 = vmatmul.f32.gmra.mxu0 %v643
      %v662 = vpop.f32.mrf.mxu0
      %v663 = vadd.f32 0.0, %v662
      %664 = vdwg.mxu0
      %v665 = vrcp.pop 512.0
      %v666 = vmul.f32 512.0, %v665
      %v667 = vsub.f32 1.0, %v666
      %v668 = vmul.f32 %v665, %v667
      %v669 = vadd.f32 %v665, %v668
      %vm670 = vweird.f32 %v665
      %v671 = vsel %vm670, %v665, %v669
      %v672 = vmul.f32 %v663, %v671
      %v673 = vperm.slane %v672, 0
      %v674 = vsub.f32 %v456, %v673
      %v675 = vsub.f32 %v458, %v673
      %v676 = vsub.f32 %v461, %v673
      %v677 = vsub.f32 %v463, %v673
      %v678 = vsub.f32 %v466, %v673
      %v679 = vsub.f32 %v468, %v673
      %v680 = vsub.f32 %v471, %v673
      %v681 = vsub.f32 %v473, %v673
      %v682 = vsub.f32 %v476, %v673
      %v683 = vsub.f32 %v478, %v673
      %v684 = vsub.f32 %v481, %v673
      %v685 = vsub.f32 %v483, %v673
      %v686 = vsub.f32 %v486, %v673
      %v687 = vsub.f32 %v488, %v673
      %v688 = vsub.f32 %v491, %v673
      %v689 = vsub.f32 %v493, %v673
      %v690 = vsub.f32 %v496, %v673
      %v691 = vsub.f32 %v498, %v673
      %v692 = vsub.f32 %v501, %v673
      %v693 = vsub.f32 %v503, %v673
      %v694 = vsub.f32 %v506, %v673
      %v695 = vsub.f32 %v508, %v673
      %v696 = vsub.f32 %v511, %v673
      %v697 = vsub.f32 %v513, %v673
      %v698 = vsub.f32 %v516, %v673
      %v699 = vsub.f32 %v518, %v673
      %v700 = vsub.f32 %v521, %v673
      %v701 = vsub.f32 %v523, %v673
      %v702 = vsub.f32 %v526, %v673
      %v703 = vsub.f32 %v528, %v673
      %v704 = vsub.f32 %v531, %v673
      %v705 = vsub.f32 %v533, %v673
      %v706 = vmul.f32 %v674, %v674
      %v707 = vmul.f32 %v675, %v675
      %v708 = vmul.f32 %v676, %v676
      %v709 = vmul.f32 %v677, %v677
      %v710 = vmul.f32 %v678, %v678
      %v711 = vmul.f32 %v679, %v679
      %v712 = vmul.f32 %v680, %v680
      %v713 = vmul.f32 %v681, %v681
      %v714 = vmul.f32 %v682, %v682
      %v715 = vmul.f32 %v683, %v683
      %v716 = vmul.f32 %v684, %v684
      %v717 = vmul.f32 %v685, %v685
      %v718 = vmul.f32 %v686, %v686
      %v719 = vmul.f32 %v687, %v687
      %v720 = vmul.f32 %v688, %v688
      %v721 = vmul.f32 %v689, %v689
      %v722 = vmul.f32 %v690, %v690
      %v723 = vmul.f32 %v691, %v691
      %v724 = vmul.f32 %v692, %v692
      %v725 = vmul.f32 %v693, %v693
      %v726 = vmul.f32 %v694, %v694
      %v727 = vmul.f32 %v695, %v695
      %v728 = vmul.f32 %v696, %v696
      %v729 = vmul.f32 %v697, %v697
      %v730 = vmul.f32 %v698, %v698
      %v731 = vmul.f32 %v699, %v699
      %v732 = vmul.f32 %v700, %v700
      %v733 = vmul.f32 %v701, %v701
      %v734 = vmul.f32 %v702, %v702
      %v735 = vmul.f32 %v703, %v703
      %v736 = vmul.f32 %v704, %v704
      %v737 = vmul.f32 %v705, %v705
      %v738 = vsel %vm397, %v706, 0.0
      %v739 = vsel %vm397, %v707, 0.0
      %v740 = vadd.f32 %v738, %v739
      %v741 = vsel %vm397, %v708, 0.0
      %v742 = vadd.f32 %v740, %v741
      %v743 = vsel %vm397, %v709, 0.0
      %v744 = vadd.f32 %v742, %v743
      %v745 = vsel %vm397, %v710, 0.0
      %v746 = vadd.f32 %v744, %v745
      %v747 = vsel %vm397, %v711, 0.0
      %v748 = vadd.f32 %v746, %v747
      %v749 = vsel %vm397, %v712, 0.0
      %v750 = vadd.f32 %v748, %v749
      %v751 = vsel %vm397, %v713, 0.0
      %v752 = vadd.f32 %v750, %v751
      %v753 = vsel %vm397, %v714, 0.0
      %v754 = vadd.f32 %v752, %v753
      %v755 = vsel %vm397, %v715, 0.0
      %v756 = vadd.f32 %v754, %v755
      %v757 = vsel %vm397, %v716, 0.0
      %v758 = vadd.f32 %v756, %v757
      %v759 = vsel %vm397, %v717, 0.0
      %v760 = vadd.f32 %v758, %v759
      %v761 = vsel %vm397, %v718, 0.0
      %v762 = vadd.f32 %v760, %v761
      %v763 = vsel %vm397, %v719, 0.0
      %v764 = vadd.f32 %v762, %v763
      %v765 = vsel %vm397, %v720, 0.0
      %v766 = vadd.f32 %v764, %v765
      %v767 = vsel %vm397, %v721, 0.0
      %v768 = vadd.f32 %v766, %v767
      %v769 = vsel %vm397, %v722, 0.0
      %v770 = vadd.f32 %v768, %v769
      %v771 = vsel %vm397, %v723, 0.0
      %v772 = vadd.f32 %v770, %v771
      %v773 = vsel %vm397, %v724, 0.0
      %v774 = vadd.f32 %v772, %v773
      %v775 = vsel %vm397, %v725, 0.0
      %v776 = vadd.f32 %v774, %v775
      %v777 = vsel %vm397, %v726, 0.0
      %v778 = vadd.f32 %v776, %v777
      %v779 = vsel %vm397, %v727, 0.0
      %v780 = vadd.f32 %v778, %v779
      %v781 = vsel %vm397, %v728, 0.0
      %v782 = vadd.f32 %v780, %v781
      %v783 = vsel %vm397, %v729, 0.0
      %v784 = vadd.f32 %v782, %v783
      %v785 = vsel %vm397, %v730, 0.0
      %v786 = vadd.f32 %v784, %v785
      %v787 = vsel %vm397, %v731, 0.0
      %v788 = vadd.f32 %v786, %v787
      %v789 = vsel %vm397, %v732, 0.0
      %v790 = vadd.f32 %v788, %v789
      %v791 = vsel %vm397, %v733, 0.0
      %v792 = vadd.f32 %v790, %v791
      %v793 = vsel %vm397, %v734, 0.0
      %v794 = vadd.f32 %v792, %v793
      %v795 = vsel %vm397, %v735, 0.0
      %v796 = vadd.f32 %v794, %v795
      %v797 = vsel %vm397, %v736, 0.0
      %v798 = vadd.f32 %v796, %v797
      %v799 = vsel %vm397, %v737, 0.0
      %v800 = vadd.f32 %v798, %v799
      %v801 = vrot.slane %v800, 4
      %v802 = vadd.f32 %v800, %v801
      %v803 = vrot.slane %v802, 2
      %v804 = vadd.f32 %v802, %v803
      %v805 = vrot.slane %v804, 1
      %v806 = vadd.f32 %v804, %v805
      %v808 = vsel %vm397, %v806, 0
      %810 = vmatpush.msra.mxu0 0.0
      %811 = vmatpush.msra.mxu0 0.0
      %812 = vmatpush.msra.mxu0 0.0
      %813 = vmatpush.msra.mxu0 0.0
      %814 = vmatpush.msra.mxu0 0.0
      %815 = vmatpush.msra.mxu0 0.0
      %816 = vmatpush.msra.mxu0 0.0
      %817 = vmatpush.msra.mxu0 0.0
      %818 = vmatpush.msra.mxu0 %v544
      %819 = vmatpush.msra.mxu0 %v543
      %820 = vmatpush.msra.mxu0 %v542
      %821 = vmatpush.msra.mxu0 %v541
      %822 = vmatpush.msra.mxu0 %v540
      %823 = vmatpush.msra.mxu0 %v539
      %824 = vmatpush.msra.mxu0 %v538
      %825 = vmatpush.msra.mxu0 %v537
      %826 = vmatmul.f32.gmra.mxu0 %v808
      %v827 = vpop.f32.mrf.mxu0
      %v828 = vadd.f32 0.0, %v827
      %829 = vdwg.mxu0
      %v830 = vmul.f32 %v828, %v671
      %v831 = vadd.f32 %v830, 1e-05
      %v832 = vrsqrt.pop %v831
      %v833 = vmul.f32 %v832, %v831
      %v834 = vmul.f32 %v833, %v832
      %v835 = vmul.f32 0.5, %v834
      %v836 = vsub.f32 1.5, %v835
      %v837 = vmul.f32 %v832, %v836
      %vm838 = vweird.f32 %v831
      %vm839 = vweird.f32 %v832
      %vm840 = vmor %vm838, %vm839
      %v841 = vsel %vm840, %v832, %v837
      %v843 = vsel %vm641, %v841, 0
      %845 = vmatpush.msra.mxu0 0.0
      %846 = vmatpush.msra.mxu0 0.0
      %847 = vmatpush.msra.mxu0 0.0
      %848 = vmatpush.msra.mxu0 0.0
      %849 = vmatpush.msra.mxu0 0.0
      %850 = vmatpush.msra.mxu0 0.0
      %851 = vmatpush.msra.mxu0 0.0
      %852 = vmatpush.msra.mxu0 0.0
      %853 = vmatpush.msra.mxu0 0.0
      %854 = vmatpush.msra.mxu0 0.0
      %855 = vmatpush.msra.mxu0 0.0
      %856 = vmatpush.msra.mxu0 0.0
      %857 = vmatpush.msra.mxu0 %v548
      %858 = vmatpush.msra.mxu0 %v547
      %859 = vmatpush.msra.mxu0 %v546
      %860 = vmatpush.msra.mxu0 %v545
      %861 = vmatmul.f32.gmra.mxu0 %v843
      %v862 = vpop.f32.mrf.mxu0
      %v863 = vadd.f32 0.0, %v862
      %864 = vdwg.mxu0
      %v865 = vperm.slane %v863, 0
      %v866 = vmul.f32 %v674, %v865
      %v867 = vmul.f32 %v675, %v865
      %v868 = vmul.f32 %v676, %v865
      %v869 = vmul.f32 %v677, %v865
      %v870 = vmul.f32 %v678, %v865
      %v871 = vmul.f32 %v679, %v865
      %v872 = vmul.f32 %v680, %v865
      %v873 = vmul.f32 %v681, %v865
      %v874 = vmul.f32 %v682, %v865
      %v875 = vmul.f32 %v683, %v865
      %v876 = vmul.f32 %v684, %v865
      %v877 = vmul.f32 %v685, %v865
      %v878 = vmul.f32 %v686, %v865
      %v879 = vmul.f32 %v687, %v865
      %v880 = vmul.f32 %v688, %v865
      %v881 = vmul.f32 %v689, %v865
      %v882 = vmul.f32 %v690, %v865
      %v883 = vmul.f32 %v691, %v865
      %v884 = vmul.f32 %v692, %v865
      %v885 = vmul.f32 %v693, %v865
      %v886 = vmul.f32 %v694, %v865
      %v887 = vmul.f32 %v695, %v865
      %v888 = vmul.f32 %v696, %v865
      %v889 = vmul.f32 %v697, %v865
      %v890 = vmul.f32 %v698, %v865
      %v891 = vmul.f32 %v699, %v865
      %v892 = vmul.f32 %v700, %v865
      %v893 = vmul.f32 %v701, %v865
      %v894 = vmul.f32 %v702, %v865
      %v895 = vmul.f32 %v703, %v865
      %v896 = vmul.f32 %v704, %v865
      %v897 = vmul.f32 %v705, %v865
      %v899 = vperm.slane %v535, 0
      %v901 = vmul.f32 %v866, %v899
      %v902 = vmul.f32 %v867, %v899
      %v903 = vmul.f32 %v868, %v899
      %v904 = vmul.f32 %v869, %v899
      %v905 = vmul.f32 %v870, %v899
      %v906 = vmul.f32 %v871, %v899
      %v907 = vmul.f32 %v872, %v899
      %v908 = vmul.f32 %v873, %v899
      %v909 = vmul.f32 %v874, %v899
      %v910 = vmul.f32 %v875, %v899
      %v911 = vmul.f32 %v876, %v899
      %v912 = vmul.f32 %v877, %v899
      %v913 = vmul.f32 %v878, %v899
      %v914 = vmul.f32 %v879, %v899
      %v915 = vmul.f32 %v880, %v899
      %v916 = vmul.f32 %v881, %v899
      %v917 = vmul.f32 %v882, %v899
      %v918 = vmul.f32 %v883, %v899
      %v919 = vmul.f32 %v884, %v899
      %v920 = vmul.f32 %v885, %v899
      %v921 = vmul.f32 %v886, %v899
      %v922 = vmul.f32 %v887, %v899
      %v923 = vmul.f32 %v888, %v899
      %v924 = vmul.f32 %v889, %v899
      %v925 = vmul.f32 %v890, %v899
      %v926 = vmul.f32 %v891, %v899
      %v927 = vmul.f32 %v892, %v899
      %v928 = vmul.f32 %v893, %v899
      %v929 = vmul.f32 %v894, %v899
      %v930 = vmul.f32 %v895, %v899
      %v931 = vmul.f32 %v896, %v899
      %v932 = vmul.f32 %v897, %v899
      %v934 = vperm.slane %v536, 0
      %v936 = vadd.f32 %v901, %v934
      %v937 = vadd.f32 %v902, %v934
      %v938 = vadd.f32 %v903, %v934
      %v939 = vadd.f32 %v904, %v934
      %v940 = vadd.f32 %v905, %v934
      %v941 = vadd.f32 %v906, %v934
      %v942 = vadd.f32 %v907, %v934
      %v943 = vadd.f32 %v908, %v934
      %v944 = vadd.f32 %v909, %v934
      %v945 = vadd.f32 %v910, %v934
      %v946 = vadd.f32 %v911, %v934
      %v947 = vadd.f32 %v912, %v934
      %v948 = vadd.f32 %v913, %v934
      %v949 = vadd.f32 %v914, %v934
      %v950 = vadd.f32 %v915, %v934
      %v951 = vadd.f32 %v916, %v934
      %v952 = vadd.f32 %v917, %v934
      %v953 = vadd.f32 %v918, %v934
      %v954 = vadd.f32 %v919, %v934
      %v955 = vadd.f32 %v920, %v934
      %v956 = vadd.f32 %v921, %v934
      %v957 = vadd.f32 %v922, %v934
      %v958 = vadd.f32 %v923, %v934
      %v959 = vadd.f32 %v924, %v934
      %v960 = vadd.f32 %v925, %v934
      %v961 = vadd.f32 %v926, %v934
      %v962 = vadd.f32 %v927, %v934
      %v963 = vadd.f32 %v928, %v934
      %v964 = vadd.f32 %v929, %v934
      %v965 = vadd.f32 %v930, %v934
      %v966 = vadd.f32 %v931, %v934
      %v967 = vadd.f32 %v932, %v934
      %v968 = vmax.f32 %v936, 0.0
      %v969 = vmax.f32 %v937, 0.0
      %v970 = vmax.f32 %v938, 0.0
      %v971 = vmax.f32 %v939, 0.0
      %v972 = vmax.f32 %v940, 0.0
      %v973 = vmax.f32 %v941, 0.0
      %v974 = vmax.f32 %v942, 0.0
      %v975 = vmax.f32 %v943, 0.0
      %v976 = vmax.f32 %v944, 0.0
      %v977 = vmax.f32 %v945, 0.0
      %v978 = vmax.f32 %v946, 0.0
      %v979 = vmax.f32 %v947, 0.0
      %v980 = vmax.f32 %v948, 0.0
      %v981 = vmax.f32 %v949, 0.0
      %v982 = vmax.f32 %v950, 0.0
      %v983 = vmax.f32 %v951, 0.0
      %v984 = vmax.f32 %v952, 0.0
      %v985 = vmax.f32 %v953, 0.0
      %v986 = vmax.f32 %v954, 0.0
      %v987 = vmax.f32 %v955, 0.0
      %v988 = vmax.f32 %v956, 0.0
      %v989 = vmax.f32 %v957, 0.0
      %v990 = vmax.f32 %v958, 0.0
      %v991 = vmax.f32 %v959, 0.0
      %v992 = vmax.f32 %v960, 0.0
      %v993 = vmax.f32 %v961, 0.0
      %v994 = vmax.f32 %v962, 0.0
      %v995 = vmax.f32 %v963, 0.0
      %v996 = vmax.f32 %v964, 0.0
      %v997 = vmax.f32 %v965, 0.0
      %v998 = vmax.f32 %v966, 0.0
      %v999 = vmax.f32 %v967, 0.0
      %1000 = vst.msk [vmem:[%s251] sm:$0xff] %vm397, %v968
      %1001 = vst.msk [vmem:[%s251 + $0x8] sm:$0xff] %vm397, %v969
      %1002 = vst.msk [vmem:[%s251 + $0x10] sm:$0xff] %vm397, %v970
      %1003 = vst.msk [vmem:[%s251 + $0x18] sm:$0xff] %vm397, %v971
      %1004 = vst.msk [vmem:[%s251 + $0x20] sm:$0xff] %vm397, %v972
      %1005 = vst.msk [vmem:[%s251 + $0x28] sm:$0xff] %vm397, %v973
      %1006 = vst.msk [vmem:[%s251 + $0x30] sm:$0xff] %vm397, %v974
      %1007 = vst.msk [vmem:[%s251 + $0x38] sm:$0xff] %vm397, %v975
      %1008 = vst.msk [vmem:[%s251 + $0x40] sm:$0xff] %vm397, %v976
      %1009 = vst.msk [vmem:[%s251 + $0x48] sm:$0xff] %vm397, %v977
      %1010 = vst.msk [vmem:[%s251 + $0x50] sm:$0xff] %vm397, %v978
      %1011 = vst.msk [vmem:[%s251 + $0x58] sm:$0xff] %vm397, %v979
      %1012 = vst.msk [vmem:[%s251 + $0x60] sm:$0xff] %vm397, %v980
      %1013 = vst.msk [vmem:[%s251 + $0x68] sm:$0xff] %vm397, %v981
      %1014 = vst.msk [vmem:[%s251 + $0x70] sm:$0xff] %vm397, %v982
      %1015 = vst.msk [vmem:[%s251 + $0x78] sm:$0xff] %vm397, %v983
      %1016 = vst.msk [vmem:[%s251 + $0x80] sm:$0xff] %vm397, %v984
      %1017 = vst.msk [vmem:[%s251 + $0x88] sm:$0xff] %vm397, %v985
      %1018 = vst.msk [vmem:[%s251 + $0x90] sm:$0xff] %vm397, %v986
      %1019 = vst.msk [vmem:[%s251 + $0x98] sm:$0xff] %vm397, %v987
      %1020 = vst.msk [vmem:[%s251 + $0xa0] sm:$0xff] %vm397, %v988
      %1021 = vst.msk [vmem:[%s251 + $0xa8] sm:$0xff] %vm397, %v989
      %1022 = vst.msk [vmem:[%s251 + $0xb0] sm:$0xff] %vm397, %v990
      %1023 = vst.msk [vmem:[%s251 + $0xb8] sm:$0xff] %vm397, %v991
      %1024 = vst.msk [vmem:[%s251 + $0xc0] sm:$0xff] %vm397, %v992
      %1025 = vst.msk [vmem:[%s251 + $0xc8] sm:$0xff] %vm397, %v993
      %1026 = vst.msk [vmem:[%s251 + $0xd0] sm:$0xff] %vm397, %v994
      %1027 = vst.msk [vmem:[%s251 + $0xd8] sm:$0xff] %vm397, %v995
      %1028 = vst.msk [vmem:[%s251 + $0xe0] sm:$0xff] %vm397, %v996
      %1029 = vst.msk [vmem:[%s251 + $0xe8] sm:$0xff] %vm397, %v997
      %1030 = vst.msk [vmem:[%s251 + $0xf0] sm:$0xff] %vm397, %v998
      %1031 = vst.msk [vmem:[%s251 + $0xf8] sm:$0xff] %vm397, %v999
      %p1032 = scmp.lt.s32.totalorder %s17, 1
      %s1033 = scalar_select %p1032, %s17, 1
      %s1034 = smul.addr %s1033, 32
      %s1035 = smul.addr %s1034, 8
      %s1036 = scalar_lea.vmem %s6, %s1035
      // Predicated region
      $region45: #{_lambda_.8} parent=43 // pred_check
        %p1037 = pneg %p166
      $region46: #{_lambda_.8} parent=43 // pred_check_branch
        %1039 = sbr.rel (%p1037) target = $region48
      $region47: #{_lambda_.8} parent=43 // pred_region
        _
      $region48: #{_lambda_.8} parent=43 // pred_fallthru
        _
    $region44: #{_lambda_.8} parent=5 // pred_fallthru
      _
    %p1040 = scmp.le.s32.totalorder 2, %s12
    // Predicated region
    $region49: #{_lambda_.8} parent=5 // pred_check
      %p1041 = pneg %p1040
    $region50: #{_lambda_.8} parent=5 // pred_check_branch
      %1043 = sbr.rel (%p1041) target = $region52
    $region51: #{_lambda_.8} parent=5 // pred_region
      %s1044 = ssub.s32 %s12, 2
      // Predicated region
      $region53: #{_lambda_.8} parent=51 // pred_check
        %p1045 = pneg %p172
      $region54: #{_lambda_.8} parent=51 // pred_check_branch
        %1047 = sbr.rel (%p1045) target = $region56
      $region55: #{_lambda_.8} parent=51 // pred_region
        %p1048 = scmp.lt.s32.totalorder %s18, 1
        %s1049 = scalar_select %p1048, %s18, 1
        %s1050 = smul.addr %s1049, 32
        %s1051 = smul.addr %s1050, 8
        %s1052 = scalar_lea.vmem %s6, %s1051
      $region56: #{_lambda_.8} parent=51 // pred_fallthru
        _
    $region52: #{_lambda_.8} parent=5 // pred_fallthru
      _
  $region6: #{_lambda_.8} parent=0 // loop_footer
    %s16 = sadd.s32 1, %s12
  $region7: #{_lambda_.8} parent=0 // loop_footer_branch
    %11 = sbr.rel target = $region3
  $region8: #{_lambda_.8} parent=0 // loop_exit
    _

// kernel: _lambda_.10
$region0: #{_lambda_.10}
  #allocation0 [shape = 'u32[]', space=smem, size = 0x4, offset = 0x4, fixed_abs, tag = 'smem constant byte address 0x4 - core index']
  #allocation1 [shape = 'u32[72,128]{1,0:T(1,128)}', space=vmem, size = 0x9000, scoped, tag = 'internal scratch']
  %s0 = inlined_call_operand.vmem [shape: bf16[2,64,64], index: 0, kind: input, shape index: {}]
  %s1 = inlined_call_operand.vmem [shape: bf16[64,256], index: 1, kind: input, shape index: {}]
  %s2 = inlined_call_operand.vmem [shape: f32[1,256], index: 2, kind: input, shape index: {}]
  %s3 = inlined_call_operand.vmem [shape: f32[1,256], index: 3, kind: input, shape index: {}]
  %s4 = inlined_call_operand.vmem [shape: f32[256,32], index: 4, kind: input, shape index: {}]
  %s5 = inlined_call_operand.vmem [shape: f32[32,256], index: 5, kind: input, shape index: {}]
  %s6 = inlined_call_operand.vmem [shape: bf16[2,64,256], index: 6, kind: input, shape index: {}]
  %s7 = inlined_call_operand.vmem [shape: bf16[2,64,256], index: 7, kind: output, shape index: {}]
  %s8 = sld [smem:[#allocation0]]
  $region61: #{_lambda_.10} parent=0
    _
  %s10 = ssub.s32 1, %s8
  %s11 = scalar_select 0, %s10, %s8
  loop: start=0, step=1, limit=4
  $region2: #{_lambda_.10} parent=0 // loop_pre_header
    _
  $region3: #{_lambda_.10} parent=0 // loop_header
    %s13 = sphi 0, %s17
    %p14 = scmp.ge.s32.totalorder %s13, 4
    %s23 = sphi 0, %s25
    %s26 = sphi 0, %s23
    %s27 = sphi 0, %s26
    %s43 = sphi 0, %s27
    %s47 = sphi 0, %s47
    %s49 = sphi 0, %s47
    %s50 = sphi 0, %s49
    %s64 = sphi 0, %s50
    %s68 = sphi 0, %s68
    %s70 = sphi 0, %s68
    %s71 = sphi 0, %s70
    %s85 = sphi 0, %s71
    %s89 = sphi 0, %s89
    %s91 = sphi 0, %s89
    %s92 = sphi 0, %s91
    %s106 = sphi 0, %s92
    %s110 = sphi 0, %s110
    %s112 = sphi 0, %s110
    %s113 = sphi 0, %s112
    %s127 = sphi 0, %s113
    %s131 = sphi 0, %s131
    %s133 = sphi 0, %s131
    %s134 = sphi 0, %s133
    %s148 = sphi 0, %s134
    %s154 = sphi 0, %s156
    %s157 = sphi 0, %s154
    %s158 = sphi 0, %s157
    %s174 = sphi 0, %s158
    %s180 = sphi 0, %s182
    %s183 = sphi 0, %s180
    %s184 = sphi 0, %s183
    %s200 = sphi 0, %s184
  $region4: #{_lambda_.10} parent=0 // loop_header_branch
    %16 = sbr.rel (%p14) target = $region8
  $region5: #{_lambda_.10} parent=0 // loop_body
    %s18 = ssub.s32 %s13, 1
    %s19 = ssub.s32 %s13, 2
    %s20 = sadd.s32 %s13, 1
    %s21 = ssub.s32 %s13, %s20
    %p22 = scmp.eq.s32.totalorder %s21, 0
    %s24 = sadd.s32 %s23, 1
    %s25 = scalar_select %p22, %s23, %s24
    %p28 = pneg %p22
    %p29 = scmp.eq.s32.totalorder %s13, 1
    %p30 = por %p28, %p29
    %p31 = scmp.ne.s32.totalorder %s23, %s26
    %p32 = scmp.eq.s32.totalorder %s13, 0
    %p33 = por %p31, %p32
    %p34 = scmp.ne.s32.totalorder %s23, %s26
    %p35 = scmp.eq.s32.totalorder %s18, 1
    %p36 = por %p34, %p35
    %p37 = scmp.ne.s32.totalorder %s26, %s27
    %p38 = scmp.eq.s32.totalorder %s18, 0
    %p39 = por %p37, %p38
    %p40 = scmp.ne.s32.totalorder %s26, %s27
    %p41 = scmp.eq.s32.totalorder %s19, 1
    %p42 = por %p40, %p41
    %p44 = scmp.ne.s32.totalorder %s27, %s43
    %p45 = scmp.eq.s32.totalorder %s19, 0
    %p46 = por %p44, %p45
    %s48 = sadd.s32 %s47, 1
    %p51 = scmp.eq.s32.totalorder %s13, 1
    %p52 = scmp.ne.s32.totalorder %s47, %s49
    %p53 = scmp.eq.s32.totalorder %s13, 0
    %p54 = por %p52, %p53
    %p55 = scmp.ne.s32.totalorder %s47, %s49
    %p56 = scmp.eq.s32.totalorder %s18, 1
    %p57 = por %p55, %p56
    %p58 = scmp.ne.s32.totalorder %s49, %s50
    %p59 = scmp.eq.s32.totalorder %s18, 0
    %p60 = por %p58, %p59
    %p61 = scmp.ne.s32.totalorder %s49, %s50
    %p62 = scmp.eq.s32.totalorder %s19, 1
    %p63 = por %p61, %p62
    %p65 = scmp.ne.s32.totalorder %s50, %s64
    %p66 = scmp.eq.s32.totalorder %s19, 0
    %p67 = por %p65, %p66
    %s69 = sadd.s32 %s68, 1
    %p72 = scmp.eq.s32.totalorder %s13, 1
    %p73 = scmp.ne.s32.totalorder %s68, %s70
    %p74 = scmp.eq.s32.totalorder %s13, 0
    %p75 = por %p73, %p74
    %p76 = scmp.ne.s32.totalorder %s68, %s70
    %p77 = scmp.eq.s32.totalorder %s18, 1
    %p78 = por %p76, %p77
    %p79 = scmp.ne.s32.totalorder %s70, %s71
    %p80 = scmp.eq.s32.totalorder %s18, 0
    %p81 = por %p79, %p80
    %p82 = scmp.ne.s32.totalorder %s70, %s71
    %p83 = scmp.eq.s32.totalorder %s19, 1
    %p84 = por %p82, %p83
    %p86 = scmp.ne.s32.totalorder %s71, %s85
    %p87 = scmp.eq.s32.totalorder %s19, 0
    %p88 = por %p86, %p87
    %s90 = sadd.s32 %s89, 1
    %p93 = scmp.eq.s32.totalorder %s13, 1
    %p94 = scmp.ne.s32.totalorder %s89, %s91
    %p95 = scmp.eq.s32.totalorder %s13, 0
    %p96 = por %p94, %p95
    %p97 = scmp.ne.s32.totalorder %s89, %s91
    %p98 = scmp.eq.s32.totalorder %s18, 1
    %p99 = por %p97, %p98
    %p100 = scmp.ne.s32.totalorder %s91, %s92
    %p101 = scmp.eq.s32.totalorder %s18, 0
    %p102 = por %p100, %p101
    %p103 = scmp.ne.s32.totalorder %s91, %s92
    %p104 = scmp.eq.s32.totalorder %s19, 1
    %p105 = por %p103, %p104
    %p107 = scmp.ne.s32.totalorder %s92, %s106
    %p108 = scmp.eq.s32.totalorder %s19, 0
    %p109 = por %p107, %p108
    %s111 = sadd.s32 %s110, 1
    %p114 = scmp.eq.s32.totalorder %s13, 1
    %p115 = scmp.ne.s32.totalorder %s110, %s112
    %p116 = scmp.eq.s32.totalorder %s13, 0
    %p117 = por %p115, %p116
    %p118 = scmp.ne.s32.totalorder %s110, %s112
    %p119 = scmp.eq.s32.totalorder %s18, 1
    %p120 = por %p118, %p119
    %p121 = scmp.ne.s32.totalorder %s112, %s113
    %p122 = scmp.eq.s32.totalorder %s18, 0
    %p123 = por %p121, %p122
    %p124 = scmp.ne.s32.totalorder %s112, %s113
    %p125 = scmp.eq.s32.totalorder %s19, 1
    %p126 = por %p124, %p125
    %p128 = scmp.ne.s32.totalorder %s113, %s127
    %p129 = scmp.eq.s32.totalorder %s19, 0
    %p130 = por %p128, %p129
    %s132 = sadd.s32 %s131, 1
    %p135 = scmp.eq.s32.totalorder %s13, 1
    %p136 = scmp.ne.s32.totalorder %s131, %s133
    %p137 = scmp.eq.s32.totalorder %s13, 0
    %p138 = por %p136, %p137
    %p139 = scmp.ne.s32.totalorder %s131, %s133
    %p140 = scmp.eq.s32.totalorder %s18, 1
    %p141 = por %p139, %p140
    %p142 = scmp.ne.s32.totalorder %s133, %s134
    %p143 = scmp.eq.s32.totalorder %s18, 0
    %p144 = por %p142, %p143
    %p145 = scmp.ne.s32.totalorder %s133, %s134
    %p146 = scmp.eq.s32.totalorder %s19, 1
    %p147 = por %p145, %p146
    %p149 = scmp.ne.s32.totalorder %s134, %s148
    %p150 = scmp.eq.s32.totalorder %s19, 0
    %p151 = por %p149, %p150
    %s152 = ssub.s32 %s13, %s20
    %p153 = scmp.eq.s32.totalorder %s152, 0
    %s155 = sadd.s32 %s154, 1
    %s156 = scalar_select %p153, %s154, %s155
    %p159 = pneg %p153
    %p160 = scmp.eq.s32.totalorder %s13, 1
    %p161 = por %p159, %p160
    %p162 = scmp.ne.s32.totalorder %s154, %s157
    %p163 = scmp.eq.s32.totalorder %s13, 0
    %p164 = por %p162, %p163
    %p165 = scmp.ne.s32.totalorder %s154, %s157
    %p166 = scmp.eq.s32.totalorder %s18, 1
    %p167 = por %p165, %p166
    %p168 = scmp.ne.s32.totalorder %s157, %s158
    %p169 = scmp.eq.s32.totalorder %s18, 0
    %p170 = por %p168, %p169
    %p171 = scmp.ne.s32.totalorder %s157, %s158
    %p172 = scmp.eq.s32.totalorder %s19, 1
    %p173 = por %p171, %p172
    %p175 = scmp.ne.s32.totalorder %s158, %s174
    %p176 = scmp.eq.s32.totalorder %s19, 0
    %p177 = por %p175, %p176
    %s178 = ssub.s32 %s13, %s20
    %p179 = scmp.eq.s32.totalorder %s178, 0
    %s181 = sadd.s32 %s180, 1
    %s182 = scalar_select %p179, %s180, %s181
    %p185 = pneg %p179
    %p186 = scmp.eq.s32.totalorder %s13, 1
    %p187 = por %p185, %p186
    %p188 = scmp.ne.s32.totalorder %s180, %s183
    %p189 = scmp.eq.s32.totalorder %s13, 0
    %p190 = por %p188, %p189
    %p191 = scmp.ne.s32.totalorder %s180, %s183
    %p192 = scmp.eq.s32.totalorder %s18, 1
    %p193 = por %p191, %p192
    %p194 = scmp.ne.s32.totalorder %s183, %s184
    %p195 = scmp.eq.s32.totalorder %s18, 0
    %p196 = por %p194, %p195
    %p197 = scmp.ne.s32.totalorder %s183, %s184
    %p198 = scmp.eq.s32.totalorder %s19, 1
    %p199 = por %p197, %p198
    %p201 = scmp.ne.s32.totalorder %s184, %s200
    %p202 = scmp.eq.s32.totalorder %s19, 0
    %p203 = por %p201, %p202
    %p204 = scmp.le.s32.totalorder 1, %s13
    %p205 = scmp.lt.s32.totalorder %s13, 3
    %p206 = pnand %p204, %p205
    %p207 = pneg %p206
    // Predicated region
    $region9: #{_lambda_.10} parent=5 // pred_check
      _
    $region10: #{_lambda_.10} parent=5 // pred_check_branch
      %209 = sbr.rel (%p206) target = $region12
    $region11: #{_lambda_.10} parent=5 // pred_region
      %s210 = ssub.s32 %s13, 1
      // Predicated region
      $region13: #{_lambda_.10} parent=11 // pred_check
        %p211 = pneg %p60
      $region14: #{_lambda_.10} parent=11 // pred_check_branch
        %213 = sbr.rel (%p211) target = $region16
      $region15: #{_lambda_.10} parent=11 // pred_region
        _
      $region16: #{_lambda_.10} parent=11 // pred_fallthru
        _
      // Predicated region
      $region17: #{_lambda_.10} parent=11 // pred_check
        %p214 = pneg %p81
      $region18: #{_lambda_.10} parent=11 // pred_check_branch
        %216 = sbr.rel (%p214) target = $region20
      $region19: #{_lambda_.10} parent=11 // pred_region
        _
      $region20: #{_lambda_.10} parent=11 // pred_fallthru
        _
      // Predicated region
      $region21: #{_lambda_.10} parent=11 // pred_check
        %p217 = pneg %p102
      $region22: #{_lambda_.10} parent=11 // pred_check_branch
        %219 = sbr.rel (%p217) target = $region24
      $region23: #{_lambda_.10} parent=11 // pred_region
        _
      $region24: #{_lambda_.10} parent=11 // pred_fallthru
        _
      // Predicated region
      $region25: #{_lambda_.10} parent=11 // pred_check
        %p220 = pneg %p123
      $region26: #{_lambda_.10} parent=11 // pred_check_branch
        %222 = sbr.rel (%p220) target = $region28
      $region27: #{_lambda_.10} parent=11 // pred_region
        _
      $region28: #{_lambda_.10} parent=11 // pred_fallthru
        _
      // Predicated region
      $region29: #{_lambda_.10} parent=11 // pred_check
        %p223 = pneg %p144
      $region30: #{_lambda_.10} parent=11 // pred_check_branch
        %225 = sbr.rel (%p223) target = $region32
      $region31: #{_lambda_.10} parent=11 // pred_region
        _
      $region32: #{_lambda_.10} parent=11 // pred_fallthru
        _
    $region12: #{_lambda_.10} parent=5 // pred_fallthru
      _
    %p226 = scmp.lt.s32.totalorder %s13, 2
    // Predicated region
    $region33: #{_lambda_.10} parent=5 // pred_check
      %p227 = pneg %p226
    $region34: #{_lambda_.10} parent=5 // pred_check_branch
      %229 = sbr.rel (%p227) target = $region36
    $region35: #{_lambda_.10} parent=5 // pred_region
      // Predicated region
      $region37: #{_lambda_.10} parent=35 // pred_check
        %p230 = pneg %p33
      $region38: #{_lambda_.10} parent=35 // pred_check_branch
        %232 = sbr.rel (%p230) target = $region40
      $region39: #{_lambda_.10} parent=35 // pred_region
        %p233 = scmp.lt.s32.totalorder %s13, 1
        %s234 = scalar_select %p233, %s13, 1
        %s235 = smul.addr %s234, 8
        %s236 = smul.addr %s235, 4
        %s237 = scalar_lea.vmem %s0, %s236
      $region40: #{_lambda_.10} parent=35 // pred_fallthru
        _
      // Predicated region
      $region41: #{_lambda_.10} parent=35 // pred_check
        %p238 = pneg %p164
      $region42: #{_lambda_.10} parent=35 // pred_check_branch
        %240 = sbr.rel (%p238) target = $region44
      $region43: #{_lambda_.10} parent=35 // pred_region
        %p241 = scmp.lt.s32.totalorder %s13, 1
        %s242 = scalar_select %p241, %s13, 1
        %s243 = smul.addr %s242, 16
        %s244 = smul.addr %s243, 4
        %s245 = scalar_lea.vmem %s6, %s244
      $region44: #{_lambda_.10} parent=35 // pred_fallthru
        _
    $region36: #{_lambda_.10} parent=5 // pred_fallthru
      _
    %p246 = scmp.le.s32.totalorder 1, %s13
    %p247 = scmp.lt.s32.totalorder %s13, 3
    %p248 = pnand %p246, %p247
    %p249 = pneg %p248
    // Predicated region
    $region45: #{_lambda_.10} parent=5 // pred_check
      _
    $region46: #{_lambda_.10} parent=5 // pred_check_branch
      %251 = sbr.rel (%p248) target = $region48
    $region47: #{_lambda_.10} parent=5 // pred_region
      %s252 = ssub.s32 %s13, 1
      %p253 = scmp.lt.s32.totalorder %s18, 1
      %s254 = scalar_select %p253, %s18, 1
      %s255 = smul.addr %s254, 8
      %s256 = smul.addr %s255, 4
      %s257 = scalar_lea.vmem %s0, %s256
      %p258 = pneg %p39
      %p259 = pneg %p36
      %p260 = pneg %p60
      %p261 = pneg %p57
      %p262 = pneg %p81
      %p263 = pneg %p78
      %p264 = pneg %p102
      %p265 = pneg %p99
      %p266 = pneg %p123
      %p267 = pneg %p120
      %p268 = pneg %p144
      %p269 = pneg %p141
      %p270 = scmp.lt.s32.totalorder %s18, 1
      %s271 = scalar_select %p270, %s18, 1
      %s272 = smul.addr %s271, 16
      %s273 = smul.addr %s272, 4
      %s274 = scalar_lea.vmem %s6, %s273
      %p275 = pneg %p170
      %p276 = pneg %p167
      %p277 = pneg %p196
      %p278 = pneg %p193
      %p279 = scmp.lt.s32.totalorder %s18, 1
      %s280 = scalar_select %p279, %s18, 1
      %s281 = smul.addr %s280, 16
      %s282 = smul.addr %s281, 4
      %s283 = scalar_lea.vmem %s7, %s282
      %p284 = scmp.lt.s32.totalorder %s18, 1
      %s285 = scalar_select %p284, %s18, 1
      %s286 = smul.addr %s285, 8
      %s287 = smul.addr %s286, 4
      %s288 = scalar_lea.vmem %s0, %s287
      %p289 = scmp.lt.s32.totalorder %s18, 1
      %s290 = scalar_select %p289, %s18, 1
      %s291 = smul.addr %s290, 16
      %s292 = smul.addr %s291, 4
      %s293 = scalar_lea.vmem %s6, %s292
      %p294 = scmp.lt.s32.totalorder %s18, 1
      %s295 = scalar_select %p294, %s18, 1
      %s296 = smul.addr %s295, 16
      %s297 = smul.addr %s296, 4
      %s298 = scalar_lea.vmem %s7, %s297
      %v300 = vld [vmem:[%s288] sm:$0xf]
      %v301 = vld [vmem:[%s288 + $0x4] sm:$0xf]
      %v302 = vld [vmem:[%s288 + $0x8] sm:$0xf]
      %v303 = vld [vmem:[%s288 + $0xc] sm:$0xf]
      %v304 = vld [vmem:[%s288 + $0x10] sm:$0xf]
      %v305 = vld [vmem:[%s288 + $0x14] sm:$0xf]
      %v306 = vld [vmem:[%s288 + $0x18] sm:$0xf]
      %v307 = vld [vmem:[%s288 + $0x1c] sm:$0xf]
      %v308 = vld [vmem:[%s1] sm:$0xff]
      %v309 = vld [vmem:[%s1 + $0x8] sm:$0xff]
      %v310 = vld [vmem:[%s1 + $0x10] sm:$0xff]
      %v311 = vld [vmem:[%s1 + $0x18] sm:$0xff]
      %v312 = vld [vmem:[%s1 + $0x20] sm:$0xff]
      %v313 = vld [vmem:[%s1 + $0x28] sm:$0xff]
      %v314 = vld [vmem:[%s1 + $0x30] sm:$0xff]
      %v315 = vld [vmem:[%s1 + $0x38] sm:$0xff]
      %v324 = vunpack.c.l.b16 %v300
      %v325 = vunpack.c.l.b16 %v301
      %v326 = vunpack.c.l.b16 %v302
      %v327 = vunpack.c.l.b16 %v303
      %v328 = vunpack.c.l.b16 %v304
      %v329 = vunpack.c.l.b16 %v305
      %v330 = vunpack.c.l.b16 %v306
      %v331 = vunpack.c.l.b16 %v307
      %v332 = vpack.c.b16 %v325, %v324
      %v333 = vpack.c.b16 %v327, %v326
      %v334 = vpack.c.b16 %v329, %v328
      %v335 = vpack.c.b16 %v331, %v330
      %v344 = vunpack.c.l.b16 %v308
      %v345 = vunpack.c.h.b16 %v308
      %v346 = vunpack.c.l.b16 %v309
      %v347 = vunpack.c.h.b16 %v309
      %v348 = vunpack.c.l.b16 %v310
      %v349 = vunpack.c.h.b16 %v310
      %v350 = vunpack.c.l.b16 %v311
      %v351 = vunpack.c.h.b16 %v311
      %v352 = vunpack.c.l.b16 %v312
      %v353 = vunpack.c.h.b16 %v312
      %v354 = vunpack.c.l.b16 %v313
      %v355 = vunpack.c.h.b16 %v313
      %v356 = vunpack.c.l.b16 %v314
      %v357 = vunpack.c.h.b16 %v314
      %v358 = vunpack.c.l.b16 %v315
      %v359 = vunpack.c.h.b16 %v315
      %v360 = vpack.c.b16 %v346, %v344
      %v361 = vpack.c.b16 %v347, %v345
      %v362 = vpack.c.b16 %v350, %v348
      %v363 = vpack.c.b16 %v351, %v349
      %v364 = vpack.c.b16 %v354, %v352
      %v365 = vpack.c.b16 %v355, %v353
      %v366 = vpack.c.b16 %v358, %v356
      %v367 = vpack.c.b16 %v359, %v357
      %vm376 = vcmask 523264
      %v378 = vsel %vm376, %v332, 0
      %v381 = vsel %vm376, %v333, 0
      %v384 = vsel %vm376, %v334, 0
      %v387 = vsel %vm376, %v335, 0
      %389 = vmatpush.bf16.msra.mxu0 0
      %390 = vmatpush.bf16.msra.mxu0 0
      %391 = vmatpush.bf16.msra.mxu0 0
      %392 = vmatpush.bf16.msra.mxu0 0
      %393 = vmatpush.bf16.msra.mxu0 %v366
      %394 = vmatpush.bf16.msra.mxu0 %v364
      %395 = vmatpush.bf16.msra.mxu0 %v362
      %396 = vmatpush.bf16.msra.mxu0 %v360
      %397 = vmatmul.bf16.gmra.mxu0 %v378
      %v398 = vpop.f32.mrf.mxu0
      %v399 = vadd.f32 0.0, %v398
      %v400 = vpop.f32.mrf.mxu0
      %v401 = vadd.f32 0.0, %v400
      %402 = vmatmul.bf16.gmra.mxu0 %v381
      %v403 = vpop.f32.mrf.mxu0
      %v404 = vadd.f32 0.0, %v403
      %v405 = vpop.f32.mrf.mxu0
      %v406 = vadd.f32 0.0, %v405
      %407 = vmatmul.bf16.gmra.mxu0 %v384
      %v408 = vpop.f32.mrf.mxu0
      %v409 = vadd.f32 0.0, %v408
      %v410 = vpop.f32.mrf.mxu0
      %v411 = vadd.f32 0.0, %v410
      %412 = vmatmul.bf16.gmra.mxu0 %v387
      %v413 = vpop.f32.mrf.mxu0
      %v414 = vadd.f32 0.0, %v413
      %v415 = vpop.f32.mrf.mxu0
      %v416 = vadd.f32 0.0, %v415
      %417 = vdwg.mxu0
      %418 = vmatpush.bf16.msra.mxu0 0
      %419 = vmatpush.bf16.msra.mxu0 0
      %420 = vmatpush.bf16.msra.mxu0 0
      %421 = vmatpush.bf16.msra.mxu0 0
      %422 = vmatpush.bf16.msra.mxu0 %v367
      %423 = vmatpush.bf16.msra.mxu0 %v365
      %424 = vmatpush.bf16.msra.mxu0 %v363
      %425 = vmatpush.bf16.msra.mxu0 %v361
      %426 = vmatmul.bf16.gmra.mxu0 %v378
      %v427 = vpop.f32.mrf.mxu0
      %v428 = vadd.f32 0.0, %v427
      %v429 = vpop.f32.mrf.mxu0
      %v430 = vadd.f32 0.0, %v429
      %431 = vmatmul.bf16.gmra.mxu0 %v381
      %v432 = vpop.f32.mrf.mxu0
      %v433 = vadd.f32 0.0, %v432
      %v434 = vpop.f32.mrf.mxu0
      %v435 = vadd.f32 0.0, %v434
      %436 = vmatmul.bf16.gmra.mxu0 %v384
      %v437 = vpop.f32.mrf.mxu0
      %v438 = vadd.f32 0.0, %v437
      %v439 = vpop.f32.mrf.mxu0
      %v440 = vadd.f32 0.0, %v439
      %441 = vmatmul.bf16.gmra.mxu0 %v387
      %v442 = vpop.f32.mrf.mxu0
      %v443 = vadd.f32 0.0, %v442
      %v444 = vpop.f32.mrf.mxu0
      %v445 = vadd.f32 0.0, %v444
      %446 = vdwg.mxu0
      %v447 = vld [vmem:[%s2] sm:$0x3]
      %v448 = vld [vmem:[%s3] sm:$0x3]
      %v449 = vld [vmem:[%s4] sm:$0xff]
      %v450 = vld [vmem:[%s4 + $0x8] sm:$0xff]
      %v451 = vld [vmem:[%s4 + $0x10] sm:$0xff]
      %v452 = vld [vmem:[%s4 + $0x18] sm:$0xff]
      %v453 = vld [vmem:[%s4 + $0x20] sm:$0xff]
      %v454 = vld [vmem:[%s4 + $0x28] sm:$0xff]
      %v455 = vld [vmem:[%s4 + $0x30] sm:$0xff]
      %v456 = vld [vmem:[%s4 + $0x38] sm:$0xff]
      %v457 = vld [vmem:[%s4 + $0x40] sm:$0xff]
      %v458 = vld [vmem:[%s4 + $0x48] sm:$0xff]
      %v459 = vld [vmem:[%s4 + $0x50] sm:$0xff]
      %v460 = vld [vmem:[%s4 + $0x58] sm:$0xff]
      %v461 = vld [vmem:[%s4 + $0x60] sm:$0xff]
      %v462 = vld [vmem:[%s4 + $0x68] sm:$0xff]
      %v463 = vld [vmem:[%s4 + $0x70] sm:$0xff]
      %v464 = vld [vmem:[%s4 + $0x78] sm:$0xff]
      %v465 = vld [vmem:[%s4 + $0x80] sm:$0xff]
      %v466 = vld [vmem:[%s4 + $0x88] sm:$0xff]
      %v467 = vld [vmem:[%s4 + $0x90] sm:$0xff]
      %v468 = vld [vmem:[%s4 + $0x98] sm:$0xff]
      %v469 = vld [vmem:[%s4 + $0xa0] sm:$0xff]
      %v470 = vld [vmem:[%s4 + $0xa8] sm:$0xff]
      %v471 = vld [vmem:[%s4 + $0xb0] sm:$0xff]
      %v472 = vld [vmem:[%s4 + $0xb8] sm:$0xff]
      %v473 = vld [vmem:[%s4 + $0xc0] sm:$0xff]
      %v474 = vld [vmem:[%s4 + $0xc8] sm:$0xff]
      %v475 = vld [vmem:[%s4 + $0xd0] sm:$0xff]
      %v476 = vld [vmem:[%s4 + $0xd8] sm:$0xff]
      %v477 = vld [vmem:[%s4 + $0xe0] sm:$0xff]
      %v478 = vld [vmem:[%s4 + $0xe8] sm:$0xff]
      %v479 = vld [vmem:[%s4 + $0xf0] sm:$0xff]
      %v480 = vld [vmem:[%s4 + $0xf8] sm:$0xff]
      %v481 = vld [vmem:[%s5] sm:$0xff]
      %v482 = vld [vmem:[%s5 + $0x8] sm:$0xff]
      %v483 = vld [vmem:[%s5 + $0x10] sm:$0xff]
      %v484 = vld [vmem:[%s5 + $0x18] sm:$0xff]
      %v485 = vld [vmem:[%s5 + $0x20] sm:$0xff]
      %v486 = vld [vmem:[%s5 + $0x28] sm:$0xff]
      %v487 = vld [vmem:[%s5 + $0x30] sm:$0xff]
      %v488 = vld [vmem:[%s5 + $0x38] sm:$0xff]
      %v489 = vadd.f32 %v399, %v401
      %v490 = vadd.f32 %v489, %v404
      %v491 = vadd.f32 %v490, %v406
      %v492 = vadd.f32 %v491, %v409
      %v493 = vadd.f32 %v492, %v411
      %v494 = vadd.f32 %v493, %v414
      %v495 = vadd.f32 %v494, %v416
      %v496 = vrot.slane %v495, 4
      %v497 = vadd.f32 %v495, %v496
      %v498 = vrot.slane %v497, 2
      %v499 = vadd.f32 %v497, %v498
      %v500 = vrot.slane %v499, 1
      %v501 = vadd.f32 %v499, %v500
      %v502 = vadd.f32 %v428, %v430
      %v503 = vadd.f32 %v502, %v433
      %v504 = vadd.f32 %v503, %v435
      %v505 = vadd.f32 %v504, %v438
      %v506 = vadd.f32 %v505, %v440
      %v507 = vadd.f32 %v506, %v443
      %v508 = vadd.f32 %v507, %v445
      %v509 = vrot.slane %v508, 4
      %v510 = vadd.f32 %v508, %v509
      %v511 = vrot.slane %v510, 2
      %v512 = vadd.f32 %v510, %v511
      %v513 = vrot.slane %v512, 1
      %v514 = vadd.f32 %v512, %v513
      %515 = vmatpush.msra.mxu0 %v464
      %516 = vmatpush.msra.mxu0 %v463
      %517 = vmatpush.msra.mxu0 %v462
      %518 = vmatpush.msra.mxu0 %v461
      %519 = vmatpush.msra.mxu0 %v460
      %520 = vmatpush.msra.mxu0 %v459
      %521 = vmatpush.msra.mxu0 %v458
      %522 = vmatpush.msra.mxu0 %v457
      %523 = vmatpush.msra.mxu0 %v456
      %524 = vmatpush.msra.mxu0 %v455
      %525 = vmatpush.msra.mxu0 %v454
      %526 = vmatpush.msra.mxu0 %v453
      %527 = vmatpush.msra.mxu0 %v452
      %528 = vmatpush.msra.mxu0 %v451
      %529 = vmatpush.msra.mxu0 %v450
      %530 = vmatpush.msra.mxu0 %v449
      %531 = vmatmul.f32.gmra.mxu0 %v501
      %v532 = vpop.f32.mrf.mxu0
      %v533 = vadd.f32 0.0, %v532
      %534 = vdwg.mxu0
      %535 = vmatpush.msra.mxu0 %v480
      %536 = vmatpush.msra.mxu0 %v479
      %537 = vmatpush.msra.mxu0 %v478
      %538 = vmatpush.msra.mxu0 %v477
      %539 = vmatpush.msra.mxu0 %v476
      %540 = vmatpush.msra.mxu0 %v475
      %541 = vmatpush.msra.mxu0 %v474
      %542 = vmatpush.msra.mxu0 %v473
      %543 = vmatpush.msra.mxu0 %v472
      %544 = vmatpush.msra.mxu0 %v471
      %545 = vmatpush.msra.mxu0 %v470
      %546 = vmatpush.msra.mxu0 %v469
      %547 = vmatpush.msra.mxu0 %v468
      %548 = vmatpush.msra.mxu0 %v467
      %549 = vmatpush.msra.mxu0 %v466
      %550 = vmatpush.msra.mxu0 %v465
      %551 = vmatmul.f32.gmra.mxu0 %v514
      %v552 = vpop.f32.mrf.mxu0
      %v553 = vadd.f32 %v533, %v552
      %554 = vdwg.mxu0
      %vm555 = vcmask 261120
      %v557 = vsel %vm555, %v553, 0
      %559 = vmatpush.msra.mxu0 0.0
      %560 = vmatpush.msra.mxu0 0.0
      %561 = vmatpush.msra.mxu0 0.0
      %562 = vmatpush.msra.mxu0 0.0
      %563 = vmatpush.msra.mxu0 0.0
      %564 = vmatpush.msra.mxu0 0.0
      %565 = vmatpush.msra.mxu0 0.0
      %566 = vmatpush.msra.mxu0 0.0
      %567 = vmatpush.msra.mxu0 0.0
      %568 = vmatpush.msra.mxu0 0.0
      %569 = vmatpush.msra.mxu0 0.0
      %570 = vmatpush.msra.mxu0 0.0
      %571 = vmatpush.msra.mxu0 %v487
      %572 = vmatpush.msra.mxu0 %v485
      %573 = vmatpush.msra.mxu0 %v483
      %574 = vmatpush.msra.mxu0 %v481
      %575 = vmatmul.f32.gmra.mxu0 %v557
      %v576 = vpop.f32.mrf.mxu0
      %v577 = vadd.f32 0.0, %v576
      %578 = vdwg.mxu0
      %579 = vmatpush.msra.mxu0 0.0
      %580 = vmatpush.msra.mxu0 0.0
      %581 = vmatpush.msra.mxu0 0.0
      %582 = vmatpush.msra.mxu0 0.0
      %583 = vmatpush.msra.mxu0 0.0
      %584 = vmatpush.msra.mxu0 0.0
      %585 = vmatpush.msra.mxu0 0.0
      %586 = vmatpush.msra.mxu0 0.0
      %587 = vmatpush.msra.mxu0 0.0
      %588 = vmatpush.msra.mxu0 0.0
      %589 = vmatpush.msra.mxu0 0.0
      %590 = vmatpush.msra.mxu0 0.0
      %591 = vmatpush.msra.mxu0 %v488
      %592 = vmatpush.msra.mxu0 %v486
      %593 = vmatpush.msra.mxu0 %v484
      %594 = vmatpush.msra.mxu0 %v482
      %595 = vmatmul.f32.gmra.mxu0 %v557
      %v596 = vpop.f32.mrf.mxu0
      %v597 = vadd.f32 0.0, %v596
      %598 = vdwg.mxu0
      %v599 = vrcp.pop 512.0
      %v600 = vmul.f32 512.0, %v599
      %v601 = vsub.f32 1.0, %v600
      %v602 = vmul.f32 %v599, %v601
      %v603 = vadd.f32 %v599, %v602
      %vm604 = vweird.f32 %v599
      %v605 = vsel %vm604, %v599, %v603
      %v606 = vmul.f32 %v577, %v605
      %v607 = vmul.f32 %v597, %v605
      %v608 = vperm.slane %v606, 0
      %v609 = vperm.slane %v607, 0
      %v610 = vsub.f32 %v399, %v608
      %v611 = vsub.f32 %v428, %v609
      %v612 = vsub.f32 %v401, %v608
      %v613 = vsub.f32 %v430, %v609
      %v614 = vsub.f32 %v404, %v608
      %v615 = vsub.f32 %v433, %v609
      %v616 = vsub.f32 %v406, %v608
      %v617 = vsub.f32 %v435, %v609
      %v618 = vsub.f32 %v409, %v608
      %v619 = vsub.f32 %v438, %v609
      %v620 = vsub.f32 %v411, %v608
      %v621 = vsub.f32 %v440, %v609
      %v622 = vsub.f32 %v414, %v608
      %v623 = vsub.f32 %v443, %v609
      %v624 = vsub.f32 %v416, %v608
      %v625 = vsub.f32 %v445, %v609
      %v626 = vmul.f32 %v610, %v610
      %v627 = vmul.f32 %v611, %v611
      %v628 = vmul.f32 %v612, %v612
      %v629 = vmul.f32 %v613, %v613
      %v630 = vmul.f32 %v614, %v614
      %v631 = vmul.f32 %v615, %v615
      %v632 = vmul.f32 %v616, %v616
      %v633 = vmul.f32 %v617, %v617
      %v634 = vmul.f32 %v618, %v618
      %v635 = vmul.f32 %v619, %v619
      %v636 = vmul.f32 %v620, %v620
      %v637 = vmul.f32 %v621, %v621
      %v638 = vmul.f32 %v622, %v622
      %v639 = vmul.f32 %v623, %v623
      %v640 = vmul.f32 %v624, %v624
      %v641 = vmul.f32 %v625, %v625
      %v642 = vadd.f32 %v626, %v628
      %v643 = vadd.f32 %v642, %v630
      %v644 = vadd.f32 %v643, %v632
      %v645 = vadd.f32 %v644, %v634
      %v646 = vadd.f32 %v645, %v636
      %v647 = vadd.f32 %v646, %v638
      %v648 = vadd.f32 %v647, %v640
      %v649 = vrot.slane %v648, 4
      %v650 = vadd.f32 %v648, %v649
      %v651 = vrot.slane %v650, 2
      %v652 = vadd.f32 %v650, %v651
      %v653 = vrot.slane %v652, 1
      %v654 = vadd.f32 %v652, %v653
      %v655 = vadd.f32 %v627, %v629
      %v656 = vadd.f32 %v655, %v631
      %v657 = vadd.f32 %v656, %v633
      %v658 = vadd.f32 %v657, %v635
      %v659 = vadd.f32 %v658, %v637
      %v660 = vadd.f32 %v659, %v639
      %v661 = vadd.f32 %v660, %v641
      %v662 = vrot.slane %v661, 4
      %v663 = vadd.f32 %v661, %v662
      %v664 = vrot.slane %v663, 2
      %v665 = vadd.f32 %v663, %v664
      %v666 = vrot.slane %v665, 1
      %v667 = vadd.f32 %v665, %v666
      %668 = vmatpush.msra.mxu0 %v464
      %669 = vmatpush.msra.mxu0 %v463
      %670 = vmatpush.msra.mxu0 %v462
      %671 = vmatpush.msra.mxu0 %v461
      %672 = vmatpush.msra.mxu0 %v460
      %673 = vmatpush.msra.mxu0 %v459
      %674 = vmatpush.msra.mxu0 %v458
      %675 = vmatpush.msra.mxu0 %v457
      %676 = vmatpush.msra.mxu0 %v456
      %677 = vmatpush.msra.mxu0 %v455
      %678 = vmatpush.msra.mxu0 %v454
      %679 = vmatpush.msra.mxu0 %v453
      %680 = vmatpush.msra.mxu0 %v452
      %681 = vmatpush.msra.mxu0 %v451
      %682 = vmatpush.msra.mxu0 %v450
      %683 = vmatpush.msra.mxu0 %v449
      %684 = vmatmul.f32.gmra.mxu0 %v654
      %v685 = vpop.f32.mrf.mxu0
      %v686 = vadd.f32 0.0, %v685
      %687 = vdwg.mxu0
      %688 = vmatpush.msra.mxu0 %v480
      %689 = vmatpush.msra.mxu0 %v479
      %690 = vmatpush.msra.mxu0 %v478
      %691 = vmatpush.msra.mxu0 %v477
      %692 = vmatpush.msra.mxu0 %v476
      %693 = vmatpush.msra.mxu0 %v475
      %694 = vmatpush.msra.mxu0 %v474
      %695 = vmatpush.msra.mxu0 %v473
      %696 = vmatpush.msra.mxu0 %v472
      %697 = vmatpush.msra.mxu0 %v471
      %698 = vmatpush.msra.mxu0 %v470
      %699 = vmatpush.msra.mxu0 %v469
      %700 = vmatpush.msra.mxu0 %v468
      %701 = vmatpush.msra.mxu0 %v467
      %702 = vmatpush.msra.mxu0 %v466
      %703 = vmatpush.msra.mxu0 %v465
      %704 = vmatmul.f32.gmra.mxu0 %v667
      %v705 = vpop.f32.mrf.mxu0
      %v706 = vadd.f32 %v686, %v705
      %707 = vdwg.mxu0
      %v708 = vmul.f32 %v706, %v605
      %v709 = vadd.f32 %v708, 1e-05
      %v710 = vrsqrt.pop %v709
      %v711 = vmul.f32 %v710, %v709
      %v712 = vmul.f32 %v711, %v710
      %v713 = vmul.f32 0.5, %v712
      %v714 = vsub.f32 1.5, %v713
      %v715 = vmul.f32 %v710, %v714
      %vm716 = vweird.f32 %v709
      %vm717 = vweird.f32 %v710
      %vm718 = vmor %vm716, %vm717
      %v719 = vsel %vm718, %v710, %v715
      %v721 = vsel %vm555, %v719, 0
      %723 = vmatpush.msra.mxu0 0.0
      %724 = vmatpush.msra.mxu0 0.0
      %725 = vmatpush.msra.mxu0 0.0
      %726 = vmatpush.msra.mxu0 0.0
      %727 = vmatpush.msra.mxu0 0.0
      %728 = vmatpush.msra.mxu0 0.0
      %729 = vmatpush.msra.mxu0 0.0
      %730 = vmatpush.msra.mxu0 0.0
      %731 = vmatpush.msra.mxu0 0.0
      %732 = vmatpush.msra.mxu0 0.0
      %733 = vmatpush.msra.mxu0 0.0
      %734 = vmatpush.msra.mxu0 0.0
      %735 = vmatpush.msra.mxu0 %v487
      %736 = vmatpush.msra.mxu0 %v485
      %737 = vmatpush.msra.mxu0 %v483
      %738 = vmatpush.msra.mxu0 %v481
      %739 = vmatmul.f32.gmra.mxu0 %v721
      %v740 = vpop.f32.mrf.mxu0
      %v741 = vadd.f32 0.0, %v740
      %742 = vdwg.mxu0
      %743 = vmatpush.msra.mxu0 0.0
      %744 = vmatpush.msra.mxu0 0.0
      %745 = vmatpush.msra.mxu0 0.0
      %746 = vmatpush.msra.mxu0 0.0
      %747 = vmatpush.msra.mxu0 0.0
      %748 = vmatpush.msra.mxu0 0.0
      %749 = vmatpush.msra.mxu0 0.0
      %750 = vmatpush.msra.mxu0 0.0
      %751 = vmatpush.msra.mxu0 0.0
      %752 = vmatpush.msra.mxu0 0.0
      %753 = vmatpush.msra.mxu0 0.0
      %754 = vmatpush.msra.mxu0 0.0
      %755 = vmatpush.msra.mxu0 %v488
      %756 = vmatpush.msra.mxu0 %v486
      %757 = vmatpush.msra.mxu0 %v484
      %758 = vmatpush.msra.mxu0 %v482
      %759 = vmatmul.f32.gmra.mxu0 %v721
      %v760 = vpop.f32.mrf.mxu0
      %v761 = vadd.f32 0.0, %v760
      %762 = vdwg.mxu0
      %v763 = vperm.slane %v741, 0
      %v764 = vperm.slane %v761, 0
      %v765 = vmul.f32 %v610, %v763
      %v766 = vmul.f32 %v611, %v764
      %v767 = vmul.f32 %v612, %v763
      %v768 = vmul.f32 %v613, %v764
      %v769 = vmul.f32 %v614, %v763
      %v770 = vmul.f32 %v615, %v764
      %v771 = vmul.f32 %v616, %v763
      %v772 = vmul.f32 %v617, %v764
      %v773 = vmul.f32 %v618, %v763
      %v774 = vmul.f32 %v619, %v764
      %v775 = vmul.f32 %v620, %v763
      %v776 = vmul.f32 %v621, %v764
      %v777 = vmul.f32 %v622, %v763
      %v778 = vmul.f32 %v623, %v764
      %v779 = vmul.f32 %v624, %v763
      %v780 = vmul.f32 %v625, %v764
      %v782 = vperm.slane %v447, 0
      %v783 = vperm.slane %v447, 1
      %v786 = vmul.f32 %v765, %v782
      %v787 = vmul.f32 %v766, %v783
      %v788 = vmul.f32 %v767, %v782
      %v789 = vmul.f32 %v768, %v783
      %v790 = vmul.f32 %v769, %v782
      %v791 = vmul.f32 %v770, %v783
      %v792 = vmul.f32 %v771, %v782
      %v793 = vmul.f32 %v772, %v783
      %v794 = vmul.f32 %v773, %v782
      %v795 = vmul.f32 %v774, %v783
      %v796 = vmul.f32 %v775, %v782
      %v797 = vmul.f32 %v776, %v783
      %v798 = vmul.f32 %v777, %v782
      %v799 = vmul.f32 %v778, %v783
      %v800 = vmul.f32 %v779, %v782
      %v801 = vmul.f32 %v780, %v783
      %v803 = vperm.slane %v448, 0
      %v804 = vperm.slane %v448, 1
      %v807 = vadd.f32 %v786, %v803
      %v808 = vadd.f32 %v787, %v804
      %v809 = vadd.f32 %v788, %v803
      %v810 = vadd.f32 %v789, %v804
      %v811 = vadd.f32 %v790, %v803
      %v812 = vadd.f32 %v791, %v804
      %v813 = vadd.f32 %v792, %v803
      %v814 = vadd.f32 %v793, %v804
      %v815 = vadd.f32 %v794, %v803
      %v816 = vadd.f32 %v795, %v804
      %v817 = vadd.f32 %v796, %v803
      %v818 = vadd.f32 %v797, %v804
      %v819 = vadd.f32 %v798, %v803
      %v820 = vadd.f32 %v799, %v804
      %v821 = vadd.f32 %v800, %v803
      %v822 = vadd.f32 %v801, %v804
      %v823 = vld [vmem:[%s293] sm:$0xff]
      %v824 = vld [vmem:[%s293 + $0x8] sm:$0xff]
      %v825 = vld [vmem:[%s293 + $0x10] sm:$0xff]
      %v826 = vld [vmem:[%s293 + $0x18] sm:$0xff]
      %v827 = vld [vmem:[%s293 + $0x20] sm:$0xff]
      %v828 = vld [vmem:[%s293 + $0x28] sm:$0xff]
      %v829 = vld [vmem:[%s293 + $0x30] sm:$0xff]
      %v830 = vld [vmem:[%s293 + $0x38] sm:$0xff]
      %v831 = vunpack.c.l.bf16 %v823
      %v832 = vunpack.c.h.bf16 %v823
      %v833 = vunpack.c.l.bf16 %v824
      %v834 = vunpack.c.h.bf16 %v824
      %v835 = vunpack.c.l.bf16 %v825
      %v836 = vunpack.c.h.bf16 %v825
      %v837 = vunpack.c.l.bf16 %v826
      %v838 = vunpack.c.h.bf16 %v826
      %v839 = vunpack.c.l.bf16 %v827
      %v840 = vunpack.c.h.bf16 %v827
      %v841 = vunpack.c.l.bf16 %v828
      %v842 = vunpack.c.h.bf16 %v828
      %v843 = vunpack.c.l.bf16 %v829
      %v844 = vunpack.c.h.bf16 %v829
      %v845 = vunpack.c.l.bf16 %v830
      %v846 = vunpack.c.h.bf16 %v830
      %v847 = vadd.f32 %v807, %v831
      %v848 = vadd.f32 %v808, %v832
      %v849 = vadd.f32 %v809, %v833
      %v850 = vadd.f32 %v810, %v834
      %v851 = vadd.f32 %v811, %v835
      %v852 = vadd.f32 %v812, %v836
      %v853 = vadd.f32 %v813, %v837
      %v854 = vadd.f32 %v814, %v838
      %v855 = vadd.f32 %v815, %v839
      %v856 = vadd.f32 %v816, %v840
      %v857 = vadd.f32 %v817, %v841
      %v858 = vadd.f32 %v818, %v842
      %v859 = vadd.f32 %v819, %v843
      %v860 = vadd.f32 %v820, %v844
      %v861 = vadd.f32 %v821, %v845
      %v862 = vadd.f32 %v822, %v846
      %v863 = vmax.f32 %v847, 0.0
      %v864 = vmax.f32 %v848, 0.0
      %v865 = vmax.f32 %v849, 0.0
      %v866 = vmax.f32 %v850, 0.0
      %v867 = vmax.f32 %v851, 0.0
      %v868 = vmax.f32 %v852, 0.0
      %v869 = vmax.f32 %v853, 0.0
      %v870 = vmax.f32 %v854, 0.0
      %v871 = vmax.f32 %v855, 0.0
      %v872 = vmax.f32 %v856, 0.0
      %v873 = vmax.f32 %v857, 0.0
      %v874 = vmax.f32 %v858, 0.0
      %v875 = vmax.f32 %v859, 0.0
      %v876 = vmax.f32 %v860, 0.0
      %v877 = vmax.f32 %v861, 0.0
      %v878 = vmax.f32 %v862, 0.0
      %v879 = vpack.c.bf16 %v864, %v863
      %v880 = vpack.c.bf16 %v866, %v865
      %v881 = vpack.c.bf16 %v868, %v867
      %v882 = vpack.c.bf16 %v870, %v869
      %v883 = vpack.c.bf16 %v872, %v871
      %v884 = vpack.c.bf16 %v874, %v873
      %v885 = vpack.c.bf16 %v876, %v875
      %v886 = vpack.c.bf16 %v878, %v877
      %887 = vst [vmem:[%s298] sm:$0xff] %v879
      %888 = vst [vmem:[%s298 + $0x8] sm:$0xff] %v880
      %889 = vst [vmem:[%s298 + $0x10] sm:$0xff] %v881
      %890 = vst [vmem:[%s298 + $0x18] sm:$0xff] %v882
      %891 = vst [vmem:[%s298 + $0x20] sm:$0xff] %v883
      %892 = vst [vmem:[%s298 + $0x28] sm:$0xff] %v884
      %893 = vst [vmem:[%s298 + $0x30] sm:$0xff] %v885
      %894 = vst [vmem:[%s298 + $0x38] sm:$0xff] %v886
      %p895 = scmp.lt.s32.totalorder %s18, 1
      %s896 = scalar_select %p895, %s18, 1
      %s897 = smul.addr %s896, 16
      %s898 = smul.addr %s897, 4
      %s899 = scalar_lea.vmem %s7, %s898
      // Predicated region
      $region49: #{_lambda_.10} parent=47 // pred_check
        %p900 = pneg %p193
      $region50: #{_lambda_.10} parent=47 // pred_check_branch
        %902 = sbr.rel (%p900) target = $region52
      $region51: #{_lambda_.10} parent=47 // pred_region
        _
      $region52: #{_lambda_.10} parent=47 // pred_fallthru
        _
    $region48: #{_lambda_.10} parent=5 // pred_fallthru
      _
    %p903 = scmp.le.s32.totalorder 2, %s13
    // Predicated region
    $region53: #{_lambda_.10} parent=5 // pred_check
      %p904 = pneg %p903
    $region54: #{_lambda_.10} parent=5 // pred_check_branch
      %906 = sbr.rel (%p904) target = $region56
    $region55: #{_lambda_.10} parent=5 // pred_region
      %s907 = ssub.s32 %s13, 2
      // Predicated region
      $region57: #{_lambda_.10} parent=55 // pred_check
        %p908 = pneg %p199
      $region58: #{_lambda_.10} parent=55 // pred_check_branch
        %910 = sbr.rel (%p908) target = $region60
      $region59: #{_lambda_.10} parent=55 // pred_region
        %p911 = scmp.lt.s32.totalorder %s19, 1
        %s912 = scalar_select %p911, %s19, 1
        %s913 = smul.addr %s912, 16
        %s914 = smul.addr %s913, 4
        %s915 = scalar_lea.vmem %s7, %s914
      $region60: #{_lambda_.10} parent=55 // pred_fallthru
        _
    $region56: #{_lambda_.10} parent=5 // pred_fallthru
      _
  $region6: #{_lambda_.10} parent=0 // loop_footer
    %s17 = sadd.s32 1, %s13
  $region7: #{_lambda_.10} parent=0 // loop_footer_branch
    %12 = sbr.rel target = $region3
  $region8: #{_lambda_.10} parent=0 // loop_exit
    _

// kernel: _lambda_.9
$region0: #{_lambda_.9}
  #allocation0 [shape = 'u32[]', space=smem, size = 0x4, offset = 0x4, fixed_abs, tag = 'smem constant byte address 0x4 - core index']
  #allocation1 [shape = 'u32[72,128]{1,0:T(1,128)}', space=vmem, size = 0x9000, scoped, tag = 'internal scratch']
  %s0 = inlined_call_operand.vmem [shape: f32[2,36,9,64], index: 0, kind: input, shape index: {}]
  %s1 = inlined_call_operand.vmem [shape: bf16[9,64,64], index: 1, kind: input, shape index: {}]
  %s2 = inlined_call_operand.vmem [shape: f32[1,64], index: 2, kind: input, shape index: {}]
  %s3 = inlined_call_operand.vmem [shape: f32[1,64], index: 3, kind: input, shape index: {}]
  %s4 = inlined_call_operand.vmem [shape: f32[64,32], index: 4, kind: input, shape index: {}]
  %s5 = inlined_call_operand.vmem [shape: f32[32,64], index: 5, kind: input, shape index: {}]
  %s6 = inlined_call_operand.vmem [shape: bf16[2,64,64], index: 6, kind: output, shape index: {}]
  %s7 = sld [smem:[#allocation0]]
  $region57: #{_lambda_.9} parent=0
    _
  %s9 = ssub.s32 1, %s7
  %s10 = scalar_select 0, %s9, %s7
  loop: start=0, step=1, limit=4
  $region2: #{_lambda_.9} parent=0 // loop_pre_header
    _
  $region3: #{_lambda_.9} parent=0 // loop_header
    %s12 = sphi 0, %s16
    %p13 = scmp.ge.s32.totalorder %s12, 4
    %s22 = sphi 0, %s24
    %s25 = sphi 0, %s22
    %s26 = sphi 0, %s25
    %s42 = sphi 0, %s26
    %s46 = sphi 0, %s46
    %s48 = sphi 0, %s46
    %s49 = sphi 0, %s48
    %s63 = sphi 0, %s49
    %s67 = sphi 0, %s67
    %s69 = sphi 0, %s67
    %s70 = sphi 0, %s69
    %s84 = sphi 0, %s70
    %s88 = sphi 0, %s88
    %s90 = sphi 0, %s88
    %s91 = sphi 0, %s90
    %s105 = sphi 0, %s91
    %s109 = sphi 0, %s109
    %s111 = sphi 0, %s109
    %s112 = sphi 0, %s111
    %s126 = sphi 0, %s112
    %s130 = sphi 0, %s130
    %s132 = sphi 0, %s130
    %s133 = sphi 0, %s132
    %s147 = sphi 0, %s133
    %s153 = sphi 0, %s155
    %s156 = sphi 0, %s153
    %s157 = sphi 0, %s156
    %s173 = sphi 0, %s157
  $region4: #{_lambda_.9} parent=0 // loop_header_branch
    %15 = sbr.rel (%p13) target = $region8
  $region5: #{_lambda_.9} parent=0 // loop_body
    %s17 = ssub.s32 %s12, 1
    %s18 = ssub.s32 %s12, 2
    %s19 = sadd.s32 %s12, 1
    %s20 = ssub.s32 %s12, %s19
    %p21 = scmp.eq.s32.totalorder %s20, 0
    %s23 = sadd.s32 %s22, 1
    %s24 = scalar_select %p21, %s22, %s23
    %p27 = pneg %p21
    %p28 = scmp.eq.s32.totalorder %s12, 1
    %p29 = por %p27, %p28
    %p30 = scmp.ne.s32.totalorder %s22, %s25
    %p31 = scmp.eq.s32.totalorder %s12, 0
    %p32 = por %p30, %p31
    %p33 = scmp.ne.s32.totalorder %s22, %s25
    %p34 = scmp.eq.s32.totalorder %s17, 1
    %p35 = por %p33, %p34
    %p36 = scmp.ne.s32.totalorder %s25, %s26
    %p37 = scmp.eq.s32.totalorder %s17, 0
    %p38 = por %p36, %p37
    %p39 = scmp.ne.s32.totalorder %s25, %s26
    %p40 = scmp.eq.s32.totalorder %s18, 1
    %p41 = por %p39, %p40
    %p43 = scmp.ne.s32.totalorder %s26, %s42
    %p44 = scmp.eq.s32.totalorder %s18, 0
    %p45 = por %p43, %p44
    %s47 = sadd.s32 %s46, 1
    %p50 = scmp.eq.s32.totalorder %s12, 1
    %p51 = scmp.ne.s32.totalorder %s46, %s48
    %p52 = scmp.eq.s32.totalorder %s12, 0
    %p53 = por %p51, %p52
    %p54 = scmp.ne.s32.totalorder %s46, %s48
    %p55 = scmp.eq.s32.totalorder %s17, 1
    %p56 = por %p54, %p55
    %p57 = scmp.ne.s32.totalorder %s48, %s49
    %p58 = scmp.eq.s32.totalorder %s17, 0
    %p59 = por %p57, %p58
    %p60 = scmp.ne.s32.totalorder %s48, %s49
    %p61 = scmp.eq.s32.totalorder %s18, 1
    %p62 = por %p60, %p61
    %p64 = scmp.ne.s32.totalorder %s49, %s63
    %p65 = scmp.eq.s32.totalorder %s18, 0
    %p66 = por %p64, %p65
    %s68 = sadd.s32 %s67, 1
    %p71 = scmp.eq.s32.totalorder %s12, 1
    %p72 = scmp.ne.s32.totalorder %s67, %s69
    %p73 = scmp.eq.s32.totalorder %s12, 0
    %p74 = por %p72, %p73
    %p75 = scmp.ne.s32.totalorder %s67, %s69
    %p76 = scmp.eq.s32.totalorder %s17, 1
    %p77 = por %p75, %p76
    %p78 = scmp.ne.s32.totalorder %s69, %s70
    %p79 = scmp.eq.s32.totalorder %s17, 0
    %p80 = por %p78, %p79
    %p81 = scmp.ne.s32.totalorder %s69, %s70
    %p82 = scmp.eq.s32.totalorder %s18, 1
    %p83 = por %p81, %p82
    %p85 = scmp.ne.s32.totalorder %s70, %s84
    %p86 = scmp.eq.s32.totalorder %s18, 0
    %p87 = por %p85, %p86
    %s89 = sadd.s32 %s88, 1
    %p92 = scmp.eq.s32.totalorder %s12, 1
    %p93 = scmp.ne.s32.totalorder %s88, %s90
    %p94 = scmp.eq.s32.totalorder %s12, 0
    %p95 = por %p93, %p94
    %p96 = scmp.ne.s32.totalorder %s88, %s90
    %p97 = scmp.eq.s32.totalorder %s17, 1
    %p98 = por %p96, %p97
    %p99 = scmp.ne.s32.totalorder %s90, %s91
    %p100 = scmp.eq.s32.totalorder %s17, 0
    %p101 = por %p99, %p100
    %p102 = scmp.ne.s32.totalorder %s90, %s91
    %p103 = scmp.eq.s32.totalorder %s18, 1
    %p104 = por %p102, %p103
    %p106 = scmp.ne.s32.totalorder %s91, %s105
    %p107 = scmp.eq.s32.totalorder %s18, 0
    %p108 = por %p106, %p107
    %s110 = sadd.s32 %s109, 1
    %p113 = scmp.eq.s32.totalorder %s12, 1
    %p114 = scmp.ne.s32.totalorder %s109, %s111
    %p115 = scmp.eq.s32.totalorder %s12, 0
    %p116 = por %p114, %p115
    %p117 = scmp.ne.s32.totalorder %s109, %s111
    %p118 = scmp.eq.s32.totalorder %s17, 1
    %p119 = por %p117, %p118
    %p120 = scmp.ne.s32.totalorder %s111, %s112
    %p121 = scmp.eq.s32.totalorder %s17, 0
    %p122 = por %p120, %p121
    %p123 = scmp.ne.s32.totalorder %s111, %s112
    %p124 = scmp.eq.s32.totalorder %s18, 1
    %p125 = por %p123, %p124
    %p127 = scmp.ne.s32.totalorder %s112, %s126
    %p128 = scmp.eq.s32.totalorder %s18, 0
    %p129 = por %p127, %p128
    %s131 = sadd.s32 %s130, 1
    %p134 = scmp.eq.s32.totalorder %s12, 1
    %p135 = scmp.ne.s32.totalorder %s130, %s132
    %p136 = scmp.eq.s32.totalorder %s12, 0
    %p137 = por %p135, %p136
    %p138 = scmp.ne.s32.totalorder %s130, %s132
    %p139 = scmp.eq.s32.totalorder %s17, 1
    %p140 = por %p138, %p139
    %p141 = scmp.ne.s32.totalorder %s132, %s133
    %p142 = scmp.eq.s32.totalorder %s17, 0
    %p143 = por %p141, %p142
    %p144 = scmp.ne.s32.totalorder %s132, %s133
    %p145 = scmp.eq.s32.totalorder %s18, 1
    %p146 = por %p144, %p145
    %p148 = scmp.ne.s32.totalorder %s133, %s147
    %p149 = scmp.eq.s32.totalorder %s18, 0
    %p150 = por %p148, %p149
    %s151 = ssub.s32 %s12, %s19
    %p152 = scmp.eq.s32.totalorder %s151, 0
    %s154 = sadd.s32 %s153, 1
    %s155 = scalar_select %p152, %s153, %s154
    %p158 = pneg %p152
    %p159 = scmp.eq.s32.totalorder %s12, 1
    %p160 = por %p158, %p159
    %p161 = scmp.ne.s32.totalorder %s153, %s156
    %p162 = scmp.eq.s32.totalorder %s12, 0
    %p163 = por %p161, %p162
    %p164 = scmp.ne.s32.totalorder %s153, %s156
    %p165 = scmp.eq.s32.totalorder %s17, 1
    %p166 = por %p164, %p165
    %p167 = scmp.ne.s32.totalorder %s156, %s157
    %p168 = scmp.eq.s32.totalorder %s17, 0
    %p169 = por %p167, %p168
    %p170 = scmp.ne.s32.totalorder %s156, %s157
    %p171 = scmp.eq.s32.totalorder %s18, 1
    %p172 = por %p170, %p171
    %p174 = scmp.ne.s32.totalorder %s157, %s173
    %p175 = scmp.eq.s32.totalorder %s18, 0
    %p176 = por %p174, %p175
    %p177 = scmp.le.s32.totalorder 1, %s12
    %p178 = scmp.lt.s32.totalorder %s12, 3
    %p179 = pnand %p177, %p178
    %p180 = pneg %p179
    // Predicated region
    $region9: #{_lambda_.9} parent=5 // pred_check
      _
    $region10: #{_lambda_.9} parent=5 // pred_check_branch
      %182 = sbr.rel (%p179) target = $region12
    $region11: #{_lambda_.9} parent=5 // pred_region
      %s183 = ssub.s32 %s12, 1
      // Predicated region
      $region13: #{_lambda_.9} parent=11 // pred_check
        %p184 = pneg %p59
      $region14: #{_lambda_.9} parent=11 // pred_check_branch
        %186 = sbr.rel (%p184) target = $region16
      $region15: #{_lambda_.9} parent=11 // pred_region
        _
      $region16: #{_lambda_.9} parent=11 // pred_fallthru
        _
      // Predicated region
      $region17: #{_lambda_.9} parent=11 // pred_check
        %p187 = pneg %p80
      $region18: #{_lambda_.9} parent=11 // pred_check_branch
        %189 = sbr.rel (%p187) target = $region20
      $region19: #{_lambda_.9} parent=11 // pred_region
        _
      $region20: #{_lambda_.9} parent=11 // pred_fallthru
        _
      // Predicated region
      $region21: #{_lambda_.9} parent=11 // pred_check
        %p190 = pneg %p101
      $region22: #{_lambda_.9} parent=11 // pred_check_branch
        %192 = sbr.rel (%p190) target = $region24
      $region23: #{_lambda_.9} parent=11 // pred_region
        _
      $region24: #{_lambda_.9} parent=11 // pred_fallthru
        _
      // Predicated region
      $region25: #{_lambda_.9} parent=11 // pred_check
        %p193 = pneg %p122
      $region26: #{_lambda_.9} parent=11 // pred_check_branch
        %195 = sbr.rel (%p193) target = $region28
      $region27: #{_lambda_.9} parent=11 // pred_region
        _
      $region28: #{_lambda_.9} parent=11 // pred_fallthru
        _
      // Predicated region
      $region29: #{_lambda_.9} parent=11 // pred_check
        %p196 = pneg %p143
      $region30: #{_lambda_.9} parent=11 // pred_check_branch
        %198 = sbr.rel (%p196) target = $region32
      $region31: #{_lambda_.9} parent=11 // pred_region
        _
      $region32: #{_lambda_.9} parent=11 // pred_fallthru
        _
    $region12: #{_lambda_.9} parent=5 // pred_fallthru
      _
    %p199 = scmp.lt.s32.totalorder %s12, 2
    // Predicated region
    $region33: #{_lambda_.9} parent=5 // pred_check
      %p200 = pneg %p199
    $region34: #{_lambda_.9} parent=5 // pred_check_branch
      %202 = sbr.rel (%p200) target = $region36
    $region35: #{_lambda_.9} parent=5 // pred_region
      // Predicated region
      $region37: #{_lambda_.9} parent=35 // pred_check
        %p203 = pneg %p32
      $region38: #{_lambda_.9} parent=35 // pred_check_branch
        %205 = sbr.rel (%p203) target = $region40
      $region39: #{_lambda_.9} parent=35 // pred_region
        %p206 = scmp.lt.s32.totalorder %s12, 1
        %s207 = scalar_select %p206, %s12, 1
        %s208 = smul.addr %s207, 72
        %s209 = smul.addr %s208, 8
        %s210 = scalar_lea.vmem %s0, %s209
      $region40: #{_lambda_.9} parent=35 // pred_fallthru
        _
    $region36: #{_lambda_.9} parent=5 // pred_fallthru
      _
    %p211 = scmp.le.s32.totalorder 1, %s12
    %p212 = scmp.lt.s32.totalorder %s12, 3
    %p213 = pnand %p211, %p212
    %p214 = pneg %p213
    // Predicated region
    $region41: #{_lambda_.9} parent=5 // pred_check
      _
    $region42: #{_lambda_.9} parent=5 // pred_check_branch
      %216 = sbr.rel (%p213) target = $region44
    $region43: #{_lambda_.9} parent=5 // pred_region
      %s217 = ssub.s32 %s12, 1
      %p218 = scmp.lt.s32.totalorder %s17, 1
      %s219 = scalar_select %p218, %s17, 1
      %s220 = smul.addr %s219, 72
      %s221 = smul.addr %s220, 8
      %s222 = scalar_lea.vmem %s0, %s221
      %p223 = pneg %p38
      %p224 = pneg %p35
      %p225 = pneg %p59
      %p226 = pneg %p56
      %p227 = pneg %p80
      %p228 = pneg %p77
      %p229 = pneg %p101
      %p230 = pneg %p98
      %p231 = pneg %p122
      %p232 = pneg %p119
      %p233 = pneg %p143
      %p234 = pneg %p140
      %p235 = pneg %p169
      %p236 = pneg %p166
      %p237 = scmp.lt.s32.totalorder %s17, 1
      %s238 = scalar_select %p237, %s17, 1
      %s239 = smul.addr %s238, 8
      %s240 = smul.addr %s239, 4
      %s241 = scalar_lea.vmem %s6, %s240
      %p242 = scmp.lt.s32.totalorder %s17, 1
      %s243 = scalar_select %p242, %s17, 1
      %s244 = smul.addr %s243, 72
      %s245 = smul.addr %s244, 8
      %s246 = scalar_lea.vmem %s0, %s245
      %p247 = scmp.lt.s32.totalorder %s17, 1
      %s248 = scalar_select %p247, %s17, 1
      %s249 = smul.addr %s248, 8
      %s250 = smul.addr %s249, 4
      %s251 = scalar_lea.vmem %s6, %s250
      %v253 = vld [vmem:[%s246] sm:$0xff]
      %v254 = vld [vmem:[%s246 + $0x10] sm:$0xff]
      %v255 = vld [vmem:[%s246 + $0x20] sm:$0xff]
      %v256 = vld [vmem:[%s246 + $0x30] sm:$0xff]
      %v257 = vld [vmem:[%s246 + $0x40] sm:$0xff]
      %v258 = vld [vmem:[%s246 + $0x50] sm:$0xff]
      %v259 = vld [vmem:[%s246 + $0x60] sm:$0xff]
      %v260 = vld [vmem:[%s246 + $0x70] sm:$0xff]
      %v261 = vpack.c.bf16 %v254, %v253
      %v262 = vpack.c.bf16 %v256, %v255
      %v263 = vpack.c.bf16 %v258, %v257
      %v264 = vpack.c.bf16 %v260, %v259
      %v265 = vld [vmem:[%s1] sm:$0xf]
      %v266 = vld [vmem:[%s1 + $0x4] sm:$0xf]
      %v267 = vld [vmem:[%s1 + $0x8] sm:$0xf]
      %v268 = vld [vmem:[%s1 + $0xc] sm:$0xf]
      %v269 = vld [vmem:[%s1 + $0x10] sm:$0xf]
      %v270 = vld [vmem:[%s1 + $0x14] sm:$0xf]
      %v271 = vld [vmem:[%s1 + $0x18] sm:$0xf]
      %v272 = vld [vmem:[%s1 + $0x1c] sm:$0xf]
      %s273 = scalar_lea.vmem %s246, 144
      %v274 = vld [vmem:[%s273] sm:$0xff]
      %v275 = vld [vmem:[%s273 + $0x10] sm:$0xff]
      %v276 = vld [vmem:[%s273 + $0x20] sm:$0xff]
      %v277 = vld [vmem:[%s273 + $0x30] sm:$0xff]
      %v278 = vld [vmem:[%s273 + $0x40] sm:$0xff]
      %v279 = vld [vmem:[%s273 + $0x50] sm:$0xff]
      %v280 = vld [vmem:[%s273 + $0x60] sm:$0xff]
      %v281 = vld [vmem:[%s273 + $0x70] sm:$0xff]
      %v282 = vpack.c.bf16 %v275, %v274
      %v283 = vpack.c.bf16 %v277, %v276
      %v284 = vpack.c.bf16 %v279, %v278
      %v285 = vpack.c.bf16 %v281, %v280
      %s286 = scalar_lea.vmem %s1, 32
      %v287 = vld [vmem:[%s286] sm:$0xf]
      %v288 = vld [vmem:[%s286 + $0x4] sm:$0xf]
      %v289 = vld [vmem:[%s286 + $0x8] sm:$0xf]
      %v290 = vld [vmem:[%s286 + $0xc] sm:$0xf]
      %v291 = vld [vmem:[%s286 + $0x10] sm:$0xf]
      %v292 = vld [vmem:[%s286 + $0x14] sm:$0xf]
      %v293 = vld [vmem:[%s286 + $0x18] sm:$0xf]
      %v294 = vld [vmem:[%s286 + $0x1c] sm:$0xf]
      %v303 = vunpack.c.l.b16 %v287
      %v304 = vunpack.c.l.b16 %v288
      %v305 = vunpack.c.l.b16 %v289
      %v306 = vunpack.c.l.b16 %v290
      %v307 = vunpack.c.l.b16 %v291
      %v308 = vunpack.c.l.b16 %v292
      %v309 = vunpack.c.l.b16 %v293
      %v310 = vunpack.c.l.b16 %v294
      %v311 = vpack.c.b16 %v304, %v303
      %v312 = vpack.c.b16 %v306, %v305
      %v313 = vpack.c.b16 %v308, %v307
      %v314 = vpack.c.b16 %v310, %v309
      %vm319 = vcmask 523264
      %v321 = vsel %vm319, %v282, 0
      %v324 = vsel %vm319, %v283, 0
      %v327 = vsel %vm319, %v284, 0
      %v330 = vsel %vm319, %v285, 0
      %332 = vmatpush.bf16.msra.mxu0 0
      %333 = vmatpush.bf16.msra.mxu0 0
      %334 = vmatpush.bf16.msra.mxu0 0
      %335 = vmatpush.bf16.msra.mxu0 0
      %336 = vmatpush.bf16.msra.mxu0 %v314
      %337 = vmatpush.bf16.msra.mxu0 %v313
      %338 = vmatpush.bf16.msra.mxu0 %v312
      %339 = vmatpush.bf16.msra.mxu0 %v311
      %340 = vmatmul.bf16.gmra.mxu0 %v321
      %v341 = vpop.f32.mrf.mxu0
      %v342 = vadd.f32 0.0, %v341
      %v343 = vpop.f32.mrf.mxu0
      %v344 = vadd.f32 0.0, %v343
      %345 = vmatmul.bf16.gmra.mxu0 %v324
      %v346 = vpop.f32.mrf.mxu0
      %v347 = vadd.f32 0.0, %v346
      %v348 = vpop.f32.mrf.mxu0
      %v349 = vadd.f32 0.0, %v348
      %350 = vmatmul.bf16.gmra.mxu0 %v327
      %v351 = vpop.f32.mrf.mxu0
      %v352 = vadd.f32 0.0, %v351
      %v353 = vpop.f32.mrf.mxu0
      %v354 = vadd.f32 0.0, %v353
      %355 = vmatmul.bf16.gmra.mxu0 %v330
      %v356 = vpop.f32.mrf.mxu0
      %v357 = vadd.f32 0.0, %v356
      %v358 = vpop.f32.mrf.mxu0
      %v359 = vadd.f32 0.0, %v358
      %360 = vdwg.mxu0
      %v369 = vunpack.c.l.b16 %v265
      %v370 = vunpack.c.l.b16 %v266
      %v371 = vunpack.c.l.b16 %v267
      %v372 = vunpack.c.l.b16 %v268
      %v373 = vunpack.c.l.b16 %v269
      %v374 = vunpack.c.l.b16 %v270
      %v375 = vunpack.c.l.b16 %v271
      %v376 = vunpack.c.l.b16 %v272
      %v377 = vpack.c.b16 %v370, %v369
      %v378 = vpack.c.b16 %v372, %v371
      %v379 = vpack.c.b16 %v374, %v373
      %v380 = vpack.c.b16 %v376, %v375
      %v386 = vsel %vm319, %v261, 0
      %v389 = vsel %vm319, %v262, 0
      %v392 = vsel %vm319, %v263, 0
      %v395 = vsel %vm319, %v264, 0
      %397 = vmatpush.bf16.msra.mxu0 0
      %398 = vmatpush.bf16.msra.mxu0 0
      %399 = vmatpush.bf16.msra.mxu0 0
      %400 = vmatpush.bf16.msra.mxu0 0
      %401 = vmatpush.bf16.msra.mxu0 %v380
      %402 = vmatpush.bf16.msra.mxu0 %v379
      %403 = vmatpush.bf16.msra.mxu0 %v378
      %404 = vmatpush.bf16.msra.mxu0 %v377
      %405 = vmatmul.bf16.gmra.mxu0 %v386
      %v406 = vpop.f32.mrf.mxu0
      %v407 = vadd.f32 %v342, %v406
      %v408 = vpop.f32.mrf.mxu0
      %v409 = vadd.f32 %v344, %v408
      %410 = vmatmul.bf16.gmra.mxu0 %v389
      %v411 = vpop.f32.mrf.mxu0
      %v412 = vadd.f32 %v347, %v411
      %v413 = vpop.f32.mrf.mxu0
      %v414 = vadd.f32 %v349, %v413
      %415 = vmatmul.bf16.gmra.mxu0 %v392
      %v416 = vpop.f32.mrf.mxu0
      %v417 = vadd.f32 %v352, %v416
      %v418 = vpop.f32.mrf.mxu0
      %v419 = vadd.f32 %v354, %v418
      %420 = vmatmul.bf16.gmra.mxu0 %v395
      %v421 = vpop.f32.mrf.mxu0
      %v422 = vadd.f32 %v357, %v421
      %v423 = vpop.f32.mrf.mxu0
      %v424 = vadd.f32 %v359, %v423
      %425 = vdwg.mxu0
      %v426 = vld [vmem:[%s246 + $0x1] sm:$0xff]
      %v427 = vld [vmem:[%s246 + $0x11] sm:$0xff]
      %v428 = vld [vmem:[%s246 + $0x21] sm:$0xff]
      %v429 = vld [vmem:[%s246 + $0x31] sm:$0xff]
      %v430 = vld [vmem:[%s246 + $0x41] sm:$0xff]
      %v431 = vld [vmem:[%s246 + $0x51] sm:$0xff]
      %v432 = vld [vmem:[%s246 + $0x61] sm:$0xff]
      %v433 = vld [vmem:[%s246 + $0x71] sm:$0xff]
      %v434 = vpack.c.bf16 %v427, %v426
      %v435 = vpack.c.bf16 %v429, %v428
      %v436 = vpack.c.bf16 %v431, %v430
      %v437 = vpack.c.bf16 %v433, %v432
      %s438 = scalar_lea.vmem %s1, 64
      %v439 = vld [vmem:[%s438] sm:$0xf]
      %v440 = vld [vmem:[%s438 + $0x4] sm:$0xf]
      %v441 = vld [vmem:[%s438 + $0x8] sm:$0xf]
      %v442 = vld [vmem:[%s438 + $0xc] sm:$0xf]
      %v443 = vld [vmem:[%s438 + $0x10] sm:$0xf]
      %v444 = vld [vmem:[%s438 + $0x14] sm:$0xf]
      %v445 = vld [vmem:[%s438 + $0x18] sm:$0xf]
      %v446 = vld [vmem:[%s438 + $0x1c] sm:$0xf]
      %v455 = vunpack.c.l.b16 %v439
      %v456 = vunpack.c.l.b16 %v440
      %v457 = vunpack.c.l.b16 %v441
      %v458 = vunpack.c.l.b16 %v442
      %v459 = vunpack.c.l.b16 %v443
      %v460 = vunpack.c.l.b16 %v444
      %v461 = vunpack.c.l.b16 %v445
      %v462 = vunpack.c.l.b16 %v446
      %v463 = vpack.c.b16 %v456, %v455
      %v464 = vpack.c.b16 %v458, %v457
      %v465 = vpack.c.b16 %v460, %v459
      %v466 = vpack.c.b16 %v462, %v461
      %v472 = vsel %vm319, %v434, 0
      %v475 = vsel %vm319, %v435, 0
      %v478 = vsel %vm319, %v436, 0
      %v481 = vsel %vm319, %v437, 0
      %483 = vmatpush.bf16.msra.mxu0 0
      %484 = vmatpush.bf16.msra.mxu0 0
      %485 = vmatpush.bf16.msra.mxu0 0
      %486 = vmatpush.bf16.msra.mxu0 0
      %487 = vmatpush.bf16.msra.mxu0 %v466
      %488 = vmatpush.bf16.msra.mxu0 %v465
      %489 = vmatpush.bf16.msra.mxu0 %v464
      %490 = vmatpush.bf16.msra.mxu0 %v463
      %491 = vmatmul.bf16.gmra.mxu0 %v472
      %v492 = vpop.f32.mrf.mxu0
      %v493 = vadd.f32 0.0, %v492
      %v494 = vpop.f32.mrf.mxu0
      %v495 = vadd.f32 0.0, %v494
      %496 = vmatmul.bf16.gmra.mxu0 %v475
      %v497 = vpop.f32.mrf.mxu0
      %v498 = vadd.f32 0.0, %v497
      %v499 = vpop.f32.mrf.mxu0
      %v500 = vadd.f32 0.0, %v499
      %501 = vmatmul.bf16.gmra.mxu0 %v478
      %v502 = vpop.f32.mrf.mxu0
      %v503 = vadd.f32 0.0, %v502
      %v504 = vpop.f32.mrf.mxu0
      %v505 = vadd.f32 0.0, %v504
      %506 = vmatmul.bf16.gmra.mxu0 %v481
      %v507 = vpop.f32.mrf.mxu0
      %v508 = vadd.f32 0.0, %v507
      %v509 = vpop.f32.mrf.mxu0
      %v510 = vadd.f32 0.0, %v509
      %511 = vdwg.mxu0
      %v512 = vadd.f32 %v407, %v493
      %v513 = vadd.f32 %v409, %v495
      %v514 = vadd.f32 %v412, %v498
      %v515 = vadd.f32 %v414, %v500
      %v516 = vadd.f32 %v417, %v503
      %v517 = vadd.f32 %v419, %v505
      %v518 = vadd.f32 %v422, %v508
      %v519 = vadd.f32 %v424, %v510
      %s520 = scalar_lea.vmem %s246, 288
      %v521 = vld [vmem:[%s520] sm:$0xff]
      %v522 = vld [vmem:[%s520 + $0x10] sm:$0xff]
      %v523 = vld [vmem:[%s520 + $0x20] sm:$0xff]
      %v524 = vld [vmem:[%s520 + $0x30] sm:$0xff]
      %v525 = vld [vmem:[%s520 + $0x40] sm:$0xff]
      %v526 = vld [vmem:[%s520 + $0x50] sm:$0xff]
      %v527 = vld [vmem:[%s520 + $0x60] sm:$0xff]
      %v528 = vld [vmem:[%s520 + $0x70] sm:$0xff]
      %v529 = vpack.c.bf16 %v522, %v521
      %v530 = vpack.c.bf16 %v524, %v523
      %v531 = vpack.c.bf16 %v526, %v525
      %v532 = vpack.c.bf16 %v528, %v527
      %s533 = scalar_lea.vmem %s1, 96
      %v534 = vld [vmem:[%s533] sm:$0xf]
      %v535 = vld [vmem:[%s533 + $0x4] sm:$0xf]
      %v536 = vld [vmem:[%s533 + $0x8] sm:$0xf]
      %v537 = vld [vmem:[%s533 + $0xc] sm:$0xf]
      %v538 = vld [vmem:[%s533 + $0x10] sm:$0xf]
      %v539 = vld [vmem:[%s533 + $0x14] sm:$0xf]
      %v540 = vld [vmem:[%s533 + $0x18] sm:$0xf]
      %v541 = vld [vmem:[%s533 + $0x1c] sm:$0xf]
      %v550 = vunpack.c.l.b16 %v534
      %v551 = vunpack.c.l.b16 %v535
      %v552 = vunpack.c.l.b16 %v536
      %v553 = vunpack.c.l.b16 %v537
      %v554 = vunpack.c.l.b16 %v538
      %v555 = vunpack.c.l.b16 %v539
      %v556 = vunpack.c.l.b16 %v540
      %v557 = vunpack.c.l.b16 %v541
      %v558 = vpack.c.b16 %v551, %v550
      %v559 = vpack.c.b16 %v553, %v552
      %v560 = vpack.c.b16 %v555, %v554
      %v561 = vpack.c.b16 %v557, %v556
      %v567 = vsel %vm319, %v529, 0
      %v570 = vsel %vm319, %v530, 0
      %v573 = vsel %vm319, %v531, 0
      %v576 = vsel %vm319, %v532, 0
      %578 = vmatpush.bf16.msra.mxu0 0
      %579 = vmatpush.bf16.msra.mxu0 0
      %580 = vmatpush.bf16.msra.mxu0 0
      %581 = vmatpush.bf16.msra.mxu0 0
      %582 = vmatpush.bf16.msra.mxu0 %v561
      %583 = vmatpush.bf16.msra.mxu0 %v560
      %584 = vmatpush.bf16.msra.mxu0 %v559
      %585 = vmatpush.bf16.msra.mxu0 %v558
      %586 = vmatmul.bf16.gmra.mxu0 %v567
      %v587 = vpop.f32.mrf.mxu0
      %v588 = vadd.f32 0.0, %v587
      %v589 = vpop.f32.mrf.mxu0
      %v590 = vadd.f32 0.0, %v589
      %591 = vmatmul.bf16.gmra.mxu0 %v570
      %v592 = vpop.f32.mrf.mxu0
      %v593 = vadd.f32 0.0, %v592
      %v594 = vpop.f32.mrf.mxu0
      %v595 = vadd.f32 0.0, %v594
      %596 = vmatmul.bf16.gmra.mxu0 %v573
      %v597 = vpop.f32.mrf.mxu0
      %v598 = vadd.f32 0.0, %v597
      %v599 = vpop.f32.mrf.mxu0
      %v600 = vadd.f32 0.0, %v599
      %601 = vmatmul.bf16.gmra.mxu0 %v576
      %v602 = vpop.f32.mrf.mxu0
      %v603 = vadd.f32 0.0, %v602
      %v604 = vpop.f32.mrf.mxu0
      %v605 = vadd.f32 0.0, %v604
      %606 = vdwg.mxu0
      %v607 = vadd.f32 %v512, %v588
      %v608 = vadd.f32 %v513, %v590
      %v609 = vadd.f32 %v514, %v593
      %v610 = vadd.f32 %v515, %v595
      %v611 = vadd.f32 %v516, %v598
      %v612 = vadd.f32 %v517, %v600
      %v613 = vadd.f32 %v518, %v603
      %v614 = vadd.f32 %v519, %v605
      %s615 = scalar_lea.vmem %s246, 432
      %v616 = vld [vmem:[%s615] sm:$0xff]
      %v617 = vld [vmem:[%s615 + $0x10] sm:$0xff]
      %v618 = vld [vmem:[%s615 + $0x20] sm:$0xff]
      %v619 = vld [vmem:[%s615 + $0x30] sm:$0xff]
      %v620 = vld [vmem:[%s615 + $0x40] sm:$0xff]
      %v621 = vld [vmem:[%s615 + $0x50] sm:$0xff]
      %v622 = vld [vmem:[%s615 + $0x60] sm:$0xff]
      %v623 = vld [vmem:[%s615 + $0x70] sm:$0xff]
      %v624 = vpack.c.bf16 %v617, %v616
      %v625 = vpack.c.bf16 %v619, %v618
      %v626 = vpack.c.bf16 %v621, %v620
      %v627 = vpack.c.bf16 %v623, %v622
      %s628 = scalar_lea.vmem %s1, 128
      %v629 = vld [vmem:[%s628] sm:$0xf]
      %v630 = vld [vmem:[%s628 + $0x4] sm:$0xf]
      %v631 = vld [vmem:[%s628 + $0x8] sm:$0xf]
      %v632 = vld [vmem:[%s628 + $0xc] sm:$0xf]
      %v633 = vld [vmem:[%s628 + $0x10] sm:$0xf]
      %v634 = vld [vmem:[%s628 + $0x14] sm:$0xf]
      %v635 = vld [vmem:[%s628 + $0x18] sm:$0xf]
      %v636 = vld [vmem:[%s628 + $0x1c] sm:$0xf]
      %v645 = vunpack.c.l.b16 %v629
      %v646 = vunpack.c.l.b16 %v630
      %v647 = vunpack.c.l.b16 %v631
      %v648 = vunpack.c.l.b16 %v632
      %v649 = vunpack.c.l.b16 %v633
      %v650 = vunpack.c.l.b16 %v634
      %v651 = vunpack.c.l.b16 %v635
      %v652 = vunpack.c.l.b16 %v636
      %v653 = vpack.c.b16 %v646, %v645
      %v654 = vpack.c.b16 %v648, %v647
      %v655 = vpack.c.b16 %v650, %v649
      %v656 = vpack.c.b16 %v652, %v651
      %v662 = vsel %vm319, %v624, 0
      %v665 = vsel %vm319, %v625, 0
      %v668 = vsel %vm319, %v626, 0
      %v671 = vsel %vm319, %v627, 0
      %673 = vmatpush.bf16.msra.mxu0 0
      %674 = vmatpush.bf16.msra.mxu0 0
      %675 = vmatpush.bf16.msra.mxu0 0
      %676 = vmatpush.bf16.msra.mxu0 0
      %677 = vmatpush.bf16.msra.mxu0 %v656
      %678 = vmatpush.bf16.msra.mxu0 %v655
      %679 = vmatpush.bf16.msra.mxu0 %v654
      %680 = vmatpush.bf16.msra.mxu0 %v653
      %681 = vmatmul.bf16.gmra.mxu0 %v662
      %v682 = vpop.f32.mrf.mxu0
      %v683 = vadd.f32 0.0, %v682
      %v684 = vpop.f32.mrf.mxu0
      %v685 = vadd.f32 0.0, %v684
      %686 = vmatmul.bf16.gmra.mxu0 %v665
      %v687 = vpop.f32.mrf.mxu0
      %v688 = vadd.f32 0.0, %v687
      %v689 = vpop.f32.mrf.mxu0
      %v690 = vadd.f32 0.0, %v689
      %691 = vmatmul.bf16.gmra.mxu0 %v668
      %v692 = vpop.f32.mrf.mxu0
      %v693 = vadd.f32 0.0, %v692
      %v694 = vpop.f32.mrf.mxu0
      %v695 = vadd.f32 0.0, %v694
      %696 = vmatmul.bf16.gmra.mxu0 %v671
      %v697 = vpop.f32.mrf.mxu0
      %v698 = vadd.f32 0.0, %v697
      %v699 = vpop.f32.mrf.mxu0
      %v700 = vadd.f32 0.0, %v699
      %701 = vdwg.mxu0
      %v702 = vadd.f32 %v607, %v683
      %v703 = vadd.f32 %v608, %v685
      %v704 = vadd.f32 %v609, %v688
      %v705 = vadd.f32 %v610, %v690
      %v706 = vadd.f32 %v611, %v693
      %v707 = vadd.f32 %v612, %v695
      %v708 = vadd.f32 %v613, %v698
      %v709 = vadd.f32 %v614, %v700
      %v710 = vld [vmem:[%s520 + $0x1] sm:$0xff]
      %v711 = vld [vmem:[%s520 + $0x11] sm:$0xff]
      %v712 = vld [vmem:[%s520 + $0x21] sm:$0xff]
      %v713 = vld [vmem:[%s520 + $0x31] sm:$0xff]
      %v714 = vld [vmem:[%s520 + $0x41] sm:$0xff]
      %v715 = vld [vmem:[%s520 + $0x51] sm:$0xff]
      %v716 = vld [vmem:[%s520 + $0x61] sm:$0xff]
      %v717 = vld [vmem:[%s520 + $0x71] sm:$0xff]
      %v718 = vpack.c.bf16 %v711, %v710
      %v719 = vpack.c.bf16 %v713, %v712
      %v720 = vpack.c.bf16 %v715, %v714
      %v721 = vpack.c.bf16 %v717, %v716
      %s722 = scalar_lea.vmem %s1, 160
      %v723 = vld [vmem:[%s722] sm:$0xf]
      %v724 = vld [vmem:[%s722 + $0x4] sm:$0xf]
      %v725 = vld [vmem:[%s722 + $0x8] sm:$0xf]
      %v726 = vld [vmem:[%s722 + $0xc] sm:$0xf]
      %v727 = vld [vmem:[%s722 + $0x10] sm:$0xf]
      %v728 = vld [vmem:[%s722 + $0x14] sm:$0xf]
      %v729 = vld [vmem:[%s722 + $0x18] sm:$0xf]
      %v730 = vld [vmem:[%s722 + $0x1c] sm:$0xf]
      %v739 = vunpack.c.l.b16 %v723
      %v740 = vunpack.c.l.b16 %v724
      %v741 = vunpack.c.l.b16 %v725
      %v742 = vunpack.c.l.b16 %v726
      %v743 = vunpack.c.l.b16 %v727
      %v744 = vunpack.c.l.b16 %v728
      %v745 = vunpack.c.l.b16 %v729
      %v746 = vunpack.c.l.b16 %v730
      %v747 = vpack.c.b16 %v740, %v739
      %v748 = vpack.c.b16 %v742, %v741
      %v749 = vpack.c.b16 %v744, %v743
      %v750 = vpack.c.b16 %v746, %v745
      %v756 = vsel %vm319, %v718, 0
      %v759 = vsel %vm319, %v719, 0
      %v762 = vsel %vm319, %v720, 0
      %v765 = vsel %vm319, %v721, 0
      %767 = vmatpush.bf16.msra.mxu0 0
      %768 = vmatpush.bf16.msra.mxu0 0
      %769 = vmatpush.bf16.msra.mxu0 0
      %770 = vmatpush.bf16.msra.mxu0 0
      %771 = vmatpush.bf16.msra.mxu0 %v750
      %772 = vmatpush.bf16.msra.mxu0 %v749
      %773 = vmatpush.bf16.msra.mxu0 %v748
      %774 = vmatpush.bf16.msra.mxu0 %v747
      %775 = vmatmul.bf16.gmra.mxu0 %v756
      %v776 = vpop.f32.mrf.mxu0
      %v777 = vadd.f32 0.0, %v776
      %v778 = vpop.f32.mrf.mxu0
      %v779 = vadd.f32 0.0, %v778
      %780 = vmatmul.bf16.gmra.mxu0 %v759
      %v781 = vpop.f32.mrf.mxu0
      %v782 = vadd.f32 0.0, %v781
      %v783 = vpop.f32.mrf.mxu0
      %v784 = vadd.f32 0.0, %v783
      %785 = vmatmul.bf16.gmra.mxu0 %v762
      %v786 = vpop.f32.mrf.mxu0
      %v787 = vadd.f32 0.0, %v786
      %v788 = vpop.f32.mrf.mxu0
      %v789 = vadd.f32 0.0, %v788
      %790 = vmatmul.bf16.gmra.mxu0 %v765
      %v791 = vpop.f32.mrf.mxu0
      %v792 = vadd.f32 0.0, %v791
      %v793 = vpop.f32.mrf.mxu0
      %v794 = vadd.f32 0.0, %v793
      %795 = vdwg.mxu0
      %v796 = vadd.f32 %v702, %v777
      %v797 = vadd.f32 %v703, %v779
      %v798 = vadd.f32 %v704, %v782
      %v799 = vadd.f32 %v705, %v784
      %v800 = vadd.f32 %v706, %v787
      %v801 = vadd.f32 %v707, %v789
      %v802 = vadd.f32 %v708, %v792
      %v803 = vadd.f32 %v709, %v794
      %s804 = scalar_lea.vmem %s246, 16
      %v805 = vld [vmem:[%s804] sm:$0xff]
      %v806 = vld [vmem:[%s804 + $0x10] sm:$0xff]
      %v807 = vld [vmem:[%s804 + $0x20] sm:$0xff]
      %v808 = vld [vmem:[%s804 + $0x30] sm:$0xff]
      %v809 = vld [vmem:[%s804 + $0x40] sm:$0xff]
      %v810 = vld [vmem:[%s804 + $0x50] sm:$0xff]
      %v811 = vld [vmem:[%s804 + $0x60] sm:$0xff]
      %v812 = vld [vmem:[%s804 + $0x70] sm:$0xff]
      %v813 = vpack.c.bf16 %v806, %v805
      %v814 = vpack.c.bf16 %v808, %v807
      %v815 = vpack.c.bf16 %v810, %v809
      %v816 = vpack.c.bf16 %v812, %v811
      %s817 = scalar_lea.vmem %s1, 192
      %v818 = vld [vmem:[%s817] sm:$0xf]
      %v819 = vld [vmem:[%s817 + $0x4] sm:$0xf]
      %v820 = vld [vmem:[%s817 + $0x8] sm:$0xf]
      %v821 = vld [vmem:[%s817 + $0xc] sm:$0xf]
      %v822 = vld [vmem:[%s817 + $0x10] sm:$0xf]
      %v823 = vld [vmem:[%s817 + $0x14] sm:$0xf]
      %v824 = vld [vmem:[%s817 + $0x18] sm:$0xf]
      %v825 = vld [vmem:[%s817 + $0x1c] sm:$0xf]
      %v834 = vunpack.c.l.b16 %v818
      %v835 = vunpack.c.l.b16 %v819
      %v836 = vunpack.c.l.b16 %v820
      %v837 = vunpack.c.l.b16 %v821
      %v838 = vunpack.c.l.b16 %v822
      %v839 = vunpack.c.l.b16 %v823
      %v840 = vunpack.c.l.b16 %v824
      %v841 = vunpack.c.l.b16 %v825
      %v842 = vpack.c.b16 %v835, %v834
      %v843 = vpack.c.b16 %v837, %v836
      %v844 = vpack.c.b16 %v839, %v838
      %v845 = vpack.c.b16 %v841, %v840
      %v851 = vsel %vm319, %v813, 0
      %v854 = vsel %vm319, %v814, 0
      %v857 = vsel %vm319, %v815, 0
      %v860 = vsel %vm319, %v816, 0
      %862 = vmatpush.bf16.msra.mxu0 0
      %863 = vmatpush.bf16.msra.mxu0 0
      %864 = vmatpush.bf16.msra.mxu0 0
      %865 = vmatpush.bf16.msra.mxu0 0
      %866 = vmatpush.bf16.msra.mxu0 %v845
      %867 = vmatpush.bf16.msra.mxu0 %v844
      %868 = vmatpush.bf16.msra.mxu0 %v843
      %869 = vmatpush.bf16.msra.mxu0 %v842
      %870 = vmatmul.bf16.gmra.mxu0 %v851
      %v871 = vpop.f32.mrf.mxu0
      %v872 = vadd.f32 0.0, %v871
      %v873 = vpop.f32.mrf.mxu0
      %v874 = vadd.f32 0.0, %v873
      %875 = vmatmul.bf16.gmra.mxu0 %v854
      %v876 = vpop.f32.mrf.mxu0
      %v877 = vadd.f32 0.0, %v876
      %v878 = vpop.f32.mrf.mxu0
      %v879 = vadd.f32 0.0, %v878
      %880 = vmatmul.bf16.gmra.mxu0 %v857
      %v881 = vpop.f32.mrf.mxu0
      %v882 = vadd.f32 0.0, %v881
      %v883 = vpop.f32.mrf.mxu0
      %v884 = vadd.f32 0.0, %v883
      %885 = vmatmul.bf16.gmra.mxu0 %v860
      %v886 = vpop.f32.mrf.mxu0
      %v887 = vadd.f32 0.0, %v886
      %v888 = vpop.f32.mrf.mxu0
      %v889 = vadd.f32 0.0, %v888
      %890 = vdwg.mxu0
      %v891 = vadd.f32 %v796, %v872
      %v892 = vadd.f32 %v797, %v874
      %v893 = vadd.f32 %v798, %v877
      %v894 = vadd.f32 %v799, %v879
      %v895 = vadd.f32 %v800, %v882
      %v896 = vadd.f32 %v801, %v884
      %v897 = vadd.f32 %v802, %v887
      %v898 = vadd.f32 %v803, %v889
      %s899 = scalar_lea.vmem %s246, 160
      %v900 = vld [vmem:[%s899] sm:$0xff]
      %v901 = vld [vmem:[%s899 + $0x10] sm:$0xff]
      %v902 = vld [vmem:[%s899 + $0x20] sm:$0xff]
      %v903 = vld [vmem:[%s899 + $0x30] sm:$0xff]
      %v904 = vld [vmem:[%s899 + $0x40] sm:$0xff]
      %v905 = vld [vmem:[%s899 + $0x50] sm:$0xff]
      %v906 = vld [vmem:[%s899 + $0x60] sm:$0xff]
      %v907 = vld [vmem:[%s899 + $0x70] sm:$0xff]
      %v908 = vpack.c.bf16 %v901, %v900
      %v909 = vpack.c.bf16 %v903, %v902
      %v910 = vpack.c.bf16 %v905, %v904
      %v911 = vpack.c.bf16 %v907, %v906
      %s912 = scalar_lea.vmem %s1, 224
      %v913 = vld [vmem:[%s912] sm:$0xf]
      %v914 = vld [vmem:[%s912 + $0x4] sm:$0xf]
      %v915 = vld [vmem:[%s912 + $0x8] sm:$0xf]
      %v916 = vld [vmem:[%s912 + $0xc] sm:$0xf]
      %v917 = vld [vmem:[%s912 + $0x10] sm:$0xf]
      %v918 = vld [vmem:[%s912 + $0x14] sm:$0xf]
      %v919 = vld [vmem:[%s912 + $0x18] sm:$0xf]
      %v920 = vld [vmem:[%s912 + $0x1c] sm:$0xf]
      %v929 = vunpack.c.l.b16 %v913
      %v930 = vunpack.c.l.b16 %v914
      %v931 = vunpack.c.l.b16 %v915
      %v932 = vunpack.c.l.b16 %v916
      %v933 = vunpack.c.l.b16 %v917
      %v934 = vunpack.c.l.b16 %v918
      %v935 = vunpack.c.l.b16 %v919
      %v936 = vunpack.c.l.b16 %v920
      %v937 = vpack.c.b16 %v930, %v929
      %v938 = vpack.c.b16 %v932, %v931
      %v939 = vpack.c.b16 %v934, %v933
      %v940 = vpack.c.b16 %v936, %v935
      %v946 = vsel %vm319, %v908, 0
      %v949 = vsel %vm319, %v909, 0
      %v952 = vsel %vm319, %v910, 0
      %v955 = vsel %vm319, %v911, 0
      %957 = vmatpush.bf16.msra.mxu0 0
      %958 = vmatpush.bf16.msra.mxu0 0
      %959 = vmatpush.bf16.msra.mxu0 0
      %960 = vmatpush.bf16.msra.mxu0 0
      %961 = vmatpush.bf16.msra.mxu0 %v940
      %962 = vmatpush.bf16.msra.mxu0 %v939
      %963 = vmatpush.bf16.msra.mxu0 %v938
      %964 = vmatpush.bf16.msra.mxu0 %v937
      %965 = vmatmul.bf16.gmra.mxu0 %v946
      %v966 = vpop.f32.mrf.mxu0
      %v967 = vadd.f32 0.0, %v966
      %v968 = vpop.f32.mrf.mxu0
      %v969 = vadd.f32 0.0, %v968
      %970 = vmatmul.bf16.gmra.mxu0 %v949
      %v971 = vpop.f32.mrf.mxu0
      %v972 = vadd.f32 0.0, %v971
      %v973 = vpop.f32.mrf.mxu0
      %v974 = vadd.f32 0.0, %v973
      %975 = vmatmul.bf16.gmra.mxu0 %v952
      %v976 = vpop.f32.mrf.mxu0
      %v977 = vadd.f32 0.0, %v976
      %v978 = vpop.f32.mrf.mxu0
      %v979 = vadd.f32 0.0, %v978
      %980 = vmatmul.bf16.gmra.mxu0 %v955
      %v981 = vpop.f32.mrf.mxu0
      %v982 = vadd.f32 0.0, %v981
      %v983 = vpop.f32.mrf.mxu0
      %v984 = vadd.f32 0.0, %v983
      %985 = vdwg.mxu0
      %v986 = vadd.f32 %v891, %v967
      %v987 = vadd.f32 %v892, %v969
      %v988 = vadd.f32 %v893, %v972
      %v989 = vadd.f32 %v894, %v974
      %v990 = vadd.f32 %v895, %v977
      %v991 = vadd.f32 %v896, %v979
      %v992 = vadd.f32 %v897, %v982
      %v993 = vadd.f32 %v898, %v984
      %v994 = vld [vmem:[%s804 + $0x1] sm:$0xff]
      %v995 = vld [vmem:[%s804 + $0x11] sm:$0xff]
      %v996 = vld [vmem:[%s804 + $0x21] sm:$0xff]
      %v997 = vld [vmem:[%s804 + $0x31] sm:$0xff]
      %v998 = vld [vmem:[%s804 + $0x41] sm:$0xff]
      %v999 = vld [vmem:[%s804 + $0x51] sm:$0xff]
      %v1000 = vld [vmem:[%s804 + $0x61] sm:$0xff]
      %v1001 = vld [vmem:[%s804 + $0x71] sm:$0xff]
      %v1002 = vpack.c.bf16 %v995, %v994
      %v1003 = vpack.c.bf16 %v997, %v996
      %v1004 = vpack.c.bf16 %v999, %v998
      %v1005 = vpack.c.bf16 %v1001, %v1000
      %s1006 = scalar_lea.vmem %s1, 256
      %v1007 = vld [vmem:[%s1006] sm:$0xf]
      %v1008 = vld [vmem:[%s1006 + $0x4] sm:$0xf]
      %v1009 = vld [vmem:[%s1006 + $0x8] sm:$0xf]
      %v1010 = vld [vmem:[%s1006 + $0xc] sm:$0xf]
      %v1011 = vld [vmem:[%s1006 + $0x10] sm:$0xf]
      %v1012 = vld [vmem:[%s1006 + $0x14] sm:$0xf]
      %v1013 = vld [vmem:[%s1006 + $0x18] sm:$0xf]
      %v1014 = vld [vmem:[%s1006 + $0x1c] sm:$0xf]
      %v1023 = vunpack.c.l.b16 %v1007
      %v1024 = vunpack.c.l.b16 %v1008
      %v1025 = vunpack.c.l.b16 %v1009
      %v1026 = vunpack.c.l.b16 %v1010
      %v1027 = vunpack.c.l.b16 %v1011
      %v1028 = vunpack.c.l.b16 %v1012
      %v1029 = vunpack.c.l.b16 %v1013
      %v1030 = vunpack.c.l.b16 %v1014
      %v1031 = vpack.c.b16 %v1024, %v1023
      %v1032 = vpack.c.b16 %v1026, %v1025
      %v1033 = vpack.c.b16 %v1028, %v1027
      %v1034 = vpack.c.b16 %v1030, %v1029
      %v1040 = vsel %vm319, %v1002, 0
      %v1043 = vsel %vm319, %v1003, 0
      %v1046 = vsel %vm319, %v1004, 0
      %v1049 = vsel %vm319, %v1005, 0
      %1051 = vmatpush.bf16.msra.mxu0 0
      %1052 = vmatpush.bf16.msra.mxu0 0
      %1053 = vmatpush.bf16.msra.mxu0 0
      %1054 = vmatpush.bf16.msra.mxu0 0
      %1055 = vmatpush.bf16.msra.mxu0 %v1034
      %1056 = vmatpush.bf16.msra.mxu0 %v1033
      %1057 = vmatpush.bf16.msra.mxu0 %v1032
      %1058 = vmatpush.bf16.msra.mxu0 %v1031
      %1059 = vmatmul.bf16.gmra.mxu0 %v1040
      %v1060 = vpop.f32.mrf.mxu0
      %v1061 = vadd.f32 0.0, %v1060
      %v1062 = vpop.f32.mrf.mxu0
      %v1063 = vadd.f32 0.0, %v1062
      %1064 = vmatmul.bf16.gmra.mxu0 %v1043
      %v1065 = vpop.f32.mrf.mxu0
      %v1066 = vadd.f32 0.0, %v1065
      %v1067 = vpop.f32.mrf.mxu0
      %v1068 = vadd.f32 0.0, %v1067
      %1069 = vmatmul.bf16.gmra.mxu0 %v1046
      %v1070 = vpop.f32.mrf.mxu0
      %v1071 = vadd.f32 0.0, %v1070
      %v1072 = vpop.f32.mrf.mxu0
      %v1073 = vadd.f32 0.0, %v1072
      %1074 = vmatmul.bf16.gmra.mxu0 %v1049
      %v1075 = vpop.f32.mrf.mxu0
      %v1076 = vadd.f32 0.0, %v1075
      %v1077 = vpop.f32.mrf.mxu0
      %v1078 = vadd.f32 0.0, %v1077
      %1079 = vdwg.mxu0
      %v1080 = vadd.f32 %v986, %v1061
      %v1081 = vadd.f32 %v987, %v1063
      %v1082 = vadd.f32 %v988, %v1066
      %v1083 = vadd.f32 %v989, %v1068
      %v1084 = vadd.f32 %v990, %v1071
      %v1085 = vadd.f32 %v991, %v1073
      %v1086 = vadd.f32 %v992, %v1076
      %v1087 = vadd.f32 %v993, %v1078
      %v1088 = vld [vmem:[%s2] sm:$0x1]
      %v1089 = vld [vmem:[%s3] sm:$0x1]
      %v1090 = vld [vmem:[%s4] sm:$0xff]
      %v1091 = vld [vmem:[%s4 + $0x8] sm:$0xff]
      %v1092 = vld [vmem:[%s4 + $0x10] sm:$0xff]
      %v1093 = vld [vmem:[%s4 + $0x18] sm:$0xff]
      %v1094 = vld [vmem:[%s4 + $0x20] sm:$0xff]
      %v1095 = vld [vmem:[%s4 + $0x28] sm:$0xff]
      %v1096 = vld [vmem:[%s4 + $0x30] sm:$0xff]
      %v1097 = vld [vmem:[%s4 + $0x38] sm:$0xff]
      %v1098 = vld [vmem:[%s5] sm:$0xff]
      %v1099 = vld [vmem:[%s5 + $0x8] sm:$0xff]
      %v1100 = vld [vmem:[%s5 + $0x10] sm:$0xff]
      %v1101 = vld [vmem:[%s5 + $0x18] sm:$0xff]
      %v1102 = vsel %vm319, %v1080, 0.0
      %v1103 = vsel %vm319, %v1081, 0.0
      %v1104 = vadd.f32 %v1102, %v1103
      %v1105 = vsel %vm319, %v1082, 0.0
      %v1106 = vadd.f32 %v1104, %v1105
      %v1107 = vsel %vm319, %v1083, 0.0
      %v1108 = vadd.f32 %v1106, %v1107
      %v1109 = vsel %vm319, %v1084, 0.0
      %v1110 = vadd.f32 %v1108, %v1109
      %v1111 = vsel %vm319, %v1085, 0.0
      %v1112 = vadd.f32 %v1110, %v1111
      %v1113 = vsel %vm319, %v1086, 0.0
      %v1114 = vadd.f32 %v1112, %v1113
      %v1115 = vsel %vm319, %v1087, 0.0
      %v1116 = vadd.f32 %v1114, %v1115
      %v1117 = vrot.slane %v1116, 4
      %v1118 = vadd.f32 %v1116, %v1117
      %v1119 = vrot.slane %v1118, 2
      %v1120 = vadd.f32 %v1118, %v1119
      %v1121 = vrot.slane %v1120, 1
      %v1122 = vadd.f32 %v1120, %v1121
      %v1124 = vsel %vm319, %v1122, 0
      %1126 = vmatpush.msra.mxu0 0.0
      %1127 = vmatpush.msra.mxu0 0.0
      %1128 = vmatpush.msra.mxu0 0.0
      %1129 = vmatpush.msra.mxu0 0.0
      %1130 = vmatpush.msra.mxu0 0.0
      %1131 = vmatpush.msra.mxu0 0.0
      %1132 = vmatpush.msra.mxu0 0.0
      %1133 = vmatpush.msra.mxu0 0.0
      %1134 = vmatpush.msra.mxu0 %v1097
      %1135 = vmatpush.msra.mxu0 %v1096
      %1136 = vmatpush.msra.mxu0 %v1095
      %1137 = vmatpush.msra.mxu0 %v1094
      %1138 = vmatpush.msra.mxu0 %v1093
      %1139 = vmatpush.msra.mxu0 %v1092
      %1140 = vmatpush.msra.mxu0 %v1091
      %1141 = vmatpush.msra.mxu0 %v1090
      %1142 = vmatmul.f32.gmra.mxu0 %v1124
      %v1143 = vpop.f32.mrf.mxu0
      %v1144 = vadd.f32 0.0, %v1143
      %1145 = vdwg.mxu0
      %vm1146 = vcmask 261120
      %v1148 = vsel %vm1146, %v1144, 0
      %1150 = vmatpush.msra.mxu0 0.0
      %1151 = vmatpush.msra.mxu0 0.0
      %1152 = vmatpush.msra.mxu0 0.0
      %1153 = vmatpush.msra.mxu0 0.0
      %1154 = vmatpush.msra.mxu0 0.0
      %1155 = vmatpush.msra.mxu0 0.0
      %1156 = vmatpush.msra.mxu0 0.0
      %1157 = vmatpush.msra.mxu0 0.0
      %1158 = vmatpush.msra.mxu0 0.0
      %1159 = vmatpush.msra.mxu0 0.0
      %1160 = vmatpush.msra.mxu0 0.0
      %1161 = vmatpush.msra.mxu0 0.0
      %1162 = vmatpush.msra.mxu0 %v1101
      %1163 = vmatpush.msra.mxu0 %v1100
      %1164 = vmatpush.msra.mxu0 %v1099
      %1165 = vmatpush.msra.mxu0 %v1098
      %1166 = vmatmul.f32.gmra.mxu0 %v1148
      %v1167 = vpop.f32.mrf.mxu0
      %v1168 = vadd.f32 0.0, %v1167
      %1169 = vdwg.mxu0
      %v1170 = vrcp.pop 128.0
      %v1171 = vmul.f32 128.0, %v1170
      %v1172 = vsub.f32 1.0, %v1171
      %v1173 = vmul.f32 %v1170, %v1172
      %v1174 = vadd.f32 %v1170, %v1173
      %vm1175 = vweird.f32 %v1170
      %v1176 = vsel %vm1175, %v1170, %v1174
      %v1177 = vmul.f32 %v1168, %v1176
      %v1178 = vperm.slane %v1177, 0
      %v1179 = vsub.f32 %v1080, %v1178
      %v1180 = vsub.f32 %v1081, %v1178
      %v1181 = vsub.f32 %v1082, %v1178
      %v1182 = vsub.f32 %v1083, %v1178
      %v1183 = vsub.f32 %v1084, %v1178
      %v1184 = vsub.f32 %v1085, %v1178
      %v1185 = vsub.f32 %v1086, %v1178
      %v1186 = vsub.f32 %v1087, %v1178
      %v1187 = vmul.f32 %v1179, %v1179
      %v1188 = vmul.f32 %v1180, %v1180
      %v1189 = vmul.f32 %v1181, %v1181
      %v1190 = vmul.f32 %v1182, %v1182
      %v1191 = vmul.f32 %v1183, %v1183
      %v1192 = vmul.f32 %v1184, %v1184
      %v1193 = vmul.f32 %v1185, %v1185
      %v1194 = vmul.f32 %v1186, %v1186
      %v1195 = vsel %vm319, %v1187, 0.0
      %v1196 = vsel %vm319, %v1188, 0.0
      %v1197 = vadd.f32 %v1195, %v1196
      %v1198 = vsel %vm319, %v1189, 0.0
      %v1199 = vadd.f32 %v1197, %v1198
      %v1200 = vsel %vm319, %v1190, 0.0
      %v1201 = vadd.f32 %v1199, %v1200
      %v1202 = vsel %vm319, %v1191, 0.0
      %v1203 = vadd.f32 %v1201, %v1202
      %v1204 = vsel %vm319, %v1192, 0.0
      %v1205 = vadd.f32 %v1203, %v1204
      %v1206 = vsel %vm319, %v1193, 0.0
      %v1207 = vadd.f32 %v1205, %v1206
      %v1208 = vsel %vm319, %v1194, 0.0
      %v1209 = vadd.f32 %v1207, %v1208
      %v1210 = vrot.slane %v1209, 4
      %v1211 = vadd.f32 %v1209, %v1210
      %v1212 = vrot.slane %v1211, 2
      %v1213 = vadd.f32 %v1211, %v1212
      %v1214 = vrot.slane %v1213, 1
      %v1215 = vadd.f32 %v1213, %v1214
      %v1217 = vsel %vm319, %v1215, 0
      %1219 = vmatpush.msra.mxu0 0.0
      %1220 = vmatpush.msra.mxu0 0.0
      %1221 = vmatpush.msra.mxu0 0.0
      %1222 = vmatpush.msra.mxu0 0.0
      %1223 = vmatpush.msra.mxu0 0.0
      %1224 = vmatpush.msra.mxu0 0.0
      %1225 = vmatpush.msra.mxu0 0.0
      %1226 = vmatpush.msra.mxu0 0.0
      %1227 = vmatpush.msra.mxu0 %v1097
      %1228 = vmatpush.msra.mxu0 %v1096
      %1229 = vmatpush.msra.mxu0 %v1095
      %1230 = vmatpush.msra.mxu0 %v1094
      %1231 = vmatpush.msra.mxu0 %v1093
      %1232 = vmatpush.msra.mxu0 %v1092
      %1233 = vmatpush.msra.mxu0 %v1091
      %1234 = vmatpush.msra.mxu0 %v1090
      %1235 = vmatmul.f32.gmra.mxu0 %v1217
      %v1236 = vpop.f32.mrf.mxu0
      %v1237 = vadd.f32 0.0, %v1236
      %1238 = vdwg.mxu0
      %v1239 = vmul.f32 %v1237, %v1176
      %v1240 = vadd.f32 %v1239, 1e-05
      %v1241 = vrsqrt.pop %v1240
      %v1242 = vmul.f32 %v1241, %v1240
      %v1243 = vmul.f32 %v1242, %v1241
      %v1244 = vmul.f32 0.5, %v1243
      %v1245 = vsub.f32 1.5, %v1244
      %v1246 = vmul.f32 %v1241, %v1245
      %vm1247 = vweird.f32 %v1240
      %vm1248 = vweird.f32 %v1241
      %vm1249 = vmor %vm1247, %vm1248
      %v1250 = vsel %vm1249, %v1241, %v1246
      %v1252 = vsel %vm1146, %v1250, 0
      %1254 = vmatpush.msra.mxu0 0.0
      %1255 = vmatpush.msra.mxu0 0.0
      %1256 = vmatpush.msra.mxu0 0.0
      %1257 = vmatpush.msra.mxu0 0.0
      %1258 = vmatpush.msra.mxu0 0.0
      %1259 = vmatpush.msra.mxu0 0.0
      %1260 = vmatpush.msra.mxu0 0.0
      %1261 = vmatpush.msra.mxu0 0.0
      %1262 = vmatpush.msra.mxu0 0.0
      %1263 = vmatpush.msra.mxu0 0.0
      %1264 = vmatpush.msra.mxu0 0.0
      %1265 = vmatpush.msra.mxu0 0.0
      %1266 = vmatpush.msra.mxu0 %v1101
      %1267 = vmatpush.msra.mxu0 %v1100
      %1268 = vmatpush.msra.mxu0 %v1099
      %1269 = vmatpush.msra.mxu0 %v1098
      %1270 = vmatmul.f32.gmra.mxu0 %v1252
      %v1271 = vpop.f32.mrf.mxu0
      %v1272 = vadd.f32 0.0, %v1271
      %1273 = vdwg.mxu0
      %v1274 = vperm.slane %v1272, 0
      %v1275 = vmul.f32 %v1179, %v1274
      %v1276 = vmul.f32 %v1180, %v1274
      %v1277 = vmul.f32 %v1181, %v1274
      %v1278 = vmul.f32 %v1182, %v1274
      %v1279 = vmul.f32 %v1183, %v1274
      %v1280 = vmul.f32 %v1184, %v1274
      %v1281 = vmul.f32 %v1185, %v1274
      %v1282 = vmul.f32 %v1186, %v1274
      %v1284 = vperm.slane %v1088, 0
      %v1286 = vmul.f32 %v1275, %v1284
      %v1287 = vmul.f32 %v1276, %v1284
      %v1288 = vmul.f32 %v1277, %v1284
      %v1289 = vmul.f32 %v1278, %v1284
      %v1290 = vmul.f32 %v1279, %v1284
      %v1291 = vmul.f32 %v1280, %v1284
      %v1292 = vmul.f32 %v1281, %v1284
      %v1293 = vmul.f32 %v1282, %v1284
      %v1295 = vperm.slane %v1089, 0
      %v1297 = vadd.f32 %v1286, %v1295
      %v1298 = vadd.f32 %v1287, %v1295
      %v1299 = vadd.f32 %v1288, %v1295
      %v1300 = vadd.f32 %v1289, %v1295
      %v1301 = vadd.f32 %v1290, %v1295
      %v1302 = vadd.f32 %v1291, %v1295
      %v1303 = vadd.f32 %v1292, %v1295
      %v1304 = vadd.f32 %v1293, %v1295
      %v1305 = vmax.f32 %v1297, 0.0
      %v1306 = vmax.f32 %v1298, 0.0
      %v1307 = vmax.f32 %v1299, 0.0
      %v1308 = vmax.f32 %v1300, 0.0
      %v1309 = vmax.f32 %v1301, 0.0
      %v1310 = vmax.f32 %v1302, 0.0
      %v1311 = vmax.f32 %v1303, 0.0
      %v1312 = vmax.f32 %v1304, 0.0
      %v1313 = vpack.c.bf16 %v1305, %v1305
      %v1314 = vpack.c.bf16 %v1306, %v1306
      %v1315 = vpack.c.bf16 %v1307, %v1307
      %v1316 = vpack.c.bf16 %v1308, %v1308
      %v1317 = vpack.c.bf16 %v1309, %v1309
      %v1318 = vpack.c.bf16 %v1310, %v1310
      %v1319 = vpack.c.bf16 %v1311, %v1311
      %v1320 = vpack.c.bf16 %v1312, %v1312
      %vm1321 = vcmask 519168
      %1322 = vst.msk [vmem:[%s251] sm:$0xf] %vm1321, %v1313
      %1323 = vst.msk [vmem:[%s251 + $0x4] sm:$0xf] %vm1321, %v1314
      %1324 = vst.msk [vmem:[%s251 + $0x8] sm:$0xf] %vm1321, %v1315
      %1325 = vst.msk [vmem:[%s251 + $0xc] sm:$0xf] %vm1321, %v1316
      %1326 = vst.msk [vmem:[%s251 + $0x10] sm:$0xf] %vm1321, %v1317
      %1327 = vst.msk [vmem:[%s251 + $0x14] sm:$0xf] %vm1321, %v1318
      %1328 = vst.msk [vmem:[%s251 + $0x18] sm:$0xf] %vm1321, %v1319
      %1329 = vst.msk [vmem:[%s251 + $0x1c] sm:$0xf] %vm1321, %v1320
      %p1330 = scmp.lt.s32.totalorder %s17, 1
      %s1331 = scalar_select %p1330, %s17, 1
      %s1332 = smul.addr %s1331, 8
      %s1333 = smul.addr %s1332, 4
      %s1334 = scalar_lea.vmem %s6, %s1333
      // Predicated region
      $region45: #{_lambda_.9} parent=43 // pred_check
        %p1335 = pneg %p166
      $region46: #{_lambda_.9} parent=43 // pred_check_branch
        %1337 = sbr.rel (%p1335) target = $region48
      $region47: #{_lambda_.9} parent=43 // pred_region
        _
      $region48: #{_lambda_.9} parent=43 // pred_fallthru
        _
    $region44: #{_lambda_.9} parent=5 // pred_fallthru
      _
    %p1338 = scmp.le.s32.totalorder 2, %s12
    // Predicated region
    $region49: #{_lambda_.9} parent=5 // pred_check
      %p1339 = pneg %p1338
    $region50: #{_lambda_.9} parent=5 // pred_check_branch
      %1341 = sbr.rel (%p1339) target = $region52
    $region51: #{_lambda_.9} parent=5 // pred_region
      %s1342 = ssub.s32 %s12, 2
      // Predicated region
      $region53: #{_lambda_.9} parent=51 // pred_check
        %p1343 = pneg %p172
      $region54: #{_lambda_.9} parent=51 // pred_check_branch
        %1345 = sbr.rel (%p1343) target = $region56
      $region55: #{_lambda_.9} parent=51 // pred_region
        %p1346 = scmp.lt.s32.totalorder %s18, 1
        %s1347 = scalar_select %p1346, %s18, 1
        %s1348 = smul.addr %s1347, 8
        %s1349 = smul.addr %s1348, 4
        %s1350 = scalar_lea.vmem %s6, %s1349
      $region56: #{_lambda_.9} parent=51 // pred_fallthru
        _
    $region52: #{_lambda_.9} parent=5 // pred_fallthru
      _
  $region6: #{_lambda_.9} parent=0 // loop_footer
    %s16 = sadd.s32 1, %s12
  $region7: #{_lambda_.9} parent=0 // loop_footer_branch
    %11 = sbr.rel target = $region3
  $region8: #{_lambda_.9} parent=0 // loop_exit
    _

// kernel: _lambda_.11
$region0: #{_lambda_.11}
  #allocation0 [shape = 'u32[]', space=smem, size = 0x4, offset = 0x4, fixed_abs, tag = 'smem constant byte address 0x4 - core index']
  #allocation1 [shape = 'u32[72,128]{1,0:T(1,128)}', space=vmem, size = 0x9000, scoped, tag = 'internal scratch']
  %s0 = inlined_call_operand.vmem [shape: bf16[2,64,256], index: 0, kind: input, shape index: {}]
  %s1 = inlined_call_operand.vmem [shape: bf16[256,64], index: 1, kind: input, shape index: {}]
  %s2 = inlined_call_operand.vmem [shape: f32[1,64], index: 2, kind: input, shape index: {}]
  %s3 = inlined_call_operand.vmem [shape: f32[1,64], index: 3, kind: input, shape index: {}]
  %s4 = inlined_call_operand.vmem [shape: f32[64,32], index: 4, kind: input, shape index: {}]
  %s5 = inlined_call_operand.vmem [shape: f32[32,64], index: 5, kind: input, shape index: {}]
  %s6 = inlined_call_operand.vmem [shape: f32[2,64,64], index: 6, kind: output, shape index: {}]
  %s7 = sld [smem:[#allocation0]]
  $region57: #{_lambda_.11} parent=0
    _
  %s9 = ssub.s32 1, %s7
  %s10 = scalar_select 0, %s9, %s7
  loop: start=0, step=1, limit=4
  $region2: #{_lambda_.11} parent=0 // loop_pre_header
    _
  $region3: #{_lambda_.11} parent=0 // loop_header
    %s12 = sphi 0, %s16
    %p13 = scmp.ge.s32.totalorder %s12, 4
    %s22 = sphi 0, %s24
    %s25 = sphi 0, %s22
    %s26 = sphi 0, %s25
    %s42 = sphi 0, %s26
    %s46 = sphi 0, %s46
    %s48 = sphi 0, %s46
    %s49 = sphi 0, %s48
    %s63 = sphi 0, %s49
    %s67 = sphi 0, %s67
    %s69 = sphi 0, %s67
    %s70 = sphi 0, %s69
    %s84 = sphi 0, %s70
    %s88 = sphi 0, %s88
    %s90 = sphi 0, %s88
    %s91 = sphi 0, %s90
    %s105 = sphi 0, %s91
    %s109 = sphi 0, %s109
    %s111 = sphi 0, %s109
    %s112 = sphi 0, %s111
    %s126 = sphi 0, %s112
    %s130 = sphi 0, %s130
    %s132 = sphi 0, %s130
    %s133 = sphi 0, %s132
    %s147 = sphi 0, %s133
    %s153 = sphi 0, %s155
    %s156 = sphi 0, %s153
    %s157 = sphi 0, %s156
    %s173 = sphi 0, %s157
  $region4: #{_lambda_.11} parent=0 // loop_header_branch
    %15 = sbr.rel (%p13) target = $region8
  $region5: #{_lambda_.11} parent=0 // loop_body
    %s17 = ssub.s32 %s12, 1
    %s18 = ssub.s32 %s12, 2
    %s19 = sadd.s32 %s12, 1
    %s20 = ssub.s32 %s12, %s19
    %p21 = scmp.eq.s32.totalorder %s20, 0
    %s23 = sadd.s32 %s22, 1
    %s24 = scalar_select %p21, %s22, %s23
    %p27 = pneg %p21
    %p28 = scmp.eq.s32.totalorder %s12, 1
    %p29 = por %p27, %p28
    %p30 = scmp.ne.s32.totalorder %s22, %s25
    %p31 = scmp.eq.s32.totalorder %s12, 0
    %p32 = por %p30, %p31
    %p33 = scmp.ne.s32.totalorder %s22, %s25
    %p34 = scmp.eq.s32.totalorder %s17, 1
    %p35 = por %p33, %p34
    %p36 = scmp.ne.s32.totalorder %s25, %s26
    %p37 = scmp.eq.s32.totalorder %s17, 0
    %p38 = por %p36, %p37
    %p39 = scmp.ne.s32.totalorder %s25, %s26
    %p40 = scmp.eq.s32.totalorder %s18, 1
    %p41 = por %p39, %p40
    %p43 = scmp.ne.s32.totalorder %s26, %s42
    %p44 = scmp.eq.s32.totalorder %s18, 0
    %p45 = por %p43, %p44
    %s47 = sadd.s32 %s46, 1
    %p50 = scmp.eq.s32.totalorder %s12, 1
    %p51 = scmp.ne.s32.totalorder %s46, %s48
    %p52 = scmp.eq.s32.totalorder %s12, 0
    %p53 = por %p51, %p52
    %p54 = scmp.ne.s32.totalorder %s46, %s48
    %p55 = scmp.eq.s32.totalorder %s17, 1
    %p56 = por %p54, %p55
    %p57 = scmp.ne.s32.totalorder %s48, %s49
    %p58 = scmp.eq.s32.totalorder %s17, 0
    %p59 = por %p57, %p58
    %p60 = scmp.ne.s32.totalorder %s48, %s49
    %p61 = scmp.eq.s32.totalorder %s18, 1
    %p62 = por %p60, %p61
    %p64 = scmp.ne.s32.totalorder %s49, %s63
    %p65 = scmp.eq.s32.totalorder %s18, 0
    %p66 = por %p64, %p65
    %s68 = sadd.s32 %s67, 1
    %p71 = scmp.eq.s32.totalorder %s12, 1
    %p72 = scmp.ne.s32.totalorder %s67, %s69
    %p73 = scmp.eq.s32.totalorder %s12, 0
    %p74 = por %p72, %p73
    %p75 = scmp.ne.s32.totalorder %s67, %s69
    %p76 = scmp.eq.s32.totalorder %s17, 1
    %p77 = por %p75, %p76
    %p78 = scmp.ne.s32.totalorder %s69, %s70
    %p79 = scmp.eq.s32.totalorder %s17, 0
    %p80 = por %p78, %p79
    %p81 = scmp.ne.s32.totalorder %s69, %s70
    %p82 = scmp.eq.s32.totalorder %s18, 1
    %p83 = por %p81, %p82
    %p85 = scmp.ne.s32.totalorder %s70, %s84
    %p86 = scmp.eq.s32.totalorder %s18, 0
    %p87 = por %p85, %p86
    %s89 = sadd.s32 %s88, 1
    %p92 = scmp.eq.s32.totalorder %s12, 1
    %p93 = scmp.ne.s32.totalorder %s88, %s90
    %p94 = scmp.eq.s32.totalorder %s12, 0
    %p95 = por %p93, %p94
    %p96 = scmp.ne.s32.totalorder %s88, %s90
    %p97 = scmp.eq.s32.totalorder %s17, 1
    %p98 = por %p96, %p97
    %p99 = scmp.ne.s32.totalorder %s90, %s91
    %p100 = scmp.eq.s32.totalorder %s17, 0
    %p101 = por %p99, %p100
    %p102 = scmp.ne.s32.totalorder %s90, %s91
    %p103 = scmp.eq.s32.totalorder %s18, 1
    %p104 = por %p102, %p103
    %p106 = scmp.ne.s32.totalorder %s91, %s105
    %p107 = scmp.eq.s32.totalorder %s18, 0
    %p108 = por %p106, %p107
    %s110 = sadd.s32 %s109, 1
    %p113 = scmp.eq.s32.totalorder %s12, 1
    %p114 = scmp.ne.s32.totalorder %s109, %s111
    %p115 = scmp.eq.s32.totalorder %s12, 0
    %p116 = por %p114, %p115
    %p117 = scmp.ne.s32.totalorder %s109, %s111
    %p118 = scmp.eq.s32.totalorder %s17, 1
    %p119 = por %p117, %p118
    %p120 = scmp.ne.s32.totalorder %s111, %s112
    %p121 = scmp.eq.s32.totalorder %s17, 0
    %p122 = por %p120, %p121
    %p123 = scmp.ne.s32.totalorder %s111, %s112
    %p124 = scmp.eq.s32.totalorder %s18, 1
    %p125 = por %p123, %p124
    %p127 = scmp.ne.s32.totalorder %s112, %s126
    %p128 = scmp.eq.s32.totalorder %s18, 0
    %p129 = por %p127, %p128
    %s131 = sadd.s32 %s130, 1
    %p134 = scmp.eq.s32.totalorder %s12, 1
    %p135 = scmp.ne.s32.totalorder %s130, %s132
    %p136 = scmp.eq.s32.totalorder %s12, 0
    %p137 = por %p135, %p136
    %p138 = scmp.ne.s32.totalorder %s130, %s132
    %p139 = scmp.eq.s32.totalorder %s17, 1
    %p140 = por %p138, %p139
    %p141 = scmp.ne.s32.totalorder %s132, %s133
    %p142 = scmp.eq.s32.totalorder %s17, 0
    %p143 = por %p141, %p142
    %p144 = scmp.ne.s32.totalorder %s132, %s133
    %p145 = scmp.eq.s32.totalorder %s18, 1
    %p146 = por %p144, %p145
    %p148 = scmp.ne.s32.totalorder %s133, %s147
    %p149 = scmp.eq.s32.totalorder %s18, 0
    %p150 = por %p148, %p149
    %s151 = ssub.s32 %s12, %s19
    %p152 = scmp.eq.s32.totalorder %s151, 0
    %s154 = sadd.s32 %s153, 1
    %s155 = scalar_select %p152, %s153, %s154
    %p158 = pneg %p152
    %p159 = scmp.eq.s32.totalorder %s12, 1
    %p160 = por %p158, %p159
    %p161 = scmp.ne.s32.totalorder %s153, %s156
    %p162 = scmp.eq.s32.totalorder %s12, 0
    %p163 = por %p161, %p162
    %p164 = scmp.ne.s32.totalorder %s153, %s156
    %p165 = scmp.eq.s32.totalorder %s17, 1
    %p166 = por %p164, %p165
    %p167 = scmp.ne.s32.totalorder %s156, %s157
    %p168 = scmp.eq.s32.totalorder %s17, 0
    %p169 = por %p167, %p168
    %p170 = scmp.ne.s32.totalorder %s156, %s157
    %p171 = scmp.eq.s32.totalorder %s18, 1
    %p172 = por %p170, %p171
    %p174 = scmp.ne.s32.totalorder %s157, %s173
    %p175 = scmp.eq.s32.totalorder %s18, 0
    %p176 = por %p174, %p175
    %p177 = scmp.le.s32.totalorder 1, %s12
    %p178 = scmp.lt.s32.totalorder %s12, 3
    %p179 = pnand %p177, %p178
    %p180 = pneg %p179
    // Predicated region
    $region9: #{_lambda_.11} parent=5 // pred_check
      _
    $region10: #{_lambda_.11} parent=5 // pred_check_branch
      %182 = sbr.rel (%p179) target = $region12
    $region11: #{_lambda_.11} parent=5 // pred_region
      %s183 = ssub.s32 %s12, 1
      // Predicated region
      $region13: #{_lambda_.11} parent=11 // pred_check
        %p184 = pneg %p59
      $region14: #{_lambda_.11} parent=11 // pred_check_branch
        %186 = sbr.rel (%p184) target = $region16
      $region15: #{_lambda_.11} parent=11 // pred_region
        _
      $region16: #{_lambda_.11} parent=11 // pred_fallthru
        _
      // Predicated region
      $region17: #{_lambda_.11} parent=11 // pred_check
        %p187 = pneg %p80
      $region18: #{_lambda_.11} parent=11 // pred_check_branch
        %189 = sbr.rel (%p187) target = $region20
      $region19: #{_lambda_.11} parent=11 // pred_region
        _
      $region20: #{_lambda_.11} parent=11 // pred_fallthru
        _
      // Predicated region
      $region21: #{_lambda_.11} parent=11 // pred_check
        %p190 = pneg %p101
      $region22: #{_lambda_.11} parent=11 // pred_check_branch
        %192 = sbr.rel (%p190) target = $region24
      $region23: #{_lambda_.11} parent=11 // pred_region
        _
      $region24: #{_lambda_.11} parent=11 // pred_fallthru
        _
      // Predicated region
      $region25: #{_lambda_.11} parent=11 // pred_check
        %p193 = pneg %p122
      $region26: #{_lambda_.11} parent=11 // pred_check_branch
        %195 = sbr.rel (%p193) target = $region28
      $region27: #{_lambda_.11} parent=11 // pred_region
        _
      $region28: #{_lambda_.11} parent=11 // pred_fallthru
        _
      // Predicated region
      $region29: #{_lambda_.11} parent=11 // pred_check
        %p196 = pneg %p143
      $region30: #{_lambda_.11} parent=11 // pred_check_branch
        %198 = sbr.rel (%p196) target = $region32
      $region31: #{_lambda_.11} parent=11 // pred_region
        _
      $region32: #{_lambda_.11} parent=11 // pred_fallthru
        _
    $region12: #{_lambda_.11} parent=5 // pred_fallthru
      _
    %p199 = scmp.lt.s32.totalorder %s12, 2
    // Predicated region
    $region33: #{_lambda_.11} parent=5 // pred_check
      %p200 = pneg %p199
    $region34: #{_lambda_.11} parent=5 // pred_check_branch
      %202 = sbr.rel (%p200) target = $region36
    $region35: #{_lambda_.11} parent=5 // pred_region
      // Predicated region
      $region37: #{_lambda_.11} parent=35 // pred_check
        %p203 = pneg %p32
      $region38: #{_lambda_.11} parent=35 // pred_check_branch
        %205 = sbr.rel (%p203) target = $region40
      $region39: #{_lambda_.11} parent=35 // pred_region
        %p206 = scmp.lt.s32.totalorder %s12, 1
        %s207 = scalar_select %p206, %s12, 1
        %s208 = smul.addr %s207, 16
        %s209 = smul.addr %s208, 4
        %s210 = scalar_lea.vmem %s0, %s209
      $region40: #{_lambda_.11} parent=35 // pred_fallthru
        _
    $region36: #{_lambda_.11} parent=5 // pred_fallthru
      _
    %p211 = scmp.le.s32.totalorder 1, %s12
    %p212 = scmp.lt.s32.totalorder %s12, 3
    %p213 = pnand %p211, %p212
    %p214 = pneg %p213
    // Predicated region
    $region41: #{_lambda_.11} parent=5 // pred_check
      _
    $region42: #{_lambda_.11} parent=5 // pred_check_branch
      %216 = sbr.rel (%p213) target = $region44
    $region43: #{_lambda_.11} parent=5 // pred_region
      %s217 = ssub.s32 %s12, 1
      %p218 = scmp.lt.s32.totalorder %s17, 1
      %s219 = scalar_select %p218, %s17, 1
      %s220 = smul.addr %s219, 16
      %s221 = smul.addr %s220, 4
      %s222 = scalar_lea.vmem %s0, %s221
      %p223 = pneg %p38
      %p224 = pneg %p35
      %p225 = pneg %p59
      %p226 = pneg %p56
      %p227 = pneg %p80
      %p228 = pneg %p77
      %p229 = pneg %p101
      %p230 = pneg %p98
      %p231 = pneg %p122
      %p232 = pneg %p119
      %p233 = pneg %p143
      %p234 = pneg %p140
      %p235 = pneg %p169
      %p236 = pneg %p166
      %p237 = scmp.lt.s32.totalorder %s17, 1
      %s238 = scalar_select %p237, %s17, 1
      %s239 = smul.addr %s238, 8
      %s240 = smul.addr %s239, 8
      %s241 = scalar_lea.vmem %s6, %s240
      %p242 = scmp.lt.s32.totalorder %s17, 1
      %s243 = scalar_select %p242, %s17, 1
      %s244 = smul.addr %s243, 16
      %s245 = smul.addr %s244, 4
      %s246 = scalar_lea.vmem %s0, %s245
      %p247 = scmp.lt.s32.totalorder %s17, 1
      %s248 = scalar_select %p247, %s17, 1
      %s249 = smul.addr %s248, 8
      %s250 = smul.addr %s249, 8
      %s251 = scalar_lea.vmem %s6, %s250
      %v252 = vld [vmem:[%s246] sm:$0xff]
      %v253 = vld [vmem:[%s246 + $0x8] sm:$0xff]
      %v254 = vld [vmem:[%s246 + $0x10] sm:$0xff]
      %v255 = vld [vmem:[%s246 + $0x18] sm:$0xff]
      %v256 = vld [vmem:[%s246 + $0x20] sm:$0xff]
      %v257 = vld [vmem:[%s246 + $0x28] sm:$0xff]
      %v258 = vld [vmem:[%s246 + $0x30] sm:$0xff]
      %v259 = vld [vmem:[%s246 + $0x38] sm:$0xff]
      %v260 = vld [vmem:[%s1] sm:$0xf]
      %v261 = vld [vmem:[%s1 + $0x4] sm:$0xf]
      %v262 = vld [vmem:[%s1 + $0x8] sm:$0xf]
      %v263 = vld [vmem:[%s1 + $0xc] sm:$0xf]
      %v264 = vld [vmem:[%s1 + $0x10] sm:$0xf]
      %v265 = vld [vmem:[%s1 + $0x14] sm:$0xf]
      %v266 = vld [vmem:[%s1 + $0x18] sm:$0xf]
      %v267 = vld [vmem:[%s1 + $0x1c] sm:$0xf]
      %v268 = vld [vmem:[%s1 + $0x20] sm:$0xf]
      %v269 = vld [vmem:[%s1 + $0x24] sm:$0xf]
      %v270 = vld [vmem:[%s1 + $0x28] sm:$0xf]
      %v271 = vld [vmem:[%s1 + $0x2c] sm:$0xf]
      %v272 = vld [vmem:[%s1 + $0x30] sm:$0xf]
      %v273 = vld [vmem:[%s1 + $0x34] sm:$0xf]
      %v274 = vld [vmem:[%s1 + $0x38] sm:$0xf]
      %v275 = vld [vmem:[%s1 + $0x3c] sm:$0xf]
      %v276 = vld [vmem:[%s1 + $0x40] sm:$0xf]
      %v277 = vld [vmem:[%s1 + $0x44] sm:$0xf]
      %v278 = vld [vmem:[%s1 + $0x48] sm:$0xf]
      %v279 = vld [vmem:[%s1 + $0x4c] sm:$0xf]
      %v280 = vld [vmem:[%s1 + $0x50] sm:$0xf]
      %v281 = vld [vmem:[%s1 + $0x54] sm:$0xf]
      %v282 = vld [vmem:[%s1 + $0x58] sm:$0xf]
      %v283 = vld [vmem:[%s1 + $0x5c] sm:$0xf]
      %v284 = vld [vmem:[%s1 + $0x60] sm:$0xf]
      %v285 = vld [vmem:[%s1 + $0x64] sm:$0xf]
      %v286 = vld [vmem:[%s1 + $0x68] sm:$0xf]
      %v287 = vld [vmem:[%s1 + $0x6c] sm:$0xf]
      %v288 = vld [vmem:[%s1 + $0x70] sm:$0xf]
      %v289 = vld [vmem:[%s1 + $0x74] sm:$0xf]
      %v290 = vld [vmem:[%s1 + $0x78] sm:$0xf]
      %v291 = vld [vmem:[%s1 + $0x7c] sm:$0xf]
      %v300 = vunpack.c.l.b16 %v252
      %v301 = vunpack.c.h.b16 %v252
      %v302 = vunpack.c.l.b16 %v253
      %v303 = vunpack.c.h.b16 %v253
      %v304 = vunpack.c.l.b16 %v254
      %v305 = vunpack.c.h.b16 %v254
      %v306 = vunpack.c.l.b16 %v255
      %v307 = vunpack.c.h.b16 %v255
      %v308 = vunpack.c.l.b16 %v256
      %v309 = vunpack.c.h.b16 %v256
      %v310 = vunpack.c.l.b16 %v257
      %v311 = vunpack.c.h.b16 %v257
      %v312 = vunpack.c.l.b16 %v258
      %v313 = vunpack.c.h.b16 %v258
      %v314 = vunpack.c.l.b16 %v259
      %v315 = vunpack.c.h.b16 %v259
      %v316 = vpack.c.b16 %v302, %v300
      %v317 = vpack.c.b16 %v303, %v301
      %v318 = vpack.c.b16 %v306, %v304
      %v319 = vpack.c.b16 %v307, %v305
      %v320 = vpack.c.b16 %v310, %v308
      %v321 = vpack.c.b16 %v311, %v309
      %v322 = vpack.c.b16 %v314, %v312
      %v323 = vpack.c.b16 %v315, %v313
      %v364 = vunpack.c.l.b16 %v260
      %v365 = vunpack.c.l.b16 %v261
      %v366 = vunpack.c.l.b16 %v262
      %v367 = vunpack.c.l.b16 %v263
      %v368 = vunpack.c.l.b16 %v264
      %v369 = vunpack.c.l.b16 %v265
      %v370 = vunpack.c.l.b16 %v266
      %v371 = vunpack.c.l.b16 %v267
      %v372 = vunpack.c.l.b16 %v268
      %v373 = vunpack.c.l.b16 %v269
      %v374 = vunpack.c.l.b16 %v270
      %v375 = vunpack.c.l.b16 %v271
      %v376 = vunpack.c.l.b16 %v272
      %v377 = vunpack.c.l.b16 %v273
      %v378 = vunpack.c.l.b16 %v274
      %v379 = vunpack.c.l.b16 %v275
      %v380 = vunpack.c.l.b16 %v276
      %v381 = vunpack.c.l.b16 %v277
      %v382 = vunpack.c.l.b16 %v278
      %v383 = vunpack.c.l.b16 %v279
      %v384 = vunpack.c.l.b16 %v280
      %v385 = vunpack.c.l.b16 %v281
      %v386 = vunpack.c.l.b16 %v282
      %v387 = vunpack.c.l.b16 %v283
      %v388 = vunpack.c.l.b16 %v284
      %v389 = vunpack.c.l.b16 %v285
      %v390 = vunpack.c.l.b16 %v286
      %v391 = vunpack.c.l.b16 %v287
      %v392 = vunpack.c.l.b16 %v288
      %v393 = vunpack.c.l.b16 %v289
      %v394 = vunpack.c.l.b16 %v290
      %v395 = vunpack.c.l.b16 %v291
      %v396 = vpack.c.b16 %v365, %v364
      %v397 = vpack.c.b16 %v367, %v366
      %v398 = vpack.c.b16 %v369, %v368
      %v399 = vpack.c.b16 %v371, %v370
      %v400 = vpack.c.b16 %v373, %v372
      %v401 = vpack.c.b16 %v375, %v374
      %v402 = vpack.c.b16 %v377, %v376
      %v403 = vpack.c.b16 %v379, %v378
      %v404 = vpack.c.b16 %v381, %v380
      %v405 = vpack.c.b16 %v383, %v382
      %v406 = vpack.c.b16 %v385, %v384
      %v407 = vpack.c.b16 %v387, %v386
      %v408 = vpack.c.b16 %v389, %v388
      %v409 = vpack.c.b16 %v391, %v390
      %v410 = vpack.c.b16 %v393, %v392
      %v411 = vpack.c.b16 %v395, %v394
      %428 = vmatpush.bf16.msra.mxu0 %v403
      %429 = vmatpush.bf16.msra.mxu0 %v402
      %430 = vmatpush.bf16.msra.mxu0 %v401
      %431 = vmatpush.bf16.msra.mxu0 %v400
      %432 = vmatpush.bf16.msra.mxu0 %v399
      %433 = vmatpush.bf16.msra.mxu0 %v398
      %434 = vmatpush.bf16.msra.mxu0 %v397
      %435 = vmatpush.bf16.msra.mxu0 %v396
      %436 = vmatmul.bf16.gmra.mxu0 %v316
      %v437 = vpop.f32.mrf.mxu0
      %v438 = vadd.f32 0.0, %v437
      %v439 = vpop.f32.mrf.mxu0
      %v440 = vadd.f32 0.0, %v439
      %441 = vmatmul.bf16.gmra.mxu0 %v318
      %v442 = vpop.f32.mrf.mxu0
      %v443 = vadd.f32 0.0, %v442
      %v444 = vpop.f32.mrf.mxu0
      %v445 = vadd.f32 0.0, %v444
      %446 = vmatmul.bf16.gmra.mxu0 %v320
      %v447 = vpop.f32.mrf.mxu0
      %v448 = vadd.f32 0.0, %v447
      %v449 = vpop.f32.mrf.mxu0
      %v450 = vadd.f32 0.0, %v449
      %451 = vmatmul.bf16.gmra.mxu0 %v322
      %v452 = vpop.f32.mrf.mxu0
      %v453 = vadd.f32 0.0, %v452
      %v454 = vpop.f32.mrf.mxu0
      %v455 = vadd.f32 0.0, %v454
      %456 = vdwg.mxu0
      %457 = vmatpush.bf16.msra.mxu0 %v411
      %458 = vmatpush.bf16.msra.mxu0 %v410
      %459 = vmatpush.bf16.msra.mxu0 %v409
      %460 = vmatpush.bf16.msra.mxu0 %v408
      %461 = vmatpush.bf16.msra.mxu0 %v407
      %462 = vmatpush.bf16.msra.mxu0 %v406
      %463 = vmatpush.bf16.msra.mxu0 %v405
      %464 = vmatpush.bf16.msra.mxu0 %v404
      %465 = vmatmul.bf16.gmra.mxu0 %v317
      %v466 = vpop.f32.mrf.mxu0
      %v467 = vadd.f32 %v438, %v466
      %v468 = vpop.f32.mrf.mxu0
      %v469 = vadd.f32 %v440, %v468
      %470 = vmatmul.bf16.gmra.mxu0 %v319
      %v471 = vpop.f32.mrf.mxu0
      %v472 = vadd.f32 %v443, %v471
      %v473 = vpop.f32.mrf.mxu0
      %v474 = vadd.f32 %v445, %v473
      %475 = vmatmul.bf16.gmra.mxu0 %v321
      %v476 = vpop.f32.mrf.mxu0
      %v477 = vadd.f32 %v448, %v476
      %v478 = vpop.f32.mrf.mxu0
      %v479 = vadd.f32 %v450, %v478
      %480 = vmatmul.bf16.gmra.mxu0 %v323
      %v481 = vpop.f32.mrf.mxu0
      %v482 = vadd.f32 %v453, %v481
      %v483 = vpop.f32.mrf.mxu0
      %v484 = vadd.f32 %v455, %v483
      %485 = vdwg.mxu0
      %v486 = vld [vmem:[%s2] sm:$0x1]
      %v487 = vld [vmem:[%s3] sm:$0x1]
      %v488 = vld [vmem:[%s4] sm:$0xff]
      %v489 = vld [vmem:[%s4 + $0x8] sm:$0xff]
      %v490 = vld [vmem:[%s4 + $0x10] sm:$0xff]
      %v491 = vld [vmem:[%s4 + $0x18] sm:$0xff]
      %v492 = vld [vmem:[%s4 + $0x20] sm:$0xff]
      %v493 = vld [vmem:[%s4 + $0x28] sm:$0xff]
      %v494 = vld [vmem:[%s4 + $0x30] sm:$0xff]
      %v495 = vld [vmem:[%s4 + $0x38] sm:$0xff]
      %v496 = vld [vmem:[%s5] sm:$0xff]
      %v497 = vld [vmem:[%s5 + $0x8] sm:$0xff]
      %v498 = vld [vmem:[%s5 + $0x10] sm:$0xff]
      %v499 = vld [vmem:[%s5 + $0x18] sm:$0xff]
      %vm500 = vcmask 523264
      %v501 = vsel %vm500, %v467, 0.0
      %v502 = vsel %vm500, %v469, 0.0
      %v503 = vadd.f32 %v501, %v502
      %v504 = vsel %vm500, %v472, 0.0
      %v505 = vadd.f32 %v503, %v504
      %v506 = vsel %vm500, %v474, 0.0
      %v507 = vadd.f32 %v505, %v506
      %v508 = vsel %vm500, %v477, 0.0
      %v509 = vadd.f32 %v507, %v508
      %v510 = vsel %vm500, %v479, 0.0
      %v511 = vadd.f32 %v509, %v510
      %v512 = vsel %vm500, %v482, 0.0
      %v513 = vadd.f32 %v511, %v512
      %v514 = vsel %vm500, %v484, 0.0
      %v515 = vadd.f32 %v513, %v514
      %v516 = vrot.slane %v515, 4
      %v517 = vadd.f32 %v515, %v516
      %v518 = vrot.slane %v517, 2
      %v519 = vadd.f32 %v517, %v518
      %v520 = vrot.slane %v519, 1
      %v521 = vadd.f32 %v519, %v520
      %v523 = vsel %vm500, %v521, 0
      %525 = vmatpush.msra.mxu0 0.0
      %526 = vmatpush.msra.mxu0 0.0
      %527 = vmatpush.msra.mxu0 0.0
      %528 = vmatpush.msra.mxu0 0.0
      %529 = vmatpush.msra.mxu0 0.0
      %530 = vmatpush.msra.mxu0 0.0
      %531 = vmatpush.msra.mxu0 0.0
      %532 = vmatpush.msra.mxu0 0.0
      %533 = vmatpush.msra.mxu0 %v495
      %534 = vmatpush.msra.mxu0 %v494
      %535 = vmatpush.msra.mxu0 %v493
      %536 = vmatpush.msra.mxu0 %v492
      %537 = vmatpush.msra.mxu0 %v491
      %538 = vmatpush.msra.mxu0 %v490
      %539 = vmatpush.msra.mxu0 %v489
      %540 = vmatpush.msra.mxu0 %v488
      %541 = vmatmul.f32.gmra.mxu0 %v523
      %v542 = vpop.f32.mrf.mxu0
      %v543 = vadd.f32 0.0, %v542
      %544 = vdwg.mxu0
      %vm545 = vcmask 261120
      %v547 = vsel %vm545, %v543, 0
      %549 = vmatpush.msra.mxu0 0.0
      %550 = vmatpush.msra.mxu0 0.0
      %551 = vmatpush.msra.mxu0 0.0
      %552 = vmatpush.msra.mxu0 0.0
      %553 = vmatpush.msra.mxu0 0.0
      %554 = vmatpush.msra.mxu0 0.0
      %555 = vmatpush.msra.mxu0 0.0
      %556 = vmatpush.msra.mxu0 0.0
      %557 = vmatpush.msra.mxu0 0.0
      %558 = vmatpush.msra.mxu0 0.0
      %559 = vmatpush.msra.mxu0 0.0
      %560 = vmatpush.msra.mxu0 0.0
      %561 = vmatpush.msra.mxu0 %v499
      %562 = vmatpush.msra.mxu0 %v498
      %563 = vmatpush.msra.mxu0 %v497
      %564 = vmatpush.msra.mxu0 %v496
      %565 = vmatmul.f32.gmra.mxu0 %v547
      %v566 = vpop.f32.mrf.mxu0
      %v567 = vadd.f32 0.0, %v566
      %568 = vdwg.mxu0
      %v569 = vrcp.pop 128.0
      %v570 = vmul.f32 128.0, %v569
      %v571 = vsub.f32 1.0, %v570
      %v572 = vmul.f32 %v569, %v571
      %v573 = vadd.f32 %v569, %v572
      %vm574 = vweird.f32 %v569
      %v575 = vsel %vm574, %v569, %v573
      %v576 = vmul.f32 %v567, %v575
      %v577 = vperm.slane %v576, 0
      %v578 = vsub.f32 %v467, %v577
      %v579 = vsub.f32 %v469, %v577
      %v580 = vsub.f32 %v472, %v577
      %v581 = vsub.f32 %v474, %v577
      %v582 = vsub.f32 %v477, %v577
      %v583 = vsub.f32 %v479, %v577
      %v584 = vsub.f32 %v482, %v577
      %v585 = vsub.f32 %v484, %v577
      %v586 = vmul.f32 %v578, %v578
      %v587 = vmul.f32 %v579, %v579
      %v588 = vmul.f32 %v580, %v580
      %v589 = vmul.f32 %v581, %v581
      %v590 = vmul.f32 %v582, %v582
      %v591 = vmul.f32 %v583, %v583
      %v592 = vmul.f32 %v584, %v584
      %v593 = vmul.f32 %v585, %v585
      %v594 = vsel %vm500, %v586, 0.0
      %v595 = vsel %vm500, %v587, 0.0
      %v596 = vadd.f32 %v594, %v595
      %v597 = vsel %vm500, %v588, 0.0
      %v598 = vadd.f32 %v596, %v597
      %v599 = vsel %vm500, %v589, 0.0
      %v600 = vadd.f32 %v598, %v599
      %v601 = vsel %vm500, %v590, 0.0
      %v602 = vadd.f32 %v600, %v601
      %v603 = vsel %vm500, %v591, 0.0
      %v604 = vadd.f32 %v602, %v603
      %v605 = vsel %vm500, %v592, 0.0
      %v606 = vadd.f32 %v604, %v605
      %v607 = vsel %vm500, %v593, 0.0
      %v608 = vadd.f32 %v606, %v607
      %v609 = vrot.slane %v608, 4
      %v610 = vadd.f32 %v608, %v609
      %v611 = vrot.slane %v610, 2
      %v612 = vadd.f32 %v610, %v611
      %v613 = vrot.slane %v612, 1
      %v614 = vadd.f32 %v612, %v613
      %v616 = vsel %vm500, %v614, 0
      %618 = vmatpush.msra.mxu0 0.0
      %619 = vmatpush.msra.mxu0 0.0
      %620 = vmatpush.msra.mxu0 0.0
      %621 = vmatpush.msra.mxu0 0.0
      %622 = vmatpush.msra.mxu0 0.0
      %623 = vmatpush.msra.mxu0 0.0
      %624 = vmatpush.msra.mxu0 0.0
      %625 = vmatpush.msra.mxu0 0.0
      %626 = vmatpush.msra.mxu0 %v495
      %627 = vmatpush.msra.mxu0 %v494
      %628 = vmatpush.msra.mxu0 %v493
      %629 = vmatpush.msra.mxu0 %v492
      %630 = vmatpush.msra.mxu0 %v491
      %631 = vmatpush.msra.mxu0 %v490
      %632 = vmatpush.msra.mxu0 %v489
      %633 = vmatpush.msra.mxu0 %v488
      %634 = vmatmul.f32.gmra.mxu0 %v616
      %v635 = vpop.f32.mrf.mxu0
      %v636 = vadd.f32 0.0, %v635
      %637 = vdwg.mxu0
      %v638 = vmul.f32 %v636, %v575
      %v639 = vadd.f32 %v638, 1e-05
      %v640 = vrsqrt.pop %v639
      %v641 = vmul.f32 %v640, %v639
      %v642 = vmul.f32 %v641, %v640
      %v643 = vmul.f32 0.5, %v642
      %v644 = vsub.f32 1.5, %v643
      %v645 = vmul.f32 %v640, %v644
      %vm646 = vweird.f32 %v639
      %vm647 = vweird.f32 %v640
      %vm648 = vmor %vm646, %vm647
      %v649 = vsel %vm648, %v640, %v645
      %v651 = vsel %vm545, %v649, 0
      %653 = vmatpush.msra.mxu0 0.0
      %654 = vmatpush.msra.mxu0 0.0
      %655 = vmatpush.msra.mxu0 0.0
      %656 = vmatpush.msra.mxu0 0.0
      %657 = vmatpush.msra.mxu0 0.0
      %658 = vmatpush.msra.mxu0 0.0
      %659 = vmatpush.msra.mxu0 0.0
      %660 = vmatpush.msra.mxu0 0.0
      %661 = vmatpush.msra.mxu0 0.0
      %662 = vmatpush.msra.mxu0 0.0
      %663 = vmatpush.msra.mxu0 0.0
      %664 = vmatpush.msra.mxu0 0.0
      %665 = vmatpush.msra.mxu0 %v499
      %666 = vmatpush.msra.mxu0 %v498
      %667 = vmatpush.msra.mxu0 %v497
      %668 = vmatpush.msra.mxu0 %v496
      %669 = vmatmul.f32.gmra.mxu0 %v651
      %v670 = vpop.f32.mrf.mxu0
      %v671 = vadd.f32 0.0, %v670
      %672 = vdwg.mxu0
      %v673 = vperm.slane %v671, 0
      %v674 = vmul.f32 %v578, %v673
      %v675 = vmul.f32 %v579, %v673
      %v676 = vmul.f32 %v580, %v673
      %v677 = vmul.f32 %v581, %v673
      %v678 = vmul.f32 %v582, %v673
      %v679 = vmul.f32 %v583, %v673
      %v680 = vmul.f32 %v584, %v673
      %v681 = vmul.f32 %v585, %v673
      %v683 = vperm.slane %v486, 0
      %v685 = vmul.f32 %v674, %v683
      %v686 = vmul.f32 %v675, %v683
      %v687 = vmul.f32 %v676, %v683
      %v688 = vmul.f32 %v677, %v683
      %v689 = vmul.f32 %v678, %v683
      %v690 = vmul.f32 %v679, %v683
      %v691 = vmul.f32 %v680, %v683
      %v692 = vmul.f32 %v681, %v683
      %v694 = vperm.slane %v487, 0
      %v696 = vadd.f32 %v685, %v694
      %v697 = vadd.f32 %v686, %v694
      %v698 = vadd.f32 %v687, %v694
      %v699 = vadd.f32 %v688, %v694
      %v700 = vadd.f32 %v689, %v694
      %v701 = vadd.f32 %v690, %v694
      %v702 = vadd.f32 %v691, %v694
      %v703 = vadd.f32 %v692, %v694
      %v704 = vmax.f32 %v696, 0.0
      %v705 = vmax.f32 %v697, 0.0
      %v706 = vmax.f32 %v698, 0.0
      %v707 = vmax.f32 %v699, 0.0
      %v708 = vmax.f32 %v700, 0.0
      %v709 = vmax.f32 %v701, 0.0
      %v710 = vmax.f32 %v702, 0.0
      %v711 = vmax.f32 %v703, 0.0
      %712 = vst.msk [vmem:[%s251] sm:$0xff] %vm500, %v704
      %713 = vst.msk [vmem:[%s251 + $0x8] sm:$0xff] %vm500, %v705
      %714 = vst.msk [vmem:[%s251 + $0x10] sm:$0xff] %vm500, %v706
      %715 = vst.msk [vmem:[%s251 + $0x18] sm:$0xff] %vm500, %v707
      %716 = vst.msk [vmem:[%s251 + $0x20] sm:$0xff] %vm500, %v708
      %717 = vst.msk [vmem:[%s251 + $0x28] sm:$0xff] %vm500, %v709
      %718 = vst.msk [vmem:[%s251 + $0x30] sm:$0xff] %vm500, %v710
      %719 = vst.msk [vmem:[%s251 + $0x38] sm:$0xff] %vm500, %v711
      %p720 = scmp.lt.s32.totalorder %s17, 1
      %s721 = scalar_select %p720, %s17, 1
      %s722 = smul.addr %s721, 8
      %s723 = smul.addr %s722, 8
      %s724 = scalar_lea.vmem %s6, %s723
      // Predicated region
      $region45: #{_lambda_.11} parent=43 // pred_check
        %p725 = pneg %p166
      $region46: #{_lambda_.11} parent=43 // pred_check_branch
        %727 = sbr.rel (%p725) target = $region48
      $region47: #{_lambda_.11} parent=43 // pred_region
        _
      $region48: #{_lambda_.11} parent=43 // pred_fallthru
        _
    $region44: #{_lambda_.11} parent=5 // pred_fallthru
      _
    %p728 = scmp.le.s32.totalorder 2, %s12
    // Predicated region
    $region49: #{_lambda_.11} parent=5 // pred_check
      %p729 = pneg %p728
    $region50: #{_lambda_.11} parent=5 // pred_check_branch
      %731 = sbr.rel (%p729) target = $region52
    $region51: #{_lambda_.11} parent=5 // pred_region
      %s732 = ssub.s32 %s12, 2
      // Predicated region
      $region53: #{_lambda_.11} parent=51 // pred_check
        %p733 = pneg %p172
      $region54: #{_lambda_.11} parent=51 // pred_check_branch
        %735 = sbr.rel (%p733) target = $region56
      $region55: #{_lambda_.11} parent=51 // pred_region
        %p736 = scmp.lt.s32.totalorder %s18, 1
        %s737 = scalar_select %p736, %s18, 1
        %s738 = smul.addr %s737, 8
        %s739 = smul.addr %s738, 8
        %s740 = scalar_lea.vmem %s6, %s739
      $region56: #{_lambda_.11} parent=51 // pred_fallthru
        _
    $region52: #{_lambda_.11} parent=5 // pred_fallthru
      _
  $region6: #{_lambda_.11} parent=0 // loop_footer
    %s16 = sadd.s32 1, %s12
  $region7: #{_lambda_.11} parent=0 // loop_footer_branch
    %11 = sbr.rel target = $region3
  $region8: #{_lambda_.11} parent=0 // loop_exit
    _

// kernel: _lambda_.12
$region0: #{_lambda_.12}
  #allocation0 [shape = 'u32[]', space=smem, size = 0x4, offset = 0x4, fixed_abs, tag = 'smem constant byte address 0x4 - core index']
  #allocation1 [shape = 'u32[72,128]{1,0:T(1,128)}', space=vmem, size = 0x9000, scoped, tag = 'internal scratch']
  %s0 = inlined_call_operand.vmem [shape: f32[2,10,10,64], index: 0, kind: input, shape index: {}]
  %s1 = inlined_call_operand.vmem [shape: bf16[9,64,64], index: 1, kind: input, shape index: {}]
  %s2 = inlined_call_operand.vmem [shape: f32[1,64], index: 2, kind: input, shape index: {}]
  %s3 = inlined_call_operand.vmem [shape: f32[1,64], index: 3, kind: input, shape index: {}]
  %s4 = inlined_call_operand.vmem [shape: f32[64,32], index: 4, kind: input, shape index: {}]
  %s5 = inlined_call_operand.vmem [shape: f32[32,64], index: 5, kind: input, shape index: {}]
  %s6 = inlined_call_operand.vmem [shape: bf16[2,64,64], index: 6, kind: output, shape index: {}]
  %s7 = sld [smem:[#allocation0]]
  $region57: #{_lambda_.12} parent=0
    _
  %s9 = ssub.s32 1, %s7
  %s10 = scalar_select 0, %s9, %s7
  loop: start=0, step=1, limit=4
  $region2: #{_lambda_.12} parent=0 // loop_pre_header
    _
  $region3: #{_lambda_.12} parent=0 // loop_header
    %s12 = sphi 0, %s16
    %p13 = scmp.ge.s32.totalorder %s12, 4
    %s22 = sphi 0, %s24
    %s25 = sphi 0, %s22
    %s26 = sphi 0, %s25
    %s42 = sphi 0, %s26
    %s46 = sphi 0, %s46
    %s48 = sphi 0, %s46
    %s49 = sphi 0, %s48
    %s63 = sphi 0, %s49
    %s67 = sphi 0, %s67
    %s69 = sphi 0, %s67
    %s70 = sphi 0, %s69
    %s84 = sphi 0, %s70
    %s88 = sphi 0, %s88
    %s90 = sphi 0, %s88
    %s91 = sphi 0, %s90
    %s105 = sphi 0, %s91
    %s109 = sphi 0, %s109
    %s111 = sphi 0, %s109
    %s112 = sphi 0, %s111
    %s126 = sphi 0, %s112
    %s130 = sphi 0, %s130
    %s132 = sphi 0, %s130
    %s133 = sphi 0, %s132
    %s147 = sphi 0, %s133
    %s153 = sphi 0, %s155
    %s156 = sphi 0, %s153
    %s157 = sphi 0, %s156
    %s173 = sphi 0, %s157
  $region4: #{_lambda_.12} parent=0 // loop_header_branch
    %15 = sbr.rel (%p13) target = $region8
  $region5: #{_lambda_.12} parent=0 // loop_body
    %s17 = ssub.s32 %s12, 1
    %s18 = ssub.s32 %s12, 2
    %s19 = sadd.s32 %s12, 1
    %s20 = ssub.s32 %s12, %s19
    %p21 = scmp.eq.s32.totalorder %s20, 0
    %s23 = sadd.s32 %s22, 1
    %s24 = scalar_select %p21, %s22, %s23
    %p27 = pneg %p21
    %p28 = scmp.eq.s32.totalorder %s12, 1
    %p29 = por %p27, %p28
    %p30 = scmp.ne.s32.totalorder %s22, %s25
    %p31 = scmp.eq.s32.totalorder %s12, 0
    %p32 = por %p30, %p31
    %p33 = scmp.ne.s32.totalorder %s22, %s25
    %p34 = scmp.eq.s32.totalorder %s17, 1
    %p35 = por %p33, %p34
    %p36 = scmp.ne.s32.totalorder %s25, %s26
    %p37 = scmp.eq.s32.totalorder %s17, 0
    %p38 = por %p36, %p37
    %p39 = scmp.ne.s32.totalorder %s25, %s26
    %p40 = scmp.eq.s32.totalorder %s18, 1
    %p41 = por %p39, %p40
    %p43 = scmp.ne.s32.totalorder %s26, %s42
    %p44 = scmp.eq.s32.totalorder %s18, 0
    %p45 = por %p43, %p44
    %s47 = sadd.s32 %s46, 1
    %p50 = scmp.eq.s32.totalorder %s12, 1
    %p51 = scmp.ne.s32.totalorder %s46, %s48
    %p52 = scmp.eq.s32.totalorder %s12, 0
    %p53 = por %p51, %p52
    %p54 = scmp.ne.s32.totalorder %s46, %s48
    %p55 = scmp.eq.s32.totalorder %s17, 1
    %p56 = por %p54, %p55
    %p57 = scmp.ne.s32.totalorder %s48, %s49
    %p58 = scmp.eq.s32.totalorder %s17, 0
    %p59 = por %p57, %p58
    %p60 = scmp.ne.s32.totalorder %s48, %s49
    %p61 = scmp.eq.s32.totalorder %s18, 1
    %p62 = por %p60, %p61
    %p64 = scmp.ne.s32.totalorder %s49, %s63
    %p65 = scmp.eq.s32.totalorder %s18, 0
    %p66 = por %p64, %p65
    %s68 = sadd.s32 %s67, 1
    %p71 = scmp.eq.s32.totalorder %s12, 1
    %p72 = scmp.ne.s32.totalorder %s67, %s69
    %p73 = scmp.eq.s32.totalorder %s12, 0
    %p74 = por %p72, %p73
    %p75 = scmp.ne.s32.totalorder %s67, %s69
    %p76 = scmp.eq.s32.totalorder %s17, 1
    %p77 = por %p75, %p76
    %p78 = scmp.ne.s32.totalorder %s69, %s70
    %p79 = scmp.eq.s32.totalorder %s17, 0
    %p80 = por %p78, %p79
    %p81 = scmp.ne.s32.totalorder %s69, %s70
    %p82 = scmp.eq.s32.totalorder %s18, 1
    %p83 = por %p81, %p82
    %p85 = scmp.ne.s32.totalorder %s70, %s84
    %p86 = scmp.eq.s32.totalorder %s18, 0
    %p87 = por %p85, %p86
    %s89 = sadd.s32 %s88, 1
    %p92 = scmp.eq.s32.totalorder %s12, 1
    %p93 = scmp.ne.s32.totalorder %s88, %s90
    %p94 = scmp.eq.s32.totalorder %s12, 0
    %p95 = por %p93, %p94
    %p96 = scmp.ne.s32.totalorder %s88, %s90
    %p97 = scmp.eq.s32.totalorder %s17, 1
    %p98 = por %p96, %p97
    %p99 = scmp.ne.s32.totalorder %s90, %s91
    %p100 = scmp.eq.s32.totalorder %s17, 0
    %p101 = por %p99, %p100
    %p102 = scmp.ne.s32.totalorder %s90, %s91
    %p103 = scmp.eq.s32.totalorder %s18, 1
    %p104 = por %p102, %p103
    %p106 = scmp.ne.s32.totalorder %s91, %s105
    %p107 = scmp.eq.s32.totalorder %s18, 0
    %p108 = por %p106, %p107
    %s110 = sadd.s32 %s109, 1
    %p113 = scmp.eq.s32.totalorder %s12, 1
    %p114 = scmp.ne.s32.totalorder %s109, %s111
    %p115 = scmp.eq.s32.totalorder %s12, 0
    %p116 = por %p114, %p115
    %p117 = scmp.ne.s32.totalorder %s109, %s111
    %p118 = scmp.eq.s32.totalorder %s17, 1
    %p119 = por %p117, %p118
    %p120 = scmp.ne.s32.totalorder %s111, %s112
    %p121 = scmp.eq.s32.totalorder %s17, 0
    %p122 = por %p120, %p121
    %p123 = scmp.ne.s32.totalorder %s111, %s112
    %p124 = scmp.eq.s32.totalorder %s18, 1
    %p125 = por %p123, %p124
    %p127 = scmp.ne.s32.totalorder %s112, %s126
    %p128 = scmp.eq.s32.totalorder %s18, 0
    %p129 = por %p127, %p128
    %s131 = sadd.s32 %s130, 1
    %p134 = scmp.eq.s32.totalorder %s12, 1
    %p135 = scmp.ne.s32.totalorder %s130, %s132
    %p136 = scmp.eq.s32.totalorder %s12, 0
    %p137 = por %p135, %p136
    %p138 = scmp.ne.s32.totalorder %s130, %s132
    %p139 = scmp.eq.s32.totalorder %s17, 1
    %p140 = por %p138, %p139
    %p141 = scmp.ne.s32.totalorder %s132, %s133
    %p142 = scmp.eq.s32.totalorder %s17, 0
    %p143 = por %p141, %p142
    %p144 = scmp.ne.s32.totalorder %s132, %s133
    %p145 = scmp.eq.s32.totalorder %s18, 1
    %p146 = por %p144, %p145
    %p148 = scmp.ne.s32.totalorder %s133, %s147
    %p149 = scmp.eq.s32.totalorder %s18, 0
    %p150 = por %p148, %p149
    %s151 = ssub.s32 %s12, %s19
    %p152 = scmp.eq.s32.totalorder %s151, 0
    %s154 = sadd.s32 %s153, 1
    %s155 = scalar_select %p152, %s153, %s154
    %p158 = pneg %p152
    %p159 = scmp.eq.s32.totalorder %s12, 1
    %p160 = por %p158, %p159
    %p161 = scmp.ne.s32.totalorder %s153, %s156
    %p162 = scmp.eq.s32.totalorder %s12, 0
    %p163 = por %p161, %p162
    %p164 = scmp.ne.s32.totalorder %s153, %s156
    %p165 = scmp.eq.s32.totalorder %s17, 1
    %p166 = por %p164, %p165
    %p167 = scmp.ne.s32.totalorder %s156, %s157
    %p168 = scmp.eq.s32.totalorder %s17, 0
    %p169 = por %p167, %p168
    %p170 = scmp.ne.s32.totalorder %s156, %s157
    %p171 = scmp.eq.s32.totalorder %s18, 1
    %p172 = por %p170, %p171
    %p174 = scmp.ne.s32.totalorder %s157, %s173
    %p175 = scmp.eq.s32.totalorder %s18, 0
    %p176 = por %p174, %p175
    %p177 = scmp.le.s32.totalorder 1, %s12
    %p178 = scmp.lt.s32.totalorder %s12, 3
    %p179 = pnand %p177, %p178
    %p180 = pneg %p179
    // Predicated region
    $region9: #{_lambda_.12} parent=5 // pred_check
      _
    $region10: #{_lambda_.12} parent=5 // pred_check_branch
      %182 = sbr.rel (%p179) target = $region12
    $region11: #{_lambda_.12} parent=5 // pred_region
      %s183 = ssub.s32 %s12, 1
      // Predicated region
      $region13: #{_lambda_.12} parent=11 // pred_check
        %p184 = pneg %p59
      $region14: #{_lambda_.12} parent=11 // pred_check_branch
        %186 = sbr.rel (%p184) target = $region16
      $region15: #{_lambda_.12} parent=11 // pred_region
        _
      $region16: #{_lambda_.12} parent=11 // pred_fallthru
        _
      // Predicated region
      $region17: #{_lambda_.12} parent=11 // pred_check
        %p187 = pneg %p80
      $region18: #{_lambda_.12} parent=11 // pred_check_branch
        %189 = sbr.rel (%p187) target = $region20
      $region19: #{_lambda_.12} parent=11 // pred_region
        _
      $region20: #{_lambda_.12} parent=11 // pred_fallthru
        _
      // Predicated region
      $region21: #{_lambda_.12} parent=11 // pred_check
        %p190 = pneg %p101
      $region22: #{_lambda_.12} parent=11 // pred_check_branch
        %192 = sbr.rel (%p190) target = $region24
      $region23: #{_lambda_.12} parent=11 // pred_region
        _
      $region24: #{_lambda_.12} parent=11 // pred_fallthru
        _
      // Predicated region
      $region25: #{_lambda_.12} parent=11 // pred_check
        %p193 = pneg %p122
      $region26: #{_lambda_.12} parent=11 // pred_check_branch
        %195 = sbr.rel (%p193) target = $region28
      $region27: #{_lambda_.12} parent=11 // pred_region
        _
      $region28: #{_lambda_.12} parent=11 // pred_fallthru
        _
      // Predicated region
      $region29: #{_lambda_.12} parent=11 // pred_check
        %p196 = pneg %p143
      $region30: #{_lambda_.12} parent=11 // pred_check_branch
        %198 = sbr.rel (%p196) target = $region32
      $region31: #{_lambda_.12} parent=11 // pred_region
        _
      $region32: #{_lambda_.12} parent=11 // pred_fallthru
        _
    $region12: #{_lambda_.12} parent=5 // pred_fallthru
      _
    %p199 = scmp.lt.s32.totalorder %s12, 2
    // Predicated region
    $region33: #{_lambda_.12} parent=5 // pred_check
      %p200 = pneg %p199
    $region34: #{_lambda_.12} parent=5 // pred_check_branch
      %202 = sbr.rel (%p200) target = $region36
    $region35: #{_lambda_.12} parent=5 // pred_region
      // Predicated region
      $region37: #{_lambda_.12} parent=35 // pred_check
        %p203 = pneg %p32
      $region38: #{_lambda_.12} parent=35 // pred_check_branch
        %205 = sbr.rel (%p203) target = $region40
      $region39: #{_lambda_.12} parent=35 // pred_region
        %p206 = scmp.lt.s32.totalorder %s12, 1
        %s207 = scalar_select %p206, %s12, 1
        %s208 = smul.addr %s207, 20
        %s209 = smul.addr %s208, 8
        %s210 = scalar_lea.vmem %s0, %s209
      $region40: #{_lambda_.12} parent=35 // pred_fallthru
        _
    $region36: #{_lambda_.12} parent=5 // pred_fallthru
      _
    %p211 = scmp.le.s32.totalorder 1, %s12
    %p212 = scmp.lt.s32.totalorder %s12, 3
    %p213 = pnand %p211, %p212
    %p214 = pneg %p213
    // Predicated region
    $region41: #{_lambda_.12} parent=5 // pred_check
      _
    $region42: #{_lambda_.12} parent=5 // pred_check_branch
      %216 = sbr.rel (%p213) target = $region44
    $region43: #{_lambda_.12} parent=5 // pred_region
      %s217 = ssub.s32 %s12, 1
      %p218 = scmp.lt.s32.totalorder %s17, 1
      %s219 = scalar_select %p218, %s17, 1
      %s220 = smul.addr %s219, 20
      %s221 = smul.addr %s220, 8
      %s222 = scalar_lea.vmem %s0, %s221
      %p223 = pneg %p38
      %p224 = pneg %p35
      %p225 = pneg %p59
      %p226 = pneg %p56
      %p227 = pneg %p80
      %p228 = pneg %p77
      %p229 = pneg %p101
      %p230 = pneg %p98
      %p231 = pneg %p122
      %p232 = pneg %p119
      %p233 = pneg %p143
      %p234 = pneg %p140
      %p235 = pneg %p169
      %p236 = pneg %p166
      %p237 = scmp.lt.s32.totalorder %s17, 1
      %s238 = scalar_select %p237, %s17, 1
      %s239 = smul.addr %s238, 8
      %s240 = smul.addr %s239, 4
      %s241 = scalar_lea.vmem %s6, %s240
      %p242 = scmp.lt.s32.totalorder %s17, 1
      %s243 = scalar_select %p242, %s17, 1
      %s244 = smul.addr %s243, 20
      %s245 = smul.addr %s244, 8
      %s246 = scalar_lea.vmem %s0, %s245
      %p247 = scmp.lt.s32.totalorder %s17, 1
      %s248 = scalar_select %p247, %s17, 1
      %s249 = smul.addr %s248, 8
      %s250 = smul.addr %s249, 4
      %s251 = scalar_lea.vmem %s6, %s250
      %v253 = vld [vmem:[%s246] sm:$0xff]
      %v254 = vld [vmem:[%s246 + $0x10] sm:$0xff]
      %v255 = vld [vmem:[%s246 + $0x20] sm:$0xff]
      %v256 = vld [vmem:[%s246 + $0x30] sm:$0xff]
      %v257 = vld [vmem:[%s246 + $0x40] sm:$0xff]
      %v258 = vld [vmem:[%s246 + $0x50] sm:$0xff]
      %v259 = vld [vmem:[%s246 + $0x60] sm:$0xff]
      %v260 = vld [vmem:[%s246 + $0x70] sm:$0xff]
      %v261 = vpack.c.bf16 %v254, %v253
      %v262 = vpack.c.bf16 %v256, %v255
      %v263 = vpack.c.bf16 %v258, %v257
      %v264 = vpack.c.bf16 %v260, %v259
      %v265 = vld [vmem:[%s1] sm:$0xf]
      %v266 = vld [vmem:[%s1 + $0x4] sm:$0xf]
      %v267 = vld [vmem:[%s1 + $0x8] sm:$0xf]
      %v268 = vld [vmem:[%s1 + $0xc] sm:$0xf]
      %v269 = vld [vmem:[%s1 + $0x10] sm:$0xf]
      %v270 = vld [vmem:[%s1 + $0x14] sm:$0xf]
      %v271 = vld [vmem:[%s1 + $0x18] sm:$0xf]
      %v272 = vld [vmem:[%s1 + $0x1c] sm:$0xf]
      %v273 = vld [vmem:[%s246 + $0x1] sm:$0xff]
      %v274 = vld [vmem:[%s246 + $0x11] sm:$0xff]
      %v275 = vld [vmem:[%s246 + $0x21] sm:$0xff]
      %v276 = vld [vmem:[%s246 + $0x31] sm:$0xff]
      %v277 = vld [vmem:[%s246 + $0x41] sm:$0xff]
      %v278 = vld [vmem:[%s246 + $0x51] sm:$0xff]
      %v279 = vld [vmem:[%s246 + $0x61] sm:$0xff]
      %v280 = vld [vmem:[%s246 + $0x71] sm:$0xff]
      %v281 = vpack.c.bf16 %v274, %v273
      %v282 = vpack.c.bf16 %v276, %v275
      %v283 = vpack.c.bf16 %v278, %v277
      %v284 = vpack.c.bf16 %v280, %v279
      %s285 = scalar_lea.vmem %s1, 32
      %v286 = vld [vmem:[%s285] sm:$0xf]
      %v287 = vld [vmem:[%s285 + $0x4] sm:$0xf]
      %v288 = vld [vmem:[%s285 + $0x8] sm:$0xf]
      %v289 = vld [vmem:[%s285 + $0xc] sm:$0xf]
      %v290 = vld [vmem:[%s285 + $0x10] sm:$0xf]
      %v291 = vld [vmem:[%s285 + $0x14] sm:$0xf]
      %v292 = vld [vmem:[%s285 + $0x18] sm:$0xf]
      %v293 = vld [vmem:[%s285 + $0x1c] sm:$0xf]
      %v302 = vunpack.c.l.b16 %v286
      %v303 = vunpack.c.l.b16 %v287
      %v304 = vunpack.c.l.b16 %v288
      %v305 = vunpack.c.l.b16 %v289
      %v306 = vunpack.c.l.b16 %v290
      %v307 = vunpack.c.l.b16 %v291
      %v308 = vunpack.c.l.b16 %v292
      %v309 = vunpack.c.l.b16 %v293
      %v310 = vpack.c.b16 %v303, %v302
      %v311 = vpack.c.b16 %v305, %v304
      %v312 = vpack.c.b16 %v307, %v306
      %v313 = vpack.c.b16 %v309, %v308
      %vm318 = vcmask 523264
      %v320 = vsel %vm318, %v281, 0
      %v323 = vsel %vm318, %v282, 0
      %v326 = vsel %vm318, %v283, 0
      %v329 = vsel %vm318, %v284, 0
      %331 = vmatpush.bf16.msra.mxu0 0
      %332 = vmatpush.bf16.msra.mxu0 0
      %333 = vmatpush.bf16.msra.mxu0 0
      %334 = vmatpush.bf16.msra.mxu0 0
      %335 = vmatpush.bf16.msra.mxu0 %v313
      %336 = vmatpush.bf16.msra.mxu0 %v312
      %337 = vmatpush.bf16.msra.mxu0 %v311
      %338 = vmatpush.bf16.msra.mxu0 %v310
      %339 = vmatmul.bf16.gmra.mxu0 %v320
      %v340 = vpop.f32.mrf.mxu0
      %v341 = vadd.f32 0.0, %v340
      %v342 = vpop.f32.mrf.mxu0
      %v343 = vadd.f32 0.0, %v342
      %344 = vmatmul.bf16.gmra.mxu0 %v323
      %v345 = vpop.f32.mrf.mxu0
      %v346 = vadd.f32 0.0, %v345
      %v347 = vpop.f32.mrf.mxu0
      %v348 = vadd.f32 0.0, %v347
      %349 = vmatmul.bf16.gmra.mxu0 %v326
      %v350 = vpop.f32.mrf.mxu0
      %v351 = vadd.f32 0.0, %v350
      %v352 = vpop.f32.mrf.mxu0
      %v353 = vadd.f32 0.0, %v352
      %354 = vmatmul.bf16.gmra.mxu0 %v329
      %v355 = vpop.f32.mrf.mxu0
      %v356 = vadd.f32 0.0, %v355
      %v357 = vpop.f32.mrf.mxu0
      %v358 = vadd.f32 0.0, %v357
      %359 = vdwg.mxu0
      %v368 = vunpack.c.l.b16 %v265
      %v369 = vunpack.c.l.b16 %v266
      %v370 = vunpack.c.l.b16 %v267
      %v371 = vunpack.c.l.b16 %v268
      %v372 = vunpack.c.l.b16 %v269
      %v373 = vunpack.c.l.b16 %v270
      %v374 = vunpack.c.l.b16 %v271
      %v375 = vunpack.c.l.b16 %v272
      %v376 = vpack.c.b16 %v369, %v368
      %v377 = vpack.c.b16 %v371, %v370
      %v378 = vpack.c.b16 %v373, %v372
      %v379 = vpack.c.b16 %v375, %v374
      %v385 = vsel %vm318, %v261, 0
      %v388 = vsel %vm318, %v262, 0
      %v391 = vsel %vm318, %v263, 0
      %v394 = vsel %vm318, %v264, 0
      %396 = vmatpush.bf16.msra.mxu0 0
      %397 = vmatpush.bf16.msra.mxu0 0
      %398 = vmatpush.bf16.msra.mxu0 0
      %399 = vmatpush.bf16.msra.mxu0 0
      %400 = vmatpush.bf16.msra.mxu0 %v379
      %401 = vmatpush.bf16.msra.mxu0 %v378
      %402 = vmatpush.bf16.msra.mxu0 %v377
      %403 = vmatpush.bf16.msra.mxu0 %v376
      %404 = vmatmul.bf16.gmra.mxu0 %v385
      %v405 = vpop.f32.mrf.mxu0
      %v406 = vadd.f32 %v341, %v405
      %v407 = vpop.f32.mrf.mxu0
      %v408 = vadd.f32 %v343, %v407
      %409 = vmatmul.bf16.gmra.mxu0 %v388
      %v410 = vpop.f32.mrf.mxu0
      %v411 = vadd.f32 %v346, %v410
      %v412 = vpop.f32.mrf.mxu0
      %v413 = vadd.f32 %v348, %v412
      %414 = vmatmul.bf16.gmra.mxu0 %v391
      %v415 = vpop.f32.mrf.mxu0
      %v416 = vadd.f32 %v351, %v415
      %v417 = vpop.f32.mrf.mxu0
      %v418 = vadd.f32 %v353, %v417
      %419 = vmatmul.bf16.gmra.mxu0 %v394
      %v420 = vpop.f32.mrf.mxu0
      %v421 = vadd.f32 %v356, %v420
      %v422 = vpop.f32.mrf.mxu0
      %v423 = vadd.f32 %v358, %v422
      %424 = vdwg.mxu0
      %v425 = vld [vmem:[%s246 + $0x2] sm:$0xff]
      %v426 = vld [vmem:[%s246 + $0x12] sm:$0xff]
      %v427 = vld [vmem:[%s246 + $0x22] sm:$0xff]
      %v428 = vld [vmem:[%s246 + $0x32] sm:$0xff]
      %v429 = vld [vmem:[%s246 + $0x42] sm:$0xff]
      %v430 = vld [vmem:[%s246 + $0x52] sm:$0xff]
      %v431 = vld [vmem:[%s246 + $0x62] sm:$0xff]
      %v432 = vld [vmem:[%s246 + $0x72] sm:$0xff]
      %v433 = vpack.c.bf16 %v426, %v425
      %v434 = vpack.c.bf16 %v428, %v427
      %v435 = vpack.c.bf16 %v430, %v429
      %v436 = vpack.c.bf16 %v432, %v431
      %s437 = scalar_lea.vmem %s1, 64
      %v438 = vld [vmem:[%s437] sm:$0xf]
      %v439 = vld [vmem:[%s437 + $0x4] sm:$0xf]
      %v440 = vld [vmem:[%s437 + $0x8] sm:$0xf]
      %v441 = vld [vmem:[%s437 + $0xc] sm:$0xf]
      %v442 = vld [vmem:[%s437 + $0x10] sm:$0xf]
      %v443 = vld [vmem:[%s437 + $0x14] sm:$0xf]
      %v444 = vld [vmem:[%s437 + $0x18] sm:$0xf]
      %v445 = vld [vmem:[%s437 + $0x1c] sm:$0xf]
      %v454 = vunpack.c.l.b16 %v438
      %v455 = vunpack.c.l.b16 %v439
      %v456 = vunpack.c.l.b16 %v440
      %v457 = vunpack.c.l.b16 %v441
      %v458 = vunpack.c.l.b16 %v442
      %v459 = vunpack.c.l.b16 %v443
      %v460 = vunpack.c.l.b16 %v444
      %v461 = vunpack.c.l.b16 %v445
      %v462 = vpack.c.b16 %v455, %v454
      %v463 = vpack.c.b16 %v457, %v456
      %v464 = vpack.c.b16 %v459, %v458
      %v465 = vpack.c.b16 %v461, %v460
      %v471 = vsel %vm318, %v433, 0
      %v474 = vsel %vm318, %v434, 0
      %v477 = vsel %vm318, %v435, 0
      %v480 = vsel %vm318, %v436, 0
      %482 = vmatpush.bf16.msra.mxu0 0
      %483 = vmatpush.bf16.msra.mxu0 0
      %484 = vmatpush.bf16.msra.mxu0 0
      %485 = vmatpush.bf16.msra.mxu0 0
      %486 = vmatpush.bf16.msra.mxu0 %v465
      %487 = vmatpush.bf16.msra.mxu0 %v464
      %488 = vmatpush.bf16.msra.mxu0 %v463
      %489 = vmatpush.bf16.msra.mxu0 %v462
      %490 = vmatmul.bf16.gmra.mxu0 %v471
      %v491 = vpop.f32.mrf.mxu0
      %v492 = vadd.f32 0.0, %v491
      %v493 = vpop.f32.mrf.mxu0
      %v494 = vadd.f32 0.0, %v493
      %495 = vmatmul.bf16.gmra.mxu0 %v474
      %v496 = vpop.f32.mrf.mxu0
      %v497 = vadd.f32 0.0, %v496
      %v498 = vpop.f32.mrf.mxu0
      %v499 = vadd.f32 0.0, %v498
      %500 = vmatmul.bf16.gmra.mxu0 %v477
      %v501 = vpop.f32.mrf.mxu0
      %v502 = vadd.f32 0.0, %v501
      %v503 = vpop.f32.mrf.mxu0
      %v504 = vadd.f32 0.0, %v503
      %505 = vmatmul.bf16.gmra.mxu0 %v480
      %v506 = vpop.f32.mrf.mxu0
      %v507 = vadd.f32 0.0, %v506
      %v508 = vpop.f32.mrf.mxu0
      %v509 = vadd.f32 0.0, %v508
      %510 = vdwg.mxu0
      %v511 = vadd.f32 %v406, %v492
      %v512 = vadd.f32 %v408, %v494
      %v513 = vadd.f32 %v411, %v497
      %v514 = vadd.f32 %v413, %v499
      %v515 = vadd.f32 %v416, %v502
      %v516 = vadd.f32 %v418, %v504
      %v517 = vadd.f32 %v421, %v507
      %v518 = vadd.f32 %v423, %v509
      %s519 = scalar_lea.vmem %s246, 16
      %v520 = vld [vmem:[%s519] sm:$0xff]
      %v521 = vld [vmem:[%s519 + $0x10] sm:$0xff]
      %v522 = vld [vmem:[%s519 + $0x20] sm:$0xff]
      %v523 = vld [vmem:[%s519 + $0x30] sm:$0xff]
      %v524 = vld [vmem:[%s519 + $0x40] sm:$0xff]
      %v525 = vld [vmem:[%s519 + $0x50] sm:$0xff]
      %v526 = vld [vmem:[%s519 + $0x60] sm:$0xff]
      %v527 = vld [vmem:[%s519 + $0x70] sm:$0xff]
      %v528 = vpack.c.bf16 %v521, %v520
      %v529 = vpack.c.bf16 %v523, %v522
      %v530 = vpack.c.bf16 %v525, %v524
      %v531 = vpack.c.bf16 %v527, %v526
      %s532 = scalar_lea.vmem %s1, 96
      %v533 = vld [vmem:[%s532] sm:$0xf]
      %v534 = vld [vmem:[%s532 + $0x4] sm:$0xf]
      %v535 = vld [vmem:[%s532 + $0x8] sm:$0xf]
      %v536 = vld [vmem:[%s532 + $0xc] sm:$0xf]
      %v537 = vld [vmem:[%s532 + $0x10] sm:$0xf]
      %v538 = vld [vmem:[%s532 + $0x14] sm:$0xf]
      %v539 = vld [vmem:[%s532 + $0x18] sm:$0xf]
      %v540 = vld [vmem:[%s532 + $0x1c] sm:$0xf]
      %v549 = vunpack.c.l.b16 %v533
      %v550 = vunpack.c.l.b16 %v534
      %v551 = vunpack.c.l.b16 %v535
      %v552 = vunpack.c.l.b16 %v536
      %v553 = vunpack.c.l.b16 %v537
      %v554 = vunpack.c.l.b16 %v538
      %v555 = vunpack.c.l.b16 %v539
      %v556 = vunpack.c.l.b16 %v540
      %v557 = vpack.c.b16 %v550, %v549
      %v558 = vpack.c.b16 %v552, %v551
      %v559 = vpack.c.b16 %v554, %v553
      %v560 = vpack.c.b16 %v556, %v555
      %v566 = vsel %vm318, %v528, 0
      %v569 = vsel %vm318, %v529, 0
      %v572 = vsel %vm318, %v530, 0
      %v575 = vsel %vm318, %v531, 0
      %577 = vmatpush.bf16.msra.mxu0 0
      %578 = vmatpush.bf16.msra.mxu0 0
      %579 = vmatpush.bf16.msra.mxu0 0
      %580 = vmatpush.bf16.msra.mxu0 0
      %581 = vmatpush.bf16.msra.mxu0 %v560
      %582 = vmatpush.bf16.msra.mxu0 %v559
      %583 = vmatpush.bf16.msra.mxu0 %v558
      %584 = vmatpush.bf16.msra.mxu0 %v557
      %585 = vmatmul.bf16.gmra.mxu0 %v566
      %v586 = vpop.f32.mrf.mxu0
      %v587 = vadd.f32 0.0, %v586
      %v588 = vpop.f32.mrf.mxu0
      %v589 = vadd.f32 0.0, %v588
      %590 = vmatmul.bf16.gmra.mxu0 %v569
      %v591 = vpop.f32.mrf.mxu0
      %v592 = vadd.f32 0.0, %v591
      %v593 = vpop.f32.mrf.mxu0
      %v594 = vadd.f32 0.0, %v593
      %595 = vmatmul.bf16.gmra.mxu0 %v572
      %v596 = vpop.f32.mrf.mxu0
      %v597 = vadd.f32 0.0, %v596
      %v598 = vpop.f32.mrf.mxu0
      %v599 = vadd.f32 0.0, %v598
      %600 = vmatmul.bf16.gmra.mxu0 %v575
      %v601 = vpop.f32.mrf.mxu0
      %v602 = vadd.f32 0.0, %v601
      %v603 = vpop.f32.mrf.mxu0
      %v604 = vadd.f32 0.0, %v603
      %605 = vdwg.mxu0
      %v606 = vadd.f32 %v511, %v587
      %v607 = vadd.f32 %v512, %v589
      %v608 = vadd.f32 %v513, %v592
      %v609 = vadd.f32 %v514, %v594
      %v610 = vadd.f32 %v515, %v597
      %v611 = vadd.f32 %v516, %v599
      %v612 = vadd.f32 %v517, %v602
      %v613 = vadd.f32 %v518, %v604
      %v614 = vld [vmem:[%s519 + $0x1] sm:$0xff]
      %v615 = vld [vmem:[%s519 + $0x11] sm:$0xff]
      %v616 = vld [vmem:[%s519 + $0x21] sm:$0xff]
      %v617 = vld [vmem:[%s519 + $0x31] sm:$0xff]
      %v618 = vld [vmem:[%s519 + $0x41] sm:$0xff]
      %v619 = vld [vmem:[%s519 + $0x51] sm:$0xff]
      %v620 = vld [vmem:[%s519 + $0x61] sm:$0xff]
      %v621 = vld [vmem:[%s519 + $0x71] sm:$0xff]
      %v622 = vpack.c.bf16 %v615, %v614
      %v623 = vpack.c.bf16 %v617, %v616
      %v624 = vpack.c.bf16 %v619, %v618
      %v625 = vpack.c.bf16 %v621, %v620
      %s626 = scalar_lea.vmem %s1, 128
      %v627 = vld [vmem:[%s626] sm:$0xf]
      %v628 = vld [vmem:[%s626 + $0x4] sm:$0xf]
      %v629 = vld [vmem:[%s626 + $0x8] sm:$0xf]
      %v630 = vld [vmem:[%s626 + $0xc] sm:$0xf]
      %v631 = vld [vmem:[%s626 + $0x10] sm:$0xf]
      %v632 = vld [vmem:[%s626 + $0x14] sm:$0xf]
      %v633 = vld [vmem:[%s626 + $0x18] sm:$0xf]
      %v634 = vld [vmem:[%s626 + $0x1c] sm:$0xf]
      %v643 = vunpack.c.l.b16 %v627
      %v644 = vunpack.c.l.b16 %v628
      %v645 = vunpack.c.l.b16 %v629
      %v646 = vunpack.c.l.b16 %v630
      %v647 = vunpack.c.l.b16 %v631
      %v648 = vunpack.c.l.b16 %v632
      %v649 = vunpack.c.l.b16 %v633
      %v650 = vunpack.c.l.b16 %v634
      %v651 = vpack.c.b16 %v644, %v643
      %v652 = vpack.c.b16 %v646, %v645
      %v653 = vpack.c.b16 %v648, %v647
      %v654 = vpack.c.b16 %v650, %v649
      %v660 = vsel %vm318, %v622, 0
      %v663 = vsel %vm318, %v623, 0
      %v666 = vsel %vm318, %v624, 0
      %v669 = vsel %vm318, %v625, 0
      %671 = vmatpush.bf16.msra.mxu0 0
      %672 = vmatpush.bf16.msra.mxu0 0
      %673 = vmatpush.bf16.msra.mxu0 0
      %674 = vmatpush.bf16.msra.mxu0 0
      %675 = vmatpush.bf16.msra.mxu0 %v654
      %676 = vmatpush.bf16.msra.mxu0 %v653
      %677 = vmatpush.bf16.msra.mxu0 %v652
      %678 = vmatpush.bf16.msra.mxu0 %v651
      %679 = vmatmul.bf16.gmra.mxu0 %v660
      %v680 = vpop.f32.mrf.mxu0
      %v681 = vadd.f32 0.0, %v680
      %v682 = vpop.f32.mrf.mxu0
      %v683 = vadd.f32 0.0, %v682
      %684 = vmatmul.bf16.gmra.mxu0 %v663
      %v685 = vpop.f32.mrf.mxu0
      %v686 = vadd.f32 0.0, %v685
      %v687 = vpop.f32.mrf.mxu0
      %v688 = vadd.f32 0.0, %v687
      %689 = vmatmul.bf16.gmra.mxu0 %v666
      %v690 = vpop.f32.mrf.mxu0
      %v691 = vadd.f32 0.0, %v690
      %v692 = vpop.f32.mrf.mxu0
      %v693 = vadd.f32 0.0, %v692
      %694 = vmatmul.bf16.gmra.mxu0 %v669
      %v695 = vpop.f32.mrf.mxu0
      %v696 = vadd.f32 0.0, %v695
      %v697 = vpop.f32.mrf.mxu0
      %v698 = vadd.f32 0.0, %v697
      %699 = vdwg.mxu0
      %v700 = vadd.f32 %v606, %v681
      %v701 = vadd.f32 %v607, %v683
      %v702 = vadd.f32 %v608, %v686
      %v703 = vadd.f32 %v609, %v688
      %v704 = vadd.f32 %v610, %v691
      %v705 = vadd.f32 %v611, %v693
      %v706 = vadd.f32 %v612, %v696
      %v707 = vadd.f32 %v613, %v698
      %v708 = vld [vmem:[%s519 + $0x2] sm:$0xff]
      %v709 = vld [vmem:[%s519 + $0x12] sm:$0xff]
      %v710 = vld [vmem:[%s519 + $0x22] sm:$0xff]
      %v711 = vld [vmem:[%s519 + $0x32] sm:$0xff]
      %v712 = vld [vmem:[%s519 + $0x42] sm:$0xff]
      %v713 = vld [vmem:[%s519 + $0x52] sm:$0xff]
      %v714 = vld [vmem:[%s519 + $0x62] sm:$0xff]
      %v715 = vld [vmem:[%s519 + $0x72] sm:$0xff]
      %v716 = vpack.c.bf16 %v709, %v708
      %v717 = vpack.c.bf16 %v711, %v710
      %v718 = vpack.c.bf16 %v713, %v712
      %v719 = vpack.c.bf16 %v715, %v714
      %s720 = scalar_lea.vmem %s1, 160
      %v721 = vld [vmem:[%s720] sm:$0xf]
      %v722 = vld [vmem:[%s720 + $0x4] sm:$0xf]
      %v723 = vld [vmem:[%s720 + $0x8] sm:$0xf]
      %v724 = vld [vmem:[%s720 + $0xc] sm:$0xf]
      %v725 = vld [vmem:[%s720 + $0x10] sm:$0xf]
      %v726 = vld [vmem:[%s720 + $0x14] sm:$0xf]
      %v727 = vld [vmem:[%s720 + $0x18] sm:$0xf]
      %v728 = vld [vmem:[%s720 + $0x1c] sm:$0xf]
      %v737 = vunpack.c.l.b16 %v721
      %v738 = vunpack.c.l.b16 %v722
      %v739 = vunpack.c.l.b16 %v723
      %v740 = vunpack.c.l.b16 %v724
      %v741 = vunpack.c.l.b16 %v725
      %v742 = vunpack.c.l.b16 %v726
      %v743 = vunpack.c.l.b16 %v727
      %v744 = vunpack.c.l.b16 %v728
      %v745 = vpack.c.b16 %v738, %v737
      %v746 = vpack.c.b16 %v740, %v739
      %v747 = vpack.c.b16 %v742, %v741
      %v748 = vpack.c.b16 %v744, %v743
      %v754 = vsel %vm318, %v716, 0
      %v757 = vsel %vm318, %v717, 0
      %v760 = vsel %vm318, %v718, 0
      %v763 = vsel %vm318, %v719, 0
      %765 = vmatpush.bf16.msra.mxu0 0
      %766 = vmatpush.bf16.msra.mxu0 0
      %767 = vmatpush.bf16.msra.mxu0 0
      %768 = vmatpush.bf16.msra.mxu0 0
      %769 = vmatpush.bf16.msra.mxu0 %v748
      %770 = vmatpush.bf16.msra.mxu0 %v747
      %771 = vmatpush.bf16.msra.mxu0 %v746
      %772 = vmatpush.bf16.msra.mxu0 %v745
      %773 = vmatmul.bf16.gmra.mxu0 %v754
      %v774 = vpop.f32.mrf.mxu0
      %v775 = vadd.f32 0.0, %v774
      %v776 = vpop.f32.mrf.mxu0
      %v777 = vadd.f32 0.0, %v776
      %778 = vmatmul.bf16.gmra.mxu0 %v757
      %v779 = vpop.f32.mrf.mxu0
      %v780 = vadd.f32 0.0, %v779
      %v781 = vpop.f32.mrf.mxu0
      %v782 = vadd.f32 0.0, %v781
      %783 = vmatmul.bf16.gmra.mxu0 %v760
      %v784 = vpop.f32.mrf.mxu0
      %v785 = vadd.f32 0.0, %v784
      %v786 = vpop.f32.mrf.mxu0
      %v787 = vadd.f32 0.0, %v786
      %788 = vmatmul.bf16.gmra.mxu0 %v763
      %v789 = vpop.f32.mrf.mxu0
      %v790 = vadd.f32 0.0, %v789
      %v791 = vpop.f32.mrf.mxu0
      %v792 = vadd.f32 0.0, %v791
      %793 = vdwg.mxu0
      %v794 = vadd.f32 %v700, %v775
      %v795 = vadd.f32 %v701, %v777
      %v796 = vadd.f32 %v702, %v780
      %v797 = vadd.f32 %v703, %v782
      %v798 = vadd.f32 %v704, %v785
      %v799 = vadd.f32 %v705, %v787
      %v800 = vadd.f32 %v706, %v790
      %v801 = vadd.f32 %v707, %v792
      %s802 = scalar_lea.vmem %s246, 32
      %v803 = vld [vmem:[%s802] sm:$0xff]
      %v804 = vld [vmem:[%s802 + $0x10] sm:$0xff]
      %v805 = vld [vmem:[%s802 + $0x20] sm:$0xff]
      %v806 = vld [vmem:[%s802 + $0x30] sm:$0xff]
      %v807 = vld [vmem:[%s802 + $0x40] sm:$0xff]
      %v808 = vld [vmem:[%s802 + $0x50] sm:$0xff]
      %v809 = vld [vmem:[%s802 + $0x60] sm:$0xff]
      %v810 = vld [vmem:[%s802 + $0x70] sm:$0xff]
      %v811 = vpack.c.bf16 %v804, %v803
      %v812 = vpack.c.bf16 %v806, %v805
      %v813 = vpack.c.bf16 %v808, %v807
      %v814 = vpack.c.bf16 %v810, %v809
      %s815 = scalar_lea.vmem %s1, 192
      %v816 = vld [vmem:[%s815] sm:$0xf]
      %v817 = vld [vmem:[%s815 + $0x4] sm:$0xf]
      %v818 = vld [vmem:[%s815 + $0x8] sm:$0xf]
      %v819 = vld [vmem:[%s815 + $0xc] sm:$0xf]
      %v820 = vld [vmem:[%s815 + $0x10] sm:$0xf]
      %v821 = vld [vmem:[%s815 + $0x14] sm:$0xf]
      %v822 = vld [vmem:[%s815 + $0x18] sm:$0xf]
      %v823 = vld [vmem:[%s815 + $0x1c] sm:$0xf]
      %v832 = vunpack.c.l.b16 %v816
      %v833 = vunpack.c.l.b16 %v817
      %v834 = vunpack.c.l.b16 %v818
      %v835 = vunpack.c.l.b16 %v819
      %v836 = vunpack.c.l.b16 %v820
      %v837 = vunpack.c.l.b16 %v821
      %v838 = vunpack.c.l.b16 %v822
      %v839 = vunpack.c.l.b16 %v823
      %v840 = vpack.c.b16 %v833, %v832
      %v841 = vpack.c.b16 %v835, %v834
      %v842 = vpack.c.b16 %v837, %v836
      %v843 = vpack.c.b16 %v839, %v838
      %v849 = vsel %vm318, %v811, 0
      %v852 = vsel %vm318, %v812, 0
      %v855 = vsel %vm318, %v813, 0
      %v858 = vsel %vm318, %v814, 0
      %860 = vmatpush.bf16.msra.mxu0 0
      %861 = vmatpush.bf16.msra.mxu0 0
      %862 = vmatpush.bf16.msra.mxu0 0
      %863 = vmatpush.bf16.msra.mxu0 0
      %864 = vmatpush.bf16.msra.mxu0 %v843
      %865 = vmatpush.bf16.msra.mxu0 %v842
      %866 = vmatpush.bf16.msra.mxu0 %v841
      %867 = vmatpush.bf16.msra.mxu0 %v840
      %868 = vmatmul.bf16.gmra.mxu0 %v849
      %v869 = vpop.f32.mrf.mxu0
      %v870 = vadd.f32 0.0, %v869
      %v871 = vpop.f32.mrf.mxu0
      %v872 = vadd.f32 0.0, %v871
      %873 = vmatmul.bf16.gmra.mxu0 %v852
      %v874 = vpop.f32.mrf.mxu0
      %v875 = vadd.f32 0.0, %v874
      %v876 = vpop.f32.mrf.mxu0
      %v877 = vadd.f32 0.0, %v876
      %878 = vmatmul.bf16.gmra.mxu0 %v855
      %v879 = vpop.f32.mrf.mxu0
      %v880 = vadd.f32 0.0, %v879
      %v881 = vpop.f32.mrf.mxu0
      %v882 = vadd.f32 0.0, %v881
      %883 = vmatmul.bf16.gmra.mxu0 %v858
      %v884 = vpop.f32.mrf.mxu0
      %v885 = vadd.f32 0.0, %v884
      %v886 = vpop.f32.mrf.mxu0
      %v887 = vadd.f32 0.0, %v886
      %888 = vdwg.mxu0
      %v889 = vadd.f32 %v794, %v870
      %v890 = vadd.f32 %v795, %v872
      %v891 = vadd.f32 %v796, %v875
      %v892 = vadd.f32 %v797, %v877
      %v893 = vadd.f32 %v798, %v880
      %v894 = vadd.f32 %v799, %v882
      %v895 = vadd.f32 %v800, %v885
      %v896 = vadd.f32 %v801, %v887
      %v897 = vld [vmem:[%s802 + $0x1] sm:$0xff]
      %v898 = vld [vmem:[%s802 + $0x11] sm:$0xff]
      %v899 = vld [vmem:[%s802 + $0x21] sm:$0xff]
      %v900 = vld [vmem:[%s802 + $0x31] sm:$0xff]
      %v901 = vld [vmem:[%s802 + $0x41] sm:$0xff]
      %v902 = vld [vmem:[%s802 + $0x51] sm:$0xff]
      %v903 = vld [vmem:[%s802 + $0x61] sm:$0xff]
      %v904 = vld [vmem:[%s802 + $0x71] sm:$0xff]
      %v905 = vpack.c.bf16 %v898, %v897
      %v906 = vpack.c.bf16 %v900, %v899
      %v907 = vpack.c.bf16 %v902, %v901
      %v908 = vpack.c.bf16 %v904, %v903
      %s909 = scalar_lea.vmem %s1, 224
      %v910 = vld [vmem:[%s909] sm:$0xf]
      %v911 = vld [vmem:[%s909 + $0x4] sm:$0xf]
      %v912 = vld [vmem:[%s909 + $0x8] sm:$0xf]
      %v913 = vld [vmem:[%s909 + $0xc] sm:$0xf]
      %v914 = vld [vmem:[%s909 + $0x10] sm:$0xf]
      %v915 = vld [vmem:[%s909 + $0x14] sm:$0xf]
      %v916 = vld [vmem:[%s909 + $0x18] sm:$0xf]
      %v917 = vld [vmem:[%s909 + $0x1c] sm:$0xf]
      %v926 = vunpack.c.l.b16 %v910
      %v927 = vunpack.c.l.b16 %v911
      %v928 = vunpack.c.l.b16 %v912
      %v929 = vunpack.c.l.b16 %v913
      %v930 = vunpack.c.l.b16 %v914
      %v931 = vunpack.c.l.b16 %v915
      %v932 = vunpack.c.l.b16 %v916
      %v933 = vunpack.c.l.b16 %v917
      %v934 = vpack.c.b16 %v927, %v926
      %v935 = vpack.c.b16 %v929, %v928
      %v936 = vpack.c.b16 %v931, %v930
      %v937 = vpack.c.b16 %v933, %v932
      %v943 = vsel %vm318, %v905, 0
      %v946 = vsel %vm318, %v906, 0
      %v949 = vsel %vm318, %v907, 0
      %v952 = vsel %vm318, %v908, 0
      %954 = vmatpush.bf16.msra.mxu0 0
      %955 = vmatpush.bf16.msra.mxu0 0
      %956 = vmatpush.bf16.msra.mxu0 0
      %957 = vmatpush.bf16.msra.mxu0 0
      %958 = vmatpush.bf16.msra.mxu0 %v937
      %959 = vmatpush.bf16.msra.mxu0 %v936
      %960 = vmatpush.bf16.msra.mxu0 %v935
      %961 = vmatpush.bf16.msra.mxu0 %v934
      %962 = vmatmul.bf16.gmra.mxu0 %v943
      %v963 = vpop.f32.mrf.mxu0
      %v964 = vadd.f32 0.0, %v963
      %v965 = vpop.f32.mrf.mxu0
      %v966 = vadd.f32 0.0, %v965
      %967 = vmatmul.bf16.gmra.mxu0 %v946
      %v968 = vpop.f32.mrf.mxu0
      %v969 = vadd.f32 0.0, %v968
      %v970 = vpop.f32.mrf.mxu0
      %v971 = vadd.f32 0.0, %v970
      %972 = vmatmul.bf16.gmra.mxu0 %v949
      %v973 = vpop.f32.mrf.mxu0
      %v974 = vadd.f32 0.0, %v973
      %v975 = vpop.f32.mrf.mxu0
      %v976 = vadd.f32 0.0, %v975
      %977 = vmatmul.bf16.gmra.mxu0 %v952
      %v978 = vpop.f32.mrf.mxu0
      %v979 = vadd.f32 0.0, %v978
      %v980 = vpop.f32.mrf.mxu0
      %v981 = vadd.f32 0.0, %v980
      %982 = vdwg.mxu0
      %v983 = vadd.f32 %v889, %v964
      %v984 = vadd.f32 %v890, %v966
      %v985 = vadd.f32 %v891, %v969
      %v986 = vadd.f32 %v892, %v971
      %v987 = vadd.f32 %v893, %v974
      %v988 = vadd.f32 %v894, %v976
      %v989 = vadd.f32 %v895, %v979
      %v990 = vadd.f32 %v896, %v981
      %v991 = vld [vmem:[%s802 + $0x2] sm:$0xff]
      %v992 = vld [vmem:[%s802 + $0x12] sm:$0xff]
      %v993 = vld [vmem:[%s802 + $0x22] sm:$0xff]
      %v994 = vld [vmem:[%s802 + $0x32] sm:$0xff]
      %v995 = vld [vmem:[%s802 + $0x42] sm:$0xff]
      %v996 = vld [vmem:[%s802 + $0x52] sm:$0xff]
      %v997 = vld [vmem:[%s802 + $0x62] sm:$0xff]
      %v998 = vld [vmem:[%s802 + $0x72] sm:$0xff]
      %v999 = vpack.c.bf16 %v992, %v991
      %v1000 = vpack.c.bf16 %v994, %v993
      %v1001 = vpack.c.bf16 %v996, %v995
      %v1002 = vpack.c.bf16 %v998, %v997
      %s1003 = scalar_lea.vmem %s1, 256
      %v1004 = vld [vmem:[%s1003] sm:$0xf]
      %v1005 = vld [vmem:[%s1003 + $0x4] sm:$0xf]
      %v1006 = vld [vmem:[%s1003 + $0x8] sm:$0xf]
      %v1007 = vld [vmem:[%s1003 + $0xc] sm:$0xf]
      %v1008 = vld [vmem:[%s1003 + $0x10] sm:$0xf]
      %v1009 = vld [vmem:[%s1003 + $0x14] sm:$0xf]
      %v1010 = vld [vmem:[%s1003 + $0x18] sm:$0xf]
      %v1011 = vld [vmem:[%s1003 + $0x1c] sm:$0xf]
      %v1020 = vunpack.c.l.b16 %v1004
      %v1021 = vunpack.c.l.b16 %v1005
      %v1022 = vunpack.c.l.b16 %v1006
      %v1023 = vunpack.c.l.b16 %v1007
      %v1024 = vunpack.c.l.b16 %v1008
      %v1025 = vunpack.c.l.b16 %v1009
      %v1026 = vunpack.c.l.b16 %v1010
      %v1027 = vunpack.c.l.b16 %v1011
      %v1028 = vpack.c.b16 %v1021, %v1020
      %v1029 = vpack.c.b16 %v1023, %v1022
      %v1030 = vpack.c.b16 %v1025, %v1024
      %v1031 = vpack.c.b16 %v1027, %v1026
      %v1037 = vsel %vm318, %v999, 0
      %v1040 = vsel %vm318, %v1000, 0
      %v1043 = vsel %vm318, %v1001, 0
      %v1046 = vsel %vm318, %v1002, 0
      %1048 = vmatpush.bf16.msra.mxu0 0
      %1049 = vmatpush.bf16.msra.mxu0 0
      %1050 = vmatpush.bf16.msra.mxu0 0
      %1051 = vmatpush.bf16.msra.mxu0 0
      %1052 = vmatpush.bf16.msra.mxu0 %v1031
      %1053 = vmatpush.bf16.msra.mxu0 %v1030
      %1054 = vmatpush.bf16.msra.mxu0 %v1029
      %1055 = vmatpush.bf16.msra.mxu0 %v1028
      %1056 = vmatmul.bf16.gmra.mxu0 %v1037
      %v1057 = vpop.f32.mrf.mxu0
      %v1058 = vadd.f32 0.0, %v1057
      %v1059 = vpop.f32.mrf.mxu0
      %v1060 = vadd.f32 0.0, %v1059
      %1061 = vmatmul.bf16.gmra.mxu0 %v1040
      %v1062 = vpop.f32.mrf.mxu0
      %v1063 = vadd.f32 0.0, %v1062
      %v1064 = vpop.f32.mrf.mxu0
      %v1065 = vadd.f32 0.0, %v1064
      %1066 = vmatmul.bf16.gmra.mxu0 %v1043
      %v1067 = vpop.f32.mrf.mxu0
      %v1068 = vadd.f32 0.0, %v1067
      %v1069 = vpop.f32.mrf.mxu0
      %v1070 = vadd.f32 0.0, %v1069
      %1071 = vmatmul.bf16.gmra.mxu0 %v1046
      %v1072 = vpop.f32.mrf.mxu0
      %v1073 = vadd.f32 0.0, %v1072
      %v1074 = vpop.f32.mrf.mxu0
      %v1075 = vadd.f32 0.0, %v1074
      %1076 = vdwg.mxu0
      %v1077 = vadd.f32 %v983, %v1058
      %v1078 = vadd.f32 %v984, %v1060
      %v1079 = vadd.f32 %v985, %v1063
      %v1080 = vadd.f32 %v986, %v1065
      %v1081 = vadd.f32 %v987, %v1068
      %v1082 = vadd.f32 %v988, %v1070
      %v1083 = vadd.f32 %v989, %v1073
      %v1084 = vadd.f32 %v990, %v1075
      %v1085 = vld [vmem:[%s2] sm:$0x1]
      %v1086 = vld [vmem:[%s3] sm:$0x1]
      %v1087 = vld [vmem:[%s4] sm:$0xff]
      %v1088 = vld [vmem:[%s4 + $0x8] sm:$0xff]
      %v1089 = vld [vmem:[%s4 + $0x10] sm:$0xff]
      %v1090 = vld [vmem:[%s4 + $0x18] sm:$0xff]
      %v1091 = vld [vmem:[%s4 + $0x20] sm:$0xff]
      %v1092 = vld [vmem:[%s4 + $0x28] sm:$0xff]
      %v1093 = vld [vmem:[%s4 + $0x30] sm:$0xff]
      %v1094 = vld [vmem:[%s4 + $0x38] sm:$0xff]
      %v1095 = vld [vmem:[%s5] sm:$0xff]
      %v1096 = vld [vmem:[%s5 + $0x8] sm:$0xff]
      %v1097 = vld [vmem:[%s5 + $0x10] sm:$0xff]
      %v1098 = vld [vmem:[%s5 + $0x18] sm:$0xff]
      %v1099 = vsel %vm318, %v1077, 0.0
      %v1100 = vsel %vm318, %v1078, 0.0
      %v1101 = vadd.f32 %v1099, %v1100
      %v1102 = vsel %vm318, %v1079, 0.0
      %v1103 = vadd.f32 %v1101, %v1102
      %v1104 = vsel %vm318, %v1080, 0.0
      %v1105 = vadd.f32 %v1103, %v1104
      %v1106 = vsel %vm318, %v1081, 0.0
      %v1107 = vadd.f32 %v1105, %v1106
      %v1108 = vsel %vm318, %v1082, 0.0
      %v1109 = vadd.f32 %v1107, %v1108
      %v1110 = vsel %vm318, %v1083, 0.0
      %v1111 = vadd.f32 %v1109, %v1110
      %v1112 = vsel %vm318, %v1084, 0.0
      %v1113 = vadd.f32 %v1111, %v1112
      %v1114 = vrot.slane %v1113, 4
      %v1115 = vadd.f32 %v1113, %v1114
      %v1116 = vrot.slane %v1115, 2
      %v1117 = vadd.f32 %v1115, %v1116
      %v1118 = vrot.slane %v1117, 1
      %v1119 = vadd.f32 %v1117, %v1118
      %v1121 = vsel %vm318, %v1119, 0
      %1123 = vmatpush.msra.mxu0 0.0
      %1124 = vmatpush.msra.mxu0 0.0
      %1125 = vmatpush.msra.mxu0 0.0
      %1126 = vmatpush.msra.mxu0 0.0
      %1127 = vmatpush.msra.mxu0 0.0
      %1128 = vmatpush.msra.mxu0 0.0
      %1129 = vmatpush.msra.mxu0 0.0
      %1130 = vmatpush.msra.mxu0 0.0
      %1131 = vmatpush.msra.mxu0 %v1094
      %1132 = vmatpush.msra.mxu0 %v1093
      %1133 = vmatpush.msra.mxu0 %v1092
      %1134 = vmatpush.msra.mxu0 %v1091
      %1135 = vmatpush.msra.mxu0 %v1090
      %1136 = vmatpush.msra.mxu0 %v1089
      %1137 = vmatpush.msra.mxu0 %v1088
      %1138 = vmatpush.msra.mxu0 %v1087
      %1139 = vmatmul.f32.gmra.mxu0 %v1121
      %v1140 = vpop.f32.mrf.mxu0
      %v1141 = vadd.f32 0.0, %v1140
      %1142 = vdwg.mxu0
      %vm1143 = vcmask 261120
      %v1145 = vsel %vm1143, %v1141, 0
      %1147 = vmatpush.msra.mxu0 0.0
      %1148 = vmatpush.msra.mxu0 0.0
      %1149 = vmatpush.msra.mxu0 0.0
      %1150 = vmatpush.msra.mxu0 0.0
      %1151 = vmatpush.msra.mxu0 0.0
      %1152 = vmatpush.msra.mxu0 0.0
      %1153 = vmatpush.msra.mxu0 0.0
      %1154 = vmatpush.msra.mxu0 0.0
      %1155 = vmatpush.msra.mxu0 0.0
      %1156 = vmatpush.msra.mxu0 0.0
      %1157 = vmatpush.msra.mxu0 0.0
      %1158 = vmatpush.msra.mxu0 0.0
      %1159 = vmatpush.msra.mxu0 %v1098
      %1160 = vmatpush.msra.mxu0 %v1097
      %1161 = vmatpush.msra.mxu0 %v1096
      %1162 = vmatpush.msra.mxu0 %v1095
      %1163 = vmatmul.f32.gmra.mxu0 %v1145
      %v1164 = vpop.f32.mrf.mxu0
      %v1165 = vadd.f32 0.0, %v1164
      %1166 = vdwg.mxu0
      %v1167 = vrcp.pop 128.0
      %v1168 = vmul.f32 128.0, %v1167
      %v1169 = vsub.f32 1.0, %v1168
      %v1170 = vmul.f32 %v1167, %v1169
      %v1171 = vadd.f32 %v1167, %v1170
      %vm1172 = vweird.f32 %v1167
      %v1173 = vsel %vm1172, %v1167, %v1171
      %v1174 = vmul.f32 %v1165, %v1173
      %v1175 = vperm.slane %v1174, 0
      %v1176 = vsub.f32 %v1077, %v1175
      %v1177 = vsub.f32 %v1078, %v1175
      %v1178 = vsub.f32 %v1079, %v1175
      %v1179 = vsub.f32 %v1080, %v1175
      %v1180 = vsub.f32 %v1081, %v1175
      %v1181 = vsub.f32 %v1082, %v1175
      %v1182 = vsub.f32 %v1083, %v1175
      %v1183 = vsub.f32 %v1084, %v1175
      %v1184 = vmul.f32 %v1176, %v1176
      %v1185 = vmul.f32 %v1177, %v1177
      %v1186 = vmul.f32 %v1178, %v1178
      %v1187 = vmul.f32 %v1179, %v1179
      %v1188 = vmul.f32 %v1180, %v1180
      %v1189 = vmul.f32 %v1181, %v1181
      %v1190 = vmul.f32 %v1182, %v1182
      %v1191 = vmul.f32 %v1183, %v1183
      %v1192 = vsel %vm318, %v1184, 0.0
      %v1193 = vsel %vm318, %v1185, 0.0
      %v1194 = vadd.f32 %v1192, %v1193
      %v1195 = vsel %vm318, %v1186, 0.0
      %v1196 = vadd.f32 %v1194, %v1195
      %v1197 = vsel %vm318, %v1187, 0.0
      %v1198 = vadd.f32 %v1196, %v1197
      %v1199 = vsel %vm318, %v1188, 0.0
      %v1200 = vadd.f32 %v1198, %v1199
      %v1201 = vsel %vm318, %v1189, 0.0
      %v1202 = vadd.f32 %v1200, %v1201
      %v1203 = vsel %vm318, %v1190, 0.0
      %v1204 = vadd.f32 %v1202, %v1203
      %v1205 = vsel %vm318, %v1191, 0.0
      %v1206 = vadd.f32 %v1204, %v1205
      %v1207 = vrot.slane %v1206, 4
      %v1208 = vadd.f32 %v1206, %v1207
      %v1209 = vrot.slane %v1208, 2
      %v1210 = vadd.f32 %v1208, %v1209
      %v1211 = vrot.slane %v1210, 1
      %v1212 = vadd.f32 %v1210, %v1211
      %v1214 = vsel %vm318, %v1212, 0
      %1216 = vmatpush.msra.mxu0 0.0
      %1217 = vmatpush.msra.mxu0 0.0
      %1218 = vmatpush.msra.mxu0 0.0
      %1219 = vmatpush.msra.mxu0 0.0
      %1220 = vmatpush.msra.mxu0 0.0
      %1221 = vmatpush.msra.mxu0 0.0
      %1222 = vmatpush.msra.mxu0 0.0
      %1223 = vmatpush.msra.mxu0 0.0
      %1224 = vmatpush.msra.mxu0 %v1094
      %1225 = vmatpush.msra.mxu0 %v1093
      %1226 = vmatpush.msra.mxu0 %v1092
      %1227 = vmatpush.msra.mxu0 %v1091
      %1228 = vmatpush.msra.mxu0 %v1090
      %1229 = vmatpush.msra.mxu0 %v1089
      %1230 = vmatpush.msra.mxu0 %v1088
      %1231 = vmatpush.msra.mxu0 %v1087
      %1232 = vmatmul.f32.gmra.mxu0 %v1214
      %v1233 = vpop.f32.mrf.mxu0
      %v1234 = vadd.f32 0.0, %v1233
      %1235 = vdwg.mxu0
      %v1236 = vmul.f32 %v1234, %v1173
      %v1237 = vadd.f32 %v1236, 1e-05
      %v1238 = vrsqrt.pop %v1237
      %v1239 = vmul.f32 %v1238, %v1237
      %v1240 = vmul.f32 %v1239, %v1238
      %v1241 = vmul.f32 0.5, %v1240
      %v1242 = vsub.f32 1.5, %v1241
      %v1243 = vmul.f32 %v1238, %v1242
      %vm1244 = vweird.f32 %v1237
      %vm1245 = vweird.f32 %v1238
      %vm1246 = vmor %vm1244, %vm1245
      %v1247 = vsel %vm1246, %v1238, %v1243
      %v1249 = vsel %vm1143, %v1247, 0
      %1251 = vmatpush.msra.mxu0 0.0
      %1252 = vmatpush.msra.mxu0 0.0
      %1253 = vmatpush.msra.mxu0 0.0
      %1254 = vmatpush.msra.mxu0 0.0
      %1255 = vmatpush.msra.mxu0 0.0
      %1256 = vmatpush.msra.mxu0 0.0
      %1257 = vmatpush.msra.mxu0 0.0
      %1258 = vmatpush.msra.mxu0 0.0
      %1259 = vmatpush.msra.mxu0 0.0
      %1260 = vmatpush.msra.mxu0 0.0
      %1261 = vmatpush.msra.mxu0 0.0
      %1262 = vmatpush.msra.mxu0 0.0
      %1263 = vmatpush.msra.mxu0 %v1098
      %1264 = vmatpush.msra.mxu0 %v1097
      %1265 = vmatpush.msra.mxu0 %v1096
      %1266 = vmatpush.msra.mxu0 %v1095
      %1267 = vmatmul.f32.gmra.mxu0 %v1249
      %v1268 = vpop.f32.mrf.mxu0
      %v1269 = vadd.f32 0.0, %v1268
      %1270 = vdwg.mxu0
      %v1271 = vperm.slane %v1269, 0
      %v1272 = vmul.f32 %v1176, %v1271
      %v1273 = vmul.f32 %v1177, %v1271
      %v1274 = vmul.f32 %v1178, %v1271
      %v1275 = vmul.f32 %v1179, %v1271
      %v1276 = vmul.f32 %v1180, %v1271
      %v1277 = vmul.f32 %v1181, %v1271
      %v1278 = vmul.f32 %v1182, %v1271
      %v1279 = vmul.f32 %v1183, %v1271
      %v1281 = vperm.slane %v1085, 0
      %v1283 = vmul.f32 %v1272, %v1281
      %v1284 = vmul.f32 %v1273, %v1281
      %v1285 = vmul.f32 %v1274, %v1281
      %v1286 = vmul.f32 %v1275, %v1281
      %v1287 = vmul.f32 %v1276, %v1281
      %v1288 = vmul.f32 %v1277, %v1281
      %v1289 = vmul.f32 %v1278, %v1281
      %v1290 = vmul.f32 %v1279, %v1281
      %v1292 = vperm.slane %v1086, 0
      %v1294 = vadd.f32 %v1283, %v1292
      %v1295 = vadd.f32 %v1284, %v1292
      %v1296 = vadd.f32 %v1285, %v1292
      %v1297 = vadd.f32 %v1286, %v1292
      %v1298 = vadd.f32 %v1287, %v1292
      %v1299 = vadd.f32 %v1288, %v1292
      %v1300 = vadd.f32 %v1289, %v1292
      %v1301 = vadd.f32 %v1290, %v1292
      %v1302 = vmax.f32 %v1294, 0.0
      %v1303 = vmax.f32 %v1295, 0.0
      %v1304 = vmax.f32 %v1296, 0.0
      %v1305 = vmax.f32 %v1297, 0.0
      %v1306 = vmax.f32 %v1298, 0.0
      %v1307 = vmax.f32 %v1299, 0.0
      %v1308 = vmax.f32 %v1300, 0.0
      %v1309 = vmax.f32 %v1301, 0.0
      %v1310 = vpack.c.bf16 %v1302, %v1302
      %v1311 = vpack.c.bf16 %v1303, %v1303
      %v1312 = vpack.c.bf16 %v1304, %v1304
      %v1313 = vpack.c.bf16 %v1305, %v1305
      %v1314 = vpack.c.bf16 %v1306, %v1306
      %v1315 = vpack.c.bf16 %v1307, %v1307
      %v1316 = vpack.c.bf16 %v1308, %v1308
      %v1317 = vpack.c.bf16 %v1309, %v1309
      %vm1318 = vcmask 519168
      %1319 = vst.msk [vmem:[%s251] sm:$0xf] %vm1318, %v1310
      %1320 = vst.msk [vmem:[%s251 + $0x4] sm:$0xf] %vm1318, %v1311
      %1321 = vst.msk [vmem:[%s251 + $0x8] sm:$0xf] %vm1318, %v1312
      %1322 = vst.msk [vmem:[%s251 + $0xc] sm:$0xf] %vm1318, %v1313
      %1323 = vst.msk [vmem:[%s251 + $0x10] sm:$0xf] %vm1318, %v1314
      %1324 = vst.msk [vmem:[%s251 + $0x14] sm:$0xf] %vm1318, %v1315
      %1325 = vst.msk [vmem:[%s251 + $0x18] sm:$0xf] %vm1318, %v1316
      %1326 = vst.msk [vmem:[%s251 + $0x1c] sm:$0xf] %vm1318, %v1317
      %p1327 = scmp.lt.s32.totalorder %s17, 1
      %s1328 = scalar_select %p1327, %s17, 1
      %s1329 = smul.addr %s1328, 8
      %s1330 = smul.addr %s1329, 4
      %s1331 = scalar_lea.vmem %s6, %s1330
      // Predicated region
      $region45: #{_lambda_.12} parent=43 // pred_check
        %p1332 = pneg %p166
      $region46: #{_lambda_.12} parent=43 // pred_check_branch
        %1334 = sbr.rel (%p1332) target = $region48
      $region47: #{_lambda_.12} parent=43 // pred_region
        _
      $region48: #{_lambda_.12} parent=43 // pred_fallthru
        _
    $region44: #{_lambda_.12} parent=5 // pred_fallthru
      _
    %p1335 = scmp.le.s32.totalorder 2, %s12
    // Predicated region
    $region49: #{_lambda_.12} parent=5 // pred_check
      %p1336 = pneg %p1335
    $region50: #{_lambda_.12} parent=5 // pred_check_branch
      %1338 = sbr.rel (%p1336) target = $region52
    $region51: #{_lambda_.12} parent=5 // pred_region
      %s1339 = ssub.s32 %s12, 2
      // Predicated region
      $region53: #{_lambda_.12} parent=51 // pred_check
        %p1340 = pneg %p172
      $region54: #{_lambda_.12} parent=51 // pred_check_branch
        %1342 = sbr.rel (%p1340) target = $region56
      $region55: #{_lambda_.12} parent=51 // pred_region
        %p1343 = scmp.lt.s32.totalorder %s18, 1
        %s1344 = scalar_select %p1343, %s18, 1
        %s1345 = smul.addr %s1344, 8
        %s1346 = smul.addr %s1345, 4
        %s1347 = scalar_lea.vmem %s6, %s1346
      $region56: #{_lambda_.12} parent=51 // pred_fallthru
        _
    $region52: #{_lambda_.12} parent=5 // pred_fallthru
      _
  $region6: #{_lambda_.12} parent=0 // loop_footer
    %s16 = sadd.s32 1, %s12
  $region7: #{_lambda_.12} parent=0 // loop_footer_branch
    %11 = sbr.rel target = $region3
  $region8: #{_lambda_.12} parent=0 // loop_exit
    _

</llo_original>
